<compile_context>
chip_gen: v7x
topology: tpu7x:2x2x1
jax: 0.10.0
libtpu: 0.0.40
codegen_flags: <defaults>
</compile_context>

<pallas_src>
import functools

import jax
import jax.numpy as jnp
from jax.experimental import pallas as pl
from jax.experimental.pallas import tpu as pltpu

EPS = 1e-5
LANES = 128


def _round_up(v, m):
    return (v + m - 1) // m * m


# ---------------------------------------------------------------------------
# In-kernel helpers
# ---------------------------------------------------------------------------
def _im2col(xp, ksize, hh, ww):
    """(H+2p, W+2p, C) f32 value -> (H*W, K*K*C) bf16 patches, built in VMEM."""
    c = xp.shape[-1]
    cols = [xp[kh:kh + hh, kw:kw + ww, :].reshape(hh * ww, c)
            for kh in range(ksize) for kw in range(ksize)]
    return jnp.concatenate(cols, axis=-1).astype(jnp.bfloat16)


def _accumulate_stats(stats_ref, acc):
    """Accumulate per-channel (sum, sumsq) into a grid-resident (2, C) output."""
    @pl.when(pl.program_id(0) == 0)
    def _():
        stats_ref[...] = jnp.zeros_like(stats_ref)
    stats_ref[...] += jnp.concatenate(
        [jnp.sum(acc, axis=0, keepdims=True),
         jnp.sum(acc * acc, axis=0, keepdims=True)], axis=0)


def _bn_scale_shift(stats_ref, g_ref, be_ref, inv_count):
    mean = stats_ref[0:1, :] * inv_count
    var = jnp.maximum(stats_ref[1:2, :] * inv_count - mean * mean, 0.0)
    scale = g_ref[...] * jax.lax.rsqrt(var + EPS)
    shift = be_ref[...] - mean * scale
    return scale, shift


# ---------------------------------------------------------------------------
# Pallas kernels
# ---------------------------------------------------------------------------
def _conv1_kernel(xpad_ref, w_ref, b_ref, y_ref, stats_ref, *, ksize, hh, ww):
    """conv1(5x5)+bias for one image; accumulate BN1 sum/sumsq across the grid."""
    hp, wp, cin = xpad_ref.shape[1:]
    xp = xpad_ref[...].reshape(hp, wp, cin)
    patches = _im2col(xp, ksize, hh, ww)                       # (HW, KK*Cin) bf16
    acc = jnp.dot(patches, w_ref[...],
                  preferred_element_type=jnp.float32) + b_ref[...]
    y_ref[...] = acc.reshape(1, hh, ww, -1)
    _accumulate_stats(stats_ref, acc)


def _bn1_relu_conv2_kernel(y1_ref, stats1_ref, g1_ref, be1_ref, w_ref, b_ref,
                           y2_ref, stats2_ref, pad_scr,
                           *, ksize, hh, ww, inv_count):
    """BN1 + ReLU on the resident tile, halo-pad in VMEM, conv2 + BN2 partial stats."""
    cin = y1_ref.shape[-1]
    p = (ksize - 1) // 2
    scale, shift = _bn_scale_shift(stats1_ref, g1_ref, be1_ref, inv_count)
    a = jnp.maximum(y1_ref[...].reshape(hh * ww, cin) * scale + shift, 0.0)

    pad_scr[...] = jnp.zeros_like(pad_scr)                     # zero halo border
    pad_scr[p:p + hh, p:p + ww, :] = a.reshape(hh, ww, cin)

    patches = _im2col(pad_scr[...], ksize, hh, ww)
    acc = jnp.dot(patches, w_ref[...],
                  preferred_element_type=jnp.float32) + b_ref[...]
    y2_ref[...] = acc.reshape(1, hh, ww, -1)
    _accumulate_stats(stats2_ref, acc)


def _bn2_shortcut_kernel(*refs, project, inv_count, ksize, hh, ww):
    """BN2 + shortcut (1x1 conv matmul or identity add) + residual sum."""
    if project:
        y2_ref, stats2_ref, g2_ref, be2_ref, xpad_ref, wsc_ref, o_ref = refs
    else:
        y2_ref, stats2_ref, g2_ref, be2_ref, xpad_ref, o_ref = refs
    p = (ksize - 1) // 2
    c2 = y2_ref.shape[-1]
    scale, shift = _bn_scale_shift(stats2_ref, g2_ref, be2_ref, inv_count)
    y = y2_ref[...].reshape(hh * ww, c2) * scale + shift

    hp, wp, c1 = xpad_ref.shape[1:]
    xin = xpad_ref[...].reshape(hp, wp, c1)[p:p + hh, p:p + ww, :]
    xin = xin.reshape(hh * ww, c1)
    if project:
        short = jnp.dot(xin.astype(jnp.bfloat16), wsc_ref[...],
                        preferred_element_type=jnp.float32)
    else:                                   # identity shortcut: plain VPU add
        short = xin
    o_ref[...] = (y + short).reshape(1, hh, ww, c2).astype(o_ref.dtype)


# ---------------------------------------------------------------------------
# Wrapper (layout plumbing + pallas_call plumbing)
# ---------------------------------------------------------------------------
@functools.partial(jax.jit, static_argnames=("ksize",))
def resblock_pallas(x, params, ksize=5):
    """x: (N, H, W, dim1) float32 -> (N, H, W, dim2) float32."""
    n, h, w, c1 = x.shape
    pad = (ksize - 1) // 2
    kk = ksize * ksize
    hp, wp = h + 2 * pad, w + 2 * pad

    w1, b1, g1, be1 = params["w1"], params["b1"], params["g1"], params["be1"]
    w2, b2, g2, be2 = params["w2"], params["b2"], params["g2"], params["be2"]
    cm, c2 = w1.shape[-1], w2.shape[-1]
    project = "wsc" in params

    c1p, cmp_, c2p = (_round_up(c, LANES) for c in (c1, cm, c2))

    # Lane-dense channel padding (padded channels stay exactly zero end-to-end).
    xpad = jnp.pad(x, ((0, 0), (pad, pad), (pad, pad), (0, c1p - c1)))
    w1p = jnp.pad(w1, ((0, 0), (0, 0), (0, c1p - c1), (0, cmp_ - cm))
                  ).reshape(kk * c1p, cmp_).astype(jnp.bfloat16)
    w2p = jnp.pad(w2, ((0, 0), (0, 0), (0, cmp_ - cm), (0, c2p - c2))
                  ).reshape(kk * cmp_, c2p).astype(jnp.bfloat16)
    b1p = jnp.pad(b1, (0, cmp_ - cm)).reshape(1, cmp_)
    g1p = jnp.pad(g1, (0, cmp_ - cm), constant_values=1.0).reshape(1, cmp_)
    be1p = jnp.pad(be1, (0, cmp_ - cm)).reshape(1, cmp_)
    b2p = jnp.pad(b2, (0, c2p - c2)).reshape(1, c2p)
    g2p = jnp.pad(g2, (0, c2p - c2), constant_values=1.0).reshape(1, c2p)
    be2p = jnp.pad(be2, (0, c2p - c2)).reshape(1, c2p)

    inv_count = 1.0 / float(n * h * w)
    full2 = lambda i: (0, 0)

    # ---- kernel A: conv1 + BN1 partial stats -------------------------------
    y1, stats1 = pl.pallas_call(
        functools.partial(_conv1_kernel, ksize=ksize, hh=h, ww=w),
        grid=(n,),
        in_specs=[
            pl.BlockSpec((1, hp, wp, c1p), lambda i: (i, 0, 0, 0)),
            pl.BlockSpec((kk * c1p, cmp_), full2),
            pl.BlockSpec((1, cmp_), full2),
        ],
        out_specs=(
            pl.BlockSpec((1, h, w, cmp_), lambda i: (i, 0, 0, 0)),
            pl.BlockSpec((2, cmp_), full2),          # grid-resident accumulator
        ),
        out_shape=(
            jax.ShapeDtypeStruct((n, h, w, cmp_), jnp.float32),
            jax.ShapeDtypeStruct((2, cmp_), jnp.float32),
        ),
        compiler_params=pltpu.CompilerParams(dimension_semantics=("arbitrary",)),
        cost_estimate=pl.CostEstimate(
            flops=2 * n * h * w * kk * c1p * cmp_, transcendentals=0,
            bytes_accessed=4 * n * hp * wp * c1p + 2 * kk * c1p * cmp_
                           + 4 * n * h * w * cmp_),
    )(xpad, w1p, b1p)

    # ---- kernel B: BN1 + ReLU fused into conv2, + BN2 partial stats --------
    y2, stats2 = pl.pallas_call(
        functools.partial(_bn1_relu_conv2_kernel, ksize=ksize, hh=h, ww=w,
                          inv_count=inv_count),
        grid=(n,),
        in_specs=[
            pl.BlockSpec((1, h, w, cmp_), lambda i: (i, 0, 0, 0)),
            pl.BlockSpec((2, cmp_), full2),
            pl.BlockSpec((1, cmp_), full2),
            pl.BlockSpec((1, cmp_), full2),
            pl.BlockSpec((kk * cmp_, c2p), full2),
            pl.BlockSpec((1, c2p), full2),
        ],
        out_specs=(
            pl.BlockSpec((1, h, w, c2p), lambda i: (i, 0, 0, 0)),
            pl.BlockSpec((2, c2p), full2),
        ),
        out_shape=(
            jax.ShapeDtypeStruct((n, h, w, c2p), jnp.float32),
            jax.ShapeDtypeStruct((2, c2p), jnp.float32),
        ),
        scratch_shapes=[pltpu.VMEM((hp, wp, cmp_), jnp.float32)],
        compiler_params=pltpu.CompilerParams(dimension_semantics=("arbitrary",)),
        cost_estimate=pl.CostEstimate(
            flops=2 * n * h * w * kk * cmp_ * c2p, transcendentals=0,
            bytes_accessed=4 * n * h * w * cmp_ + 2 * kk * cmp_ * c2p
                           + 4 * n * h * w * c2p),
    )(y1, stats1, g1p, be1p, w2p, b2p)

    # ---- kernel C: BN2 + shortcut + residual add ----------------------------
    in_specs = [
        pl.BlockSpec((1, h, w, c2p), lambda i: (i, 0, 0, 0)),
        pl.BlockSpec((2, c2p), full2),
        pl.BlockSpec((1, c2p), full2),
        pl.BlockSpec((1, c2p), full2),
        pl.BlockSpec((1, hp, wp, c1p), lambda i: (i, 0, 0, 0)),
    ]
    args = [y2, stats2, g2p, be2p, xpad]
    if project:
        wscp = jnp.pad(params["wsc"], ((0, c1p - c1), (0, c2p - c2))
                       ).astype(jnp.bfloat16)
        in_specs.append(pl.BlockSpec((c1p, c2p), full2))
        args.append(wscp)

    out = pl.pallas_call(
        functools.partial(_bn2_shortcut_kernel, project=project,
                          inv_count=inv_count, ksize=ksize, hh=h, ww=w),
        grid=(n,),
        in_specs=in_specs,
        out_specs=pl.BlockSpec((1, h, w, c2p), lambda i: (i, 0, 0, 0)),
        out_shape=jax.ShapeDtypeStruct((n, h, w, c2p), jnp.float32),
        compiler_params=pltpu.CompilerParams(dimension_semantics=("parallel",)),
    )(*args)

    return out[..., :c2]


# ---------------------------------------------------------------------------
# Deterministic parameter init (shapes from ResBlock.__init__)
# ---------------------------------------------------------------------------
def init_params(key, dim1, dim2, r=2, ksize=5):
    cm = dim1 // r
    ks = jax.random.split(key, 9)
    p = {
        "w1": 0.1 * jax.random.normal(ks[0], (ksize, ksize, dim1, cm), jnp.float32),
        "b1": 0.1 * jax.random.normal(ks[1], (cm,), jnp.float32),
        "g1": 1.0 + 0.1 * jax.random.normal(ks[2], (cm,), jnp.float32),
        "be1": 0.1 * jax.random.normal(ks[3], (cm,), jnp.float32),
        "w2": 0.1 * jax.random.normal(ks[4], (ksize, ksize, cm, dim2), jnp.float32),
        "b2": 0.1 * jax.random.normal(ks[5], (dim2,), jnp.float32),
        "g2": 1.0 + 0.1 * jax.random.normal(ks[6], (dim2,), jnp.float32),
        "be2": 0.1 * jax.random.normal(ks[7], (dim2,), jnp.float32),
    }
    if dim1 != dim2:  # nn.Identity() shortcut otherwise -> no projection weight
        p["wsc"] = 0.1 * jax.random.normal(ks[8], (dim1, dim2), jnp.float32)
    return p


# Pure-JAX reference (matches the PyTorch forward, in NHWC), full-f32 precision.
def resblock_reference(x, params):
    hi = jax.lax.Precision.HIGHEST

    def conv(xx, ww, bb):
        y = jax.lax.conv_general_dilated(
            xx, ww, window_strides=(1, 1), padding="SAME",
            dimension_numbers=("NHWC", "HWIO", "NHWC"), precision=hi)
        return y + bb

    def bn(y, g, b):
        mean = jnp.mean(y, axis=(0, 1, 2), keepdims=True)
        var = jnp.mean((y - mean) ** 2, axis=(0, 1, 2), keepdims=True)
        return (y - mean) * jax.lax.rsqrt(var + EPS) * g + b

    h = jnp.maximum(bn(conv(x, params["w1"], params["b1"]),
                       params["g1"], params["be1"]), 0.0)
    y = bn(conv(h, params["w2"], params["b2"]), params["g2"], params["be2"])
    if "wsc" in params:
        sc = jnp.einsum("nhwc,cd->nhwd", x, params["wsc"], precision=hi)
    else:
        sc = x
    return y + sc


if __name__ == "__main__":
    key = jax.random.PRNGKey(0)
    kx, kp = jax.random.split(key)

    dim1, dim2, r, ksize = 4, 8, 2, 5
    n, hh, ww = 2, 16, 16  # PyTorch-equivalent input would be NCHW (2, 4, 16, 16)

    x = jax.random.normal(kx, (n, hh, ww, dim1), jnp.float32)
    params = init_params(kp, dim1, dim2, r=r, ksize=ksize)

    out = resblock_pallas(x, params, ksize=ksize)
    jax.block_until_ready(out)

    assert out.shape == (n, hh, ww, dim2)
    ref = resblock_reference(x, params)
    # Tolerance sized for bf16 MXU inputs (f32 accumulation) vs. a full-f32 reference.
    err = float(jnp.max(jnp.abs(out - ref)))
    assert jnp.allclose(out, ref, atol=5e-2, rtol=5e-2), err

    print("KERNEL_OK")
</pallas_src>

<mosaic_0001>
module attributes {stable_mosaic.version = 11 : i64} {
  func.func @_conv1_kernel(%arg0: i32, %arg1: memref<1x20x20x128xf32, #tpu.memory_space<vmem>>, %arg2: memref<3200x128xbf16, #tpu.memory_space<vmem>>, %arg3: memref<1x128xf32, #tpu.memory_space<vmem>>, %arg4: memref<1x16x16x128xf32, #tpu.memory_space<vmem>>, %arg5: memref<2x128xf32, #tpu.memory_space<vmem>>) attributes {dimension_semantics = [#tpu.dimension_semantics<arbitrary>], iteration_bounds = array<i64: 2>, scalar_prefetch = 0 : i64, scratch_operands = 0 : i64, tpu.core_type = #tpu.core_type<tc>, window_params = [{transform_indices = @transform_0, window_bounds = array<i64: 1, 20, 20, 128>}, {pipeline_mode = #tpu.pipeline_mode<synchronous>, transform_indices = @transform_1, window_bounds = array<i64: 3200, 128>}, {pipeline_mode = #tpu.pipeline_mode<synchronous>, transform_indices = @transform_2, window_bounds = array<i64: 1, 128>}, {transform_indices = @transform_3, window_bounds = array<i64: 1, 16, 16, 128>}, {pipeline_mode = #tpu.pipeline_mode<synchronous>, transform_indices = @transform_4, window_bounds = array<i64: 2, 128>}]} {
    %c0 = arith.constant 0 : index
    %c0_0 = arith.constant 0 : index
    %c0_1 = arith.constant 0 : index
    %c0_2 = arith.constant 0 : index
    %0 = vector.load %arg1[%c0, %c0_0, %c0_1, %c0_2] : memref<1x20x20x128xf32, #tpu.memory_space<vmem>>, vector<1x20x20x128xf32>
    %1 = vector.shape_cast %0 : vector<1x20x20x128xf32> to vector<20x20x128xf32>
    %2 = vector.extract_strided_slice %1 {offsets = [0, 0, 0], sizes = [16, 16, 128], strides = [1, 1, 1]} : vector<20x20x128xf32> to vector<16x16x128xf32>
    %3 = vector.shape_cast %2 : vector<16x16x128xf32> to vector<256x128xf32>
    %4 = vector.extract_strided_slice %1 {offsets = [0, 1, 0], sizes = [16, 16, 128], strides = [1, 1, 1]} : vector<20x20x128xf32> to vector<16x16x128xf32>
    %5 = vector.shape_cast %4 : vector<16x16x128xf32> to vector<256x128xf32>
    %6 = vector.extract_strided_slice %1 {offsets = [0, 2, 0], sizes = [16, 16, 128], strides = [1, 1, 1]} : vector<20x20x128xf32> to vector<16x16x128xf32>
    %7 = vector.shape_cast %6 : vector<16x16x128xf32> to vector<256x128xf32>
    %8 = vector.extract_strided_slice %1 {offsets = [0, 3, 0], sizes = [16, 16, 128], strides = [1, 1, 1]} : vector<20x20x128xf32> to vector<16x16x128xf32>
    %9 = vector.shape_cast %8 : vector<16x16x128xf32> to vector<256x128xf32>
    %10 = vector.extract_strided_slice %1 {offsets = [0, 4, 0], sizes = [16, 16, 128], strides = [1, 1, 1]} : vector<20x20x128xf32> to vector<16x16x128xf32>
    %11 = vector.shape_cast %10 : vector<16x16x128xf32> to vector<256x128xf32>
    %12 = vector.extract_strided_slice %1 {offsets = [1, 0, 0], sizes = [16, 16, 128], strides = [1, 1, 1]} : vector<20x20x128xf32> to vector<16x16x128xf32>
    %13 = vector.shape_cast %12 : vector<16x16x128xf32> to vector<256x128xf32>
    %14 = vector.extract_strided_slice %1 {offsets = [1, 1, 0], sizes = [16, 16, 128], strides = [1, 1, 1]} : vector<20x20x128xf32> to vector<16x16x128xf32>
    %15 = vector.shape_cast %14 : vector<16x16x128xf32> to vector<256x128xf32>
    %16 = vector.extract_strided_slice %1 {offsets = [1, 2, 0], sizes = [16, 16, 128], strides = [1, 1, 1]} : vector<20x20x128xf32> to vector<16x16x128xf32>
    %17 = vector.shape_cast %16 : vector<16x16x128xf32> to vector<256x128xf32>
    %18 = vector.extract_strided_slice %1 {offsets = [1, 3, 0], sizes = [16, 16, 128], strides = [1, 1, 1]} : vector<20x20x128xf32> to vector<16x16x128xf32>
    %19 = vector.shape_cast %18 : vector<16x16x128xf32> to vector<256x128xf32>
    %20 = vector.extract_strided_slice %1 {offsets = [1, 4, 0], sizes = [16, 16, 128], strides = [1, 1, 1]} : vector<20x20x128xf32> to vector<16x16x128xf32>
    %21 = vector.shape_cast %20 : vector<16x16x128xf32> to vector<256x128xf32>
    %22 = vector.extract_strided_slice %1 {offsets = [2, 0, 0], sizes = [16, 16, 128], strides = [1, 1, 1]} : vector<20x20x128xf32> to vector<16x16x128xf32>
    %23 = vector.shape_cast %22 : vector<16x16x128xf32> to vector<256x128xf32>
    %24 = vector.extract_strided_slice %1 {offsets = [2, 1, 0], sizes = [16, 16, 128], strides = [1, 1, 1]} : vector<20x20x128xf32> to vector<16x16x128xf32>
    %25 = vector.shape_cast %24 : vector<16x16x128xf32> to vector<256x128xf32>
    %26 = vector.extract_strided_slice %1 {offsets = [2, 2, 0], sizes = [16, 16, 128], strides = [1, 1, 1]} : vector<20x20x128xf32> to vector<16x16x128xf32>
    %27 = vector.shape_cast %26 : vector<16x16x128xf32> to vector<256x128xf32>
    %28 = vector.extract_strided_slice %1 {offsets = [2, 3, 0], sizes = [16, 16, 128], strides = [1, 1, 1]} : vector<20x20x128xf32> to vector<16x16x128xf32>
    %29 = vector.shape_cast %28 : vector<16x16x128xf32> to vector<256x128xf32>
    %30 = vector.extract_strided_slice %1 {offsets = [2, 4, 0], sizes = [16, 16, 128], strides = [1, 1, 1]} : vector<20x20x128xf32> to vector<16x16x128xf32>
    %31 = vector.shape_cast %30 : vector<16x16x128xf32> to vector<256x128xf32>
    %32 = vector.extract_strided_slice %1 {offsets = [3, 0, 0], sizes = [16, 16, 128], strides = [1, 1, 1]} : vector<20x20x128xf32> to vector<16x16x128xf32>
    %33 = vector.shape_cast %32 : vector<16x16x128xf32> to vector<256x128xf32>
    %34 = vector.extract_strided_slice %1 {offsets = [3, 1, 0], sizes = [16, 16, 128], strides = [1, 1, 1]} : vector<20x20x128xf32> to vector<16x16x128xf32>
    %35 = vector.shape_cast %34 : vector<16x16x128xf32> to vector<256x128xf32>
    %36 = vector.extract_strided_slice %1 {offsets = [3, 2, 0], sizes = [16, 16, 128], strides = [1, 1, 1]} : vector<20x20x128xf32> to vector<16x16x128xf32>
    %37 = vector.shape_cast %36 : vector<16x16x128xf32> to vector<256x128xf32>
    %38 = vector.extract_strided_slice %1 {offsets = [3, 3, 0], sizes = [16, 16, 128], strides = [1, 1, 1]} : vector<20x20x128xf32> to vector<16x16x128xf32>
    %39 = vector.shape_cast %38 : vector<16x16x128xf32> to vector<256x128xf32>
    %40 = vector.extract_strided_slice %1 {offsets = [3, 4, 0], sizes = [16, 16, 128], strides = [1, 1, 1]} : vector<20x20x128xf32> to vector<16x16x128xf32>
    %41 = vector.shape_cast %40 : vector<16x16x128xf32> to vector<256x128xf32>
    %42 = vector.extract_strided_slice %1 {offsets = [4, 0, 0], sizes = [16, 16, 128], strides = [1, 1, 1]} : vector<20x20x128xf32> to vector<16x16x128xf32>
    %43 = vector.shape_cast %42 : vector<16x16x128xf32> to vector<256x128xf32>
    %44 = vector.extract_strided_slice %1 {offsets = [4, 1, 0], sizes = [16, 16, 128], strides = [1, 1, 1]} : vector<20x20x128xf32> to vector<16x16x128xf32>
    %45 = vector.shape_cast %44 : vector<16x16x128xf32> to vector<256x128xf32>
    %46 = vector.extract_strided_slice %1 {offsets = [4, 2, 0], sizes = [16, 16, 128], strides = [1, 1, 1]} : vector<20x20x128xf32> to vector<16x16x128xf32>
    %47 = vector.shape_cast %46 : vector<16x16x128xf32> to vector<256x128xf32>
    %48 = vector.extract_strided_slice %1 {offsets = [4, 3, 0], sizes = [16, 16, 128], strides = [1, 1, 1]} : vector<20x20x128xf32> to vector<16x16x128xf32>
    %49 = vector.shape_cast %48 : vector<16x16x128xf32> to vector<256x128xf32>
    %50 = vector.extract_strided_slice %1 {offsets = [4, 4, 0], sizes = [16, 16, 128], strides = [1, 1, 1]} : vector<20x20x128xf32> to vector<16x16x128xf32>
    %51 = vector.shape_cast %50 : vector<16x16x128xf32> to vector<256x128xf32>
    %52 = tpu.concatenate %3, %5, %7, %9, %11, %13, %15, %17, %19, %21, %23, %25, %27, %29, %31, %33 in 1 : vector<256x128xf32>, vector<256x128xf32>, vector<256x128xf32>, vector<256x128xf32>, vector<256x128xf32>, vector<256x128xf32>, vector<256x128xf32>, vector<256x128xf32>, vector<256x128xf32>, vector<256x128xf32>, vector<256x128xf32>, vector<256x128xf32>, vector<256x128xf32>, vector<256x128xf32>, vector<256x128xf32>, vector<256x128xf32> -> vector<256x2048xf32>
    %53 = tpu.concatenate %35, %37, %39, %41, %43, %45, %47, %49, %51 in 1 : vector<256x128xf32>, vector<256x128xf32>, vector<256x128xf32>, vector<256x128xf32>, vector<256x128xf32>, vector<256x128xf32>, vector<256x128xf32>, vector<256x128xf32>, vector<256x128xf32> -> vector<256x1152xf32>
    %54 = tpu.concatenate %52, %53 in 1 : vector<256x2048xf32>, vector<256x1152xf32> -> vector<256x3200xf32>
    %55 = arith.truncf %54 : vector<256x3200xf32> to vector<256x3200xbf16>
    %c0_3 = arith.constant 0 : index
    %c0_4 = arith.constant 0 : index
    %56 = vector.load %arg2[%c0_3, %c0_4] : memref<3200x128xbf16, #tpu.memory_space<vmem>>, vector<3200x128xbf16>
    %cst = arith.constant dense<0.000000e+00> : vector<256x128xf32>
    %57 = tpu.matmul %55, %56, %cst {dimension_numbers = #tpu.dot_dimension_numbers<[1], [0], [0], [1], [0, 0, 1, 1], [], []>} : vector<256x3200xbf16>, vector<3200x128xbf16>, vector<256x128xf32> -> vector<256x128xf32>
    %c0_5 = arith.constant 0 : index
    %c0_6 = arith.constant 0 : index
    %58 = vector.load %arg3[%c0_5, %c0_6] : memref<1x128xf32, #tpu.memory_space<vmem>>, vector<1x128xf32>
    %59 = vector.broadcast %58 : vector<1x128xf32> to vector<256x128xf32>
    %60 = arith.addf %57, %59 : vector<256x128xf32>
    %61 = vector.shape_cast %60 : vector<256x128xf32> to vector<1x16x16x128xf32>
    %c0_7 = arith.constant 0 : index
    %c0_8 = arith.constant 0 : index
    %c0_9 = arith.constant 0 : index
    %c0_10 = arith.constant 0 : index
    %62 = vector.load %arg4[%c0_7, %c0_8, %c0_9, %c0_10] : memref<1x16x16x128xf32, #tpu.memory_space<vmem>>, vector<1x16x16x128xf32>
    tpu.vector_store %arg4[%c0_7, %c0_8, %c0_9, %c0_10], %61 {strides = array<i32>} : memref<1x16x16x128xf32, #tpu.memory_space<vmem>>, vector<1x16x16x128xf32>,
    %c0_i32 = arith.constant 0 : i32
    %63 = arith.cmpi eq, %arg0, %c0_i32 : i32
    %64 = arith.extui %63 : i1 to i32
    %c0_i32_11 = arith.constant 0 : i32
    %65 = arith.cmpi ne, %64, %c0_i32_11 : i32
    scf.if %65 {
      %cst_18 = arith.constant 0.000000e+00 : f32
      %75 = vector.broadcast %cst_18 : f32 to vector<2x128xf32>
      %c0_19 = arith.constant 0 : index
      %c0_20 = arith.constant 0 : index
      %76 = vector.load %arg5[%c0_19, %c0_20] : memref<2x128xf32, #tpu.memory_space<vmem>>, vector<2x128xf32>
      tpu.vector_store %arg5[%c0_19, %c0_20], %75 {strides = array<i32>} : memref<2x128xf32, #tpu.memory_space<vmem>>, vector<2x128xf32>,
    } else {
    }
    %c0_12 = arith.constant 0 : index
    %c0_13 = arith.constant 0 : index
    %66 = vector.load %arg5[%c0_12, %c0_13] : memref<2x128xf32, #tpu.memory_space<vmem>>, vector<2x128xf32>
    %cst_14 = arith.constant dense<0.000000e+00> : vector<128xf32>
    %67 = vector.multi_reduction <add>, %60, %cst_14 [0] : vector<256x128xf32> to vector<128xf32>
    %68 = vector.shape_cast %67 : vector<128xf32> to vector<1x128xf32>
    %69 = arith.mulf %60, %60 : vector<256x128xf32>
    %cst_15 = arith.constant dense<0.000000e+00> : vector<128xf32>
    %70 = vector.multi_reduction <add>, %69, %cst_15 [0] : vector<256x128xf32> to vector<128xf32>
    %71 = vector.shape_cast %70 : vector<128xf32> to vector<1x128xf32>
    %72 = tpu.concatenate %68, %71 in 0 : vector<1x128xf32>, vector<1x128xf32> -> vector<2x128xf32>
    %73 = arith.addf %66, %72 : vector<2x128xf32>
    %c0_16 = arith.constant 0 : index
    %c0_17 = arith.constant 0 : index
    %74 = vector.load %arg5[%c0_16, %c0_17] : memref<2x128xf32, #tpu.memory_space<vmem>>, vector<2x128xf32>
    tpu.vector_store %arg5[%c0_16, %c0_17], %73 {strides = array<i32>} : memref<2x128xf32, #tpu.memory_space<vmem>>, vector<2x128xf32>,
    return
  }
  func.func @transform_0(%arg0: i32) -> (i32, i32, i32, i32) {
    %c0_i32 = arith.constant 0 : i32
    %c0_i32_0 = arith.constant 0 : i32
    %c0_i32_1 = arith.constant 0 : i32
    %c0_i32_2 = arith.constant 0 : i32
    return %arg0, %c0_i32, %c0_i32_0, %c0_i32_1 : i32, i32, i32, i32
  }
  func.func @transform_1(%arg0: i32) -> (i32, i32) {
    %c0_i32 = arith.constant 0 : i32
    %c0_i32_0 = arith.constant 0 : i32
    %c0_i32_1 = arith.constant 0 : i32
    return %c0_i32, %c0_i32_0 : i32, i32
  }
  func.func @transform_2(%arg0: i32) -> (i32, i32) {
    %c0_i32 = arith.constant 0 : i32
    %c0_i32_0 = arith.constant 0 : i32
    %c0_i32_1 = arith.constant 0 : i32
    return %c0_i32, %c0_i32_0 : i32, i32
  }
  func.func @transform_3(%arg0: i32) -> (i32, i32, i32, i32) {
    %c0_i32 = arith.constant 0 : i32
    %c0_i32_0 = arith.constant 0 : i32
    %c0_i32_1 = arith.constant 0 : i32
    %c0_i32_2 = arith.constant 0 : i32
    return %arg0, %c0_i32, %c0_i32_0, %c0_i32_1 : i32, i32, i32, i32
  }
  func.func @transform_4(%arg0: i32) -> (i32, i32) {
    %c0_i32 = arith.constant 0 : i32
    %c0_i32_0 = arith.constant 0 : i32
    %c0_i32_1 = arith.constant 0 : i32
    return %c0_i32, %c0_i32_0 : i32, i32
  }
}

module attributes {stable_mosaic.version = 11 : i64} {
  func.func @_bn1_relu_conv2_kernel(%arg0: i32, %arg1: memref<1x16x16x128xf32, #tpu.memory_space<vmem>>, %arg2: memref<2x128xf32, #tpu.memory_space<vmem>>, %arg3: memref<1x128xf32, #tpu.memory_space<vmem>>, %arg4: memref<1x128xf32, #tpu.memory_space<vmem>>, %arg5: memref<3200x128xbf16, #tpu.memory_space<vmem>>, %arg6: memref<1x128xf32, #tpu.memory_space<vmem>>, %arg7: memref<1x16x16x128xf32, #tpu.memory_space<vmem>>, %arg8: memref<2x128xf32, #tpu.memory_space<vmem>>, %arg9: memref<20x20x128xf32, #tpu.memory_space<vmem>>) attributes {dimension_semantics = [#tpu.dimension_semantics<arbitrary>], iteration_bounds = array<i64: 2>, scalar_prefetch = 0 : i64, scratch_operands = 1 : i64, tpu.core_type = #tpu.core_type<tc>, window_params = [{transform_indices = @transform_0, window_bounds = array<i64: 1, 16, 16, 128>}, {pipeline_mode = #tpu.pipeline_mode<synchronous>, transform_indices = @transform_1, window_bounds = array<i64: 2, 128>}, {pipeline_mode = #tpu.pipeline_mode<synchronous>, transform_indices = @transform_2, window_bounds = array<i64: 1, 128>}, {pipeline_mode = #tpu.pipeline_mode<synchronous>, transform_indices = @transform_3, window_bounds = array<i64: 1, 128>}, {pipeline_mode = #tpu.pipeline_mode<synchronous>, transform_indices = @transform_4, window_bounds = array<i64: 3200, 128>}, {pipeline_mode = #tpu.pipeline_mode<synchronous>, transform_indices = @transform_5, window_bounds = array<i64: 1, 128>}, {transform_indices = @transform_6, window_bounds = array<i64: 1, 16, 16, 128>}, {pipeline_mode = #tpu.pipeline_mode<synchronous>, transform_indices = @transform_7, window_bounds = array<i64: 2, 128>}]} {
    %c0 = arith.constant 0 : index
    %c0_0 = arith.constant 0 : index
    %0 = vector.load %arg2[%c0, %c0_0] : memref<2x128xf32, #tpu.memory_space<vmem>>, vector<1x128xf32>
    %cst = arith.constant 0.001953125 : f32
    %1 = vector.broadcast %cst : f32 to vector<1x128xf32>
    %2 = arith.mulf %0, %1 : vector<1x128xf32>
    %c1 = arith.constant 1 : index
    %c0_1 = arith.constant 0 : index
    %3 = vector.load %arg2[%c1, %c0_1] : memref<2x128xf32, #tpu.memory_space<vmem>>, vector<1x128xf32>
    %cst_2 = arith.constant 0.001953125 : f32
    %4 = vector.broadcast %cst_2 : f32 to vector<1x128xf32>
    %5 = arith.mulf %3, %4 : vector<1x128xf32>
    %6 = arith.mulf %2, %2 : vector<1x128xf32>
    %7 = arith.subf %5, %6 : vector<1x128xf32>
    %cst_3 = arith.constant 0.000000e+00 : f32
    %8 = vector.broadcast %cst_3 : f32 to vector<1x128xf32>
    %9 = arith.maximumf %7, %8 : vector<1x128xf32>
    %c0_4 = arith.constant 0 : index
    %c0_5 = arith.constant 0 : index
    %10 = vector.load %arg3[%c0_4, %c0_5] : memref<1x128xf32, #tpu.memory_space<vmem>>, vector<1x128xf32>
    %cst_6 = arith.constant 9.99999974E-6 : f32
    %11 = vector.broadcast %cst_6 : f32 to vector<1x128xf32>
    %12 = arith.addf %9, %11 : vector<1x128xf32>
    %13 = math.rsqrt %12 : vector<1x128xf32>
    %14 = arith.mulf %10, %13 : vector<1x128xf32>
    %c0_7 = arith.constant 0 : index
    %c0_8 = arith.constant 0 : index
    %15 = vector.load %arg4[%c0_7, %c0_8] : memref<1x128xf32, #tpu.memory_space<vmem>>, vector<1x128xf32>
    %16 = arith.mulf %2, %14 : vector<1x128xf32>
    %17 = arith.subf %15, %16 : vector<1x128xf32>
    %c0_9 = arith.constant 0 : index
    %c0_10 = arith.constant 0 : index
    %c0_11 = arith.constant 0 : index
    %c0_12 = arith.constant 0 : index
    %18 = vector.load %arg1[%c0_9, %c0_10, %c0_11, %c0_12] : memref<1x16x16x128xf32, #tpu.memory_space<vmem>>, vector<1x16x16x128xf32>
    %19 = vector.shape_cast %18 : vector<1x16x16x128xf32> to vector<256x128xf32>
    %20 = vector.broadcast %14 : vector<1x128xf32> to vector<256x128xf32>
    %21 = arith.mulf %19, %20 : vector<256x128xf32>
    %22 = vector.broadcast %17 : vector<1x128xf32> to vector<256x128xf32>
    %23 = arith.addf %21, %22 : vector<256x128xf32>
    %cst_13 = arith.constant 0.000000e+00 : f32
    %24 = vector.broadcast %cst_13 : f32 to vector<256x128xf32>
    %25 = arith.maximumf %23, %24 : vector<256x128xf32>
    %cst_14 = arith.constant 0.000000e+00 : f32
    %26 = vector.broadcast %cst_14 : f32 to vector<20x20x128xf32>
    %c0_15 = arith.constant 0 : index
    %c0_16 = arith.constant 0 : index
    %c0_17 = arith.constant 0 : index
    %27 = vector.load %arg9[%c0_15, %c0_16, %c0_17] : memref<20x20x128xf32, #tpu.memory_space<vmem>>, vector<20x20x128xf32>
    tpu.vector_store %arg9[%c0_15, %c0_16, %c0_17], %26 {strides = array<i32>} : memref<20x20x128xf32, #tpu.memory_space<vmem>>, vector<20x20x128xf32>,
    %28 = vector.shape_cast %25 : vector<256x128xf32> to vector<16x16x128xf32>
    %c2 = arith.constant 2 : index
    %c2_18 = arith.constant 2 : index
    %c0_19 = arith.constant 0 : index
    %29 = vector.load %arg9[%c2, %c2_18, %c0_19] : memref<20x20x128xf32, #tpu.memory_space<vmem>>, vector<16x16x128xf32>
    tpu.vector_store %arg9[%c2, %c2_18, %c0_19], %28 {strides = array<i32>} : memref<20x20x128xf32, #tpu.memory_space<vmem>>, vector<16x16x128xf32>,
    %c0_20 = arith.constant 0 : index
    %c0_21 = arith.constant 0 : index
    %c0_22 = arith.constant 0 : index
    %30 = vector.load %arg9[%c0_20, %c0_21, %c0_22] : memref<20x20x128xf32, #tpu.memory_space<vmem>>, vector<20x20x128xf32>
    %31 = vector.extract_strided_slice %30 {offsets = [0, 0, 0], sizes = [16, 16, 128], strides = [1, 1, 1]} : vector<20x20x128xf32> to vector<16x16x128xf32>
    %32 = vector.shape_cast %31 : vector<16x16x128xf32> to vector<256x128xf32>
    %33 = vector.extract_strided_slice %30 {offsets = [0, 1, 0], sizes = [16, 16, 128], strides = [1, 1, 1]} : vector<20x20x128xf32> to vector<16x16x128xf32>
    %34 = vector.shape_cast %33 : vector<16x16x128xf32> to vector<256x128xf32>
    %35 = vector.extract_strided_slice %30 {offsets = [0, 2, 0], sizes = [16, 16, 128], strides = [1, 1, 1]} : vector<20x20x128xf32> to vector<16x16x128xf32>
    %36 = vector.shape_cast %35 : vector<16x16x128xf32> to vector<256x128xf32>
    %37 = vector.extract_strided_slice %30 {offsets = [0, 3, 0], sizes = [16, 16, 128], strides = [1, 1, 1]} : vector<20x20x128xf32> to vector<16x16x128xf32>
    %38 = vector.shape_cast %37 : vector<16x16x128xf32> to vector<256x128xf32>
    %39 = vector.extract_strided_slice %30 {offsets = [0, 4, 0], sizes = [16, 16, 128], strides = [1, 1, 1]} : vector<20x20x128xf32> to vector<16x16x128xf32>
    %40 = vector.shape_cast %39 : vector<16x16x128xf32> to vector<256x128xf32>
    %41 = vector.extract_strided_slice %30 {offsets = [1, 0, 0], sizes = [16, 16, 128], strides = [1, 1, 1]} : vector<20x20x128xf32> to vector<16x16x128xf32>
    %42 = vector.shape_cast %41 : vector<16x16x128xf32> to vector<256x128xf32>
    %43 = vector.extract_strided_slice %30 {offsets = [1, 1, 0], sizes = [16, 16, 128], strides = [1, 1, 1]} : vector<20x20x128xf32> to vector<16x16x128xf32>
    %44 = vector.shape_cast %43 : vector<16x16x128xf32> to vector<256x128xf32>
    %45 = vector.extract_strided_slice %30 {offsets = [1, 2, 0], sizes = [16, 16, 128], strides = [1, 1, 1]} : vector<20x20x128xf32> to vector<16x16x128xf32>
    %46 = vector.shape_cast %45 : vector<16x16x128xf32> to vector<256x128xf32>
    %47 = vector.extract_strided_slice %30 {offsets = [1, 3, 0], sizes = [16, 16, 128], strides = [1, 1, 1]} : vector<20x20x128xf32> to vector<16x16x128xf32>
    %48 = vector.shape_cast %47 : vector<16x16x128xf32> to vector<256x128xf32>
    %49 = vector.extract_strided_slice %30 {offsets = [1, 4, 0], sizes = [16, 16, 128], strides = [1, 1, 1]} : vector<20x20x128xf32> to vector<16x16x128xf32>
    %50 = vector.shape_cast %49 : vector<16x16x128xf32> to vector<256x128xf32>
    %51 = vector.extract_strided_slice %30 {offsets = [2, 0, 0], sizes = [16, 16, 128], strides = [1, 1, 1]} : vector<20x20x128xf32> to vector<16x16x128xf32>
    %52 = vector.shape_cast %51 : vector<16x16x128xf32> to vector<256x128xf32>
    %53 = vector.extract_strided_slice %30 {offsets = [2, 1, 0], sizes = [16, 16, 128], strides = [1, 1, 1]} : vector<20x20x128xf32> to vector<16x16x128xf32>
    %54 = vector.shape_cast %53 : vector<16x16x128xf32> to vector<256x128xf32>
    %55 = vector.extract_strided_slice %30 {offsets = [2, 2, 0], sizes = [16, 16, 128], strides = [1, 1, 1]} : vector<20x20x128xf32> to vector<16x16x128xf32>
    %56 = vector.shape_cast %55 : vector<16x16x128xf32> to vector<256x128xf32>
    %57 = vector.extract_strided_slice %30 {offsets = [2, 3, 0], sizes = [16, 16, 128], strides = [1, 1, 1]} : vector<20x20x128xf32> to vector<16x16x128xf32>
    %58 = vector.shape_cast %57 : vector<16x16x128xf32> to vector<256x128xf32>
    %59 = vector.extract_strided_slice %30 {offsets = [2, 4, 0], sizes = [16, 16, 128], strides = [1, 1, 1]} : vector<20x20x128xf32> to vector<16x16x128xf32>
    %60 = vector.shape_cast %59 : vector<16x16x128xf32> to vector<256x128xf32>
    %61 = vector.extract_strided_slice %30 {offsets = [3, 0, 0], sizes = [16, 16, 128], strides = [1, 1, 1]} : vector<20x20x128xf32> to vector<16x16x128xf32>
    %62 = vector.shape_cast %61 : vector<16x16x128xf32> to vector<256x128xf32>
    %63 = vector.extract_strided_slice %30 {offsets = [3, 1, 0], sizes = [16, 16, 128], strides = [1, 1, 1]} : vector<20x20x128xf32> to vector<16x16x128xf32>
    %64 = vector.shape_cast %63 : vector<16x16x128xf32> to vector<256x128xf32>
    %65 = vector.extract_strided_slice %30 {offsets = [3, 2, 0], sizes = [16, 16, 128], strides = [1, 1, 1]} : vector<20x20x128xf32> to vector<16x16x128xf32>
    %66 = vector.shape_cast %65 : vector<16x16x128xf32> to vector<256x128xf32>
    %67 = vector.extract_strided_slice %30 {offsets = [3, 3, 0], sizes = [16, 16, 128], strides = [1, 1, 1]} : vector<20x20x128xf32> to vector<16x16x128xf32>
    %68 = vector.shape_cast %67 : vector<16x16x128xf32> to vector<256x128xf32>
    %69 = vector.extract_strided_slice %30 {offsets = [3, 4, 0], sizes = [16, 16, 128], strides = [1, 1, 1]} : vector<20x20x128xf32> to vector<16x16x128xf32>
    %70 = vector.shape_cast %69 : vector<16x16x128xf32> to vector<256x128xf32>
    %71 = vector.extract_strided_slice %30 {offsets = [4, 0, 0], sizes = [16, 16, 128], strides = [1, 1, 1]} : vector<20x20x128xf32> to vector<16x16x128xf32>
    %72 = vector.shape_cast %71 : vector<16x16x128xf32> to vector<256x128xf32>
    %73 = vector.extract_strided_slice %30 {offsets = [4, 1, 0], sizes = [16, 16, 128], strides = [1, 1, 1]} : vector<20x20x128xf32> to vector<16x16x128xf32>
    %74 = vector.shape_cast %73 : vector<16x16x128xf32> to vector<256x128xf32>
    %75 = vector.extract_strided_slice %30 {offsets = [4, 2, 0], sizes = [16, 16, 128], strides = [1, 1, 1]} : vector<20x20x128xf32> to vector<16x16x128xf32>
    %76 = vector.shape_cast %75 : vector<16x16x128xf32> to vector<256x128xf32>
    %77 = vector.extract_strided_slice %30 {offsets = [4, 3, 0], sizes = [16, 16, 128], strides = [1, 1, 1]} : vector<20x20x128xf32> to vector<16x16x128xf32>
    %78 = vector.shape_cast %77 : vector<16x16x128xf32> to vector<256x128xf32>
    %79 = vector.extract_strided_slice %30 {offsets = [4, 4, 0], sizes = [16, 16, 128], strides = [1, 1, 1]} : vector<20x20x128xf32> to vector<16x16x128xf32>
    %80 = vector.shape_cast %79 : vector<16x16x128xf32> to vector<256x128xf32>
    %81 = tpu.concatenate %32, %34, %36, %38, %40, %42, %44, %46, %48, %50, %52, %54, %56, %58, %60, %62 in 1 : vector<256x128xf32>, vector<256x128xf32>, vector<256x128xf32>, vector<256x128xf32>, vector<256x128xf32>, vector<256x128xf32>, vector<256x128xf32>, vector<256x128xf32>, vector<256x128xf32>, vector<256x128xf32>, vector<256x128xf32>, vector<256x128xf32>, vector<256x128xf32>, vector<256x128xf32>, vector<256x128xf32>, vector<256x128xf32> -> vector<256x2048xf32>
    %82 = tpu.concatenate %64, %66, %68, %70, %72, %74, %76, %78, %80 in 1 : vector<256x128xf32>, vector<256x128xf32>, vector<256x128xf32>, vector<256x128xf32>, vector<256x128xf32>, vector<256x128xf32>, vector<256x128xf32>, vector<256x128xf32>, vector<256x128xf32> -> vector<256x1152xf32>
    %83 = tpu.concatenate %81, %82 in 1 : vector<256x2048xf32>, vector<256x1152xf32> -> vector<256x3200xf32>
    %84 = arith.truncf %83 : vector<256x3200xf32> to vector<256x3200xbf16>
    %c0_23 = arith.constant 0 : index
    %c0_24 = arith.constant 0 : index
    %85 = vector.load %arg5[%c0_23, %c0_24] : memref<3200x128xbf16, #tpu.memory_space<vmem>>, vector<3200x128xbf16>
    %cst_25 = arith.constant dense<0.000000e+00> : vector<256x128xf32>
    %86 = tpu.matmul %84, %85, %cst_25 {dimension_numbers = #tpu.dot_dimension_numbers<[1], [0], [0], [1], [0, 0, 1, 1], [], []>} : vector<256x3200xbf16>, vector<3200x128xbf16>, vector<256x128xf32> -> vector<256x128xf32>
    %c0_26 = arith.constant 0 : index
    %c0_27 = arith.constant 0 : index
    %87 = vector.load %arg6[%c0_26, %c0_27] : memref<1x128xf32, #tpu.memory_space<vmem>>, vector<1x128xf32>
    %88 = vector.broadcast %87 : vector<1x128xf32> to vector<256x128xf32>
    %89 = arith.addf %86, %88 : vector<256x128xf32>
    %90 = vector.shape_cast %89 : vector<256x128xf32> to vector<1x16x16x128xf32>
    %c0_28 = arith.constant 0 : index
    %c0_29 = arith.constant 0 : index
    %c0_30 = arith.constant 0 : index
    %c0_31 = arith.constant 0 : index
    %91 = vector.load %arg7[%c0_28, %c0_29, %c0_30, %c0_31] : memref<1x16x16x128xf32, #tpu.memory_space<vmem>>, vector<1x16x16x128xf32>
    tpu.vector_store %arg7[%c0_28, %c0_29, %c0_30, %c0_31], %90 {strides = array<i32>} : memref<1x16x16x128xf32, #tpu.memory_space<vmem>>, vector<1x16x16x128xf32>,
    %c0_i32 = arith.constant 0 : i32
    %92 = arith.cmpi eq, %arg0, %c0_i32 : i32
    %93 = arith.extui %92 : i1 to i32
    %c0_i32_32 = arith.constant 0 : i32
    %94 = arith.cmpi ne, %93, %c0_i32_32 : i32
    scf.if %94 {
      %cst_39 = arith.constant 0.000000e+00 : f32
      %104 = vector.broadcast %cst_39 : f32 to vector<2x128xf32>
      %c0_40 = arith.constant 0 : index
      %c0_41 = arith.constant 0 : index
      %105 = vector.load %arg8[%c0_40, %c0_41] : memref<2x128xf32, #tpu.memory_space<vmem>>, vector<2x128xf32>
      tpu.vector_store %arg8[%c0_40, %c0_41], %104 {strides = array<i32>} : memref<2x128xf32, #tpu.memory_space<vmem>>, vector<2x128xf32>,
    } else {
    }
    %c0_33 = arith.constant 0 : index
    %c0_34 = arith.constant 0 : index
    %95 = vector.load %arg8[%c0_33, %c0_34] : memref<2x128xf32, #tpu.memory_space<vmem>>, vector<2x128xf32>
    %cst_35 = arith.constant dense<0.000000e+00> : vector<128xf32>
    %96 = vector.multi_reduction <add>, %89, %cst_35 [0] : vector<256x128xf32> to vector<128xf32>
    %97 = vector.shape_cast %96 : vector<128xf32> to vector<1x128xf32>
    %98 = arith.mulf %89, %89 : vector<256x128xf32>
    %cst_36 = arith.constant dense<0.000000e+00> : vector<128xf32>
    %99 = vector.multi_reduction <add>, %98, %cst_36 [0] : vector<256x128xf32> to vector<128xf32>
    %100 = vector.shape_cast %99 : vector<128xf32> to vector<1x128xf32>
    %101 = tpu.concatenate %97, %100 in 0 : vector<1x128xf32>, vector<1x128xf32> -> vector<2x128xf32>
    %102 = arith.addf %95, %101 : vector<2x128xf32>
    %c0_37 = arith.constant 0 : index
    %c0_38 = arith.constant 0 : index
    %103 = vector.load %arg8[%c0_37, %c0_38] : memref<2x128xf32, #tpu.memory_space<vmem>>, vector<2x128xf32>
    tpu.vector_store %arg8[%c0_37, %c0_38], %102 {strides = array<i32>} : memref<2x128xf32, #tpu.memory_space<vmem>>, vector<2x128xf32>,
    return
  }
  func.func @transform_0(%arg0: i32) -> (i32, i32, i32, i32) {
    %c0_i32 = arith.constant 0 : i32
    %c0_i32_0 = arith.constant 0 : i32
    %c0_i32_1 = arith.constant 0 : i32
    %c0_i32_2 = arith.constant 0 : i32
    return %arg0, %c0_i32, %c0_i32_0, %c0_i32_1 : i32, i32, i32, i32
  }
  func.func @transform_1(%arg0: i32) -> (i32, i32) {
    %c0_i32 = arith.constant 0 : i32
    %c0_i32_0 = arith.constant 0 : i32
    %c0_i32_1 = arith.constant 0 : i32
    return %c0_i32, %c0_i32_0 : i32, i32
  }
  func.func @transform_2(%arg0: i32) -> (i32, i32) {
    %c0_i32 = arith.constant 0 : i32
    %c0_i32_0 = arith.constant 0 : i32
    %c0_i32_1 = arith.constant 0 : i32
    return %c0_i32, %c0_i32_0 : i32, i32
  }
  func.func @transform_3(%arg0: i32) -> (i32, i32) {
    %c0_i32 = arith.constant 0 : i32
    %c0_i32_0 = arith.constant 0 : i32
    %c0_i32_1 = arith.constant 0 : i32
    return %c0_i32, %c0_i32_0 : i32, i32
  }
  func.func @transform_4(%arg0: i32) -> (i32, i32) {
    %c0_i32 = arith.constant 0 : i32
    %c0_i32_0 = arith.constant 0 : i32
    %c0_i32_1 = arith.constant 0 : i32
    return %c0_i32, %c0_i32_0 : i32, i32
  }
  func.func @transform_5(%arg0: i32) -> (i32, i32) {
    %c0_i32 = arith.constant 0 : i32
    %c0_i32_0 = arith.constant 0 : i32
    %c0_i32_1 = arith.constant 0 : i32
    return %c0_i32, %c0_i32_0 : i32, i32
  }
  func.func @transform_6(%arg0: i32) -> (i32, i32, i32, i32) {
    %c0_i32 = arith.constant 0 : i32
    %c0_i32_0 = arith.constant 0 : i32
    %c0_i32_1 = arith.constant 0 : i32
    %c0_i32_2 = arith.constant 0 : i32
    return %arg0, %c0_i32, %c0_i32_0, %c0_i32_1 : i32, i32, i32, i32
  }
  func.func @transform_7(%arg0: i32) -> (i32, i32) {
    %c0_i32 = arith.constant 0 : i32
    %c0_i32_0 = arith.constant 0 : i32
    %c0_i32_1 = arith.constant 0 : i32
    return %c0_i32, %c0_i32_0 : i32, i32
  }
}

module attributes {stable_mosaic.version = 11 : i64} {
  func.func @_bn2_shortcut_kernel(%arg0: i32, %arg1: memref<1x16x16x128xf32, #tpu.memory_space<vmem>>, %arg2: memref<2x128xf32, #tpu.memory_space<vmem>>, %arg3: memref<1x128xf32, #tpu.memory_space<vmem>>, %arg4: memref<1x128xf32, #tpu.memory_space<vmem>>, %arg5: memref<1x20x20x128xf32, #tpu.memory_space<vmem>>, %arg6: memref<128x128xbf16, #tpu.memory_space<vmem>>, %arg7: memref<1x16x16x128xf32, #tpu.memory_space<vmem>>) attributes {dimension_semantics = [#tpu.dimension_semantics<parallel>], iteration_bounds = array<i64: 2>, scalar_prefetch = 0 : i64, scratch_operands = 0 : i64, tpu.core_type = #tpu.core_type<tc>, window_params = [{transform_indices = @transform_0, window_bounds = array<i64: 1, 16, 16, 128>}, {pipeline_mode = #tpu.pipeline_mode<synchronous>, transform_indices = @transform_1, window_bounds = array<i64: 2, 128>}, {pipeline_mode = #tpu.pipeline_mode<synchronous>, transform_indices = @transform_2, window_bounds = array<i64: 1, 128>}, {pipeline_mode = #tpu.pipeline_mode<synchronous>, transform_indices = @transform_3, window_bounds = array<i64: 1, 128>}, {transform_indices = @transform_4, window_bounds = array<i64: 1, 20, 20, 128>}, {pipeline_mode = #tpu.pipeline_mode<synchronous>, transform_indices = @transform_5, window_bounds = array<i64: 128, 128>}, {transform_indices = @transform_6, window_bounds = array<i64: 1, 16, 16, 128>}]} {
    %c0 = arith.constant 0 : index
    %c0_0 = arith.constant 0 : index
    %0 = vector.load %arg2[%c0, %c0_0] : memref<2x128xf32, #tpu.memory_space<vmem>>, vector<1x128xf32>
    %cst = arith.constant 0.001953125 : f32
    %1 = vector.broadcast %cst : f32 to vector<1x128xf32>
    %2 = arith.mulf %0, %1 : vector<1x128xf32>
    %c1 = arith.constant 1 : index
    %c0_1 = arith.constant 0 : index
    %3 = vector.load %arg2[%c1, %c0_1] : memref<2x128xf32, #tpu.memory_space<vmem>>, vector<1x128xf32>
    %cst_2 = arith.constant 0.001953125 : f32
    %4 = vector.broadcast %cst_2 : f32 to vector<1x128xf32>
    %5 = arith.mulf %3, %4 : vector<1x128xf32>
    %6 = arith.mulf %2, %2 : vector<1x128xf32>
    %7 = arith.subf %5, %6 : vector<1x128xf32>
    %cst_3 = arith.constant 0.000000e+00 : f32
    %8 = vector.broadcast %cst_3 : f32 to vector<1x128xf32>
    %9 = arith.maximumf %7, %8 : vector<1x128xf32>
    %c0_4 = arith.constant 0 : index
    %c0_5 = arith.constant 0 : index
    %10 = vector.load %arg3[%c0_4, %c0_5] : memref<1x128xf32, #tpu.memory_space<vmem>>, vector<1x128xf32>
    %cst_6 = arith.constant 9.99999974E-6 : f32
    %11 = vector.broadcast %cst_6 : f32 to vector<1x128xf32>
    %12 = arith.addf %9, %11 : vector<1x128xf32>
    %13 = math.rsqrt %12 : vector<1x128xf32>
    %14 = arith.mulf %10, %13 : vector<1x128xf32>
    %c0_7 = arith.constant 0 : index
    %c0_8 = arith.constant 0 : index
    %15 = vector.load %arg4[%c0_7, %c0_8] : memref<1x128xf32, #tpu.memory_space<vmem>>, vector<1x128xf32>
    %16 = arith.mulf %2, %14 : vector<1x128xf32>
    %17 = arith.subf %15, %16 : vector<1x128xf32>
    %c0_9 = arith.constant 0 : index
    %c0_10 = arith.constant 0 : index
    %c0_11 = arith.constant 0 : index
    %c0_12 = arith.constant 0 : index
    %18 = vector.load %arg1[%c0_9, %c0_10, %c0_11, %c0_12] : memref<1x16x16x128xf32, #tpu.memory_space<vmem>>, vector<1x16x16x128xf32>
    %19 = vector.shape_cast %18 : vector<1x16x16x128xf32> to vector<256x128xf32>
    %20 = vector.broadcast %14 : vector<1x128xf32> to vector<256x128xf32>
    %21 = arith.mulf %19, %20 : vector<256x128xf32>
    %22 = vector.broadcast %17 : vector<1x128xf32> to vector<256x128xf32>
    %23 = arith.addf %21, %22 : vector<256x128xf32>
    %c0_13 = arith.constant 0 : index
    %c0_14 = arith.constant 0 : index
    %c0_15 = arith.constant 0 : index
    %c0_16 = arith.constant 0 : index
    %24 = vector.load %arg5[%c0_13, %c0_14, %c0_15, %c0_16] : memref<1x20x20x128xf32, #tpu.memory_space<vmem>>, vector<1x20x20x128xf32>
    %25 = vector.shape_cast %24 : vector<1x20x20x128xf32> to vector<20x20x128xf32>
    %26 = vector.extract_strided_slice %25 {offsets = [2, 2, 0], sizes = [16, 16, 128], strides = [1, 1, 1]} : vector<20x20x128xf32> to vector<16x16x128xf32>
    %27 = vector.shape_cast %26 : vector<16x16x128xf32> to vector<256x128xf32>
    %28 = arith.truncf %27 : vector<256x128xf32> to vector<256x128xbf16>
    %c0_17 = arith.constant 0 : index
    %c0_18 = arith.constant 0 : index
    %29 = vector.load %arg6[%c0_17, %c0_18] : memref<128x128xbf16, #tpu.memory_space<vmem>>, vector<128x128xbf16>
    %cst_19 = arith.constant dense<0.000000e+00> : vector<256x128xf32>
    %30 = tpu.matmul %28, %29, %cst_19 {dimension_numbers = #tpu.dot_dimension_numbers<[1], [0], [0], [1], [0, 0, 1, 1], [], []>} : vector<256x128xbf16>, vector<128x128xbf16>, vector<256x128xf32> -> vector<256x128xf32>
    %31 = arith.addf %23, %30 : vector<256x128xf32>
    %32 = vector.shape_cast %31 : vector<256x128xf32> to vector<1x16x16x128xf32>
    %c0_20 = arith.constant 0 : index
    %c0_21 = arith.constant 0 : index
    %c0_22 = arith.constant 0 : index
    %c0_23 = arith.constant 0 : index
    %33 = vector.load %arg7[%c0_20, %c0_21, %c0_22, %c0_23] : memref<1x16x16x128xf32, #tpu.memory_space<vmem>>, vector<1x16x16x128xf32>
    tpu.vector_store %arg7[%c0_20, %c0_21, %c0_22, %c0_23], %32 {strides = array<i32>} : memref<1x16x16x128xf32, #tpu.memory_space<vmem>>, vector<1x16x16x128xf32>,
    return
  }
  func.func @transform_0(%arg0: i32) -> (i32, i32, i32, i32) {
    %c0_i32 = arith.constant 0 : i32
    %c0_i32_0 = arith.constant 0 : i32
    %c0_i32_1 = arith.constant 0 : i32
    %c0_i32_2 = arith.constant 0 : i32
    return %arg0, %c0_i32, %c0_i32_0, %c0_i32_1 : i32, i32, i32, i32
  }
  func.func @transform_1(%arg0: i32) -> (i32, i32) {
    %c0_i32 = arith.constant 0 : i32
    %c0_i32_0 = arith.constant 0 : i32
    %c0_i32_1 = arith.constant 0 : i32
    return %c0_i32, %c0_i32_0 : i32, i32
  }
  func.func @transform_2(%arg0: i32) -> (i32, i32) {
    %c0_i32 = arith.constant 0 : i32
    %c0_i32_0 = arith.constant 0 : i32
    %c0_i32_1 = arith.constant 0 : i32
    return %c0_i32, %c0_i32_0 : i32, i32
  }
  func.func @transform_3(%arg0: i32) -> (i32, i32) {
    %c0_i32 = arith.constant 0 : i32
    %c0_i32_0 = arith.constant 0 : i32
    %c0_i32_1 = arith.constant 0 : i32
    return %c0_i32, %c0_i32_0 : i32, i32
  }
  func.func @transform_4(%arg0: i32) -> (i32, i32, i32, i32) {
    %c0_i32 = arith.constant 0 : i32
    %c0_i32_0 = arith.constant 0 : i32
    %c0_i32_1 = arith.constant 0 : i32
    %c0_i32_2 = arith.constant 0 : i32
    return %arg0, %c0_i32, %c0_i32_0, %c0_i32_1 : i32, i32, i32, i32
  }
  func.func @transform_5(%arg0: i32) -> (i32, i32) {
    %c0_i32 = arith.constant 0 : i32
    %c0_i32_0 = arith.constant 0 : i32
    %c0_i32_1 = arith.constant 0 : i32
    return %c0_i32, %c0_i32_0 : i32, i32
  }
  func.func @transform_6(%arg0: i32) -> (i32, i32, i32, i32) {
    %c0_i32 = arith.constant 0 : i32
    %c0_i32_0 = arith.constant 0 : i32
    %c0_i32_1 = arith.constant 0 : i32
    %c0_i32_2 = arith.constant 0 : i32
    return %arg0, %c0_i32, %c0_i32_0, %c0_i32_1 : i32, i32, i32, i32
  }
}

</mosaic_0001>

<llo_original>
// kernel: resblock_pallas.5
$region0: #{resblock_pallas.5}
  #allocation0 [shape = 'u32[]', space=smem, size = 0x4, offset = 0x4, fixed_abs, tag = 'smem constant byte address 0x4 - core index']
  #allocation1 [shape = 'u32[144,128]{1,0:T(1,128)}', space=vmem, size = 0x12000, scoped, tag = 'internal scratch']
  %s0 = inlined_call_operand.vmem [shape: f32[2,16,16,128], index: 0, kind: input, shape index: {}]
  %s1 = inlined_call_operand.vmem [shape: f32[2,128], index: 1, kind: input, shape index: {}]
  %s2 = inlined_call_operand.vmem [shape: f32[1,128], index: 2, kind: input, shape index: {}]
  %s3 = inlined_call_operand.vmem [shape: f32[1,128], index: 3, kind: input, shape index: {}]
  %s4 = inlined_call_operand.vmem [shape: f32[2,20,20,128], index: 4, kind: input, shape index: {}]
  %s5 = inlined_call_operand.vmem [shape: bf16[128,128], index: 5, kind: input, shape index: {}]
  %s6 = inlined_call_operand.vmem [shape: f32[2,16,16,128], index: 6, kind: output, shape index: {}]
  %s7 = sld [smem:[#allocation0]]
  $region57: #{resblock_pallas.5} parent=0
    _
  %s9 = ssub.s32 1, %s7
  %s10 = scalar_select 0, %s9, %s7
  loop: start=0, step=1, limit=4
  $region2: #{resblock_pallas.5} parent=0 // loop_pre_header
    _
  $region3: #{resblock_pallas.5} parent=0 // loop_header
    %s12 = sphi 0, %s16
    %p13 = scmp.ge.s32.totalorder %s12, 4
    %s22 = sphi 0, %s24
    %s25 = sphi 0, %s22
    %s26 = sphi 0, %s25
    %s42 = sphi 0, %s26
    %s46 = sphi 0, %s46
    %s48 = sphi 0, %s46
    %s49 = sphi 0, %s48
    %s63 = sphi 0, %s49
    %s67 = sphi 0, %s67
    %s69 = sphi 0, %s67
    %s70 = sphi 0, %s69
    %s84 = sphi 0, %s70
    %s88 = sphi 0, %s88
    %s90 = sphi 0, %s88
    %s91 = sphi 0, %s90
    %s105 = sphi 0, %s91
    %s111 = sphi 0, %s113
    %s114 = sphi 0, %s111
    %s115 = sphi 0, %s114
    %s131 = sphi 0, %s115
    %s135 = sphi 0, %s135
    %s137 = sphi 0, %s135
    %s138 = sphi 0, %s137
    %s152 = sphi 0, %s138
    %s158 = sphi 0, %s160
    %s161 = sphi 0, %s158
    %s162 = sphi 0, %s161
    %s178 = sphi 0, %s162
  $region4: #{resblock_pallas.5} parent=0 // loop_header_branch
    %15 = sbr.rel (%p13) target = $region8
  $region5: #{resblock_pallas.5} parent=0 // loop_body
    %s17 = ssub.s32 %s12, 1
    %s18 = ssub.s32 %s12, 2
    %s19 = sadd.s32 %s12, 1
    %s20 = ssub.s32 %s12, %s19
    %p21 = scmp.eq.s32.totalorder %s20, 0
    %s23 = sadd.s32 %s22, 1
    %s24 = scalar_select %p21, %s22, %s23
    %p27 = pneg %p21
    %p28 = scmp.eq.s32.totalorder %s12, 1
    %p29 = por %p27, %p28
    %p30 = scmp.ne.s32.totalorder %s22, %s25
    %p31 = scmp.eq.s32.totalorder %s12, 0
    %p32 = por %p30, %p31
    %p33 = scmp.ne.s32.totalorder %s22, %s25
    %p34 = scmp.eq.s32.totalorder %s17, 1
    %p35 = por %p33, %p34
    %p36 = scmp.ne.s32.totalorder %s25, %s26
    %p37 = scmp.eq.s32.totalorder %s17, 0
    %p38 = por %p36, %p37
    %p39 = scmp.ne.s32.totalorder %s25, %s26
    %p40 = scmp.eq.s32.totalorder %s18, 1
    %p41 = por %p39, %p40
    %p43 = scmp.ne.s32.totalorder %s26, %s42
    %p44 = scmp.eq.s32.totalorder %s18, 0
    %p45 = por %p43, %p44
    %s47 = sadd.s32 %s46, 1
    %p50 = scmp.eq.s32.totalorder %s12, 1
    %p51 = scmp.ne.s32.totalorder %s46, %s48
    %p52 = scmp.eq.s32.totalorder %s12, 0
    %p53 = por %p51, %p52
    %p54 = scmp.ne.s32.totalorder %s46, %s48
    %p55 = scmp.eq.s32.totalorder %s17, 1
    %p56 = por %p54, %p55
    %p57 = scmp.ne.s32.totalorder %s48, %s49
    %p58 = scmp.eq.s32.totalorder %s17, 0
    %p59 = por %p57, %p58
    %p60 = scmp.ne.s32.totalorder %s48, %s49
    %p61 = scmp.eq.s32.totalorder %s18, 1
    %p62 = por %p60, %p61
    %p64 = scmp.ne.s32.totalorder %s49, %s63
    %p65 = scmp.eq.s32.totalorder %s18, 0
    %p66 = por %p64, %p65
    %s68 = sadd.s32 %s67, 1
    %p71 = scmp.eq.s32.totalorder %s12, 1
    %p72 = scmp.ne.s32.totalorder %s67, %s69
    %p73 = scmp.eq.s32.totalorder %s12, 0
    %p74 = por %p72, %p73
    %p75 = scmp.ne.s32.totalorder %s67, %s69
    %p76 = scmp.eq.s32.totalorder %s17, 1
    %p77 = por %p75, %p76
    %p78 = scmp.ne.s32.totalorder %s69, %s70
    %p79 = scmp.eq.s32.totalorder %s17, 0
    %p80 = por %p78, %p79
    %p81 = scmp.ne.s32.totalorder %s69, %s70
    %p82 = scmp.eq.s32.totalorder %s18, 1
    %p83 = por %p81, %p82
    %p85 = scmp.ne.s32.totalorder %s70, %s84
    %p86 = scmp.eq.s32.totalorder %s18, 0
    %p87 = por %p85, %p86
    %s89 = sadd.s32 %s88, 1
    %p92 = scmp.eq.s32.totalorder %s12, 1
    %p93 = scmp.ne.s32.totalorder %s88, %s90
    %p94 = scmp.eq.s32.totalorder %s12, 0
    %p95 = por %p93, %p94
    %p96 = scmp.ne.s32.totalorder %s88, %s90
    %p97 = scmp.eq.s32.totalorder %s17, 1
    %p98 = por %p96, %p97
    %p99 = scmp.ne.s32.totalorder %s90, %s91
    %p100 = scmp.eq.s32.totalorder %s17, 0
    %p101 = por %p99, %p100
    %p102 = scmp.ne.s32.totalorder %s90, %s91
    %p103 = scmp.eq.s32.totalorder %s18, 1
    %p104 = por %p102, %p103
    %p106 = scmp.ne.s32.totalorder %s91, %s105
    %p107 = scmp.eq.s32.totalorder %s18, 0
    %p108 = por %p106, %p107
    %s109 = ssub.s32 %s12, %s19
    %p110 = scmp.eq.s32.totalorder %s109, 0
    %s112 = sadd.s32 %s111, 1
    %s113 = scalar_select %p110, %s111, %s112
    %p116 = pneg %p110
    %p117 = scmp.eq.s32.totalorder %s12, 1
    %p118 = por %p116, %p117
    %p119 = scmp.ne.s32.totalorder %s111, %s114
    %p120 = scmp.eq.s32.totalorder %s12, 0
    %p121 = por %p119, %p120
    %p122 = scmp.ne.s32.totalorder %s111, %s114
    %p123 = scmp.eq.s32.totalorder %s17, 1
    %p124 = por %p122, %p123
    %p125 = scmp.ne.s32.totalorder %s114, %s115
    %p126 = scmp.eq.s32.totalorder %s17, 0
    %p127 = por %p125, %p126
    %p128 = scmp.ne.s32.totalorder %s114, %s115
    %p129 = scmp.eq.s32.totalorder %s18, 1
    %p130 = por %p128, %p129
    %p132 = scmp.ne.s32.totalorder %s115, %s131
    %p133 = scmp.eq.s32.totalorder %s18, 0
    %p134 = por %p132, %p133
    %s136 = sadd.s32 %s135, 1
    %p139 = scmp.eq.s32.totalorder %s12, 1
    %p140 = scmp.ne.s32.totalorder %s135, %s137
    %p141 = scmp.eq.s32.totalorder %s12, 0
    %p142 = por %p140, %p141
    %p143 = scmp.ne.s32.totalorder %s135, %s137
    %p144 = scmp.eq.s32.totalorder %s17, 1
    %p145 = por %p143, %p144
    %p146 = scmp.ne.s32.totalorder %s137, %s138
    %p147 = scmp.eq.s32.totalorder %s17, 0
    %p148 = por %p146, %p147
    %p149 = scmp.ne.s32.totalorder %s137, %s138
    %p150 = scmp.eq.s32.totalorder %s18, 1
    %p151 = por %p149, %p150
    %p153 = scmp.ne.s32.totalorder %s138, %s152
    %p154 = scmp.eq.s32.totalorder %s18, 0
    %p155 = por %p153, %p154
    %s156 = ssub.s32 %s12, %s19
    %p157 = scmp.eq.s32.totalorder %s156, 0
    %s159 = sadd.s32 %s158, 1
    %s160 = scalar_select %p157, %s158, %s159
    %p163 = pneg %p157
    %p164 = scmp.eq.s32.totalorder %s12, 1
    %p165 = por %p163, %p164
    %p166 = scmp.ne.s32.totalorder %s158, %s161
    %p167 = scmp.eq.s32.totalorder %s12, 0
    %p168 = por %p166, %p167
    %p169 = scmp.ne.s32.totalorder %s158, %s161
    %p170 = scmp.eq.s32.totalorder %s17, 1
    %p171 = por %p169, %p170
    %p172 = scmp.ne.s32.totalorder %s161, %s162
    %p173 = scmp.eq.s32.totalorder %s17, 0
    %p174 = por %p172, %p173
    %p175 = scmp.ne.s32.totalorder %s161, %s162
    %p176 = scmp.eq.s32.totalorder %s18, 1
    %p177 = por %p175, %p176
    %p179 = scmp.ne.s32.totalorder %s162, %s178
    %p180 = scmp.eq.s32.totalorder %s18, 0
    %p181 = por %p179, %p180
    %p182 = scmp.le.s32.totalorder 1, %s12
    %p183 = scmp.lt.s32.totalorder %s12, 3
    %p184 = pnand %p182, %p183
    %p185 = pneg %p184
    // Predicated region
    $region9: #{resblock_pallas.5} parent=5 // pred_check
      _
    $region10: #{resblock_pallas.5} parent=5 // pred_check_branch
      %187 = sbr.rel (%p184) target = $region12
    $region11: #{resblock_pallas.5} parent=5 // pred_region
      %s188 = ssub.s32 %s12, 1
      // Predicated region
      $region13: #{resblock_pallas.5} parent=11 // pred_check
        %p189 = pneg %p59
      $region14: #{resblock_pallas.5} parent=11 // pred_check_branch
        %191 = sbr.rel (%p189) target = $region16
      $region15: #{resblock_pallas.5} parent=11 // pred_region
        _
      $region16: #{resblock_pallas.5} parent=11 // pred_fallthru
        _
      // Predicated region
      $region17: #{resblock_pallas.5} parent=11 // pred_check
        %p192 = pneg %p80
      $region18: #{resblock_pallas.5} parent=11 // pred_check_branch
        %194 = sbr.rel (%p192) target = $region20
      $region19: #{resblock_pallas.5} parent=11 // pred_region
        _
      $region20: #{resblock_pallas.5} parent=11 // pred_fallthru
        _
      // Predicated region
      $region21: #{resblock_pallas.5} parent=11 // pred_check
        %p195 = pneg %p101
      $region22: #{resblock_pallas.5} parent=11 // pred_check_branch
        %197 = sbr.rel (%p195) target = $region24
      $region23: #{resblock_pallas.5} parent=11 // pred_region
        _
      $region24: #{resblock_pallas.5} parent=11 // pred_fallthru
        _
      // Predicated region
      $region25: #{resblock_pallas.5} parent=11 // pred_check
        %p198 = pneg %p148
      $region26: #{resblock_pallas.5} parent=11 // pred_check_branch
        %200 = sbr.rel (%p198) target = $region28
      $region27: #{resblock_pallas.5} parent=11 // pred_region
        _
      $region28: #{resblock_pallas.5} parent=11 // pred_fallthru
        _
    $region12: #{resblock_pallas.5} parent=5 // pred_fallthru
      _
    %p201 = scmp.lt.s32.totalorder %s12, 2
    // Predicated region
    $region29: #{resblock_pallas.5} parent=5 // pred_check
      %p202 = pneg %p201
    $region30: #{resblock_pallas.5} parent=5 // pred_check_branch
      %204 = sbr.rel (%p202) target = $region32
    $region31: #{resblock_pallas.5} parent=5 // pred_region
      // Predicated region
      $region33: #{resblock_pallas.5} parent=31 // pred_check
        %p205 = pneg %p32
      $region34: #{resblock_pallas.5} parent=31 // pred_check_branch
        %207 = sbr.rel (%p205) target = $region36
      $region35: #{resblock_pallas.5} parent=31 // pred_region
        %p208 = scmp.lt.s32.totalorder %s12, 1
        %s209 = scalar_select %p208, %s12, 1
        %s210 = smul.addr %s209, 32
        %s211 = smul.addr %s210, 8
        %s212 = scalar_lea.vmem %s0, %s211
      $region36: #{resblock_pallas.5} parent=31 // pred_fallthru
        _
      // Predicated region
      $region37: #{resblock_pallas.5} parent=31 // pred_check
        %p213 = pneg %p121
      $region38: #{resblock_pallas.5} parent=31 // pred_check_branch
        %215 = sbr.rel (%p213) target = $region40
      $region39: #{resblock_pallas.5} parent=31 // pred_region
        %p216 = scmp.lt.s32.totalorder %s12, 1
        %s217 = scalar_select %p216, %s12, 1
        %s218 = smul.addr %s217, 60
        %s219 = smul.addr %s218, 8
        %s220 = scalar_lea.vmem %s4, %s219
      $region40: #{resblock_pallas.5} parent=31 // pred_fallthru
        _
    $region32: #{resblock_pallas.5} parent=5 // pred_fallthru
      _
    %p221 = scmp.le.s32.totalorder 1, %s12
    %p222 = scmp.lt.s32.totalorder %s12, 3
    %p223 = pnand %p221, %p222
    %p224 = pneg %p223
    // Predicated region
    $region41: #{resblock_pallas.5} parent=5 // pred_check
      _
    $region42: #{resblock_pallas.5} parent=5 // pred_check_branch
      %226 = sbr.rel (%p223) target = $region44
    $region43: #{resblock_pallas.5} parent=5 // pred_region
      %s227 = ssub.s32 %s12, 1
      %p228 = scmp.lt.s32.totalorder %s17, 1
      %s229 = scalar_select %p228, %s17, 1
      %s230 = smul.addr %s229, 32
      %s231 = smul.addr %s230, 8
      %s232 = scalar_lea.vmem %s0, %s231
      %p233 = pneg %p38
      %p234 = pneg %p35
      %p235 = pneg %p59
      %p236 = pneg %p56
      %p237 = pneg %p80
      %p238 = pneg %p77
      %p239 = pneg %p101
      %p240 = pneg %p98
      %p241 = scmp.lt.s32.totalorder %s17, 1
      %s242 = scalar_select %p241, %s17, 1
      %s243 = smul.addr %s242, 60
      %s244 = smul.addr %s243, 8
      %s245 = scalar_lea.vmem %s4, %s244
      %p246 = pneg %p127
      %p247 = pneg %p124
      %p248 = pneg %p148
      %p249 = pneg %p145
      %p250 = pneg %p174
      %p251 = pneg %p171
      %p252 = scmp.lt.s32.totalorder %s17, 1
      %s253 = scalar_select %p252, %s17, 1
      %s254 = smul.addr %s253, 32
      %s255 = smul.addr %s254, 8
      %s256 = scalar_lea.vmem %s6, %s255
      %p257 = scmp.lt.s32.totalorder %s17, 1
      %s258 = scalar_select %p257, %s17, 1
      %s259 = smul.addr %s258, 32
      %s260 = smul.addr %s259, 8
      %s261 = scalar_lea.vmem %s0, %s260
      %p262 = scmp.lt.s32.totalorder %s17, 1
      %s263 = scalar_select %p262, %s17, 1
      %s264 = smul.addr %s263, 60
      %s265 = smul.addr %s264, 8
      %s266 = scalar_lea.vmem %s4, %s265
      %p267 = scmp.lt.s32.totalorder %s17, 1
      %s268 = scalar_select %p267, %s17, 1
      %s269 = smul.addr %s268, 32
      %s270 = smul.addr %s269, 8
      %s271 = scalar_lea.vmem %s6, %s270
      %v273 = vld [vmem:[%s1] sm:$0x1]
      %v274 = vmul.f32 %v273, 0.001953125
      %v275 = vld [vmem:[%s1 + $0x1] sm:$0x1]
      %v276 = vmul.f32 %v275, 0.001953125
      %v277 = vmul.f32 %v274, %v274
      %v278 = vsub.f32 %v276, %v277
      %v279 = vmax.f32 %v278, 0.0
      %v280 = vld [vmem:[%s2] sm:$0x1]
      %v281 = vadd.f32 %v279, 1e-05
      %v282 = vrsqrt.pop %v281
      %v283 = vmul.f32 %v280, %v282
      %v284 = vld [vmem:[%s3] sm:$0x1]
      %v285 = vmul.f32 %v274, %v283
      %v286 = vsub.f32 %v284, %v285
      %v287 = vld [vmem:[%s261] sm:$0xff]
      %v288 = vld [vmem:[%s261 + $0x8] sm:$0xff]
      %v289 = vld [vmem:[%s261 + $0x10] sm:$0xff]
      %v290 = vld [vmem:[%s261 + $0x18] sm:$0xff]
      %v291 = vld [vmem:[%s261 + $0x20] sm:$0xff]
      %v292 = vld [vmem:[%s261 + $0x28] sm:$0xff]
      %v293 = vld [vmem:[%s261 + $0x30] sm:$0xff]
      %v294 = vld [vmem:[%s261 + $0x38] sm:$0xff]
      %v295 = vld [vmem:[%s261 + $0x40] sm:$0xff]
      %v296 = vld [vmem:[%s261 + $0x48] sm:$0xff]
      %v297 = vld [vmem:[%s261 + $0x50] sm:$0xff]
      %v298 = vld [vmem:[%s261 + $0x58] sm:$0xff]
      %v299 = vld [vmem:[%s261 + $0x60] sm:$0xff]
      %v300 = vld [vmem:[%s261 + $0x68] sm:$0xff]
      %v301 = vld [vmem:[%s261 + $0x70] sm:$0xff]
      %v302 = vld [vmem:[%s261 + $0x78] sm:$0xff]
      %v303 = vld [vmem:[%s261 + $0x80] sm:$0xff]
      %v304 = vld [vmem:[%s261 + $0x88] sm:$0xff]
      %v305 = vld [vmem:[%s261 + $0x90] sm:$0xff]
      %v306 = vld [vmem:[%s261 + $0x98] sm:$0xff]
      %v307 = vld [vmem:[%s261 + $0xa0] sm:$0xff]
      %v308 = vld [vmem:[%s261 + $0xa8] sm:$0xff]
      %v309 = vld [vmem:[%s261 + $0xb0] sm:$0xff]
      %v310 = vld [vmem:[%s261 + $0xb8] sm:$0xff]
      %v311 = vld [vmem:[%s261 + $0xc0] sm:$0xff]
      %v312 = vld [vmem:[%s261 + $0xc8] sm:$0xff]
      %v313 = vld [vmem:[%s261 + $0xd0] sm:$0xff]
      %v314 = vld [vmem:[%s261 + $0xd8] sm:$0xff]
      %v315 = vld [vmem:[%s261 + $0xe0] sm:$0xff]
      %v316 = vld [vmem:[%s261 + $0xe8] sm:$0xff]
      %v317 = vld [vmem:[%s261 + $0xf0] sm:$0xff]
      %v318 = vld [vmem:[%s261 + $0xf8] sm:$0xff]
      %v320 = vlaneseq
      %v321 = vshrl.u32 %v320, 7
      %v322 = vsub.s32 0, %v321
      %v323 = vrot.slane %v283, %v322
      %v325 = vmul.f32 %v287, %v323
      %v326 = vmul.f32 %v288, %v323
      %v327 = vmul.f32 %v289, %v323
      %v328 = vmul.f32 %v290, %v323
      %v329 = vmul.f32 %v291, %v323
      %v330 = vmul.f32 %v292, %v323
      %v331 = vmul.f32 %v293, %v323
      %v332 = vmul.f32 %v294, %v323
      %v333 = vmul.f32 %v295, %v323
      %v334 = vmul.f32 %v296, %v323
      %v335 = vmul.f32 %v297, %v323
      %v336 = vmul.f32 %v298, %v323
      %v337 = vmul.f32 %v299, %v323
      %v338 = vmul.f32 %v300, %v323
      %v339 = vmul.f32 %v301, %v323
      %v340 = vmul.f32 %v302, %v323
      %v341 = vmul.f32 %v303, %v323
      %v342 = vmul.f32 %v304, %v323
      %v343 = vmul.f32 %v305, %v323
      %v344 = vmul.f32 %v306, %v323
      %v345 = vmul.f32 %v307, %v323
      %v346 = vmul.f32 %v308, %v323
      %v347 = vmul.f32 %v309, %v323
      %v348 = vmul.f32 %v310, %v323
      %v349 = vmul.f32 %v311, %v323
      %v350 = vmul.f32 %v312, %v323
      %v351 = vmul.f32 %v313, %v323
      %v352 = vmul.f32 %v314, %v323
      %v353 = vmul.f32 %v315, %v323
      %v354 = vmul.f32 %v316, %v323
      %v355 = vmul.f32 %v317, %v323
      %v356 = vmul.f32 %v318, %v323
      %v358 = vlaneseq
      %v359 = vshrl.u32 %v358, 7
      %v360 = vsub.s32 0, %v359
      %v361 = vrot.slane %v286, %v360
      %v363 = vadd.f32 %v325, %v361
      %v364 = vadd.f32 %v326, %v361
      %v365 = vadd.f32 %v327, %v361
      %v366 = vadd.f32 %v328, %v361
      %v367 = vadd.f32 %v329, %v361
      %v368 = vadd.f32 %v330, %v361
      %v369 = vadd.f32 %v331, %v361
      %v370 = vadd.f32 %v332, %v361
      %v371 = vadd.f32 %v333, %v361
      %v372 = vadd.f32 %v334, %v361
      %v373 = vadd.f32 %v335, %v361
      %v374 = vadd.f32 %v336, %v361
      %v375 = vadd.f32 %v337, %v361
      %v376 = vadd.f32 %v338, %v361
      %v377 = vadd.f32 %v339, %v361
      %v378 = vadd.f32 %v340, %v361
      %v379 = vadd.f32 %v341, %v361
      %v380 = vadd.f32 %v342, %v361
      %v381 = vadd.f32 %v343, %v361
      %v382 = vadd.f32 %v344, %v361
      %v383 = vadd.f32 %v345, %v361
      %v384 = vadd.f32 %v346, %v361
      %v385 = vadd.f32 %v347, %v361
      %v386 = vadd.f32 %v348, %v361
      %v387 = vadd.f32 %v349, %v361
      %v388 = vadd.f32 %v350, %v361
      %v389 = vadd.f32 %v351, %v361
      %v390 = vadd.f32 %v352, %v361
      %v391 = vadd.f32 %v353, %v361
      %v392 = vadd.f32 %v354, %v361
      %v393 = vadd.f32 %v355, %v361
      %v394 = vadd.f32 %v356, %v361
      %v395 = vld [vmem:[%s266 + $0x30] sm:$0xff]
      %v396 = vld [vmem:[%s266 + $0x38] sm:$0xff]
      %v397 = vld [vmem:[%s266 + $0x40] sm:$0xf]
      %v398 = vld [vmem:[%s266 + $0x48] sm:$0xff]
      %v399 = vld [vmem:[%s266 + $0x50] sm:$0xff]
      %v400 = vld [vmem:[%s266 + $0x58] sm:$0xf]
      %v401 = vld [vmem:[%s266 + $0x60] sm:$0xff]
      %v402 = vld [vmem:[%s266 + $0x68] sm:$0xff]
      %v403 = vld [vmem:[%s266 + $0x70] sm:$0xf]
      %v404 = vld [vmem:[%s266 + $0x78] sm:$0xff]
      %v405 = vld [vmem:[%s266 + $0x80] sm:$0xff]
      %v406 = vld [vmem:[%s266 + $0x88] sm:$0xf]
      %v407 = vld [vmem:[%s266 + $0x90] sm:$0xff]
      %v408 = vld [vmem:[%s266 + $0x98] sm:$0xff]
      %v409 = vld [vmem:[%s266 + $0xa0] sm:$0xf]
      %v410 = vld [vmem:[%s266 + $0xa8] sm:$0xff]
      %v411 = vld [vmem:[%s266 + $0xb0] sm:$0xff]
      %v412 = vld [vmem:[%s266 + $0xb8] sm:$0xf]
      %v413 = vld [vmem:[%s266 + $0xc0] sm:$0xff]
      %v414 = vld [vmem:[%s266 + $0xc8] sm:$0xff]
      %v415 = vld [vmem:[%s266 + $0xd0] sm:$0xf]
      %v416 = vld [vmem:[%s266 + $0xd8] sm:$0xff]
      %v417 = vld [vmem:[%s266 + $0xe0] sm:$0xff]
      %v418 = vld [vmem:[%s266 + $0xe8] sm:$0xf]
      %v419 = vld [vmem:[%s266 + $0xf0] sm:$0xff]
      %v420 = vld [vmem:[%s266 + $0xf8] sm:$0xff]
      %v421 = vld [vmem:[%s266 + $0x100] sm:$0xf]
      %v422 = vld [vmem:[%s266 + $0x108] sm:$0xff]
      %v423 = vld [vmem:[%s266 + $0x110] sm:$0xff]
      %v424 = vld [vmem:[%s266 + $0x118] sm:$0xf]
      %v425 = vld [vmem:[%s266 + $0x120] sm:$0xff]
      %v426 = vld [vmem:[%s266 + $0x128] sm:$0xff]
      %v427 = vld [vmem:[%s266 + $0x130] sm:$0xf]
      %v428 = vld [vmem:[%s266 + $0x138] sm:$0xff]
      %v429 = vld [vmem:[%s266 + $0x140] sm:$0xff]
      %v430 = vld [vmem:[%s266 + $0x148] sm:$0xf]
      %v431 = vld [vmem:[%s266 + $0x150] sm:$0xff]
      %v432 = vld [vmem:[%s266 + $0x158] sm:$0xff]
      %v433 = vld [vmem:[%s266 + $0x160] sm:$0xf]
      %v434 = vld [vmem:[%s266 + $0x168] sm:$0xff]
      %v435 = vld [vmem:[%s266 + $0x170] sm:$0xff]
      %v436 = vld [vmem:[%s266 + $0x178] sm:$0xf]
      %v437 = vld [vmem:[%s266 + $0x180] sm:$0xff]
      %v438 = vld [vmem:[%s266 + $0x188] sm:$0xff]
      %v439 = vld [vmem:[%s266 + $0x190] sm:$0xf]
      %v440 = vld [vmem:[%s266 + $0x198] sm:$0xff]
      %v441 = vld [vmem:[%s266 + $0x1a0] sm:$0xff]
      %v442 = vld [vmem:[%s266 + $0x1a8] sm:$0xf]
      %vm491 = vcmask 1045504
      %v492 = vrot.slane %v395, 2
      %v493 = vrot.slane %v396, 2
      %v494 = vsel %vm491, %v492, %v493
      %v495 = vrot.slane %v397, 2
      %v496 = vsel %vm491, %v493, %v495
      %v497 = vrot.slane %v398, 2
      %v498 = vrot.slane %v399, 2
      %v499 = vsel %vm491, %v497, %v498
      %v500 = vrot.slane %v400, 2
      %v501 = vsel %vm491, %v498, %v500
      %v502 = vrot.slane %v401, 2
      %v503 = vrot.slane %v402, 2
      %v504 = vsel %vm491, %v502, %v503
      %v505 = vrot.slane %v403, 2
      %v506 = vsel %vm491, %v503, %v505
      %v507 = vrot.slane %v404, 2
      %v508 = vrot.slane %v405, 2
      %v509 = vsel %vm491, %v507, %v508
      %v510 = vrot.slane %v406, 2
      %v511 = vsel %vm491, %v508, %v510
      %v512 = vrot.slane %v407, 2
      %v513 = vrot.slane %v408, 2
      %v514 = vsel %vm491, %v512, %v513
      %v515 = vrot.slane %v409, 2
      %v516 = vsel %vm491, %v513, %v515
      %v517 = vrot.slane %v410, 2
      %v518 = vrot.slane %v411, 2
      %v519 = vsel %vm491, %v517, %v518
      %v520 = vrot.slane %v412, 2
      %v521 = vsel %vm491, %v518, %v520
      %v522 = vrot.slane %v413, 2
      %v523 = vrot.slane %v414, 2
      %v524 = vsel %vm491, %v522, %v523
      %v525 = vrot.slane %v415, 2
      %v526 = vsel %vm491, %v523, %v525
      %v527 = vrot.slane %v416, 2
      %v528 = vrot.slane %v417, 2
      %v529 = vsel %vm491, %v527, %v528
      %v530 = vrot.slane %v418, 2
      %v531 = vsel %vm491, %v528, %v530
      %v532 = vrot.slane %v419, 2
      %v533 = vrot.slane %v420, 2
      %v534 = vsel %vm491, %v532, %v533
      %v535 = vrot.slane %v421, 2
      %v536 = vsel %vm491, %v533, %v535
      %v537 = vrot.slane %v422, 2
      %v538 = vrot.slane %v423, 2
      %v539 = vsel %vm491, %v537, %v538
      %v540 = vrot.slane %v424, 2
      %v541 = vsel %vm491, %v538, %v540
      %v542 = vrot.slane %v425, 2
      %v543 = vrot.slane %v426, 2
      %v544 = vsel %vm491, %v542, %v543
      %v545 = vrot.slane %v427, 2
      %v546 = vsel %vm491, %v543, %v545
      %v547 = vrot.slane %v428, 2
      %v548 = vrot.slane %v429, 2
      %v549 = vsel %vm491, %v547, %v548
      %v550 = vrot.slane %v430, 2
      %v551 = vsel %vm491, %v548, %v550
      %v552 = vrot.slane %v431, 2
      %v553 = vrot.slane %v432, 2
      %v554 = vsel %vm491, %v552, %v553
      %v555 = vrot.slane %v433, 2
      %v556 = vsel %vm491, %v553, %v555
      %v557 = vrot.slane %v434, 2
      %v558 = vrot.slane %v435, 2
      %v559 = vsel %vm491, %v557, %v558
      %v560 = vrot.slane %v436, 2
      %v561 = vsel %vm491, %v558, %v560
      %v562 = vrot.slane %v437, 2
      %v563 = vrot.slane %v438, 2
      %v564 = vsel %vm491, %v562, %v563
      %v565 = vrot.slane %v439, 2
      %v566 = vsel %vm491, %v563, %v565
      %v567 = vrot.slane %v440, 2
      %v568 = vrot.slane %v441, 2
      %v569 = vsel %vm491, %v567, %v568
      %v570 = vrot.slane %v442, 2
      %v571 = vsel %vm491, %v568, %v570
      %v604 = vpack.c.bf16 %v496, %v494
      %v605 = vpack.c.bf16 %v501, %v499
      %v606 = vpack.c.bf16 %v506, %v504
      %v607 = vpack.c.bf16 %v511, %v509
      %v608 = vpack.c.bf16 %v516, %v514
      %v609 = vpack.c.bf16 %v521, %v519
      %v610 = vpack.c.bf16 %v526, %v524
      %v611 = vpack.c.bf16 %v531, %v529
      %v612 = vpack.c.bf16 %v536, %v534
      %v613 = vpack.c.bf16 %v541, %v539
      %v614 = vpack.c.bf16 %v546, %v544
      %v615 = vpack.c.bf16 %v551, %v549
      %v616 = vpack.c.bf16 %v556, %v554
      %v617 = vpack.c.bf16 %v561, %v559
      %v618 = vpack.c.bf16 %v566, %v564
      %v619 = vpack.c.bf16 %v571, %v569
      %v620 = vld [vmem:[%s5] sm:$0xf]
      %v621 = vld [vmem:[%s5 + $0x4] sm:$0xf]
      %v622 = vld [vmem:[%s5 + $0x8] sm:$0xf]
      %v623 = vld [vmem:[%s5 + $0xc] sm:$0xf]
      %v624 = vld [vmem:[%s5 + $0x10] sm:$0xf]
      %v625 = vld [vmem:[%s5 + $0x14] sm:$0xf]
      %v626 = vld [vmem:[%s5 + $0x18] sm:$0xf]
      %v627 = vld [vmem:[%s5 + $0x1c] sm:$0xf]
      %v628 = vld [vmem:[%s5 + $0x20] sm:$0xf]
      %v629 = vld [vmem:[%s5 + $0x24] sm:$0xf]
      %v630 = vld [vmem:[%s5 + $0x28] sm:$0xf]
      %v631 = vld [vmem:[%s5 + $0x2c] sm:$0xf]
      %v632 = vld [vmem:[%s5 + $0x30] sm:$0xf]
      %v633 = vld [vmem:[%s5 + $0x34] sm:$0xf]
      %v634 = vld [vmem:[%s5 + $0x38] sm:$0xf]
      %v635 = vld [vmem:[%s5 + $0x3c] sm:$0xf]
      %v652 = vunpack.c.l.b16 %v620
      %v653 = vunpack.c.l.b16 %v621
      %v654 = vunpack.c.l.b16 %v622
      %v655 = vunpack.c.l.b16 %v623
      %v656 = vunpack.c.l.b16 %v624
      %v657 = vunpack.c.l.b16 %v625
      %v658 = vunpack.c.l.b16 %v626
      %v659 = vunpack.c.l.b16 %v627
      %v660 = vunpack.c.l.b16 %v628
      %v661 = vunpack.c.l.b16 %v629
      %v662 = vunpack.c.l.b16 %v630
      %v663 = vunpack.c.l.b16 %v631
      %v664 = vunpack.c.l.b16 %v632
      %v665 = vunpack.c.l.b16 %v633
      %v666 = vunpack.c.l.b16 %v634
      %v667 = vunpack.c.l.b16 %v635
      %v668 = vpack.c.b16 %v653, %v652
      %v669 = vpack.c.b16 %v655, %v654
      %v670 = vpack.c.b16 %v657, %v656
      %v671 = vpack.c.b16 %v659, %v658
      %v672 = vpack.c.b16 %v661, %v660
      %v673 = vpack.c.b16 %v663, %v662
      %v674 = vpack.c.b16 %v665, %v664
      %v675 = vpack.c.b16 %v667, %v666
      %684 = vmatprep.subr.bf16.mxu0 0
      %685 = vmatpush1.bf16.msra.mxu0 %v668
      %686 = vmatprep.subr.bf16.mxu0 0
      %687 = vmatpush1.bf16.msra.mxu0 %v669
      %688 = vmatprep.subr.bf16.mxu0 0
      %689 = vmatpush1.bf16.msra.mxu0 %v670
      %690 = vmatprep.subr.bf16.mxu0 0
      %691 = vmatpush1.bf16.msra.mxu0 %v671
      %692 = vmatprep.subr.bf16.mxu0 0
      %693 = vmatpush1.bf16.msra.mxu0 %v672
      %694 = vmatprep.subr.bf16.mxu0 0
      %695 = vmatpush1.bf16.msra.mxu0 %v673
      %696 = vmatprep.subr.bf16.mxu0 0
      %697 = vmatpush1.bf16.msra.mxu0 %v674
      %698 = vmatprep.subr.bf16.mxu0 0
      %699 = vmatpush1.bf16.msra.mxu0 %v675
      %700 = vmatprep.subr.bf16.mxu0 0
      %701 = vmatpush1.bf16.msra.mxu0 0
      %702 = vmatprep.subr.bf16.mxu0 0
      %703 = vmatpush1.bf16.msra.mxu0 0
      %704 = vmatprep.subr.bf16.mxu0 0
      %705 = vmatpush1.bf16.msra.mxu0 0
      %706 = vmatprep.subr.bf16.mxu0 0
      %707 = vmatpush1.bf16.msra.mxu0 0
      %708 = vmatprep.subr.bf16.mxu0 0
      %709 = vmatpush1.bf16.msra.mxu0 0
      %710 = vmatprep.subr.bf16.mxu0 0
      %711 = vmatpush1.bf16.msra.mxu0 0
      %712 = vmatprep.subr.bf16.mxu0 0
      %713 = vmatpush1.bf16.msra.mxu0 0
      %714 = vmatprep.subr.bf16.mxu0 0
      %715 = vmatpush1.bf16.msra.mxu0 0
      %716 = vmatprep.mubr.bf16.mxu0 0
      %717 = vmatmul.mubr.bf16.gmra.mrb[0].mxu0 %v604
      %v718 = vpop.f32.mrb[0].mxu0
      %v719 = vadd.f32 0.0, %v718
      %v720 = vpop.f32.mrb[0].mxu0
      %v721 = vpop.f32.mrb[0].mxu0
      %v722 = vadd.f32 0.0, %v721
      %v723 = vpop.f32.mrb[0].mxu0
      %724 = vmatprep.mubr.bf16.mxu0 0
      %725 = vmatmul.mubr.bf16.gmra.mrb[0].mxu0 %v605
      %v726 = vpop.f32.mrb[0].mxu0
      %v727 = vadd.f32 0.0, %v726
      %v728 = vpop.f32.mrb[0].mxu0
      %v729 = vpop.f32.mrb[0].mxu0
      %v730 = vadd.f32 0.0, %v729
      %v731 = vpop.f32.mrb[0].mxu0
      %732 = vmatprep.mubr.bf16.mxu0 0
      %733 = vmatmul.mubr.bf16.gmra.mrb[0].mxu0 %v606
      %v734 = vpop.f32.mrb[0].mxu0
      %v735 = vadd.f32 0.0, %v734
      %v736 = vpop.f32.mrb[0].mxu0
      %v737 = vpop.f32.mrb[0].mxu0
      %v738 = vadd.f32 0.0, %v737
      %v739 = vpop.f32.mrb[0].mxu0
      %740 = vmatprep.mubr.bf16.mxu0 0
      %741 = vmatmul.mubr.bf16.gmra.mrb[0].mxu0 %v607
      %v742 = vpop.f32.mrb[0].mxu0
      %v743 = vadd.f32 0.0, %v742
      %v744 = vpop.f32.mrb[0].mxu0
      %v745 = vpop.f32.mrb[0].mxu0
      %v746 = vadd.f32 0.0, %v745
      %v747 = vpop.f32.mrb[0].mxu0
      %748 = vmatprep.mubr.bf16.mxu0 0
      %749 = vmatmul.mubr.bf16.gmra.mrb[0].mxu0 %v608
      %v750 = vpop.f32.mrb[0].mxu0
      %v751 = vadd.f32 0.0, %v750
      %v752 = vpop.f32.mrb[0].mxu0
      %v753 = vpop.f32.mrb[0].mxu0
      %v754 = vadd.f32 0.0, %v753
      %v755 = vpop.f32.mrb[0].mxu0
      %756 = vmatprep.mubr.bf16.mxu0 0
      %757 = vmatmul.mubr.bf16.gmra.mrb[0].mxu0 %v609
      %v758 = vpop.f32.mrb[0].mxu0
      %v759 = vadd.f32 0.0, %v758
      %v760 = vpop.f32.mrb[0].mxu0
      %v761 = vpop.f32.mrb[0].mxu0
      %v762 = vadd.f32 0.0, %v761
      %v763 = vpop.f32.mrb[0].mxu0
      %764 = vmatprep.mubr.bf16.mxu0 0
      %765 = vmatmul.mubr.bf16.gmra.mrb[0].mxu0 %v610
      %v766 = vpop.f32.mrb[0].mxu0
      %v767 = vadd.f32 0.0, %v766
      %v768 = vpop.f32.mrb[0].mxu0
      %v769 = vpop.f32.mrb[0].mxu0
      %v770 = vadd.f32 0.0, %v769
      %v771 = vpop.f32.mrb[0].mxu0
      %772 = vmatprep.mubr.bf16.mxu0 0
      %773 = vmatmul.mubr.bf16.gmra.mrb[0].mxu0 %v611
      %v774 = vpop.f32.mrb[0].mxu0
      %v775 = vadd.f32 0.0, %v774
      %v776 = vpop.f32.mrb[0].mxu0
      %v777 = vpop.f32.mrb[0].mxu0
      %v778 = vadd.f32 0.0, %v777
      %v779 = vpop.f32.mrb[0].mxu0
      %780 = vmatprep.mubr.bf16.mxu0 0
      %781 = vmatmul.mubr.bf16.gmra.mrb[0].mxu0 %v612
      %v782 = vpop.f32.mrb[0].mxu0
      %v783 = vadd.f32 0.0, %v782
      %v784 = vpop.f32.mrb[0].mxu0
      %v785 = vpop.f32.mrb[0].mxu0
      %v786 = vadd.f32 0.0, %v785
      %v787 = vpop.f32.mrb[0].mxu0
      %788 = vmatprep.mubr.bf16.mxu0 0
      %789 = vmatmul.mubr.bf16.gmra.mrb[0].mxu0 %v613
      %v790 = vpop.f32.mrb[0].mxu0
      %v791 = vadd.f32 0.0, %v790
      %v792 = vpop.f32.mrb[0].mxu0
      %v793 = vpop.f32.mrb[0].mxu0
      %v794 = vadd.f32 0.0, %v793
      %v795 = vpop.f32.mrb[0].mxu0
      %796 = vmatprep.mubr.bf16.mxu0 0
      %797 = vmatmul.mubr.bf16.gmra.mrb[0].mxu0 %v614
      %v798 = vpop.f32.mrb[0].mxu0
      %v799 = vadd.f32 0.0, %v798
      %v800 = vpop.f32.mrb[0].mxu0
      %v801 = vpop.f32.mrb[0].mxu0
      %v802 = vadd.f32 0.0, %v801
      %v803 = vpop.f32.mrb[0].mxu0
      %804 = vmatprep.mubr.bf16.mxu0 0
      %805 = vmatmul.mubr.bf16.gmra.mrb[0].mxu0 %v615
      %v806 = vpop.f32.mrb[0].mxu0
      %v807 = vadd.f32 0.0, %v806
      %v808 = vpop.f32.mrb[0].mxu0
      %v809 = vpop.f32.mrb[0].mxu0
      %v810 = vadd.f32 0.0, %v809
      %v811 = vpop.f32.mrb[0].mxu0
      %812 = vmatprep.mubr.bf16.mxu0 0
      %813 = vmatmul.mubr.bf16.gmra.mrb[0].mxu0 %v616
      %v814 = vpop.f32.mrb[0].mxu0
      %v815 = vadd.f32 0.0, %v814
      %v816 = vpop.f32.mrb[0].mxu0
      %v817 = vpop.f32.mrb[0].mxu0
      %v818 = vadd.f32 0.0, %v817
      %v819 = vpop.f32.mrb[0].mxu0
      %820 = vmatprep.mubr.bf16.mxu0 0
      %821 = vmatmul.mubr.bf16.gmra.mrb[0].mxu0 %v617
      %v822 = vpop.f32.mrb[0].mxu0
      %v823 = vadd.f32 0.0, %v822
      %v824 = vpop.f32.mrb[0].mxu0
      %v825 = vpop.f32.mrb[0].mxu0
      %v826 = vadd.f32 0.0, %v825
      %v827 = vpop.f32.mrb[0].mxu0
      %828 = vmatprep.mubr.bf16.mxu0 0
      %829 = vmatmul.mubr.bf16.gmra.mrb[0].mxu0 %v618
      %v830 = vpop.f32.mrb[0].mxu0
      %v831 = vadd.f32 0.0, %v830
      %v832 = vpop.f32.mrb[0].mxu0
      %v833 = vpop.f32.mrb[0].mxu0
      %v834 = vadd.f32 0.0, %v833
      %v835 = vpop.f32.mrb[0].mxu0
      %836 = vmatprep.mubr.bf16.mxu0 0
      %837 = vmatmul.mubr.bf16.gmra.mrb[0].mxu0 %v619
      %v838 = vpop.f32.mrb[0].mxu0
      %v839 = vadd.f32 0.0, %v838
      %v840 = vpop.f32.mrb[0].mxu0
      %v841 = vpop.f32.mrb[0].mxu0
      %v842 = vadd.f32 0.0, %v841
      %v843 = vpop.f32.mrb[0].mxu0
      %844 = vdwg.mxu0
      %v845 = vadd.f32 %v363, %v719
      %v846 = vadd.f32 %v364, %v722
      %v847 = vadd.f32 %v365, %v727
      %v848 = vadd.f32 %v366, %v730
      %v849 = vadd.f32 %v367, %v735
      %v850 = vadd.f32 %v368, %v738
      %v851 = vadd.f32 %v369, %v743
      %v852 = vadd.f32 %v370, %v746
      %v853 = vadd.f32 %v371, %v751
      %v854 = vadd.f32 %v372, %v754
      %v855 = vadd.f32 %v373, %v759
      %v856 = vadd.f32 %v374, %v762
      %v857 = vadd.f32 %v375, %v767
      %v858 = vadd.f32 %v376, %v770
      %v859 = vadd.f32 %v377, %v775
      %v860 = vadd.f32 %v378, %v778
      %v861 = vadd.f32 %v379, %v783
      %v862 = vadd.f32 %v380, %v786
      %v863 = vadd.f32 %v381, %v791
      %v864 = vadd.f32 %v382, %v794
      %v865 = vadd.f32 %v383, %v799
      %v866 = vadd.f32 %v384, %v802
      %v867 = vadd.f32 %v385, %v807
      %v868 = vadd.f32 %v386, %v810
      %v869 = vadd.f32 %v387, %v815
      %v870 = vadd.f32 %v388, %v818
      %v871 = vadd.f32 %v389, %v823
      %v872 = vadd.f32 %v390, %v826
      %v873 = vadd.f32 %v391, %v831
      %v874 = vadd.f32 %v392, %v834
      %v875 = vadd.f32 %v393, %v839
      %v876 = vadd.f32 %v394, %v842
      %877 = vst [vmem:[%s271] sm:$0xff] %v845
      %878 = vst [vmem:[%s271 + $0x8] sm:$0xff] %v846
      %879 = vst [vmem:[%s271 + $0x10] sm:$0xff] %v847
      %880 = vst [vmem:[%s271 + $0x18] sm:$0xff] %v848
      %881 = vst [vmem:[%s271 + $0x20] sm:$0xff] %v849
      %882 = vst [vmem:[%s271 + $0x28] sm:$0xff] %v850
      %883 = vst [vmem:[%s271 + $0x30] sm:$0xff] %v851
      %884 = vst [vmem:[%s271 + $0x38] sm:$0xff] %v852
      %885 = vst [vmem:[%s271 + $0x40] sm:$0xff] %v853
      %886 = vst [vmem:[%s271 + $0x48] sm:$0xff] %v854
      %887 = vst [vmem:[%s271 + $0x50] sm:$0xff] %v855
      %888 = vst [vmem:[%s271 + $0x58] sm:$0xff] %v856
      %889 = vst [vmem:[%s271 + $0x60] sm:$0xff] %v857
      %890 = vst [vmem:[%s271 + $0x68] sm:$0xff] %v858
      %891 = vst [vmem:[%s271 + $0x70] sm:$0xff] %v859
      %892 = vst [vmem:[%s271 + $0x78] sm:$0xff] %v860
      %893 = vst [vmem:[%s271 + $0x80] sm:$0xff] %v861
      %894 = vst [vmem:[%s271 + $0x88] sm:$0xff] %v862
      %895 = vst [vmem:[%s271 + $0x90] sm:$0xff] %v863
      %896 = vst [vmem:[%s271 + $0x98] sm:$0xff] %v864
      %897 = vst [vmem:[%s271 + $0xa0] sm:$0xff] %v865
      %898 = vst [vmem:[%s271 + $0xa8] sm:$0xff] %v866
      %899 = vst [vmem:[%s271 + $0xb0] sm:$0xff] %v867
      %900 = vst [vmem:[%s271 + $0xb8] sm:$0xff] %v868
      %901 = vst [vmem:[%s271 + $0xc0] sm:$0xff] %v869
      %902 = vst [vmem:[%s271 + $0xc8] sm:$0xff] %v870
      %903 = vst [vmem:[%s271 + $0xd0] sm:$0xff] %v871
      %904 = vst [vmem:[%s271 + $0xd8] sm:$0xff] %v872
      %905 = vst [vmem:[%s271 + $0xe0] sm:$0xff] %v873
      %906 = vst [vmem:[%s271 + $0xe8] sm:$0xff] %v874
      %907 = vst [vmem:[%s271 + $0xf0] sm:$0xff] %v875
      %908 = vst [vmem:[%s271 + $0xf8] sm:$0xff] %v876
      %p909 = scmp.lt.s32.totalorder %s17, 1
      %s910 = scalar_select %p909, %s17, 1
      %s911 = smul.addr %s910, 32
      %s912 = smul.addr %s911, 8
      %s913 = scalar_lea.vmem %s6, %s912
      // Predicated region
      $region45: #{resblock_pallas.5} parent=43 // pred_check
        %p914 = pneg %p171
      $region46: #{resblock_pallas.5} parent=43 // pred_check_branch
        %916 = sbr.rel (%p914) target = $region48
      $region47: #{resblock_pallas.5} parent=43 // pred_region
        _
      $region48: #{resblock_pallas.5} parent=43 // pred_fallthru
        _
    $region44: #{resblock_pallas.5} parent=5 // pred_fallthru
      _
    %p917 = scmp.le.s32.totalorder 2, %s12
    // Predicated region
    $region49: #{resblock_pallas.5} parent=5 // pred_check
      %p918 = pneg %p917
    $region50: #{resblock_pallas.5} parent=5 // pred_check_branch
      %920 = sbr.rel (%p918) target = $region52
    $region51: #{resblock_pallas.5} parent=5 // pred_region
      %s921 = ssub.s32 %s12, 2
      // Predicated region
      $region53: #{resblock_pallas.5} parent=51 // pred_check
        %p922 = pneg %p177
      $region54: #{resblock_pallas.5} parent=51 // pred_check_branch
        %924 = sbr.rel (%p922) target = $region56
      $region55: #{resblock_pallas.5} parent=51 // pred_region
        %p925 = scmp.lt.s32.totalorder %s18, 1
        %s926 = scalar_select %p925, %s18, 1
        %s927 = smul.addr %s926, 32
        %s928 = smul.addr %s927, 8
        %s929 = scalar_lea.vmem %s6, %s928
      $region56: #{resblock_pallas.5} parent=51 // pred_fallthru
        _
    $region52: #{resblock_pallas.5} parent=5 // pred_fallthru
      _
  $region6: #{resblock_pallas.5} parent=0 // loop_footer
    %s16 = sadd.s32 1, %s12
  $region7: #{resblock_pallas.5} parent=0 // loop_footer_branch
    %11 = sbr.rel target = $region3
  $region8: #{resblock_pallas.5} parent=0 // loop_exit
    _

// kernel: resblock_pallas.4
$region0: #{resblock_pallas.4}
  #allocation0 [shape = 'u32[]', space=smem, size = 0x4, offset = 0x4, fixed_abs, tag = 'smem constant byte address 0x4 - core index']
  #allocation1 [shape = 'u32[144,128]{1,0:T(1,128)}', space=vmem, size = 0x12000, scoped, tag = 'internal scratch']
  #allocation2 [shape = 'f32[20,20,128]{2,1,0:T(8,128)}', space=vmem, size = 0x3c000, scoped, tag = 'scratch operand']
  %s0 = inlined_call_operand.vmem [shape: f32[2,16,16,128], index: 0, kind: input, shape index: {}]
  %s1 = inlined_call_operand.vmem [shape: f32[2,128], index: 1, kind: input, shape index: {}]
  %s2 = inlined_call_operand.vmem [shape: f32[1,128], index: 2, kind: input, shape index: {}]
  %s3 = inlined_call_operand.vmem [shape: f32[1,128], index: 3, kind: input, shape index: {}]
  %s4 = inlined_call_operand.vmem [shape: bf16[3200,128], index: 4, kind: input, shape index: {}]
  %s5 = inlined_call_operand.vmem [shape: f32[1,128], index: 5, kind: input, shape index: {}]
  %s6 = inlined_call_operand.vmem [shape: f32[2,16,16,128], index: 6, kind: output, shape index: {0}]
  %s7 = inlined_call_operand.vmem [shape: f32[2,128], index: 7, kind: output, shape index: {1}]
  %8 = xla_tuple %s6, %s7
  %s9 = sld [smem:[#allocation0]]
  $region69: #{resblock_pallas.4} parent=0
    _
  %s11 = ssub.s32 1, %s9
  %s12 = scalar_select 0, %s11, %s9
  loop: start=0, step=1, limit=4
  $region2: #{resblock_pallas.4} parent=0 // loop_pre_header
    _
  $region3: #{resblock_pallas.4} parent=0 // loop_header
    %s14 = sphi 0, %s18
    %p15 = scmp.ge.s32.totalorder %s14, 4
    %s24 = sphi 0, %s26
    %s27 = sphi 0, %s24
    %s28 = sphi 0, %s27
    %s44 = sphi 0, %s28
    %s48 = sphi 0, %s48
    %s50 = sphi 0, %s48
    %s51 = sphi 0, %s50
    %s65 = sphi 0, %s51
    %s69 = sphi 0, %s69
    %s71 = sphi 0, %s69
    %s72 = sphi 0, %s71
    %s86 = sphi 0, %s72
    %s90 = sphi 0, %s90
    %s92 = sphi 0, %s90
    %s93 = sphi 0, %s92
    %s107 = sphi 0, %s93
    %s111 = sphi 0, %s111
    %s113 = sphi 0, %s111
    %s114 = sphi 0, %s113
    %s128 = sphi 0, %s114
    %s132 = sphi 0, %s132
    %s134 = sphi 0, %s132
    %s135 = sphi 0, %s134
    %s149 = sphi 0, %s135
    %s155 = sphi 0, %s157
    %s158 = sphi 0, %s155
    %s159 = sphi 0, %s158
    %s175 = sphi 0, %s159
    %s179 = sphi 0, %s179
    %s181 = sphi 0, %s179
    %s182 = sphi 0, %s181
    %s196 = sphi 0, %s182
  $region4: #{resblock_pallas.4} parent=0 // loop_header_branch
    %17 = sbr.rel (%p15) target = $region8
  $region5: #{resblock_pallas.4} parent=0 // loop_body
    %s19 = ssub.s32 %s14, 1
    %s20 = ssub.s32 %s14, 2
    %s21 = sadd.s32 %s14, 1
    %s22 = ssub.s32 %s14, %s21
    %p23 = scmp.eq.s32.totalorder %s22, 0
    %s25 = sadd.s32 %s24, 1
    %s26 = scalar_select %p23, %s24, %s25
    %p29 = pneg %p23
    %p30 = scmp.eq.s32.totalorder %s14, 1
    %p31 = por %p29, %p30
    %p32 = scmp.ne.s32.totalorder %s24, %s27
    %p33 = scmp.eq.s32.totalorder %s14, 0
    %p34 = por %p32, %p33
    %p35 = scmp.ne.s32.totalorder %s24, %s27
    %p36 = scmp.eq.s32.totalorder %s19, 1
    %p37 = por %p35, %p36
    %p38 = scmp.ne.s32.totalorder %s27, %s28
    %p39 = scmp.eq.s32.totalorder %s19, 0
    %p40 = por %p38, %p39
    %p41 = scmp.ne.s32.totalorder %s27, %s28
    %p42 = scmp.eq.s32.totalorder %s20, 1
    %p43 = por %p41, %p42
    %p45 = scmp.ne.s32.totalorder %s28, %s44
    %p46 = scmp.eq.s32.totalorder %s20, 0
    %p47 = por %p45, %p46
    %s49 = sadd.s32 %s48, 1
    %p52 = scmp.eq.s32.totalorder %s14, 1
    %p53 = scmp.ne.s32.totalorder %s48, %s50
    %p54 = scmp.eq.s32.totalorder %s14, 0
    %p55 = por %p53, %p54
    %p56 = scmp.ne.s32.totalorder %s48, %s50
    %p57 = scmp.eq.s32.totalorder %s19, 1
    %p58 = por %p56, %p57
    %p59 = scmp.ne.s32.totalorder %s50, %s51
    %p60 = scmp.eq.s32.totalorder %s19, 0
    %p61 = por %p59, %p60
    %p62 = scmp.ne.s32.totalorder %s50, %s51
    %p63 = scmp.eq.s32.totalorder %s20, 1
    %p64 = por %p62, %p63
    %p66 = scmp.ne.s32.totalorder %s51, %s65
    %p67 = scmp.eq.s32.totalorder %s20, 0
    %p68 = por %p66, %p67
    %s70 = sadd.s32 %s69, 1
    %p73 = scmp.eq.s32.totalorder %s14, 1
    %p74 = scmp.ne.s32.totalorder %s69, %s71
    %p75 = scmp.eq.s32.totalorder %s14, 0
    %p76 = por %p74, %p75
    %p77 = scmp.ne.s32.totalorder %s69, %s71
    %p78 = scmp.eq.s32.totalorder %s19, 1
    %p79 = por %p77, %p78
    %p80 = scmp.ne.s32.totalorder %s71, %s72
    %p81 = scmp.eq.s32.totalorder %s19, 0
    %p82 = por %p80, %p81
    %p83 = scmp.ne.s32.totalorder %s71, %s72
    %p84 = scmp.eq.s32.totalorder %s20, 1
    %p85 = por %p83, %p84
    %p87 = scmp.ne.s32.totalorder %s72, %s86
    %p88 = scmp.eq.s32.totalorder %s20, 0
    %p89 = por %p87, %p88
    %s91 = sadd.s32 %s90, 1
    %p94 = scmp.eq.s32.totalorder %s14, 1
    %p95 = scmp.ne.s32.totalorder %s90, %s92
    %p96 = scmp.eq.s32.totalorder %s14, 0
    %p97 = por %p95, %p96
    %p98 = scmp.ne.s32.totalorder %s90, %s92
    %p99 = scmp.eq.s32.totalorder %s19, 1
    %p100 = por %p98, %p99
    %p101 = scmp.ne.s32.totalorder %s92, %s93
    %p102 = scmp.eq.s32.totalorder %s19, 0
    %p103 = por %p101, %p102
    %p104 = scmp.ne.s32.totalorder %s92, %s93
    %p105 = scmp.eq.s32.totalorder %s20, 1
    %p106 = por %p104, %p105
    %p108 = scmp.ne.s32.totalorder %s93, %s107
    %p109 = scmp.eq.s32.totalorder %s20, 0
    %p110 = por %p108, %p109
    %s112 = sadd.s32 %s111, 1
    %p115 = scmp.eq.s32.totalorder %s14, 1
    %p116 = scmp.ne.s32.totalorder %s111, %s113
    %p117 = scmp.eq.s32.totalorder %s14, 0
    %p118 = por %p116, %p117
    %p119 = scmp.ne.s32.totalorder %s111, %s113
    %p120 = scmp.eq.s32.totalorder %s19, 1
    %p121 = por %p119, %p120
    %p122 = scmp.ne.s32.totalorder %s113, %s114
    %p123 = scmp.eq.s32.totalorder %s19, 0
    %p124 = por %p122, %p123
    %p125 = scmp.ne.s32.totalorder %s113, %s114
    %p126 = scmp.eq.s32.totalorder %s20, 1
    %p127 = por %p125, %p126
    %p129 = scmp.ne.s32.totalorder %s114, %s128
    %p130 = scmp.eq.s32.totalorder %s20, 0
    %p131 = por %p129, %p130
    %s133 = sadd.s32 %s132, 1
    %p136 = scmp.eq.s32.totalorder %s14, 1
    %p137 = scmp.ne.s32.totalorder %s132, %s134
    %p138 = scmp.eq.s32.totalorder %s14, 0
    %p139 = por %p137, %p138
    %p140 = scmp.ne.s32.totalorder %s132, %s134
    %p141 = scmp.eq.s32.totalorder %s19, 1
    %p142 = por %p140, %p141
    %p143 = scmp.ne.s32.totalorder %s134, %s135
    %p144 = scmp.eq.s32.totalorder %s19, 0
    %p145 = por %p143, %p144
    %p146 = scmp.ne.s32.totalorder %s134, %s135
    %p147 = scmp.eq.s32.totalorder %s20, 1
    %p148 = por %p146, %p147
    %p150 = scmp.ne.s32.totalorder %s135, %s149
    %p151 = scmp.eq.s32.totalorder %s20, 0
    %p152 = por %p150, %p151
    %s153 = ssub.s32 %s14, %s21
    %p154 = scmp.eq.s32.totalorder %s153, 0
    %s156 = sadd.s32 %s155, 1
    %s157 = scalar_select %p154, %s155, %s156
    %p160 = pneg %p154
    %p161 = scmp.eq.s32.totalorder %s14, 1
    %p162 = por %p160, %p161
    %p163 = scmp.ne.s32.totalorder %s155, %s158
    %p164 = scmp.eq.s32.totalorder %s14, 0
    %p165 = por %p163, %p164
    %p166 = scmp.ne.s32.totalorder %s155, %s158
    %p167 = scmp.eq.s32.totalorder %s19, 1
    %p168 = por %p166, %p167
    %p169 = scmp.ne.s32.totalorder %s158, %s159
    %p170 = scmp.eq.s32.totalorder %s19, 0
    %p171 = por %p169, %p170
    %p172 = scmp.ne.s32.totalorder %s158, %s159
    %p173 = scmp.eq.s32.totalorder %s20, 1
    %p174 = por %p172, %p173
    %p176 = scmp.ne.s32.totalorder %s159, %s175
    %p177 = scmp.eq.s32.totalorder %s20, 0
    %p178 = por %p176, %p177
    %s180 = sadd.s32 %s179, 1
    %p183 = scmp.eq.s32.totalorder %s14, 1
    %p184 = scmp.ne.s32.totalorder %s179, %s181
    %p185 = scmp.eq.s32.totalorder %s14, 0
    %p186 = por %p184, %p185
    %p187 = scmp.ne.s32.totalorder %s179, %s181
    %p188 = scmp.eq.s32.totalorder %s19, 1
    %p189 = por %p187, %p188
    %p190 = scmp.ne.s32.totalorder %s181, %s182
    %p191 = scmp.eq.s32.totalorder %s19, 0
    %p192 = por %p190, %p191
    %p193 = scmp.ne.s32.totalorder %s181, %s182
    %p194 = scmp.eq.s32.totalorder %s20, 1
    %p195 = por %p193, %p194
    %p197 = scmp.ne.s32.totalorder %s182, %s196
    %p198 = scmp.eq.s32.totalorder %s20, 0
    %p199 = por %p197, %p198
    %p200 = scmp.le.s32.totalorder 1, %s14
    %p201 = scmp.lt.s32.totalorder %s14, 3
    %p202 = pnand %p200, %p201
    %p203 = pneg %p202
    // Predicated region
    $region9: #{resblock_pallas.4} parent=5 // pred_check
      _
    $region10: #{resblock_pallas.4} parent=5 // pred_check_branch
      %205 = sbr.rel (%p202) target = $region12
    $region11: #{resblock_pallas.4} parent=5 // pred_region
      %s206 = ssub.s32 %s14, 1
      // Predicated region
      $region13: #{resblock_pallas.4} parent=11 // pred_check
        %p207 = pneg %p61
      $region14: #{resblock_pallas.4} parent=11 // pred_check_branch
        %209 = sbr.rel (%p207) target = $region16
      $region15: #{resblock_pallas.4} parent=11 // pred_region
        _
      $region16: #{resblock_pallas.4} parent=11 // pred_fallthru
        _
      // Predicated region
      $region17: #{resblock_pallas.4} parent=11 // pred_check
        %p210 = pneg %p82
      $region18: #{resblock_pallas.4} parent=11 // pred_check_branch
        %212 = sbr.rel (%p210) target = $region20
      $region19: #{resblock_pallas.4} parent=11 // pred_region
        _
      $region20: #{resblock_pallas.4} parent=11 // pred_fallthru
        _
      // Predicated region
      $region21: #{resblock_pallas.4} parent=11 // pred_check
        %p213 = pneg %p103
      $region22: #{resblock_pallas.4} parent=11 // pred_check_branch
        %215 = sbr.rel (%p213) target = $region24
      $region23: #{resblock_pallas.4} parent=11 // pred_region
        _
      $region24: #{resblock_pallas.4} parent=11 // pred_fallthru
        _
      // Predicated region
      $region25: #{resblock_pallas.4} parent=11 // pred_check
        %p216 = pneg %p124
      $region26: #{resblock_pallas.4} parent=11 // pred_check_branch
        %218 = sbr.rel (%p216) target = $region28
      $region27: #{resblock_pallas.4} parent=11 // pred_region
        _
      $region28: #{resblock_pallas.4} parent=11 // pred_fallthru
        _
      // Predicated region
      $region29: #{resblock_pallas.4} parent=11 // pred_check
        %p219 = pneg %p145
      $region30: #{resblock_pallas.4} parent=11 // pred_check_branch
        %221 = sbr.rel (%p219) target = $region32
      $region31: #{resblock_pallas.4} parent=11 // pred_region
        _
      $region32: #{resblock_pallas.4} parent=11 // pred_fallthru
        _
    $region12: #{resblock_pallas.4} parent=5 // pred_fallthru
      _
    %p222 = scmp.lt.s32.totalorder %s14, 2
    // Predicated region
    $region33: #{resblock_pallas.4} parent=5 // pred_check
      %p223 = pneg %p222
    $region34: #{resblock_pallas.4} parent=5 // pred_check_branch
      %225 = sbr.rel (%p223) target = $region36
    $region35: #{resblock_pallas.4} parent=5 // pred_region
      // Predicated region
      $region37: #{resblock_pallas.4} parent=35 // pred_check
        %p226 = pneg %p34
      $region38: #{resblock_pallas.4} parent=35 // pred_check_branch
        %228 = sbr.rel (%p226) target = $region40
      $region39: #{resblock_pallas.4} parent=35 // pred_region
        %p229 = scmp.lt.s32.totalorder %s14, 1
        %s230 = scalar_select %p229, %s14, 1
        %s231 = smul.addr %s230, 32
        %s232 = smul.addr %s231, 8
        %s233 = scalar_lea.vmem %s0, %s232
      $region40: #{resblock_pallas.4} parent=35 // pred_fallthru
        _
    $region36: #{resblock_pallas.4} parent=5 // pred_fallthru
      _
    %p234 = scmp.le.s32.totalorder 1, %s14
    %p235 = scmp.lt.s32.totalorder %s14, 3
    %p236 = pnand %p234, %p235
    %p237 = pneg %p236
    // Predicated region
    $region41: #{resblock_pallas.4} parent=5 // pred_check
      _
    $region42: #{resblock_pallas.4} parent=5 // pred_check_branch
      %239 = sbr.rel (%p236) target = $region44
    $region43: #{resblock_pallas.4} parent=5 // pred_region
      %s240 = ssub.s32 %s14, 1
      %p241 = scmp.lt.s32.totalorder %s19, 1
      %s242 = scalar_select %p241, %s19, 1
      %s243 = smul.addr %s242, 32
      %s244 = smul.addr %s243, 8
      %s245 = scalar_lea.vmem %s0, %s244
      %p246 = pneg %p40
      %p247 = pneg %p37
      %p248 = pneg %p61
      %p249 = pneg %p58
      %p250 = pneg %p82
      %p251 = pneg %p79
      %p252 = pneg %p103
      %p253 = pneg %p100
      %p254 = pneg %p124
      %p255 = pneg %p121
      %p256 = pneg %p145
      %p257 = pneg %p142
      %p258 = pneg %p171
      %p259 = pneg %p168
      %p260 = scmp.lt.s32.totalorder %s19, 1
      %s261 = scalar_select %p260, %s19, 1
      %s262 = smul.addr %s261, 32
      %s263 = smul.addr %s262, 8
      %s264 = scalar_lea.vmem %s6, %s263
      %p265 = pneg %p192
      %p266 = pneg %p189
      %p267 = scmp.lt.s32.totalorder %s19, 1
      %s268 = scalar_select %p267, %s19, 1
      %s269 = smul.addr %s268, 32
      %s270 = smul.addr %s269, 8
      %s271 = scalar_lea.vmem %s0, %s270
      %p272 = scmp.lt.s32.totalorder %s19, 1
      %s273 = scalar_select %p272, %s19, 1
      %s274 = smul.addr %s273, 32
      %s275 = smul.addr %s274, 8
      %s276 = scalar_lea.vmem %s6, %s275
      %v278 = vld [vmem:[%s1] sm:$0x1]
      %v279 = vmul.f32 %v278, 0.001953125
      %v280 = vld [vmem:[%s1 + $0x1] sm:$0x1]
      %v281 = vmul.f32 %v280, 0.001953125
      %v282 = vmul.f32 %v279, %v279
      %v283 = vsub.f32 %v281, %v282
      %v284 = vmax.f32 %v283, 0.0
      %v285 = vld [vmem:[%s2] sm:$0x1]
      %v286 = vadd.f32 %v284, 1e-05
      %v287 = vrsqrt.pop %v286
      %v288 = vmul.f32 %v285, %v287
      %v289 = vld [vmem:[%s3] sm:$0x1]
      %v290 = vmul.f32 %v279, %v288
      %v291 = vsub.f32 %v289, %v290
      %v292 = vld [vmem:[%s271] sm:$0xff]
      %v293 = vld [vmem:[%s271 + $0x8] sm:$0xff]
      %v294 = vld [vmem:[%s271 + $0x10] sm:$0xff]
      %v295 = vld [vmem:[%s271 + $0x18] sm:$0xff]
      %v296 = vld [vmem:[%s271 + $0x20] sm:$0xff]
      %v297 = vld [vmem:[%s271 + $0x28] sm:$0xff]
      %v298 = vld [vmem:[%s271 + $0x30] sm:$0xff]
      %v299 = vld [vmem:[%s271 + $0x38] sm:$0xff]
      %v300 = vld [vmem:[%s271 + $0x40] sm:$0xff]
      %v301 = vld [vmem:[%s271 + $0x48] sm:$0xff]
      %v302 = vld [vmem:[%s271 + $0x50] sm:$0xff]
      %v303 = vld [vmem:[%s271 + $0x58] sm:$0xff]
      %v304 = vld [vmem:[%s271 + $0x60] sm:$0xff]
      %v305 = vld [vmem:[%s271 + $0x68] sm:$0xff]
      %v306 = vld [vmem:[%s271 + $0x70] sm:$0xff]
      %v307 = vld [vmem:[%s271 + $0x78] sm:$0xff]
      %v308 = vld [vmem:[%s271 + $0x80] sm:$0xff]
      %v309 = vld [vmem:[%s271 + $0x88] sm:$0xff]
      %v310 = vld [vmem:[%s271 + $0x90] sm:$0xff]
      %v311 = vld [vmem:[%s271 + $0x98] sm:$0xff]
      %v312 = vld [vmem:[%s271 + $0xa0] sm:$0xff]
      %v313 = vld [vmem:[%s271 + $0xa8] sm:$0xff]
      %v314 = vld [vmem:[%s271 + $0xb0] sm:$0xff]
      %v315 = vld [vmem:[%s271 + $0xb8] sm:$0xff]
      %v316 = vld [vmem:[%s271 + $0xc0] sm:$0xff]
      %v317 = vld [vmem:[%s271 + $0xc8] sm:$0xff]
      %v318 = vld [vmem:[%s271 + $0xd0] sm:$0xff]
      %v319 = vld [vmem:[%s271 + $0xd8] sm:$0xff]
      %v320 = vld [vmem:[%s271 + $0xe0] sm:$0xff]
      %v321 = vld [vmem:[%s271 + $0xe8] sm:$0xff]
      %v322 = vld [vmem:[%s271 + $0xf0] sm:$0xff]
      %v323 = vld [vmem:[%s271 + $0xf8] sm:$0xff]
      %v325 = vlaneseq
      %v326 = vshrl.u32 %v325, 7
      %v327 = vsub.s32 0, %v326
      %v328 = vrot.slane %v288, %v327
      %v330 = vmul.f32 %v292, %v328
      %v331 = vmul.f32 %v293, %v328
      %v332 = vmul.f32 %v294, %v328
      %v333 = vmul.f32 %v295, %v328
      %v334 = vmul.f32 %v296, %v328
      %v335 = vmul.f32 %v297, %v328
      %v336 = vmul.f32 %v298, %v328
      %v337 = vmul.f32 %v299, %v328
      %v338 = vmul.f32 %v300, %v328
      %v339 = vmul.f32 %v301, %v328
      %v340 = vmul.f32 %v302, %v328
      %v341 = vmul.f32 %v303, %v328
      %v342 = vmul.f32 %v304, %v328
      %v343 = vmul.f32 %v305, %v328
      %v344 = vmul.f32 %v306, %v328
      %v345 = vmul.f32 %v307, %v328
      %v346 = vmul.f32 %v308, %v328
      %v347 = vmul.f32 %v309, %v328
      %v348 = vmul.f32 %v310, %v328
      %v349 = vmul.f32 %v311, %v328
      %v350 = vmul.f32 %v312, %v328
      %v351 = vmul.f32 %v313, %v328
      %v352 = vmul.f32 %v314, %v328
      %v353 = vmul.f32 %v315, %v328
      %v354 = vmul.f32 %v316, %v328
      %v355 = vmul.f32 %v317, %v328
      %v356 = vmul.f32 %v318, %v328
      %v357 = vmul.f32 %v319, %v328
      %v358 = vmul.f32 %v320, %v328
      %v359 = vmul.f32 %v321, %v328
      %v360 = vmul.f32 %v322, %v328
      %v361 = vmul.f32 %v323, %v328
      %v363 = vlaneseq
      %v364 = vshrl.u32 %v363, 7
      %v365 = vsub.s32 0, %v364
      %v366 = vrot.slane %v291, %v365
      %v368 = vadd.f32 %v330, %v366
      %v369 = vadd.f32 %v331, %v366
      %v370 = vadd.f32 %v332, %v366
      %v371 = vadd.f32 %v333, %v366
      %v372 = vadd.f32 %v334, %v366
      %v373 = vadd.f32 %v335, %v366
      %v374 = vadd.f32 %v336, %v366
      %v375 = vadd.f32 %v337, %v366
      %v376 = vadd.f32 %v338, %v366
      %v377 = vadd.f32 %v339, %v366
      %v378 = vadd.f32 %v340, %v366
      %v379 = vadd.f32 %v341, %v366
      %v380 = vadd.f32 %v342, %v366
      %v381 = vadd.f32 %v343, %v366
      %v382 = vadd.f32 %v344, %v366
      %v383 = vadd.f32 %v345, %v366
      %v384 = vadd.f32 %v346, %v366
      %v385 = vadd.f32 %v347, %v366
      %v386 = vadd.f32 %v348, %v366
      %v387 = vadd.f32 %v349, %v366
      %v388 = vadd.f32 %v350, %v366
      %v389 = vadd.f32 %v351, %v366
      %v390 = vadd.f32 %v352, %v366
      %v391 = vadd.f32 %v353, %v366
      %v392 = vadd.f32 %v354, %v366
      %v393 = vadd.f32 %v355, %v366
      %v394 = vadd.f32 %v356, %v366
      %v395 = vadd.f32 %v357, %v366
      %v396 = vadd.f32 %v358, %v366
      %v397 = vadd.f32 %v359, %v366
      %v398 = vadd.f32 %v360, %v366
      %v399 = vadd.f32 %v361, %v366
      %v400 = vmax.f32 %v368, 0.0
      %v401 = vmax.f32 %v369, 0.0
      %v402 = vmax.f32 %v370, 0.0
      %v403 = vmax.f32 %v371, 0.0
      %v404 = vmax.f32 %v372, 0.0
      %v405 = vmax.f32 %v373, 0.0
      %v406 = vmax.f32 %v374, 0.0
      %v407 = vmax.f32 %v375, 0.0
      %v408 = vmax.f32 %v376, 0.0
      %v409 = vmax.f32 %v377, 0.0
      %v410 = vmax.f32 %v378, 0.0
      %v411 = vmax.f32 %v379, 0.0
      %v412 = vmax.f32 %v380, 0.0
      %v413 = vmax.f32 %v381, 0.0
      %v414 = vmax.f32 %v382, 0.0
      %v415 = vmax.f32 %v383, 0.0
      %v416 = vmax.f32 %v384, 0.0
      %v417 = vmax.f32 %v385, 0.0
      %v418 = vmax.f32 %v386, 0.0
      %v419 = vmax.f32 %v387, 0.0
      %v420 = vmax.f32 %v388, 0.0
      %v421 = vmax.f32 %v389, 0.0
      %v422 = vmax.f32 %v390, 0.0
      %v423 = vmax.f32 %v391, 0.0
      %v424 = vmax.f32 %v392, 0.0
      %v425 = vmax.f32 %v393, 0.0
      %v426 = vmax.f32 %v394, 0.0
      %v427 = vmax.f32 %v395, 0.0
      %v428 = vmax.f32 %v396, 0.0
      %v429 = vmax.f32 %v397, 0.0
      %v430 = vmax.f32 %v398, 0.0
      %v431 = vmax.f32 %v399, 0.0
      %432 = vst [vmem:[#allocation2] sm:$0xff] 0.0
      %433 = vst [vmem:[#allocation2 + $0x8] sm:$0xff] 0.0
      %434 = vst [vmem:[#allocation2 + $0x10] sm:$0xf] 0.0
      %435 = vst [vmem:[#allocation2 + $0x18] sm:$0xff] 0.0
      %436 = vst [vmem:[#allocation2 + $0x20] sm:$0xff] 0.0
      %437 = vst [vmem:[#allocation2 + $0x28] sm:$0xf] 0.0
      %438 = vst [vmem:[#allocation2 + $0x30] sm:$0xff] 0.0
      %439 = vst [vmem:[#allocation2 + $0x38] sm:$0xff] 0.0
      %440 = vst [vmem:[#allocation2 + $0x40] sm:$0xf] 0.0
      %441 = vst [vmem:[#allocation2 + $0x48] sm:$0xff] 0.0
      %442 = vst [vmem:[#allocation2 + $0x50] sm:$0xff] 0.0
      %443 = vst [vmem:[#allocation2 + $0x58] sm:$0xf] 0.0
      %444 = vst [vmem:[#allocation2 + $0x60] sm:$0xff] 0.0
      %445 = vst [vmem:[#allocation2 + $0x68] sm:$0xff] 0.0
      %446 = vst [vmem:[#allocation2 + $0x70] sm:$0xf] 0.0
      %447 = vst [vmem:[#allocation2 + $0x78] sm:$0xff] 0.0
      %448 = vst [vmem:[#allocation2 + $0x80] sm:$0xff] 0.0
      %449 = vst [vmem:[#allocation2 + $0x88] sm:$0xf] 0.0
      %450 = vst [vmem:[#allocation2 + $0x90] sm:$0xff] 0.0
      %451 = vst [vmem:[#allocation2 + $0x98] sm:$0xff] 0.0
      %452 = vst [vmem:[#allocation2 + $0xa0] sm:$0xf] 0.0
      %453 = vst [vmem:[#allocation2 + $0xa8] sm:$0xff] 0.0
      %454 = vst [vmem:[#allocation2 + $0xb0] sm:$0xff] 0.0
      %455 = vst [vmem:[#allocation2 + $0xb8] sm:$0xf] 0.0
      %456 = vst [vmem:[#allocation2 + $0xc0] sm:$0xff] 0.0
      %457 = vst [vmem:[#allocation2 + $0xc8] sm:$0xff] 0.0
      %458 = vst [vmem:[#allocation2 + $0xd0] sm:$0xf] 0.0
      %459 = vst [vmem:[#allocation2 + $0xd8] sm:$0xff] 0.0
      %460 = vst [vmem:[#allocation2 + $0xe0] sm:$0xff] 0.0
      %461 = vst [vmem:[#allocation2 + $0xe8] sm:$0xf] 0.0
      %462 = vst [vmem:[#allocation2 + $0xf0] sm:$0xff] 0.0
      %463 = vst [vmem:[#allocation2 + $0xf8] sm:$0xff] 0.0
      %464 = vst [vmem:[#allocation2 + $0x100] sm:$0xf] 0.0
      %465 = vst [vmem:[#allocation2 + $0x108] sm:$0xff] 0.0
      %466 = vst [vmem:[#allocation2 + $0x110] sm:$0xff] 0.0
      %467 = vst [vmem:[#allocation2 + $0x118] sm:$0xf] 0.0
      %468 = vst [vmem:[#allocation2 + $0x120] sm:$0xff] 0.0
      %469 = vst [vmem:[#allocation2 + $0x128] sm:$0xff] 0.0
      %470 = vst [vmem:[#allocation2 + $0x130] sm:$0xf] 0.0
      %471 = vst [vmem:[#allocation2 + $0x138] sm:$0xff] 0.0
      %472 = vst [vmem:[#allocation2 + $0x140] sm:$0xff] 0.0
      %473 = vst [vmem:[#allocation2 + $0x148] sm:$0xf] 0.0
      %474 = vst [vmem:[#allocation2 + $0x150] sm:$0xff] 0.0
      %475 = vst [vmem:[#allocation2 + $0x158] sm:$0xff] 0.0
      %476 = vst [vmem:[#allocation2 + $0x160] sm:$0xf] 0.0
      %477 = vst [vmem:[#allocation2 + $0x168] sm:$0xff] 0.0
      %478 = vst [vmem:[#allocation2 + $0x170] sm:$0xff] 0.0
      %479 = vst [vmem:[#allocation2 + $0x178] sm:$0xf] 0.0
      %480 = vst [vmem:[#allocation2 + $0x180] sm:$0xff] 0.0
      %481 = vst [vmem:[#allocation2 + $0x188] sm:$0xff] 0.0
      %482 = vst [vmem:[#allocation2 + $0x190] sm:$0xf] 0.0
      %483 = vst [vmem:[#allocation2 + $0x198] sm:$0xff] 0.0
      %484 = vst [vmem:[#allocation2 + $0x1a0] sm:$0xff] 0.0
      %485 = vst [vmem:[#allocation2 + $0x1a8] sm:$0xf] 0.0
      %486 = vst [vmem:[#allocation2 + $0x1b0] sm:$0xff] 0.0
      %487 = vst [vmem:[#allocation2 + $0x1b8] sm:$0xff] 0.0
      %488 = vst [vmem:[#allocation2 + $0x1c0] sm:$0xf] 0.0
      %489 = vst [vmem:[#allocation2 + $0x1c8] sm:$0xff] 0.0
      %490 = vst [vmem:[#allocation2 + $0x1d0] sm:$0xff] 0.0
      %491 = vst [vmem:[#allocation2 + $0x1d8] sm:$0xf] 0.0
      %s492 = scalar_lea.vmem [#allocation2], 48
      %493 = vst [vmem:[%s492 + $0x2] sm:$0xff] %v400
      %494 = vst [vmem:[%s492 + $0xa] sm:$0xff] %v401
      %495 = vst [vmem:[%s492 + $0x1a] sm:$0xff] %v402
      %496 = vst [vmem:[%s492 + $0x22] sm:$0xff] %v403
      %497 = vst [vmem:[%s492 + $0x32] sm:$0xff] %v404
      %498 = vst [vmem:[%s492 + $0x3a] sm:$0xff] %v405
      %499 = vst [vmem:[%s492 + $0x4a] sm:$0xff] %v406
      %500 = vst [vmem:[%s492 + $0x52] sm:$0xff] %v407
      %501 = vst [vmem:[%s492 + $0x62] sm:$0xff] %v408
      %502 = vst [vmem:[%s492 + $0x6a] sm:$0xff] %v409
      %503 = vst [vmem:[%s492 + $0x7a] sm:$0xff] %v410
      %504 = vst [vmem:[%s492 + $0x82] sm:$0xff] %v411
      %505 = vst [vmem:[%s492 + $0x92] sm:$0xff] %v412
      %506 = vst [vmem:[%s492 + $0x9a] sm:$0xff] %v413
      %507 = vst [vmem:[%s492 + $0xaa] sm:$0xff] %v414
      %508 = vst [vmem:[%s492 + $0xb2] sm:$0xff] %v415
      %509 = vst [vmem:[%s492 + $0xc2] sm:$0xff] %v416
      %510 = vst [vmem:[%s492 + $0xca] sm:$0xff] %v417
      %511 = vst [vmem:[%s492 + $0xda] sm:$0xff] %v418
      %512 = vst [vmem:[%s492 + $0xe2] sm:$0xff] %v419
      %513 = vst [vmem:[%s492 + $0xf2] sm:$0xff] %v420
      %514 = vst [vmem:[%s492 + $0xfa] sm:$0xff] %v421
      %515 = vst [vmem:[%s492 + $0x10a] sm:$0xff] %v422
      %516 = vst [vmem:[%s492 + $0x112] sm:$0xff] %v423
      %517 = vst [vmem:[%s492 + $0x122] sm:$0xff] %v424
      %518 = vst [vmem:[%s492 + $0x12a] sm:$0xff] %v425
      %519 = vst [vmem:[%s492 + $0x13a] sm:$0xff] %v426
      %520 = vst [vmem:[%s492 + $0x142] sm:$0xff] %v427
      %521 = vst [vmem:[%s492 + $0x152] sm:$0xff] %v428
      %522 = vst [vmem:[%s492 + $0x15a] sm:$0xff] %v429
      %523 = vst [vmem:[%s492 + $0x16a] sm:$0xff] %v430
      %524 = vst [vmem:[%s492 + $0x172] sm:$0xff] %v431
      %v525 = vld [vmem:[#allocation2] sm:$0xff]
      %v526 = vld [vmem:[#allocation2 + $0x8] sm:$0xff]
      %v527 = vld [vmem:[#allocation2 + $0x10] sm:$0xf]
      %v528 = vld [vmem:[#allocation2 + $0x18] sm:$0xff]
      %v529 = vld [vmem:[#allocation2 + $0x20] sm:$0xff]
      %v530 = vld [vmem:[#allocation2 + $0x28] sm:$0xf]
      %v531 = vld [vmem:[#allocation2 + $0x30] sm:$0xff]
      %v532 = vld [vmem:[#allocation2 + $0x38] sm:$0xff]
      %v533 = vld [vmem:[#allocation2 + $0x40] sm:$0xf]
      %v534 = vld [vmem:[#allocation2 + $0x48] sm:$0xff]
      %v535 = vld [vmem:[#allocation2 + $0x50] sm:$0xff]
      %v536 = vld [vmem:[#allocation2 + $0x58] sm:$0xf]
      %v537 = vld [vmem:[#allocation2 + $0x60] sm:$0xff]
      %v538 = vld [vmem:[#allocation2 + $0x68] sm:$0xff]
      %v539 = vld [vmem:[#allocation2 + $0x70] sm:$0xf]
      %v540 = vld [vmem:[#allocation2 + $0x78] sm:$0xff]
      %v541 = vld [vmem:[#allocation2 + $0x80] sm:$0xff]
      %v542 = vld [vmem:[#allocation2 + $0x88] sm:$0xf]
      %v543 = vld [vmem:[#allocation2 + $0x90] sm:$0xff]
      %v544 = vld [vmem:[#allocation2 + $0x98] sm:$0xff]
      %v545 = vld [vmem:[#allocation2 + $0xa0] sm:$0xf]
      %v546 = vld [vmem:[#allocation2 + $0xa8] sm:$0xff]
      %v547 = vld [vmem:[#allocation2 + $0xb0] sm:$0xff]
      %v548 = vld [vmem:[#allocation2 + $0xb8] sm:$0xf]
      %v549 = vld [vmem:[#allocation2 + $0xc0] sm:$0xff]
      %v550 = vld [vmem:[#allocation2 + $0xc8] sm:$0xff]
      %v551 = vld [vmem:[#allocation2 + $0xd0] sm:$0xf]
      %v552 = vld [vmem:[#allocation2 + $0xd8] sm:$0xff]
      %v553 = vld [vmem:[#allocation2 + $0xe0] sm:$0xff]
      %v554 = vld [vmem:[#allocation2 + $0xe8] sm:$0xf]
      %v555 = vld [vmem:[#allocation2 + $0xf0] sm:$0xff]
      %v556 = vld [vmem:[#allocation2 + $0xf8] sm:$0xff]
      %v557 = vld [vmem:[#allocation2 + $0x100] sm:$0xf]
      %v558 = vld [vmem:[#allocation2 + $0x108] sm:$0xff]
      %v559 = vld [vmem:[#allocation2 + $0x110] sm:$0xff]
      %v560 = vld [vmem:[#allocation2 + $0x118] sm:$0xf]
      %v561 = vld [vmem:[#allocation2 + $0x120] sm:$0xff]
      %v562 = vld [vmem:[#allocation2 + $0x128] sm:$0xff]
      %v563 = vld [vmem:[#allocation2 + $0x130] sm:$0xf]
      %v564 = vld [vmem:[#allocation2 + $0x138] sm:$0xff]
      %v565 = vld [vmem:[#allocation2 + $0x140] sm:$0xff]
      %v566 = vld [vmem:[#allocation2 + $0x148] sm:$0xf]
      %v567 = vld [vmem:[#allocation2 + $0x150] sm:$0xff]
      %v568 = vld [vmem:[#allocation2 + $0x158] sm:$0xff]
      %v569 = vld [vmem:[#allocation2 + $0x160] sm:$0xf]
      %v570 = vld [vmem:[#allocation2 + $0x168] sm:$0xff]
      %v571 = vld [vmem:[#allocation2 + $0x170] sm:$0xff]
      %v572 = vld [vmem:[#allocation2 + $0x178] sm:$0xf]
      %v573 = vld [vmem:[#allocation2 + $0x180] sm:$0xff]
      %v574 = vld [vmem:[#allocation2 + $0x188] sm:$0xff]
      %v575 = vld [vmem:[#allocation2 + $0x190] sm:$0xf]
      %v576 = vld [vmem:[#allocation2 + $0x198] sm:$0xff]
      %v577 = vld [vmem:[#allocation2 + $0x1a0] sm:$0xff]
      %v578 = vld [vmem:[#allocation2 + $0x1a8] sm:$0xf]
      %v579 = vld [vmem:[#allocation2 + $0x1b0] sm:$0xff]
      %v580 = vld [vmem:[#allocation2 + $0x1b8] sm:$0xff]
      %v581 = vld [vmem:[#allocation2 + $0x1c0] sm:$0xf]
      %v582 = vld [vmem:[#allocation2 + $0x1c8] sm:$0xff]
      %v583 = vld [vmem:[#allocation2 + $0x1d0] sm:$0xff]
      %v584 = vld [vmem:[#allocation2 + $0x1d8] sm:$0xf]
      %vm633 = vcmask 1046528
      %v634 = vrot.slane %v525, 1
      %v635 = vrot.slane %v526, 1
      %v636 = vsel %vm633, %v634, %v635
      %v637 = vrot.slane %v527, 1
      %v638 = vsel %vm633, %v635, %v637
      %v639 = vrot.slane %v528, 1
      %v640 = vrot.slane %v529, 1
      %v641 = vsel %vm633, %v639, %v640
      %v642 = vrot.slane %v530, 1
      %v643 = vsel %vm633, %v640, %v642
      %v644 = vrot.slane %v531, 1
      %v645 = vrot.slane %v532, 1
      %v646 = vsel %vm633, %v644, %v645
      %v647 = vrot.slane %v533, 1
      %v648 = vsel %vm633, %v645, %v647
      %v649 = vrot.slane %v534, 1
      %v650 = vrot.slane %v535, 1
      %v651 = vsel %vm633, %v649, %v650
      %v652 = vrot.slane %v536, 1
      %v653 = vsel %vm633, %v650, %v652
      %v654 = vrot.slane %v537, 1
      %v655 = vrot.slane %v538, 1
      %v656 = vsel %vm633, %v654, %v655
      %v657 = vrot.slane %v539, 1
      %v658 = vsel %vm633, %v655, %v657
      %v659 = vrot.slane %v540, 1
      %v660 = vrot.slane %v541, 1
      %v661 = vsel %vm633, %v659, %v660
      %v662 = vrot.slane %v542, 1
      %v663 = vsel %vm633, %v660, %v662
      %v664 = vrot.slane %v543, 1
      %v665 = vrot.slane %v544, 1
      %v666 = vsel %vm633, %v664, %v665
      %v667 = vrot.slane %v545, 1
      %v668 = vsel %vm633, %v665, %v667
      %v669 = vrot.slane %v546, 1
      %v670 = vrot.slane %v547, 1
      %v671 = vsel %vm633, %v669, %v670
      %v672 = vrot.slane %v548, 1
      %v673 = vsel %vm633, %v670, %v672
      %v674 = vrot.slane %v549, 1
      %v675 = vrot.slane %v550, 1
      %v676 = vsel %vm633, %v674, %v675
      %v677 = vrot.slane %v551, 1
      %v678 = vsel %vm633, %v675, %v677
      %v679 = vrot.slane %v552, 1
      %v680 = vrot.slane %v553, 1
      %v681 = vsel %vm633, %v679, %v680
      %v682 = vrot.slane %v554, 1
      %v683 = vsel %vm633, %v680, %v682
      %v684 = vrot.slane %v555, 1
      %v685 = vrot.slane %v556, 1
      %v686 = vsel %vm633, %v684, %v685
      %v687 = vrot.slane %v557, 1
      %v688 = vsel %vm633, %v685, %v687
      %v689 = vrot.slane %v558, 1
      %v690 = vrot.slane %v559, 1
      %v691 = vsel %vm633, %v689, %v690
      %v692 = vrot.slane %v560, 1
      %v693 = vsel %vm633, %v690, %v692
      %v694 = vrot.slane %v561, 1
      %v695 = vrot.slane %v562, 1
      %v696 = vsel %vm633, %v694, %v695
      %v697 = vrot.slane %v563, 1
      %v698 = vsel %vm633, %v695, %v697
      %v699 = vrot.slane %v564, 1
      %v700 = vrot.slane %v565, 1
      %v701 = vsel %vm633, %v699, %v700
      %v702 = vrot.slane %v566, 1
      %v703 = vsel %vm633, %v700, %v702
      %v704 = vrot.slane %v567, 1
      %v705 = vrot.slane %v568, 1
      %v706 = vsel %vm633, %v704, %v705
      %v707 = vrot.slane %v569, 1
      %v708 = vsel %vm633, %v705, %v707
      %v709 = vrot.slane %v570, 1
      %v710 = vrot.slane %v571, 1
      %v711 = vsel %vm633, %v709, %v710
      %v712 = vrot.slane %v572, 1
      %v713 = vsel %vm633, %v710, %v712
      %vm746 = vcmask 1045504
      %v747 = vrot.slane %v525, 2
      %v748 = vrot.slane %v526, 2
      %v749 = vsel %vm746, %v747, %v748
      %v750 = vrot.slane %v527, 2
      %v751 = vsel %vm746, %v748, %v750
      %v752 = vrot.slane %v528, 2
      %v753 = vrot.slane %v529, 2
      %v754 = vsel %vm746, %v752, %v753
      %v755 = vrot.slane %v530, 2
      %v756 = vsel %vm746, %v753, %v755
      %v757 = vrot.slane %v531, 2
      %v758 = vrot.slane %v532, 2
      %v759 = vsel %vm746, %v757, %v758
      %v760 = vrot.slane %v533, 2
      %v761 = vsel %vm746, %v758, %v760
      %v762 = vrot.slane %v534, 2
      %v763 = vrot.slane %v535, 2
      %v764 = vsel %vm746, %v762, %v763
      %v765 = vrot.slane %v536, 2
      %v766 = vsel %vm746, %v763, %v765
      %v767 = vrot.slane %v537, 2
      %v768 = vrot.slane %v538, 2
      %v769 = vsel %vm746, %v767, %v768
      %v770 = vrot.slane %v539, 2
      %v771 = vsel %vm746, %v768, %v770
      %v772 = vrot.slane %v540, 2
      %v773 = vrot.slane %v541, 2
      %v774 = vsel %vm746, %v772, %v773
      %v775 = vrot.slane %v542, 2
      %v776 = vsel %vm746, %v773, %v775
      %v777 = vrot.slane %v543, 2
      %v778 = vrot.slane %v544, 2
      %v779 = vsel %vm746, %v777, %v778
      %v780 = vrot.slane %v545, 2
      %v781 = vsel %vm746, %v778, %v780
      %v782 = vrot.slane %v546, 2
      %v783 = vrot.slane %v547, 2
      %v784 = vsel %vm746, %v782, %v783
      %v785 = vrot.slane %v548, 2
      %v786 = vsel %vm746, %v783, %v785
      %v787 = vrot.slane %v549, 2
      %v788 = vrot.slane %v550, 2
      %v789 = vsel %vm746, %v787, %v788
      %v790 = vrot.slane %v551, 2
      %v791 = vsel %vm746, %v788, %v790
      %v792 = vrot.slane %v552, 2
      %v793 = vrot.slane %v553, 2
      %v794 = vsel %vm746, %v792, %v793
      %v795 = vrot.slane %v554, 2
      %v796 = vsel %vm746, %v793, %v795
      %v797 = vrot.slane %v555, 2
      %v798 = vrot.slane %v556, 2
      %v799 = vsel %vm746, %v797, %v798
      %v800 = vrot.slane %v557, 2
      %v801 = vsel %vm746, %v798, %v800
      %v802 = vrot.slane %v558, 2
      %v803 = vrot.slane %v559, 2
      %v804 = vsel %vm746, %v802, %v803
      %v805 = vrot.slane %v560, 2
      %v806 = vsel %vm746, %v803, %v805
      %v807 = vrot.slane %v561, 2
      %v808 = vrot.slane %v562, 2
      %v809 = vsel %vm746, %v807, %v808
      %v810 = vrot.slane %v563, 2
      %v811 = vsel %vm746, %v808, %v810
      %v812 = vrot.slane %v564, 2
      %v813 = vrot.slane %v565, 2
      %v814 = vsel %vm746, %v812, %v813
      %v815 = vrot.slane %v566, 2
      %v816 = vsel %vm746, %v813, %v815
      %v817 = vrot.slane %v567, 2
      %v818 = vrot.slane %v568, 2
      %v819 = vsel %vm746, %v817, %v818
      %v820 = vrot.slane %v569, 2
      %v821 = vsel %vm746, %v818, %v820
      %v822 = vrot.slane %v570, 2
      %v823 = vrot.slane %v571, 2
      %v824 = vsel %vm746, %v822, %v823
      %v825 = vrot.slane %v572, 2
      %v826 = vsel %vm746, %v823, %v825
      %vm859 = vcmask 1044480
      %v860 = vrot.slane %v525, 3
      %v861 = vrot.slane %v526, 3
      %v862 = vsel %vm859, %v860, %v861
      %v863 = vrot.slane %v527, 3
      %v864 = vsel %vm859, %v861, %v863
      %v865 = vrot.slane %v528, 3
      %v866 = vrot.slane %v529, 3
      %v867 = vsel %vm859, %v865, %v866
      %v868 = vrot.slane %v530, 3
      %v869 = vsel %vm859, %v866, %v868
      %v870 = vrot.slane %v531, 3
      %v871 = vrot.slane %v532, 3
      %v872 = vsel %vm859, %v870, %v871
      %v873 = vrot.slane %v533, 3
      %v874 = vsel %vm859, %v871, %v873
      %v875 = vrot.slane %v534, 3
      %v876 = vrot.slane %v535, 3
      %v877 = vsel %vm859, %v875, %v876
      %v878 = vrot.slane %v536, 3
      %v879 = vsel %vm859, %v876, %v878
      %v880 = vrot.slane %v537, 3
      %v881 = vrot.slane %v538, 3
      %v882 = vsel %vm859, %v880, %v881
      %v883 = vrot.slane %v539, 3
      %v884 = vsel %vm859, %v881, %v883
      %v885 = vrot.slane %v540, 3
      %v886 = vrot.slane %v541, 3
      %v887 = vsel %vm859, %v885, %v886
      %v888 = vrot.slane %v542, 3
      %v889 = vsel %vm859, %v886, %v888
      %v890 = vrot.slane %v543, 3
      %v891 = vrot.slane %v544, 3
      %v892 = vsel %vm859, %v890, %v891
      %v893 = vrot.slane %v545, 3
      %v894 = vsel %vm859, %v891, %v893
      %v895 = vrot.slane %v546, 3
      %v896 = vrot.slane %v547, 3
      %v897 = vsel %vm859, %v895, %v896
      %v898 = vrot.slane %v548, 3
      %v899 = vsel %vm859, %v896, %v898
      %v900 = vrot.slane %v549, 3
      %v901 = vrot.slane %v550, 3
      %v902 = vsel %vm859, %v900, %v901
      %v903 = vrot.slane %v551, 3
      %v904 = vsel %vm859, %v901, %v903
      %v905 = vrot.slane %v552, 3
      %v906 = vrot.slane %v553, 3
      %v907 = vsel %vm859, %v905, %v906
      %v908 = vrot.slane %v554, 3
      %v909 = vsel %vm859, %v906, %v908
      %v910 = vrot.slane %v555, 3
      %v911 = vrot.slane %v556, 3
      %v912 = vsel %vm859, %v910, %v911
      %v913 = vrot.slane %v557, 3
      %v914 = vsel %vm859, %v911, %v913
      %v915 = vrot.slane %v558, 3
      %v916 = vrot.slane %v559, 3
      %v917 = vsel %vm859, %v915, %v916
      %v918 = vrot.slane %v560, 3
      %v919 = vsel %vm859, %v916, %v918
      %v920 = vrot.slane %v561, 3
      %v921 = vrot.slane %v562, 3
      %v922 = vsel %vm859, %v920, %v921
      %v923 = vrot.slane %v563, 3
      %v924 = vsel %vm859, %v921, %v923
      %v925 = vrot.slane %v564, 3
      %v926 = vrot.slane %v565, 3
      %v927 = vsel %vm859, %v925, %v926
      %v928 = vrot.slane %v566, 3
      %v929 = vsel %vm859, %v926, %v928
      %v930 = vrot.slane %v567, 3
      %v931 = vrot.slane %v568, 3
      %v932 = vsel %vm859, %v930, %v931
      %v933 = vrot.slane %v569, 3
      %v934 = vsel %vm859, %v931, %v933
      %v935 = vrot.slane %v570, 3
      %v936 = vrot.slane %v571, 3
      %v937 = vsel %vm859, %v935, %v936
      %v938 = vrot.slane %v572, 3
      %v939 = vsel %vm859, %v936, %v938
      %vm972 = vcmask 1043456
      %v973 = vrot.slane %v525, 4
      %v974 = vrot.slane %v526, 4
      %v975 = vsel %vm972, %v973, %v974
      %v976 = vrot.slane %v527, 4
      %v977 = vsel %vm972, %v974, %v976
      %v978 = vrot.slane %v528, 4
      %v979 = vrot.slane %v529, 4
      %v980 = vsel %vm972, %v978, %v979
      %v981 = vrot.slane %v530, 4
      %v982 = vsel %vm972, %v979, %v981
      %v983 = vrot.slane %v531, 4
      %v984 = vrot.slane %v532, 4
      %v985 = vsel %vm972, %v983, %v984
      %v986 = vrot.slane %v533, 4
      %v987 = vsel %vm972, %v984, %v986
      %v988 = vrot.slane %v534, 4
      %v989 = vrot.slane %v535, 4
      %v990 = vsel %vm972, %v988, %v989
      %v991 = vrot.slane %v536, 4
      %v992 = vsel %vm972, %v989, %v991
      %v993 = vrot.slane %v537, 4
      %v994 = vrot.slane %v538, 4
      %v995 = vsel %vm972, %v993, %v994
      %v996 = vrot.slane %v539, 4
      %v997 = vsel %vm972, %v994, %v996
      %v998 = vrot.slane %v540, 4
      %v999 = vrot.slane %v541, 4
      %v1000 = vsel %vm972, %v998, %v999
      %v1001 = vrot.slane %v542, 4
      %v1002 = vsel %vm972, %v999, %v1001
      %v1003 = vrot.slane %v543, 4
      %v1004 = vrot.slane %v544, 4
      %v1005 = vsel %vm972, %v1003, %v1004
      %v1006 = vrot.slane %v545, 4
      %v1007 = vsel %vm972, %v1004, %v1006
      %v1008 = vrot.slane %v546, 4
      %v1009 = vrot.slane %v547, 4
      %v1010 = vsel %vm972, %v1008, %v1009
      %v1011 = vrot.slane %v548, 4
      %v1012 = vsel %vm972, %v1009, %v1011
      %v1013 = vrot.slane %v549, 4
      %v1014 = vrot.slane %v550, 4
      %v1015 = vsel %vm972, %v1013, %v1014
      %v1016 = vrot.slane %v551, 4
      %v1017 = vsel %vm972, %v1014, %v1016
      %v1018 = vrot.slane %v552, 4
      %v1019 = vrot.slane %v553, 4
      %v1020 = vsel %vm972, %v1018, %v1019
      %v1021 = vrot.slane %v554, 4
      %v1022 = vsel %vm972, %v1019, %v1021
      %v1023 = vrot.slane %v555, 4
      %v1024 = vrot.slane %v556, 4
      %v1025 = vsel %vm972, %v1023, %v1024
      %v1026 = vrot.slane %v557, 4
      %v1027 = vsel %vm972, %v1024, %v1026
      %v1028 = vrot.slane %v558, 4
      %v1029 = vrot.slane %v559, 4
      %v1030 = vsel %vm972, %v1028, %v1029
      %v1031 = vrot.slane %v560, 4
      %v1032 = vsel %vm972, %v1029, %v1031
      %v1033 = vrot.slane %v561, 4
      %v1034 = vrot.slane %v562, 4
      %v1035 = vsel %vm972, %v1033, %v1034
      %v1036 = vrot.slane %v563, 4
      %v1037 = vsel %vm972, %v1034, %v1036
      %v1038 = vrot.slane %v564, 4
      %v1039 = vrot.slane %v565, 4
      %v1040 = vsel %vm972, %v1038, %v1039
      %v1041 = vrot.slane %v566, 4
      %v1042 = vsel %vm972, %v1039, %v1041
      %v1043 = vrot.slane %v567, 4
      %v1044 = vrot.slane %v568, 4
      %v1045 = vsel %vm972, %v1043, %v1044
      %v1046 = vrot.slane %v569, 4
      %v1047 = vsel %vm972, %v1044, %v1046
      %v1048 = vrot.slane %v570, 4
      %v1049 = vrot.slane %v571, 4
      %v1050 = vsel %vm972, %v1048, %v1049
      %v1051 = vrot.slane %v572, 4
      %v1052 = vsel %vm972, %v1049, %v1051
      %v1088 = vrot.slane %v573, 1
      %v1089 = vrot.slane %v574, 1
      %v1090 = vsel %vm633, %v1088, %v1089
      %v1091 = vrot.slane %v575, 1
      %v1092 = vsel %vm633, %v1089, %v1091
      %v1095 = vrot.slane %v573, 2
      %v1096 = vrot.slane %v574, 2
      %v1097 = vsel %vm746, %v1095, %v1096
      %v1098 = vrot.slane %v575, 2
      %v1099 = vsel %vm746, %v1096, %v1098
      %v1102 = vrot.slane %v573, 3
      %v1103 = vrot.slane %v574, 3
      %v1104 = vsel %vm859, %v1102, %v1103
      %v1105 = vrot.slane %v575, 3
      %v1106 = vsel %vm859, %v1103, %v1105
      %v1109 = vrot.slane %v573, 4
      %v1110 = vrot.slane %v574, 4
      %v1111 = vsel %vm972, %v1109, %v1110
      %v1112 = vrot.slane %v575, 4
      %v1113 = vsel %vm972, %v1110, %v1112
      %v1119 = vrot.slane %v576, 1
      %v1120 = vrot.slane %v577, 1
      %v1121 = vsel %vm633, %v1119, %v1120
      %v1122 = vrot.slane %v578, 1
      %v1123 = vsel %vm633, %v1120, %v1122
      %v1126 = vrot.slane %v576, 2
      %v1127 = vrot.slane %v577, 2
      %v1128 = vsel %vm746, %v1126, %v1127
      %v1129 = vrot.slane %v578, 2
      %v1130 = vsel %vm746, %v1127, %v1129
      %v1133 = vrot.slane %v576, 3
      %v1134 = vrot.slane %v577, 3
      %v1135 = vsel %vm859, %v1133, %v1134
      %v1136 = vrot.slane %v578, 3
      %v1137 = vsel %vm859, %v1134, %v1136
      %v1140 = vrot.slane %v576, 4
      %v1141 = vrot.slane %v577, 4
      %v1142 = vsel %vm972, %v1140, %v1141
      %v1143 = vrot.slane %v578, 4
      %v1144 = vsel %vm972, %v1141, %v1143
      %v1150 = vrot.slane %v579, 1
      %v1151 = vrot.slane %v580, 1
      %v1152 = vsel %vm633, %v1150, %v1151
      %v1153 = vrot.slane %v581, 1
      %v1154 = vsel %vm633, %v1151, %v1153
      %v1157 = vrot.slane %v579, 2
      %v1158 = vrot.slane %v580, 2
      %v1159 = vsel %vm746, %v1157, %v1158
      %v1160 = vrot.slane %v581, 2
      %v1161 = vsel %vm746, %v1158, %v1160
      %v1164 = vrot.slane %v579, 3
      %v1165 = vrot.slane %v580, 3
      %v1166 = vsel %vm859, %v1164, %v1165
      %v1167 = vrot.slane %v581, 3
      %v1168 = vsel %vm859, %v1165, %v1167
      %v1171 = vrot.slane %v579, 4
      %v1172 = vrot.slane %v580, 4
      %v1173 = vsel %vm972, %v1171, %v1172
      %v1174 = vrot.slane %v581, 4
      %v1175 = vsel %vm972, %v1172, %v1174
      %v1181 = vrot.slane %v582, 1
      %v1182 = vrot.slane %v583, 1
      %v1183 = vsel %vm633, %v1181, %v1182
      %v1184 = vrot.slane %v584, 1
      %v1185 = vsel %vm633, %v1182, %v1184
      %v1188 = vrot.slane %v582, 2
      %v1189 = vrot.slane %v583, 2
      %v1190 = vsel %vm746, %v1188, %v1189
      %v1191 = vrot.slane %v584, 2
      %v1192 = vsel %vm746, %v1189, %v1191
      %v1195 = vrot.slane %v582, 3
      %v1196 = vrot.slane %v583, 3
      %v1197 = vsel %vm859, %v1195, %v1196
      %v1198 = vrot.slane %v584, 3
      %v1199 = vsel %vm859, %v1196, %v1198
      %v1202 = vrot.slane %v582, 4
      %v1203 = vrot.slane %v583, 4
      %v1204 = vsel %vm972, %v1202, %v1203
      %v1205 = vrot.slane %v584, 4
      %v1206 = vsel %vm972, %v1203, %v1205
      %v1209 = vpack.c.bf16 %v526, %v525
      %v1210 = vpack.c.bf16 %v638, %v636
      %v1211 = vpack.c.bf16 %v751, %v749
      %v1212 = vpack.c.bf16 %v864, %v862
      %v1213 = vpack.c.bf16 %v977, %v975
      %v1214 = vpack.c.bf16 %v529, %v528
      %v1215 = vpack.c.bf16 %v643, %v641
      %v1216 = vpack.c.bf16 %v756, %v754
      %v1217 = vpack.c.bf16 %v869, %v867
      %v1218 = vpack.c.bf16 %v982, %v980
      %v1219 = vpack.c.bf16 %v532, %v531
      %v1220 = vpack.c.bf16 %v648, %v646
      %v1221 = vpack.c.bf16 %v761, %v759
      %v1222 = vpack.c.bf16 %v874, %v872
      %v1223 = vpack.c.bf16 %v987, %v985
      %v1224 = vpack.c.bf16 %v535, %v534
      %v1225 = vpack.c.bf16 %v653, %v651
      %v1226 = vpack.c.bf16 %v766, %v764
      %v1227 = vpack.c.bf16 %v879, %v877
      %v1228 = vpack.c.bf16 %v992, %v990
      %v1229 = vpack.c.bf16 %v538, %v537
      %v1230 = vpack.c.bf16 %v658, %v656
      %v1231 = vpack.c.bf16 %v771, %v769
      %v1232 = vpack.c.bf16 %v884, %v882
      %v1233 = vpack.c.bf16 %v997, %v995
      %v1234 = vpack.c.bf16 %v541, %v540
      %v1235 = vpack.c.bf16 %v663, %v661
      %v1236 = vpack.c.bf16 %v776, %v774
      %v1237 = vpack.c.bf16 %v889, %v887
      %v1238 = vpack.c.bf16 %v1002, %v1000
      %v1239 = vpack.c.bf16 %v544, %v543
      %v1240 = vpack.c.bf16 %v668, %v666
      %v1241 = vpack.c.bf16 %v781, %v779
      %v1242 = vpack.c.bf16 %v894, %v892
      %v1243 = vpack.c.bf16 %v1007, %v1005
      %v1244 = vpack.c.bf16 %v547, %v546
      %v1245 = vpack.c.bf16 %v673, %v671
      %v1246 = vpack.c.bf16 %v786, %v784
      %v1247 = vpack.c.bf16 %v899, %v897
      %v1248 = vpack.c.bf16 %v1012, %v1010
      %v1249 = vpack.c.bf16 %v550, %v549
      %v1250 = vpack.c.bf16 %v678, %v676
      %v1251 = vpack.c.bf16 %v791, %v789
      %v1252 = vpack.c.bf16 %v904, %v902
      %v1253 = vpack.c.bf16 %v1017, %v1015
      %v1254 = vpack.c.bf16 %v553, %v552
      %v1255 = vpack.c.bf16 %v683, %v681
      %v1256 = vpack.c.bf16 %v796, %v794
      %v1257 = vpack.c.bf16 %v909, %v907
      %v1258 = vpack.c.bf16 %v1022, %v1020
      %v1259 = vpack.c.bf16 %v556, %v555
      %v1260 = vpack.c.bf16 %v688, %v686
      %v1261 = vpack.c.bf16 %v801, %v799
      %v1262 = vpack.c.bf16 %v914, %v912
      %v1263 = vpack.c.bf16 %v1027, %v1025
      %v1264 = vpack.c.bf16 %v559, %v558
      %v1265 = vpack.c.bf16 %v693, %v691
      %v1266 = vpack.c.bf16 %v806, %v804
      %v1267 = vpack.c.bf16 %v919, %v917
      %v1268 = vpack.c.bf16 %v1032, %v1030
      %v1269 = vpack.c.bf16 %v562, %v561
      %v1270 = vpack.c.bf16 %v698, %v696
      %v1271 = vpack.c.bf16 %v811, %v809
      %v1272 = vpack.c.bf16 %v924, %v922
      %v1273 = vpack.c.bf16 %v1037, %v1035
      %v1274 = vpack.c.bf16 %v565, %v564
      %v1275 = vpack.c.bf16 %v703, %v701
      %v1276 = vpack.c.bf16 %v816, %v814
      %v1277 = vpack.c.bf16 %v929, %v927
      %v1278 = vpack.c.bf16 %v1042, %v1040
      %v1279 = vpack.c.bf16 %v568, %v567
      %v1280 = vpack.c.bf16 %v708, %v706
      %v1281 = vpack.c.bf16 %v821, %v819
      %v1282 = vpack.c.bf16 %v934, %v932
      %v1283 = vpack.c.bf16 %v1047, %v1045
      %v1284 = vpack.c.bf16 %v571, %v570
      %v1285 = vpack.c.bf16 %v713, %v711
      %v1286 = vpack.c.bf16 %v826, %v824
      %v1287 = vpack.c.bf16 %v939, %v937
      %v1288 = vpack.c.bf16 %v1052, %v1050
      %v1289 = vpack.c.bf16 %v574, %v573
      %v1290 = vpack.c.bf16 %v1092, %v1090
      %v1291 = vpack.c.bf16 %v1099, %v1097
      %v1292 = vpack.c.bf16 %v1106, %v1104
      %v1293 = vpack.c.bf16 %v1113, %v1111
      %v1294 = vpack.c.bf16 %v577, %v576
      %v1295 = vpack.c.bf16 %v1123, %v1121
      %v1296 = vpack.c.bf16 %v1130, %v1128
      %v1297 = vpack.c.bf16 %v1137, %v1135
      %v1298 = vpack.c.bf16 %v1144, %v1142
      %v1299 = vpack.c.bf16 %v580, %v579
      %v1300 = vpack.c.bf16 %v1154, %v1152
      %v1301 = vpack.c.bf16 %v1161, %v1159
      %v1302 = vpack.c.bf16 %v1168, %v1166
      %v1303 = vpack.c.bf16 %v1175, %v1173
      %v1304 = vpack.c.bf16 %v583, %v582
      %v1305 = vpack.c.bf16 %v1185, %v1183
      %v1306 = vpack.c.bf16 %v1192, %v1190
      %v1307 = vpack.c.bf16 %v1199, %v1197
      %v1308 = vpack.c.bf16 %v1206, %v1204
      %v1309 = vld [vmem:[%s4] sm:$0xf]
      %v1310 = vld [vmem:[%s4 + $0x4] sm:$0xf]
      %v1311 = vld [vmem:[%s4 + $0x8] sm:$0xf]
      %v1312 = vld [vmem:[%s4 + $0xc] sm:$0xf]
      %v1313 = vld [vmem:[%s4 + $0x10] sm:$0xf]
      %v1314 = vld [vmem:[%s4 + $0x14] sm:$0xf]
      %v1315 = vld [vmem:[%s4 + $0x18] sm:$0xf]
      %v1316 = vld [vmem:[%s4 + $0x1c] sm:$0xf]
      %v1317 = vld [vmem:[%s4 + $0x20] sm:$0xf]
      %v1318 = vld [vmem:[%s4 + $0x24] sm:$0xf]
      %v1319 = vld [vmem:[%s4 + $0x28] sm:$0xf]
      %v1320 = vld [vmem:[%s4 + $0x2c] sm:$0xf]
      %v1321 = vld [vmem:[%s4 + $0x30] sm:$0xf]
      %v1322 = vld [vmem:[%s4 + $0x34] sm:$0xf]
      %v1323 = vld [vmem:[%s4 + $0x38] sm:$0xf]
      %v1324 = vld [vmem:[%s4 + $0x3c] sm:$0xf]
      %v1325 = vld [vmem:[%s4 + $0x40] sm:$0xf]
      %v1326 = vld [vmem:[%s4 + $0x44] sm:$0xf]
      %v1327 = vld [vmem:[%s4 + $0x48] sm:$0xf]
      %v1328 = vld [vmem:[%s4 + $0x4c] sm:$0xf]
      %v1329 = vld [vmem:[%s4 + $0x50] sm:$0xf]
      %v1330 = vld [vmem:[%s4 + $0x54] sm:$0xf]
      %v1331 = vld [vmem:[%s4 + $0x58] sm:$0xf]
      %v1332 = vld [vmem:[%s4 + $0x5c] sm:$0xf]
      %v1333 = vld [vmem:[%s4 + $0x60] sm:$0xf]
      %v1334 = vld [vmem:[%s4 + $0x64] sm:$0xf]
      %v1335 = vld [vmem:[%s4 + $0x68] sm:$0xf]
      %v1336 = vld [vmem:[%s4 + $0x6c] sm:$0xf]
      %v1337 = vld [vmem:[%s4 + $0x70] sm:$0xf]
      %v1338 = vld [vmem:[%s4 + $0x74] sm:$0xf]
      %v1339 = vld [vmem:[%s4 + $0x78] sm:$0xf]
      %v1340 = vld [vmem:[%s4 + $0x7c] sm:$0xf]
      %v1341 = vld [vmem:[%s4 + $0x80] sm:$0xf]
      %v1342 = vld [vmem:[%s4 + $0x84] sm:$0xf]
      %v1343 = vld [vmem:[%s4 + $0x88] sm:$0xf]
      %v1344 = vld [vmem:[%s4 + $0x8c] sm:$0xf]
      %v1345 = vld [vmem:[%s4 + $0x90] sm:$0xf]
      %v1346 = vld [vmem:[%s4 + $0x94] sm:$0xf]
      %v1347 = vld [vmem:[%s4 + $0x98] sm:$0xf]
      %v1348 = vld [vmem:[%s4 + $0x9c] sm:$0xf]
      %v1349 = vld [vmem:[%s4 + $0xa0] sm:$0xf]
      %v1350 = vld [vmem:[%s4 + $0xa4] sm:$0xf]
      %v1351 = vld [vmem:[%s4 + $0xa8] sm:$0xf]
      %v1352 = vld [vmem:[%s4 + $0xac] sm:$0xf]
      %v1353 = vld [vmem:[%s4 + $0xb0] sm:$0xf]
      %v1354 = vld [vmem:[%s4 + $0xb4] sm:$0xf]
      %v1355 = vld [vmem:[%s4 + $0xb8] sm:$0xf]
      %v1356 = vld [vmem:[%s4 + $0xbc] sm:$0xf]
      %v1357 = vld [vmem:[%s4 + $0xc0] sm:$0xf]
      %v1358 = vld [vmem:[%s4 + $0xc4] sm:$0xf]
      %v1359 = vld [vmem:[%s4 + $0xc8] sm:$0xf]
      %v1360 = vld [vmem:[%s4 + $0xcc] sm:$0xf]
      %v1361 = vld [vmem:[%s4 + $0xd0] sm:$0xf]
      %v1362 = vld [vmem:[%s4 + $0xd4] sm:$0xf]
      %v1363 = vld [vmem:[%s4 + $0xd8] sm:$0xf]
      %v1364 = vld [vmem:[%s4 + $0xdc] sm:$0xf]
      %v1365 = vld [vmem:[%s4 + $0xe0] sm:$0xf]
      %v1366 = vld [vmem:[%s4 + $0xe4] sm:$0xf]
      %v1367 = vld [vmem:[%s4 + $0xe8] sm:$0xf]
      %v1368 = vld [vmem:[%s4 + $0xec] sm:$0xf]
      %v1369 = vld [vmem:[%s4 + $0xf0] sm:$0xf]
      %v1370 = vld [vmem:[%s4 + $0xf4] sm:$0xf]
      %v1371 = vld [vmem:[%s4 + $0xf8] sm:$0xf]
      %v1372 = vld [vmem:[%s4 + $0xfc] sm:$0xf]
      %v1373 = vld [vmem:[%s4 + $0x100] sm:$0xf]
      %v1374 = vld [vmem:[%s4 + $0x104] sm:$0xf]
      %v1375 = vld [vmem:[%s4 + $0x108] sm:$0xf]
      %v1376 = vld [vmem:[%s4 + $0x10c] sm:$0xf]
      %v1377 = vld [vmem:[%s4 + $0x110] sm:$0xf]
      %v1378 = vld [vmem:[%s4 + $0x114] sm:$0xf]
      %v1379 = vld [vmem:[%s4 + $0x118] sm:$0xf]
      %v1380 = vld [vmem:[%s4 + $0x11c] sm:$0xf]
      %v1381 = vld [vmem:[%s4 + $0x120] sm:$0xf]
      %v1382 = vld [vmem:[%s4 + $0x124] sm:$0xf]
      %v1383 = vld [vmem:[%s4 + $0x128] sm:$0xf]
      %v1384 = vld [vmem:[%s4 + $0x12c] sm:$0xf]
      %v1385 = vld [vmem:[%s4 + $0x130] sm:$0xf]
      %v1386 = vld [vmem:[%s4 + $0x134] sm:$0xf]
      %v1387 = vld [vmem:[%s4 + $0x138] sm:$0xf]
      %v1388 = vld [vmem:[%s4 + $0x13c] sm:$0xf]
      %v1389 = vld [vmem:[%s4 + $0x140] sm:$0xf]
      %v1390 = vld [vmem:[%s4 + $0x144] sm:$0xf]
      %v1391 = vld [vmem:[%s4 + $0x148] sm:$0xf]
      %v1392 = vld [vmem:[%s4 + $0x14c] sm:$0xf]
      %v1393 = vld [vmem:[%s4 + $0x150] sm:$0xf]
      %v1394 = vld [vmem:[%s4 + $0x154] sm:$0xf]
      %v1395 = vld [vmem:[%s4 + $0x158] sm:$0xf]
      %v1396 = vld [vmem:[%s4 + $0x15c] sm:$0xf]
      %v1397 = vld [vmem:[%s4 + $0x160] sm:$0xf]
      %v1398 = vld [vmem:[%s4 + $0x164] sm:$0xf]
      %v1399 = vld [vmem:[%s4 + $0x168] sm:$0xf]
      %v1400 = vld [vmem:[%s4 + $0x16c] sm:$0xf]
      %v1401 = vld [vmem:[%s4 + $0x170] sm:$0xf]
      %v1402 = vld [vmem:[%s4 + $0x174] sm:$0xf]
      %v1403 = vld [vmem:[%s4 + $0x178] sm:$0xf]
      %v1404 = vld [vmem:[%s4 + $0x17c] sm:$0xf]
      %v1405 = vld [vmem:[%s4 + $0x180] sm:$0xf]
      %v1406 = vld [vmem:[%s4 + $0x184] sm:$0xf]
      %v1407 = vld [vmem:[%s4 + $0x188] sm:$0xf]
      %v1408 = vld [vmem:[%s4 + $0x18c] sm:$0xf]
      %v1409 = vld [vmem:[%s4 + $0x190] sm:$0xf]
      %v1410 = vld [vmem:[%s4 + $0x194] sm:$0xf]
      %v1411 = vld [vmem:[%s4 + $0x198] sm:$0xf]
      %v1412 = vld [vmem:[%s4 + $0x19c] sm:$0xf]
      %v1413 = vld [vmem:[%s4 + $0x1a0] sm:$0xf]
      %v1414 = vld [vmem:[%s4 + $0x1a4] sm:$0xf]
      %v1415 = vld [vmem:[%s4 + $0x1a8] sm:$0xf]
      %v1416 = vld [vmem:[%s4 + $0x1ac] sm:$0xf]
      %v1417 = vld [vmem:[%s4 + $0x1b0] sm:$0xf]
      %v1418 = vld [vmem:[%s4 + $0x1b4] sm:$0xf]
      %v1419 = vld [vmem:[%s4 + $0x1b8] sm:$0xf]
      %v1420 = vld [vmem:[%s4 + $0x1bc] sm:$0xf]
      %v1421 = vld [vmem:[%s4 + $0x1c0] sm:$0xf]
      %v1422 = vld [vmem:[%s4 + $0x1c4] sm:$0xf]
      %v1423 = vld [vmem:[%s4 + $0x1c8] sm:$0xf]
      %v1424 = vld [vmem:[%s4 + $0x1cc] sm:$0xf]
      %v1425 = vld [vmem:[%s4 + $0x1d0] sm:$0xf]
      %v1426 = vld [vmem:[%s4 + $0x1d4] sm:$0xf]
      %v1427 = vld [vmem:[%s4 + $0x1d8] sm:$0xf]
      %v1428 = vld [vmem:[%s4 + $0x1dc] sm:$0xf]
      %v1429 = vld [vmem:[%s4 + $0x1e0] sm:$0xf]
      %v1430 = vld [vmem:[%s4 + $0x1e4] sm:$0xf]
      %v1431 = vld [vmem:[%s4 + $0x1e8] sm:$0xf]
      %v1432 = vld [vmem:[%s4 + $0x1ec] sm:$0xf]
      %v1433 = vld [vmem:[%s4 + $0x1f0] sm:$0xf]
      %v1434 = vld [vmem:[%s4 + $0x1f4] sm:$0xf]
      %v1435 = vld [vmem:[%s4 + $0x1f8] sm:$0xf]
      %v1436 = vld [vmem:[%s4 + $0x1fc] sm:$0xf]
      %v1437 = vld [vmem:[%s4 + $0x200] sm:$0xf]
      %v1438 = vld [vmem:[%s4 + $0x204] sm:$0xf]
      %v1439 = vld [vmem:[%s4 + $0x208] sm:$0xf]
      %v1440 = vld [vmem:[%s4 + $0x20c] sm:$0xf]
      %v1441 = vld [vmem:[%s4 + $0x210] sm:$0xf]
      %v1442 = vld [vmem:[%s4 + $0x214] sm:$0xf]
      %v1443 = vld [vmem:[%s4 + $0x218] sm:$0xf]
      %v1444 = vld [vmem:[%s4 + $0x21c] sm:$0xf]
      %v1445 = vld [vmem:[%s4 + $0x220] sm:$0xf]
      %v1446 = vld [vmem:[%s4 + $0x224] sm:$0xf]
      %v1447 = vld [vmem:[%s4 + $0x228] sm:$0xf]
      %v1448 = vld [vmem:[%s4 + $0x22c] sm:$0xf]
      %v1449 = vld [vmem:[%s4 + $0x230] sm:$0xf]
      %v1450 = vld [vmem:[%s4 + $0x234] sm:$0xf]
      %v1451 = vld [vmem:[%s4 + $0x238] sm:$0xf]
      %v1452 = vld [vmem:[%s4 + $0x23c] sm:$0xf]
      %v1453 = vld [vmem:[%s4 + $0x240] sm:$0xf]
      %v1454 = vld [vmem:[%s4 + $0x244] sm:$0xf]
      %v1455 = vld [vmem:[%s4 + $0x248] sm:$0xf]
      %v1456 = vld [vmem:[%s4 + $0x24c] sm:$0xf]
      %v1457 = vld [vmem:[%s4 + $0x250] sm:$0xf]
      %v1458 = vld [vmem:[%s4 + $0x254] sm:$0xf]
      %v1459 = vld [vmem:[%s4 + $0x258] sm:$0xf]
      %v1460 = vld [vmem:[%s4 + $0x25c] sm:$0xf]
      %v1461 = vld [vmem:[%s4 + $0x260] sm:$0xf]
      %v1462 = vld [vmem:[%s4 + $0x264] sm:$0xf]
      %v1463 = vld [vmem:[%s4 + $0x268] sm:$0xf]
      %v1464 = vld [vmem:[%s4 + $0x26c] sm:$0xf]
      %v1465 = vld [vmem:[%s4 + $0x270] sm:$0xf]
      %v1466 = vld [vmem:[%s4 + $0x274] sm:$0xf]
      %v1467 = vld [vmem:[%s4 + $0x278] sm:$0xf]
      %v1468 = vld [vmem:[%s4 + $0x27c] sm:$0xf]
      %v1469 = vld [vmem:[%s4 + $0x280] sm:$0xf]
      %v1470 = vld [vmem:[%s4 + $0x284] sm:$0xf]
      %v1471 = vld [vmem:[%s4 + $0x288] sm:$0xf]
      %v1472 = vld [vmem:[%s4 + $0x28c] sm:$0xf]
      %v1473 = vld [vmem:[%s4 + $0x290] sm:$0xf]
      %v1474 = vld [vmem:[%s4 + $0x294] sm:$0xf]
      %v1475 = vld [vmem:[%s4 + $0x298] sm:$0xf]
      %v1476 = vld [vmem:[%s4 + $0x29c] sm:$0xf]
      %v1477 = vld [vmem:[%s4 + $0x2a0] sm:$0xf]
      %v1478 = vld [vmem:[%s4 + $0x2a4] sm:$0xf]
      %v1479 = vld [vmem:[%s4 + $0x2a8] sm:$0xf]
      %v1480 = vld [vmem:[%s4 + $0x2ac] sm:$0xf]
      %v1481 = vld [vmem:[%s4 + $0x2b0] sm:$0xf]
      %v1482 = vld [vmem:[%s4 + $0x2b4] sm:$0xf]
      %v1483 = vld [vmem:[%s4 + $0x2b8] sm:$0xf]
      %v1484 = vld [vmem:[%s4 + $0x2bc] sm:$0xf]
      %v1485 = vld [vmem:[%s4 + $0x2c0] sm:$0xf]
      %v1486 = vld [vmem:[%s4 + $0x2c4] sm:$0xf]
      %v1487 = vld [vmem:[%s4 + $0x2c8] sm:$0xf]
      %v1488 = vld [vmem:[%s4 + $0x2cc] sm:$0xf]
      %v1489 = vld [vmem:[%s4 + $0x2d0] sm:$0xf]
      %v1490 = vld [vmem:[%s4 + $0x2d4] sm:$0xf]
      %v1491 = vld [vmem:[%s4 + $0x2d8] sm:$0xf]
      %v1492 = vld [vmem:[%s4 + $0x2dc] sm:$0xf]
      %v1493 = vld [vmem:[%s4 + $0x2e0] sm:$0xf]
      %v1494 = vld [vmem:[%s4 + $0x2e4] sm:$0xf]
      %v1495 = vld [vmem:[%s4 + $0x2e8] sm:$0xf]
      %v1496 = vld [vmem:[%s4 + $0x2ec] sm:$0xf]
      %v1497 = vld [vmem:[%s4 + $0x2f0] sm:$0xf]
      %v1498 = vld [vmem:[%s4 + $0x2f4] sm:$0xf]
      %v1499 = vld [vmem:[%s4 + $0x2f8] sm:$0xf]
      %v1500 = vld [vmem:[%s4 + $0x2fc] sm:$0xf]
      %v1501 = vld [vmem:[%s4 + $0x300] sm:$0xf]
      %v1502 = vld [vmem:[%s4 + $0x304] sm:$0xf]
      %v1503 = vld [vmem:[%s4 + $0x308] sm:$0xf]
      %v1504 = vld [vmem:[%s4 + $0x30c] sm:$0xf]
      %v1505 = vld [vmem:[%s4 + $0x310] sm:$0xf]
      %v1506 = vld [vmem:[%s4 + $0x314] sm:$0xf]
      %v1507 = vld [vmem:[%s4 + $0x318] sm:$0xf]
      %v1508 = vld [vmem:[%s4 + $0x31c] sm:$0xf]
      %v1509 = vld [vmem:[%s4 + $0x320] sm:$0xf]
      %v1510 = vld [vmem:[%s4 + $0x324] sm:$0xf]
      %v1511 = vld [vmem:[%s4 + $0x328] sm:$0xf]
      %v1512 = vld [vmem:[%s4 + $0x32c] sm:$0xf]
      %v1513 = vld [vmem:[%s4 + $0x330] sm:$0xf]
      %v1514 = vld [vmem:[%s4 + $0x334] sm:$0xf]
      %v1515 = vld [vmem:[%s4 + $0x338] sm:$0xf]
      %v1516 = vld [vmem:[%s4 + $0x33c] sm:$0xf]
      %v1517 = vld [vmem:[%s4 + $0x340] sm:$0xf]
      %v1518 = vld [vmem:[%s4 + $0x344] sm:$0xf]
      %v1519 = vld [vmem:[%s4 + $0x348] sm:$0xf]
      %v1520 = vld [vmem:[%s4 + $0x34c] sm:$0xf]
      %v1521 = vld [vmem:[%s4 + $0x350] sm:$0xf]
      %v1522 = vld [vmem:[%s4 + $0x354] sm:$0xf]
      %v1523 = vld [vmem:[%s4 + $0x358] sm:$0xf]
      %v1524 = vld [vmem:[%s4 + $0x35c] sm:$0xf]
      %v1525 = vld [vmem:[%s4 + $0x360] sm:$0xf]
      %v1526 = vld [vmem:[%s4 + $0x364] sm:$0xf]
      %v1527 = vld [vmem:[%s4 + $0x368] sm:$0xf]
      %v1528 = vld [vmem:[%s4 + $0x36c] sm:$0xf]
      %v1529 = vld [vmem:[%s4 + $0x370] sm:$0xf]
      %v1530 = vld [vmem:[%s4 + $0x374] sm:$0xf]
      %v1531 = vld [vmem:[%s4 + $0x378] sm:$0xf]
      %v1532 = vld [vmem:[%s4 + $0x37c] sm:$0xf]
      %v1533 = vld [vmem:[%s4 + $0x380] sm:$0xf]
      %v1534 = vld [vmem:[%s4 + $0x384] sm:$0xf]
      %v1535 = vld [vmem:[%s4 + $0x388] sm:$0xf]
      %v1536 = vld [vmem:[%s4 + $0x38c] sm:$0xf]
      %v1537 = vld [vmem:[%s4 + $0x390] sm:$0xf]
      %v1538 = vld [vmem:[%s4 + $0x394] sm:$0xf]
      %v1539 = vld [vmem:[%s4 + $0x398] sm:$0xf]
      %v1540 = vld [vmem:[%s4 + $0x39c] sm:$0xf]
      %v1541 = vld [vmem:[%s4 + $0x3a0] sm:$0xf]
      %v1542 = vld [vmem:[%s4 + $0x3a4] sm:$0xf]
      %v1543 = vld [vmem:[%s4 + $0x3a8] sm:$0xf]
      %v1544 = vld [vmem:[%s4 + $0x3ac] sm:$0xf]
      %v1545 = vld [vmem:[%s4 + $0x3b0] sm:$0xf]
      %v1546 = vld [vmem:[%s4 + $0x3b4] sm:$0xf]
      %v1547 = vld [vmem:[%s4 + $0x3b8] sm:$0xf]
      %v1548 = vld [vmem:[%s4 + $0x3bc] sm:$0xf]
      %v1549 = vld [vmem:[%s4 + $0x3c0] sm:$0xf]
      %v1550 = vld [vmem:[%s4 + $0x3c4] sm:$0xf]
      %v1551 = vld [vmem:[%s4 + $0x3c8] sm:$0xf]
      %v1552 = vld [vmem:[%s4 + $0x3cc] sm:$0xf]
      %v1553 = vld [vmem:[%s4 + $0x3d0] sm:$0xf]
      %v1554 = vld [vmem:[%s4 + $0x3d4] sm:$0xf]
      %v1555 = vld [vmem:[%s4 + $0x3d8] sm:$0xf]
      %v1556 = vld [vmem:[%s4 + $0x3dc] sm:$0xf]
      %v1557 = vld [vmem:[%s4 + $0x3e0] sm:$0xf]
      %v1558 = vld [vmem:[%s4 + $0x3e4] sm:$0xf]
      %v1559 = vld [vmem:[%s4 + $0x3e8] sm:$0xf]
      %v1560 = vld [vmem:[%s4 + $0x3ec] sm:$0xf]
      %v1561 = vld [vmem:[%s4 + $0x3f0] sm:$0xf]
      %v1562 = vld [vmem:[%s4 + $0x3f4] sm:$0xf]
      %v1563 = vld [vmem:[%s4 + $0x3f8] sm:$0xf]
      %v1564 = vld [vmem:[%s4 + $0x3fc] sm:$0xf]
      %v1565 = vld [vmem:[%s4 + $0x400] sm:$0xf]
      %v1566 = vld [vmem:[%s4 + $0x404] sm:$0xf]
      %v1567 = vld [vmem:[%s4 + $0x408] sm:$0xf]
      %v1568 = vld [vmem:[%s4 + $0x40c] sm:$0xf]
      %v1569 = vld [vmem:[%s4 + $0x410] sm:$0xf]
      %v1570 = vld [vmem:[%s4 + $0x414] sm:$0xf]
      %v1571 = vld [vmem:[%s4 + $0x418] sm:$0xf]
      %v1572 = vld [vmem:[%s4 + $0x41c] sm:$0xf]
      %v1573 = vld [vmem:[%s4 + $0x420] sm:$0xf]
      %v1574 = vld [vmem:[%s4 + $0x424] sm:$0xf]
      %v1575 = vld [vmem:[%s4 + $0x428] sm:$0xf]
      %v1576 = vld [vmem:[%s4 + $0x42c] sm:$0xf]
      %v1577 = vld [vmem:[%s4 + $0x430] sm:$0xf]
      %v1578 = vld [vmem:[%s4 + $0x434] sm:$0xf]
      %v1579 = vld [vmem:[%s4 + $0x438] sm:$0xf]
      %v1580 = vld [vmem:[%s4 + $0x43c] sm:$0xf]
      %v1581 = vld [vmem:[%s4 + $0x440] sm:$0xf]
      %v1582 = vld [vmem:[%s4 + $0x444] sm:$0xf]
      %v1583 = vld [vmem:[%s4 + $0x448] sm:$0xf]
      %v1584 = vld [vmem:[%s4 + $0x44c] sm:$0xf]
      %v1585 = vld [vmem:[%s4 + $0x450] sm:$0xf]
      %v1586 = vld [vmem:[%s4 + $0x454] sm:$0xf]
      %v1587 = vld [vmem:[%s4 + $0x458] sm:$0xf]
      %v1588 = vld [vmem:[%s4 + $0x45c] sm:$0xf]
      %v1589 = vld [vmem:[%s4 + $0x460] sm:$0xf]
      %v1590 = vld [vmem:[%s4 + $0x464] sm:$0xf]
      %v1591 = vld [vmem:[%s4 + $0x468] sm:$0xf]
      %v1592 = vld [vmem:[%s4 + $0x46c] sm:$0xf]
      %v1593 = vld [vmem:[%s4 + $0x470] sm:$0xf]
      %v1594 = vld [vmem:[%s4 + $0x474] sm:$0xf]
      %v1595 = vld [vmem:[%s4 + $0x478] sm:$0xf]
      %v1596 = vld [vmem:[%s4 + $0x47c] sm:$0xf]
      %v1597 = vld [vmem:[%s4 + $0x480] sm:$0xf]
      %v1598 = vld [vmem:[%s4 + $0x484] sm:$0xf]
      %v1599 = vld [vmem:[%s4 + $0x488] sm:$0xf]
      %v1600 = vld [vmem:[%s4 + $0x48c] sm:$0xf]
      %v1601 = vld [vmem:[%s4 + $0x490] sm:$0xf]
      %v1602 = vld [vmem:[%s4 + $0x494] sm:$0xf]
      %v1603 = vld [vmem:[%s4 + $0x498] sm:$0xf]
      %v1604 = vld [vmem:[%s4 + $0x49c] sm:$0xf]
      %v1605 = vld [vmem:[%s4 + $0x4a0] sm:$0xf]
      %v1606 = vld [vmem:[%s4 + $0x4a4] sm:$0xf]
      %v1607 = vld [vmem:[%s4 + $0x4a8] sm:$0xf]
      %v1608 = vld [vmem:[%s4 + $0x4ac] sm:$0xf]
      %v1609 = vld [vmem:[%s4 + $0x4b0] sm:$0xf]
      %v1610 = vld [vmem:[%s4 + $0x4b4] sm:$0xf]
      %v1611 = vld [vmem:[%s4 + $0x4b8] sm:$0xf]
      %v1612 = vld [vmem:[%s4 + $0x4bc] sm:$0xf]
      %v1613 = vld [vmem:[%s4 + $0x4c0] sm:$0xf]
      %v1614 = vld [vmem:[%s4 + $0x4c4] sm:$0xf]
      %v1615 = vld [vmem:[%s4 + $0x4c8] sm:$0xf]
      %v1616 = vld [vmem:[%s4 + $0x4cc] sm:$0xf]
      %v1617 = vld [vmem:[%s4 + $0x4d0] sm:$0xf]
      %v1618 = vld [vmem:[%s4 + $0x4d4] sm:$0xf]
      %v1619 = vld [vmem:[%s4 + $0x4d8] sm:$0xf]
      %v1620 = vld [vmem:[%s4 + $0x4dc] sm:$0xf]
      %v1621 = vld [vmem:[%s4 + $0x4e0] sm:$0xf]
      %v1622 = vld [vmem:[%s4 + $0x4e4] sm:$0xf]
      %v1623 = vld [vmem:[%s4 + $0x4e8] sm:$0xf]
      %v1624 = vld [vmem:[%s4 + $0x4ec] sm:$0xf]
      %v1625 = vld [vmem:[%s4 + $0x4f0] sm:$0xf]
      %v1626 = vld [vmem:[%s4 + $0x4f4] sm:$0xf]
      %v1627 = vld [vmem:[%s4 + $0x4f8] sm:$0xf]
      %v1628 = vld [vmem:[%s4 + $0x4fc] sm:$0xf]
      %v1629 = vld [vmem:[%s4 + $0x500] sm:$0xf]
      %v1630 = vld [vmem:[%s4 + $0x504] sm:$0xf]
      %v1631 = vld [vmem:[%s4 + $0x508] sm:$0xf]
      %v1632 = vld [vmem:[%s4 + $0x50c] sm:$0xf]
      %v1633 = vld [vmem:[%s4 + $0x510] sm:$0xf]
      %v1634 = vld [vmem:[%s4 + $0x514] sm:$0xf]
      %v1635 = vld [vmem:[%s4 + $0x518] sm:$0xf]
      %v1636 = vld [vmem:[%s4 + $0x51c] sm:$0xf]
      %v1637 = vld [vmem:[%s4 + $0x520] sm:$0xf]
      %v1638 = vld [vmem:[%s4 + $0x524] sm:$0xf]
      %v1639 = vld [vmem:[%s4 + $0x528] sm:$0xf]
      %v1640 = vld [vmem:[%s4 + $0x52c] sm:$0xf]
      %v1641 = vld [vmem:[%s4 + $0x530] sm:$0xf]
      %v1642 = vld [vmem:[%s4 + $0x534] sm:$0xf]
      %v1643 = vld [vmem:[%s4 + $0x538] sm:$0xf]
      %v1644 = vld [vmem:[%s4 + $0x53c] sm:$0xf]
      %v1645 = vld [vmem:[%s4 + $0x540] sm:$0xf]
      %v1646 = vld [vmem:[%s4 + $0x544] sm:$0xf]
      %v1647 = vld [vmem:[%s4 + $0x548] sm:$0xf]
      %v1648 = vld [vmem:[%s4 + $0x54c] sm:$0xf]
      %v1649 = vld [vmem:[%s4 + $0x550] sm:$0xf]
      %v1650 = vld [vmem:[%s4 + $0x554] sm:$0xf]
      %v1651 = vld [vmem:[%s4 + $0x558] sm:$0xf]
      %v1652 = vld [vmem:[%s4 + $0x55c] sm:$0xf]
      %v1653 = vld [vmem:[%s4 + $0x560] sm:$0xf]
      %v1654 = vld [vmem:[%s4 + $0x564] sm:$0xf]
      %v1655 = vld [vmem:[%s4 + $0x568] sm:$0xf]
      %v1656 = vld [vmem:[%s4 + $0x56c] sm:$0xf]
      %v1657 = vld [vmem:[%s4 + $0x570] sm:$0xf]
      %v1658 = vld [vmem:[%s4 + $0x574] sm:$0xf]
      %v1659 = vld [vmem:[%s4 + $0x578] sm:$0xf]
      %v1660 = vld [vmem:[%s4 + $0x57c] sm:$0xf]
      %v1661 = vld [vmem:[%s4 + $0x580] sm:$0xf]
      %v1662 = vld [vmem:[%s4 + $0x584] sm:$0xf]
      %v1663 = vld [vmem:[%s4 + $0x588] sm:$0xf]
      %v1664 = vld [vmem:[%s4 + $0x58c] sm:$0xf]
      %v1665 = vld [vmem:[%s4 + $0x590] sm:$0xf]
      %v1666 = vld [vmem:[%s4 + $0x594] sm:$0xf]
      %v1667 = vld [vmem:[%s4 + $0x598] sm:$0xf]
      %v1668 = vld [vmem:[%s4 + $0x59c] sm:$0xf]
      %v1669 = vld [vmem:[%s4 + $0x5a0] sm:$0xf]
      %v1670 = vld [vmem:[%s4 + $0x5a4] sm:$0xf]
      %v1671 = vld [vmem:[%s4 + $0x5a8] sm:$0xf]
      %v1672 = vld [vmem:[%s4 + $0x5ac] sm:$0xf]
      %v1673 = vld [vmem:[%s4 + $0x5b0] sm:$0xf]
      %v1674 = vld [vmem:[%s4 + $0x5b4] sm:$0xf]
      %v1675 = vld [vmem:[%s4 + $0x5b8] sm:$0xf]
      %v1676 = vld [vmem:[%s4 + $0x5bc] sm:$0xf]
      %v1677 = vld [vmem:[%s4 + $0x5c0] sm:$0xf]
      %v1678 = vld [vmem:[%s4 + $0x5c4] sm:$0xf]
      %v1679 = vld [vmem:[%s4 + $0x5c8] sm:$0xf]
      %v1680 = vld [vmem:[%s4 + $0x5cc] sm:$0xf]
      %v1681 = vld [vmem:[%s4 + $0x5d0] sm:$0xf]
      %v1682 = vld [vmem:[%s4 + $0x5d4] sm:$0xf]
      %v1683 = vld [vmem:[%s4 + $0x5d8] sm:$0xf]
      %v1684 = vld [vmem:[%s4 + $0x5dc] sm:$0xf]
      %v1685 = vld [vmem:[%s4 + $0x5e0] sm:$0xf]
      %v1686 = vld [vmem:[%s4 + $0x5e4] sm:$0xf]
      %v1687 = vld [vmem:[%s4 + $0x5e8] sm:$0xf]
      %v1688 = vld [vmem:[%s4 + $0x5ec] sm:$0xf]
      %v1689 = vld [vmem:[%s4 + $0x5f0] sm:$0xf]
      %v1690 = vld [vmem:[%s4 + $0x5f4] sm:$0xf]
      %v1691 = vld [vmem:[%s4 + $0x5f8] sm:$0xf]
      %v1692 = vld [vmem:[%s4 + $0x5fc] sm:$0xf]
      %v1693 = vld [vmem:[%s4 + $0x600] sm:$0xf]
      %v1694 = vld [vmem:[%s4 + $0x604] sm:$0xf]
      %v1695 = vld [vmem:[%s4 + $0x608] sm:$0xf]
      %v1696 = vld [vmem:[%s4 + $0x60c] sm:$0xf]
      %v1697 = vld [vmem:[%s4 + $0x610] sm:$0xf]
      %v1698 = vld [vmem:[%s4 + $0x614] sm:$0xf]
      %v1699 = vld [vmem:[%s4 + $0x618] sm:$0xf]
      %v1700 = vld [vmem:[%s4 + $0x61c] sm:$0xf]
      %v1701 = vld [vmem:[%s4 + $0x620] sm:$0xf]
      %v1702 = vld [vmem:[%s4 + $0x624] sm:$0xf]
      %v1703 = vld [vmem:[%s4 + $0x628] sm:$0xf]
      %v1704 = vld [vmem:[%s4 + $0x62c] sm:$0xf]
      %v1705 = vld [vmem:[%s4 + $0x630] sm:$0xf]
      %v1706 = vld [vmem:[%s4 + $0x634] sm:$0xf]
      %v1707 = vld [vmem:[%s4 + $0x638] sm:$0xf]
      %v1708 = vld [vmem:[%s4 + $0x63c] sm:$0xf]
      %v1709 = vld [vmem:[%s5] sm:$0x1]
      %v1711 = vlaneseq
      %v1712 = vshrl.u32 %v1711, 7
      %v1713 = vsub.s32 0, %v1712
      %v1714 = vrot.slane %v1709, %v1713
      %v2116 = vunpack.c.l.b16 %v1309
      %v2117 = vunpack.c.l.b16 %v1310
      %v2118 = vunpack.c.l.b16 %v1311
      %v2119 = vunpack.c.l.b16 %v1312
      %v2120 = vunpack.c.l.b16 %v1313
      %v2121 = vunpack.c.l.b16 %v1314
      %v2122 = vunpack.c.l.b16 %v1315
      %v2123 = vunpack.c.l.b16 %v1316
      %v2124 = vunpack.c.l.b16 %v1317
      %v2125 = vunpack.c.l.b16 %v1318
      %v2126 = vunpack.c.l.b16 %v1319
      %v2127 = vunpack.c.l.b16 %v1320
      %v2128 = vunpack.c.l.b16 %v1321
      %v2129 = vunpack.c.l.b16 %v1322
      %v2130 = vunpack.c.l.b16 %v1323
      %v2131 = vunpack.c.l.b16 %v1324
      %v2132 = vunpack.c.l.b16 %v1325
      %v2133 = vunpack.c.l.b16 %v1326
      %v2134 = vunpack.c.l.b16 %v1327
      %v2135 = vunpack.c.l.b16 %v1328
      %v2136 = vunpack.c.l.b16 %v1329
      %v2137 = vunpack.c.l.b16 %v1330
      %v2138 = vunpack.c.l.b16 %v1331
      %v2139 = vunpack.c.l.b16 %v1332
      %v2140 = vunpack.c.l.b16 %v1333
      %v2141 = vunpack.c.l.b16 %v1334
      %v2142 = vunpack.c.l.b16 %v1335
      %v2143 = vunpack.c.l.b16 %v1336
      %v2144 = vunpack.c.l.b16 %v1337
      %v2145 = vunpack.c.l.b16 %v1338
      %v2146 = vunpack.c.l.b16 %v1339
      %v2147 = vunpack.c.l.b16 %v1340
      %v2148 = vunpack.c.l.b16 %v1341
      %v2149 = vunpack.c.l.b16 %v1342
      %v2150 = vunpack.c.l.b16 %v1343
      %v2151 = vunpack.c.l.b16 %v1344
      %v2152 = vunpack.c.l.b16 %v1345
      %v2153 = vunpack.c.l.b16 %v1346
      %v2154 = vunpack.c.l.b16 %v1347
      %v2155 = vunpack.c.l.b16 %v1348
      %v2156 = vunpack.c.l.b16 %v1349
      %v2157 = vunpack.c.l.b16 %v1350
      %v2158 = vunpack.c.l.b16 %v1351
      %v2159 = vunpack.c.l.b16 %v1352
      %v2160 = vunpack.c.l.b16 %v1353
      %v2161 = vunpack.c.l.b16 %v1354
      %v2162 = vunpack.c.l.b16 %v1355
      %v2163 = vunpack.c.l.b16 %v1356
      %v2164 = vunpack.c.l.b16 %v1357
      %v2165 = vunpack.c.l.b16 %v1358
      %v2166 = vunpack.c.l.b16 %v1359
      %v2167 = vunpack.c.l.b16 %v1360
      %v2168 = vunpack.c.l.b16 %v1361
      %v2169 = vunpack.c.l.b16 %v1362
      %v2170 = vunpack.c.l.b16 %v1363
      %v2171 = vunpack.c.l.b16 %v1364
      %v2172 = vunpack.c.l.b16 %v1365
      %v2173 = vunpack.c.l.b16 %v1366
      %v2174 = vunpack.c.l.b16 %v1367
      %v2175 = vunpack.c.l.b16 %v1368
      %v2176 = vunpack.c.l.b16 %v1369
      %v2177 = vunpack.c.l.b16 %v1370
      %v2178 = vunpack.c.l.b16 %v1371
      %v2179 = vunpack.c.l.b16 %v1372
      %v2180 = vunpack.c.l.b16 %v1373
      %v2181 = vunpack.c.l.b16 %v1374
      %v2182 = vunpack.c.l.b16 %v1375
      %v2183 = vunpack.c.l.b16 %v1376
      %v2184 = vunpack.c.l.b16 %v1377
      %v2185 = vunpack.c.l.b16 %v1378
      %v2186 = vunpack.c.l.b16 %v1379
      %v2187 = vunpack.c.l.b16 %v1380
      %v2188 = vunpack.c.l.b16 %v1381
      %v2189 = vunpack.c.l.b16 %v1382
      %v2190 = vunpack.c.l.b16 %v1383
      %v2191 = vunpack.c.l.b16 %v1384
      %v2192 = vunpack.c.l.b16 %v1385
      %v2193 = vunpack.c.l.b16 %v1386
      %v2194 = vunpack.c.l.b16 %v1387
      %v2195 = vunpack.c.l.b16 %v1388
      %v2196 = vunpack.c.l.b16 %v1389
      %v2197 = vunpack.c.l.b16 %v1390
      %v2198 = vunpack.c.l.b16 %v1391
      %v2199 = vunpack.c.l.b16 %v1392
      %v2200 = vunpack.c.l.b16 %v1393
      %v2201 = vunpack.c.l.b16 %v1394
      %v2202 = vunpack.c.l.b16 %v1395
      %v2203 = vunpack.c.l.b16 %v1396
      %v2204 = vunpack.c.l.b16 %v1397
      %v2205 = vunpack.c.l.b16 %v1398
      %v2206 = vunpack.c.l.b16 %v1399
      %v2207 = vunpack.c.l.b16 %v1400
      %v2208 = vunpack.c.l.b16 %v1401
      %v2209 = vunpack.c.l.b16 %v1402
      %v2210 = vunpack.c.l.b16 %v1403
      %v2211 = vunpack.c.l.b16 %v1404
      %v2212 = vunpack.c.l.b16 %v1405
      %v2213 = vunpack.c.l.b16 %v1406
      %v2214 = vunpack.c.l.b16 %v1407
      %v2215 = vunpack.c.l.b16 %v1408
      %v2216 = vunpack.c.l.b16 %v1409
      %v2217 = vunpack.c.l.b16 %v1410
      %v2218 = vunpack.c.l.b16 %v1411
      %v2219 = vunpack.c.l.b16 %v1412
      %v2220 = vunpack.c.l.b16 %v1413
      %v2221 = vunpack.c.l.b16 %v1414
      %v2222 = vunpack.c.l.b16 %v1415
      %v2223 = vunpack.c.l.b16 %v1416
      %v2224 = vunpack.c.l.b16 %v1417
      %v2225 = vunpack.c.l.b16 %v1418
      %v2226 = vunpack.c.l.b16 %v1419
      %v2227 = vunpack.c.l.b16 %v1420
      %v2228 = vunpack.c.l.b16 %v1421
      %v2229 = vunpack.c.l.b16 %v1422
      %v2230 = vunpack.c.l.b16 %v1423
      %v2231 = vunpack.c.l.b16 %v1424
      %v2232 = vunpack.c.l.b16 %v1425
      %v2233 = vunpack.c.l.b16 %v1426
      %v2234 = vunpack.c.l.b16 %v1427
      %v2235 = vunpack.c.l.b16 %v1428
      %v2236 = vunpack.c.l.b16 %v1429
      %v2237 = vunpack.c.l.b16 %v1430
      %v2238 = vunpack.c.l.b16 %v1431
      %v2239 = vunpack.c.l.b16 %v1432
      %v2240 = vunpack.c.l.b16 %v1433
      %v2241 = vunpack.c.l.b16 %v1434
      %v2242 = vunpack.c.l.b16 %v1435
      %v2243 = vunpack.c.l.b16 %v1436
      %v2244 = vunpack.c.l.b16 %v1437
      %v2245 = vunpack.c.l.b16 %v1438
      %v2246 = vunpack.c.l.b16 %v1439
      %v2247 = vunpack.c.l.b16 %v1440
      %v2248 = vunpack.c.l.b16 %v1441
      %v2249 = vunpack.c.l.b16 %v1442
      %v2250 = vunpack.c.l.b16 %v1443
      %v2251 = vunpack.c.l.b16 %v1444
      %v2252 = vunpack.c.l.b16 %v1445
      %v2253 = vunpack.c.l.b16 %v1446
      %v2254 = vunpack.c.l.b16 %v1447
      %v2255 = vunpack.c.l.b16 %v1448
      %v2256 = vunpack.c.l.b16 %v1449
      %v2257 = vunpack.c.l.b16 %v1450
      %v2258 = vunpack.c.l.b16 %v1451
      %v2259 = vunpack.c.l.b16 %v1452
      %v2260 = vunpack.c.l.b16 %v1453
      %v2261 = vunpack.c.l.b16 %v1454
      %v2262 = vunpack.c.l.b16 %v1455
      %v2263 = vunpack.c.l.b16 %v1456
      %v2264 = vunpack.c.l.b16 %v1457
      %v2265 = vunpack.c.l.b16 %v1458
      %v2266 = vunpack.c.l.b16 %v1459
      %v2267 = vunpack.c.l.b16 %v1460
      %v2268 = vunpack.c.l.b16 %v1461
      %v2269 = vunpack.c.l.b16 %v1462
      %v2270 = vunpack.c.l.b16 %v1463
      %v2271 = vunpack.c.l.b16 %v1464
      %v2272 = vunpack.c.l.b16 %v1465
      %v2273 = vunpack.c.l.b16 %v1466
      %v2274 = vunpack.c.l.b16 %v1467
      %v2275 = vunpack.c.l.b16 %v1468
      %v2276 = vunpack.c.l.b16 %v1469
      %v2277 = vunpack.c.l.b16 %v1470
      %v2278 = vunpack.c.l.b16 %v1471
      %v2279 = vunpack.c.l.b16 %v1472
      %v2280 = vunpack.c.l.b16 %v1473
      %v2281 = vunpack.c.l.b16 %v1474
      %v2282 = vunpack.c.l.b16 %v1475
      %v2283 = vunpack.c.l.b16 %v1476
      %v2284 = vunpack.c.l.b16 %v1477
      %v2285 = vunpack.c.l.b16 %v1478
      %v2286 = vunpack.c.l.b16 %v1479
      %v2287 = vunpack.c.l.b16 %v1480
      %v2288 = vunpack.c.l.b16 %v1481
      %v2289 = vunpack.c.l.b16 %v1482
      %v2290 = vunpack.c.l.b16 %v1483
      %v2291 = vunpack.c.l.b16 %v1484
      %v2292 = vunpack.c.l.b16 %v1485
      %v2293 = vunpack.c.l.b16 %v1486
      %v2294 = vunpack.c.l.b16 %v1487
      %v2295 = vunpack.c.l.b16 %v1488
      %v2296 = vunpack.c.l.b16 %v1489
      %v2297 = vunpack.c.l.b16 %v1490
      %v2298 = vunpack.c.l.b16 %v1491
      %v2299 = vunpack.c.l.b16 %v1492
      %v2300 = vunpack.c.l.b16 %v1493
      %v2301 = vunpack.c.l.b16 %v1494
      %v2302 = vunpack.c.l.b16 %v1495
      %v2303 = vunpack.c.l.b16 %v1496
      %v2304 = vunpack.c.l.b16 %v1497
      %v2305 = vunpack.c.l.b16 %v1498
      %v2306 = vunpack.c.l.b16 %v1499
      %v2307 = vunpack.c.l.b16 %v1500
      %v2308 = vunpack.c.l.b16 %v1501
      %v2309 = vunpack.c.l.b16 %v1502
      %v2310 = vunpack.c.l.b16 %v1503
      %v2311 = vunpack.c.l.b16 %v1504
      %v2312 = vunpack.c.l.b16 %v1505
      %v2313 = vunpack.c.l.b16 %v1506
      %v2314 = vunpack.c.l.b16 %v1507
      %v2315 = vunpack.c.l.b16 %v1508
      %v2316 = vunpack.c.l.b16 %v1509
      %v2317 = vunpack.c.l.b16 %v1510
      %v2318 = vunpack.c.l.b16 %v1511
      %v2319 = vunpack.c.l.b16 %v1512
      %v2320 = vunpack.c.l.b16 %v1513
      %v2321 = vunpack.c.l.b16 %v1514
      %v2322 = vunpack.c.l.b16 %v1515
      %v2323 = vunpack.c.l.b16 %v1516
      %v2324 = vunpack.c.l.b16 %v1517
      %v2325 = vunpack.c.l.b16 %v1518
      %v2326 = vunpack.c.l.b16 %v1519
      %v2327 = vunpack.c.l.b16 %v1520
      %v2328 = vunpack.c.l.b16 %v1521
      %v2329 = vunpack.c.l.b16 %v1522
      %v2330 = vunpack.c.l.b16 %v1523
      %v2331 = vunpack.c.l.b16 %v1524
      %v2332 = vunpack.c.l.b16 %v1525
      %v2333 = vunpack.c.l.b16 %v1526
      %v2334 = vunpack.c.l.b16 %v1527
      %v2335 = vunpack.c.l.b16 %v1528
      %v2336 = vunpack.c.l.b16 %v1529
      %v2337 = vunpack.c.l.b16 %v1530
      %v2338 = vunpack.c.l.b16 %v1531
      %v2339 = vunpack.c.l.b16 %v1532
      %v2340 = vunpack.c.l.b16 %v1533
      %v2341 = vunpack.c.l.b16 %v1534
      %v2342 = vunpack.c.l.b16 %v1535
      %v2343 = vunpack.c.l.b16 %v1536
      %v2344 = vunpack.c.l.b16 %v1537
      %v2345 = vunpack.c.l.b16 %v1538
      %v2346 = vunpack.c.l.b16 %v1539
      %v2347 = vunpack.c.l.b16 %v1540
      %v2348 = vunpack.c.l.b16 %v1541
      %v2349 = vunpack.c.l.b16 %v1542
      %v2350 = vunpack.c.l.b16 %v1543
      %v2351 = vunpack.c.l.b16 %v1544
      %v2352 = vunpack.c.l.b16 %v1545
      %v2353 = vunpack.c.l.b16 %v1546
      %v2354 = vunpack.c.l.b16 %v1547
      %v2355 = vunpack.c.l.b16 %v1548
      %v2356 = vunpack.c.l.b16 %v1549
      %v2357 = vunpack.c.l.b16 %v1550
      %v2358 = vunpack.c.l.b16 %v1551
      %v2359 = vunpack.c.l.b16 %v1552
      %v2360 = vunpack.c.l.b16 %v1553
      %v2361 = vunpack.c.l.b16 %v1554
      %v2362 = vunpack.c.l.b16 %v1555
      %v2363 = vunpack.c.l.b16 %v1556
      %v2364 = vunpack.c.l.b16 %v1557
      %v2365 = vunpack.c.l.b16 %v1558
      %v2366 = vunpack.c.l.b16 %v1559
      %v2367 = vunpack.c.l.b16 %v1560
      %v2368 = vunpack.c.l.b16 %v1561
      %v2369 = vunpack.c.l.b16 %v1562
      %v2370 = vunpack.c.l.b16 %v1563
      %v2371 = vunpack.c.l.b16 %v1564
      %v2372 = vunpack.c.l.b16 %v1565
      %v2373 = vunpack.c.l.b16 %v1566
      %v2374 = vunpack.c.l.b16 %v1567
      %v2375 = vunpack.c.l.b16 %v1568
      %v2376 = vunpack.c.l.b16 %v1569
      %v2377 = vunpack.c.l.b16 %v1570
      %v2378 = vunpack.c.l.b16 %v1571
      %v2379 = vunpack.c.l.b16 %v1572
      %v2380 = vunpack.c.l.b16 %v1573
      %v2381 = vunpack.c.l.b16 %v1574
      %v2382 = vunpack.c.l.b16 %v1575
      %v2383 = vunpack.c.l.b16 %v1576
      %v2384 = vunpack.c.l.b16 %v1577
      %v2385 = vunpack.c.l.b16 %v1578
      %v2386 = vunpack.c.l.b16 %v1579
      %v2387 = vunpack.c.l.b16 %v1580
      %v2388 = vunpack.c.l.b16 %v1581
      %v2389 = vunpack.c.l.b16 %v1582
      %v2390 = vunpack.c.l.b16 %v1583
      %v2391 = vunpack.c.l.b16 %v1584
      %v2392 = vunpack.c.l.b16 %v1585
      %v2393 = vunpack.c.l.b16 %v1586
      %v2394 = vunpack.c.l.b16 %v1587
      %v2395 = vunpack.c.l.b16 %v1588
      %v2396 = vunpack.c.l.b16 %v1589
      %v2397 = vunpack.c.l.b16 %v1590
      %v2398 = vunpack.c.l.b16 %v1591
      %v2399 = vunpack.c.l.b16 %v1592
      %v2400 = vunpack.c.l.b16 %v1593
      %v2401 = vunpack.c.l.b16 %v1594
      %v2402 = vunpack.c.l.b16 %v1595
      %v2403 = vunpack.c.l.b16 %v1596
      %v2404 = vunpack.c.l.b16 %v1597
      %v2405 = vunpack.c.l.b16 %v1598
      %v2406 = vunpack.c.l.b16 %v1599
      %v2407 = vunpack.c.l.b16 %v1600
      %v2408 = vunpack.c.l.b16 %v1601
      %v2409 = vunpack.c.l.b16 %v1602
      %v2410 = vunpack.c.l.b16 %v1603
      %v2411 = vunpack.c.l.b16 %v1604
      %v2412 = vunpack.c.l.b16 %v1605
      %v2413 = vunpack.c.l.b16 %v1606
      %v2414 = vunpack.c.l.b16 %v1607
      %v2415 = vunpack.c.l.b16 %v1608
      %v2416 = vunpack.c.l.b16 %v1609
      %v2417 = vunpack.c.l.b16 %v1610
      %v2418 = vunpack.c.l.b16 %v1611
      %v2419 = vunpack.c.l.b16 %v1612
      %v2420 = vunpack.c.l.b16 %v1613
      %v2421 = vunpack.c.l.b16 %v1614
      %v2422 = vunpack.c.l.b16 %v1615
      %v2423 = vunpack.c.l.b16 %v1616
      %v2424 = vunpack.c.l.b16 %v1617
      %v2425 = vunpack.c.l.b16 %v1618
      %v2426 = vunpack.c.l.b16 %v1619
      %v2427 = vunpack.c.l.b16 %v1620
      %v2428 = vunpack.c.l.b16 %v1621
      %v2429 = vunpack.c.l.b16 %v1622
      %v2430 = vunpack.c.l.b16 %v1623
      %v2431 = vunpack.c.l.b16 %v1624
      %v2432 = vunpack.c.l.b16 %v1625
      %v2433 = vunpack.c.l.b16 %v1626
      %v2434 = vunpack.c.l.b16 %v1627
      %v2435 = vunpack.c.l.b16 %v1628
      %v2436 = vunpack.c.l.b16 %v1629
      %v2437 = vunpack.c.l.b16 %v1630
      %v2438 = vunpack.c.l.b16 %v1631
      %v2439 = vunpack.c.l.b16 %v1632
      %v2440 = vunpack.c.l.b16 %v1633
      %v2441 = vunpack.c.l.b16 %v1634
      %v2442 = vunpack.c.l.b16 %v1635
      %v2443 = vunpack.c.l.b16 %v1636
      %v2444 = vunpack.c.l.b16 %v1637
      %v2445 = vunpack.c.l.b16 %v1638
      %v2446 = vunpack.c.l.b16 %v1639
      %v2447 = vunpack.c.l.b16 %v1640
      %v2448 = vunpack.c.l.b16 %v1641
      %v2449 = vunpack.c.l.b16 %v1642
      %v2450 = vunpack.c.l.b16 %v1643
      %v2451 = vunpack.c.l.b16 %v1644
      %v2452 = vunpack.c.l.b16 %v1645
      %v2453 = vunpack.c.l.b16 %v1646
      %v2454 = vunpack.c.l.b16 %v1647
      %v2455 = vunpack.c.l.b16 %v1648
      %v2456 = vunpack.c.l.b16 %v1649
      %v2457 = vunpack.c.l.b16 %v1650
      %v2458 = vunpack.c.l.b16 %v1651
      %v2459 = vunpack.c.l.b16 %v1652
      %v2460 = vunpack.c.l.b16 %v1653
      %v2461 = vunpack.c.l.b16 %v1654
      %v2462 = vunpack.c.l.b16 %v1655
      %v2463 = vunpack.c.l.b16 %v1656
      %v2464 = vunpack.c.l.b16 %v1657
      %v2465 = vunpack.c.l.b16 %v1658
      %v2466 = vunpack.c.l.b16 %v1659
      %v2467 = vunpack.c.l.b16 %v1660
      %v2468 = vunpack.c.l.b16 %v1661
      %v2469 = vunpack.c.l.b16 %v1662
      %v2470 = vunpack.c.l.b16 %v1663
      %v2471 = vunpack.c.l.b16 %v1664
      %v2472 = vunpack.c.l.b16 %v1665
      %v2473 = vunpack.c.l.b16 %v1666
      %v2474 = vunpack.c.l.b16 %v1667
      %v2475 = vunpack.c.l.b16 %v1668
      %v2476 = vunpack.c.l.b16 %v1669
      %v2477 = vunpack.c.l.b16 %v1670
      %v2478 = vunpack.c.l.b16 %v1671
      %v2479 = vunpack.c.l.b16 %v1672
      %v2480 = vunpack.c.l.b16 %v1673
      %v2481 = vunpack.c.l.b16 %v1674
      %v2482 = vunpack.c.l.b16 %v1675
      %v2483 = vunpack.c.l.b16 %v1676
      %v2484 = vunpack.c.l.b16 %v1677
      %v2485 = vunpack.c.l.b16 %v1678
      %v2486 = vunpack.c.l.b16 %v1679
      %v2487 = vunpack.c.l.b16 %v1680
      %v2488 = vunpack.c.l.b16 %v1681
      %v2489 = vunpack.c.l.b16 %v1682
      %v2490 = vunpack.c.l.b16 %v1683
      %v2491 = vunpack.c.l.b16 %v1684
      %v2492 = vunpack.c.l.b16 %v1685
      %v2493 = vunpack.c.l.b16 %v1686
      %v2494 = vunpack.c.l.b16 %v1687
      %v2495 = vunpack.c.l.b16 %v1688
      %v2496 = vunpack.c.l.b16 %v1689
      %v2497 = vunpack.c.l.b16 %v1690
      %v2498 = vunpack.c.l.b16 %v1691
      %v2499 = vunpack.c.l.b16 %v1692
      %v2500 = vunpack.c.l.b16 %v1693
      %v2501 = vunpack.c.l.b16 %v1694
      %v2502 = vunpack.c.l.b16 %v1695
      %v2503 = vunpack.c.l.b16 %v1696
      %v2504 = vunpack.c.l.b16 %v1697
      %v2505 = vunpack.c.l.b16 %v1698
      %v2506 = vunpack.c.l.b16 %v1699
      %v2507 = vunpack.c.l.b16 %v1700
      %v2508 = vunpack.c.l.b16 %v1701
      %v2509 = vunpack.c.l.b16 %v1702
      %v2510 = vunpack.c.l.b16 %v1703
      %v2511 = vunpack.c.l.b16 %v1704
      %v2512 = vunpack.c.l.b16 %v1705
      %v2513 = vunpack.c.l.b16 %v1706
      %v2514 = vunpack.c.l.b16 %v1707
      %v2515 = vunpack.c.l.b16 %v1708
      %v2516 = vpack.c.b16 %v2117, %v2116
      %v2517 = vpack.c.b16 %v2119, %v2118
      %v2518 = vpack.c.b16 %v2121, %v2120
      %v2519 = vpack.c.b16 %v2123, %v2122
      %v2520 = vpack.c.b16 %v2125, %v2124
      %v2521 = vpack.c.b16 %v2127, %v2126
      %v2522 = vpack.c.b16 %v2129, %v2128
      %v2523 = vpack.c.b16 %v2131, %v2130
      %v2524 = vpack.c.b16 %v2133, %v2132
      %v2525 = vpack.c.b16 %v2135, %v2134
      %v2526 = vpack.c.b16 %v2137, %v2136
      %v2527 = vpack.c.b16 %v2139, %v2138
      %v2528 = vpack.c.b16 %v2141, %v2140
      %v2529 = vpack.c.b16 %v2143, %v2142
      %v2530 = vpack.c.b16 %v2145, %v2144
      %v2531 = vpack.c.b16 %v2147, %v2146
      %v2532 = vpack.c.b16 %v2149, %v2148
      %v2533 = vpack.c.b16 %v2151, %v2150
      %v2534 = vpack.c.b16 %v2153, %v2152
      %v2535 = vpack.c.b16 %v2155, %v2154
      %v2536 = vpack.c.b16 %v2157, %v2156
      %v2537 = vpack.c.b16 %v2159, %v2158
      %v2538 = vpack.c.b16 %v2161, %v2160
      %v2539 = vpack.c.b16 %v2163, %v2162
      %v2540 = vpack.c.b16 %v2165, %v2164
      %v2541 = vpack.c.b16 %v2167, %v2166
      %v2542 = vpack.c.b16 %v2169, %v2168
      %v2543 = vpack.c.b16 %v2171, %v2170
      %v2544 = vpack.c.b16 %v2173, %v2172
      %v2545 = vpack.c.b16 %v2175, %v2174
      %v2546 = vpack.c.b16 %v2177, %v2176
      %v2547 = vpack.c.b16 %v2179, %v2178
      %v2548 = vpack.c.b16 %v2181, %v2180
      %v2549 = vpack.c.b16 %v2183, %v2182
      %v2550 = vpack.c.b16 %v2185, %v2184
      %v2551 = vpack.c.b16 %v2187, %v2186
      %v2552 = vpack.c.b16 %v2189, %v2188
      %v2553 = vpack.c.b16 %v2191, %v2190
      %v2554 = vpack.c.b16 %v2193, %v2192
      %v2555 = vpack.c.b16 %v2195, %v2194
      %v2556 = vpack.c.b16 %v2197, %v2196
      %v2557 = vpack.c.b16 %v2199, %v2198
      %v2558 = vpack.c.b16 %v2201, %v2200
      %v2559 = vpack.c.b16 %v2203, %v2202
      %v2560 = vpack.c.b16 %v2205, %v2204
      %v2561 = vpack.c.b16 %v2207, %v2206
      %v2562 = vpack.c.b16 %v2209, %v2208
      %v2563 = vpack.c.b16 %v2211, %v2210
      %v2564 = vpack.c.b16 %v2213, %v2212
      %v2565 = vpack.c.b16 %v2215, %v2214
      %v2566 = vpack.c.b16 %v2217, %v2216
      %v2567 = vpack.c.b16 %v2219, %v2218
      %v2568 = vpack.c.b16 %v2221, %v2220
      %v2569 = vpack.c.b16 %v2223, %v2222
      %v2570 = vpack.c.b16 %v2225, %v2224
      %v2571 = vpack.c.b16 %v2227, %v2226
      %v2572 = vpack.c.b16 %v2229, %v2228
      %v2573 = vpack.c.b16 %v2231, %v2230
      %v2574 = vpack.c.b16 %v2233, %v2232
      %v2575 = vpack.c.b16 %v2235, %v2234
      %v2576 = vpack.c.b16 %v2237, %v2236
      %v2577 = vpack.c.b16 %v2239, %v2238
      %v2578 = vpack.c.b16 %v2241, %v2240
      %v2579 = vpack.c.b16 %v2243, %v2242
      %v2580 = vpack.c.b16 %v2245, %v2244
      %v2581 = vpack.c.b16 %v2247, %v2246
      %v2582 = vpack.c.b16 %v2249, %v2248
      %v2583 = vpack.c.b16 %v2251, %v2250
      %v2584 = vpack.c.b16 %v2253, %v2252
      %v2585 = vpack.c.b16 %v2255, %v2254
      %v2586 = vpack.c.b16 %v2257, %v2256
      %v2587 = vpack.c.b16 %v2259, %v2258
      %v2588 = vpack.c.b16 %v2261, %v2260
      %v2589 = vpack.c.b16 %v2263, %v2262
      %v2590 = vpack.c.b16 %v2265, %v2264
      %v2591 = vpack.c.b16 %v2267, %v2266
      %v2592 = vpack.c.b16 %v2269, %v2268
      %v2593 = vpack.c.b16 %v2271, %v2270
      %v2594 = vpack.c.b16 %v2273, %v2272
      %v2595 = vpack.c.b16 %v2275, %v2274
      %v2596 = vpack.c.b16 %v2277, %v2276
      %v2597 = vpack.c.b16 %v2279, %v2278
      %v2598 = vpack.c.b16 %v2281, %v2280
      %v2599 = vpack.c.b16 %v2283, %v2282
      %v2600 = vpack.c.b16 %v2285, %v2284
      %v2601 = vpack.c.b16 %v2287, %v2286
      %v2602 = vpack.c.b16 %v2289, %v2288
      %v2603 = vpack.c.b16 %v2291, %v2290
      %v2604 = vpack.c.b16 %v2293, %v2292
      %v2605 = vpack.c.b16 %v2295, %v2294
      %v2606 = vpack.c.b16 %v2297, %v2296
      %v2607 = vpack.c.b16 %v2299, %v2298
      %v2608 = vpack.c.b16 %v2301, %v2300
      %v2609 = vpack.c.b16 %v2303, %v2302
      %v2610 = vpack.c.b16 %v2305, %v2304
      %v2611 = vpack.c.b16 %v2307, %v2306
      %v2612 = vpack.c.b16 %v2309, %v2308
      %v2613 = vpack.c.b16 %v2311, %v2310
      %v2614 = vpack.c.b16 %v2313, %v2312
      %v2615 = vpack.c.b16 %v2315, %v2314
      %v2616 = vpack.c.b16 %v2317, %v2316
      %v2617 = vpack.c.b16 %v2319, %v2318
      %v2618 = vpack.c.b16 %v2321, %v2320
      %v2619 = vpack.c.b16 %v2323, %v2322
      %v2620 = vpack.c.b16 %v2325, %v2324
      %v2621 = vpack.c.b16 %v2327, %v2326
      %v2622 = vpack.c.b16 %v2329, %v2328
      %v2623 = vpack.c.b16 %v2331, %v2330
      %v2624 = vpack.c.b16 %v2333, %v2332
      %v2625 = vpack.c.b16 %v2335, %v2334
      %v2626 = vpack.c.b16 %v2337, %v2336
      %v2627 = vpack.c.b16 %v2339, %v2338
      %v2628 = vpack.c.b16 %v2341, %v2340
      %v2629 = vpack.c.b16 %v2343, %v2342
      %v2630 = vpack.c.b16 %v2345, %v2344
      %v2631 = vpack.c.b16 %v2347, %v2346
      %v2632 = vpack.c.b16 %v2349, %v2348
      %v2633 = vpack.c.b16 %v2351, %v2350
      %v2634 = vpack.c.b16 %v2353, %v2352
      %v2635 = vpack.c.b16 %v2355, %v2354
      %v2636 = vpack.c.b16 %v2357, %v2356
      %v2637 = vpack.c.b16 %v2359, %v2358
      %v2638 = vpack.c.b16 %v2361, %v2360
      %v2639 = vpack.c.b16 %v2363, %v2362
      %v2640 = vpack.c.b16 %v2365, %v2364
      %v2641 = vpack.c.b16 %v2367, %v2366
      %v2642 = vpack.c.b16 %v2369, %v2368
      %v2643 = vpack.c.b16 %v2371, %v2370
      %v2644 = vpack.c.b16 %v2373, %v2372
      %v2645 = vpack.c.b16 %v2375, %v2374
      %v2646 = vpack.c.b16 %v2377, %v2376
      %v2647 = vpack.c.b16 %v2379, %v2378
      %v2648 = vpack.c.b16 %v2381, %v2380
      %v2649 = vpack.c.b16 %v2383, %v2382
      %v2650 = vpack.c.b16 %v2385, %v2384
      %v2651 = vpack.c.b16 %v2387, %v2386
      %v2652 = vpack.c.b16 %v2389, %v2388
      %v2653 = vpack.c.b16 %v2391, %v2390
      %v2654 = vpack.c.b16 %v2393, %v2392
      %v2655 = vpack.c.b16 %v2395, %v2394
      %v2656 = vpack.c.b16 %v2397, %v2396
      %v2657 = vpack.c.b16 %v2399, %v2398
      %v2658 = vpack.c.b16 %v2401, %v2400
      %v2659 = vpack.c.b16 %v2403, %v2402
      %v2660 = vpack.c.b16 %v2405, %v2404
      %v2661 = vpack.c.b16 %v2407, %v2406
      %v2662 = vpack.c.b16 %v2409, %v2408
      %v2663 = vpack.c.b16 %v2411, %v2410
      %v2664 = vpack.c.b16 %v2413, %v2412
      %v2665 = vpack.c.b16 %v2415, %v2414
      %v2666 = vpack.c.b16 %v2417, %v2416
      %v2667 = vpack.c.b16 %v2419, %v2418
      %v2668 = vpack.c.b16 %v2421, %v2420
      %v2669 = vpack.c.b16 %v2423, %v2422
      %v2670 = vpack.c.b16 %v2425, %v2424
      %v2671 = vpack.c.b16 %v2427, %v2426
      %v2672 = vpack.c.b16 %v2429, %v2428
      %v2673 = vpack.c.b16 %v2431, %v2430
      %v2674 = vpack.c.b16 %v2433, %v2432
      %v2675 = vpack.c.b16 %v2435, %v2434
      %v2676 = vpack.c.b16 %v2437, %v2436
      %v2677 = vpack.c.b16 %v2439, %v2438
      %v2678 = vpack.c.b16 %v2441, %v2440
      %v2679 = vpack.c.b16 %v2443, %v2442
      %v2680 = vpack.c.b16 %v2445, %v2444
      %v2681 = vpack.c.b16 %v2447, %v2446
      %v2682 = vpack.c.b16 %v2449, %v2448
      %v2683 = vpack.c.b16 %v2451, %v2450
      %v2684 = vpack.c.b16 %v2453, %v2452
      %v2685 = vpack.c.b16 %v2455, %v2454
      %v2686 = vpack.c.b16 %v2457, %v2456
      %v2687 = vpack.c.b16 %v2459, %v2458
      %v2688 = vpack.c.b16 %v2461, %v2460
      %v2689 = vpack.c.b16 %v2463, %v2462
      %v2690 = vpack.c.b16 %v2465, %v2464
      %v2691 = vpack.c.b16 %v2467, %v2466
      %v2692 = vpack.c.b16 %v2469, %v2468
      %v2693 = vpack.c.b16 %v2471, %v2470
      %v2694 = vpack.c.b16 %v2473, %v2472
      %v2695 = vpack.c.b16 %v2475, %v2474
      %v2696 = vpack.c.b16 %v2477, %v2476
      %v2697 = vpack.c.b16 %v2479, %v2478
      %v2698 = vpack.c.b16 %v2481, %v2480
      %v2699 = vpack.c.b16 %v2483, %v2482
      %v2700 = vpack.c.b16 %v2485, %v2484
      %v2701 = vpack.c.b16 %v2487, %v2486
      %v2702 = vpack.c.b16 %v2489, %v2488
      %v2703 = vpack.c.b16 %v2491, %v2490
      %v2704 = vpack.c.b16 %v2493, %v2492
      %v2705 = vpack.c.b16 %v2495, %v2494
      %v2706 = vpack.c.b16 %v2497, %v2496
      %v2707 = vpack.c.b16 %v2499, %v2498
      %v2708 = vpack.c.b16 %v2501, %v2500
      %v2709 = vpack.c.b16 %v2503, %v2502
      %v2710 = vpack.c.b16 %v2505, %v2504
      %v2711 = vpack.c.b16 %v2507, %v2506
      %v2712 = vpack.c.b16 %v2509, %v2508
      %v2713 = vpack.c.b16 %v2511, %v2510
      %v2714 = vpack.c.b16 %v2513, %v2512
      %v2715 = vpack.c.b16 %v2515, %v2514
      %2916 = vmatprep.subr.bf16.mxu0 0
      %2917 = vmatpush1.bf16.msra.mxu0 %v2516
      %2918 = vmatprep.subr.bf16.mxu0 0
      %2919 = vmatpush1.bf16.msra.mxu0 %v2517
      %2920 = vmatprep.subr.bf16.mxu0 0
      %2921 = vmatpush1.bf16.msra.mxu0 %v2518
      %2922 = vmatprep.subr.bf16.mxu0 0
      %2923 = vmatpush1.bf16.msra.mxu0 %v2519
      %2924 = vmatprep.subr.bf16.mxu0 0
      %2925 = vmatpush1.bf16.msra.mxu0 %v2520
      %2926 = vmatprep.subr.bf16.mxu0 0
      %2927 = vmatpush1.bf16.msra.mxu0 %v2521
      %2928 = vmatprep.subr.bf16.mxu0 0
      %2929 = vmatpush1.bf16.msra.mxu0 %v2522
      %2930 = vmatprep.subr.bf16.mxu0 0
      %2931 = vmatpush1.bf16.msra.mxu0 %v2523
      %2932 = vmatprep.subr.bf16.mxu0 0
      %2933 = vmatpush1.bf16.msra.mxu0 %v2524
      %2934 = vmatprep.subr.bf16.mxu0 0
      %2935 = vmatpush1.bf16.msra.mxu0 %v2525
      %2936 = vmatprep.subr.bf16.mxu0 0
      %2937 = vmatpush1.bf16.msra.mxu0 %v2526
      %2938 = vmatprep.subr.bf16.mxu0 0
      %2939 = vmatpush1.bf16.msra.mxu0 %v2527
      %2940 = vmatprep.subr.bf16.mxu0 0
      %2941 = vmatpush1.bf16.msra.mxu0 %v2528
      %2942 = vmatprep.subr.bf16.mxu0 0
      %2943 = vmatpush1.bf16.msra.mxu0 %v2529
      %2944 = vmatprep.subr.bf16.mxu0 0
      %2945 = vmatpush1.bf16.msra.mxu0 %v2530
      %2946 = vmatprep.subr.bf16.mxu0 0
      %2947 = vmatpush1.bf16.msra.mxu0 %v2531
      %2948 = vmatprep.mubr.bf16.mxu0 %v1210
      %2949 = vmatmul.mubr.bf16.gmra.mrb[0].mxu0 %v1209
      %v2950 = vpop.f32.mrb[0].mxu0
      %v2951 = vadd.f32 %v1714, %v2950
      %v2952 = vpop.f32.mrb[0].mxu0
      %v2953 = vpop.f32.mrb[0].mxu0
      %v2954 = vadd.f32 %v1714, %v2953
      %v2955 = vpop.f32.mrb[0].mxu0
      %2956 = vmatprep.mubr.bf16.mxu0 %v1215
      %2957 = vmatmul.mubr.bf16.gmra.mrb[0].mxu0 %v1214
      %v2958 = vpop.f32.mrb[0].mxu0
      %v2959 = vadd.f32 %v1714, %v2958
      %v2960 = vpop.f32.mrb[0].mxu0
      %v2961 = vpop.f32.mrb[0].mxu0
      %v2962 = vadd.f32 %v1714, %v2961
      %v2963 = vpop.f32.mrb[0].mxu0
      %2964 = vmatprep.mubr.bf16.mxu0 %v1220
      %2965 = vmatmul.mubr.bf16.gmra.mrb[0].mxu0 %v1219
      %v2966 = vpop.f32.mrb[0].mxu0
      %v2967 = vadd.f32 %v1714, %v2966
      %v2968 = vpop.f32.mrb[0].mxu0
      %v2969 = vpop.f32.mrb[0].mxu0
      %v2970 = vadd.f32 %v1714, %v2969
      %v2971 = vpop.f32.mrb[0].mxu0
      %2972 = vmatprep.mubr.bf16.mxu0 %v1225
      %2973 = vmatmul.mubr.bf16.gmra.mrb[0].mxu0 %v1224
      %v2974 = vpop.f32.mrb[0].mxu0
      %v2975 = vadd.f32 %v1714, %v2974
      %v2976 = vpop.f32.mrb[0].mxu0
      %v2977 = vpop.f32.mrb[0].mxu0
      %v2978 = vadd.f32 %v1714, %v2977
      %v2979 = vpop.f32.mrb[0].mxu0
      %2980 = vmatprep.mubr.bf16.mxu0 %v1230
      %2981 = vmatmul.mubr.bf16.gmra.mrb[0].mxu0 %v1229
      %v2982 = vpop.f32.mrb[0].mxu0
      %v2983 = vadd.f32 %v1714, %v2982
      %v2984 = vpop.f32.mrb[0].mxu0
      %v2985 = vpop.f32.mrb[0].mxu0
      %v2986 = vadd.f32 %v1714, %v2985
      %v2987 = vpop.f32.mrb[0].mxu0
      %2988 = vmatprep.mubr.bf16.mxu0 %v1235
      %2989 = vmatmul.mubr.bf16.gmra.mrb[0].mxu0 %v1234
      %v2990 = vpop.f32.mrb[0].mxu0
      %v2991 = vadd.f32 %v1714, %v2990
      %v2992 = vpop.f32.mrb[0].mxu0
      %v2993 = vpop.f32.mrb[0].mxu0
      %v2994 = vadd.f32 %v1714, %v2993
      %v2995 = vpop.f32.mrb[0].mxu0
      %2996 = vmatprep.mubr.bf16.mxu0 %v1240
      %2997 = vmatmul.mubr.bf16.gmra.mrb[0].mxu0 %v1239
      %v2998 = vpop.f32.mrb[0].mxu0
      %v2999 = vadd.f32 %v1714, %v2998
      %v3000 = vpop.f32.mrb[0].mxu0
      %v3001 = vpop.f32.mrb[0].mxu0
      %v3002 = vadd.f32 %v1714, %v3001
      %v3003 = vpop.f32.mrb[0].mxu0
      %3004 = vmatprep.mubr.bf16.mxu0 %v1245
      %3005 = vmatmul.mubr.bf16.gmra.mrb[0].mxu0 %v1244
      %v3006 = vpop.f32.mrb[0].mxu0
      %v3007 = vadd.f32 %v1714, %v3006
      %v3008 = vpop.f32.mrb[0].mxu0
      %v3009 = vpop.f32.mrb[0].mxu0
      %v3010 = vadd.f32 %v1714, %v3009
      %v3011 = vpop.f32.mrb[0].mxu0
      %3012 = vmatprep.mubr.bf16.mxu0 %v1250
      %3013 = vmatmul.mubr.bf16.gmra.mrb[0].mxu0 %v1249
      %v3014 = vpop.f32.mrb[0].mxu0
      %v3015 = vadd.f32 %v1714, %v3014
      %v3016 = vpop.f32.mrb[0].mxu0
      %v3017 = vpop.f32.mrb[0].mxu0
      %v3018 = vadd.f32 %v1714, %v3017
      %v3019 = vpop.f32.mrb[0].mxu0
      %3020 = vmatprep.mubr.bf16.mxu0 %v1255
      %3021 = vmatmul.mubr.bf16.gmra.mrb[0].mxu0 %v1254
      %v3022 = vpop.f32.mrb[0].mxu0
      %v3023 = vadd.f32 %v1714, %v3022
      %v3024 = vpop.f32.mrb[0].mxu0
      %v3025 = vpop.f32.mrb[0].mxu0
      %v3026 = vadd.f32 %v1714, %v3025
      %v3027 = vpop.f32.mrb[0].mxu0
      %3028 = vmatprep.mubr.bf16.mxu0 %v1260
      %3029 = vmatmul.mubr.bf16.gmra.mrb[0].mxu0 %v1259
      %v3030 = vpop.f32.mrb[0].mxu0
      %v3031 = vadd.f32 %v1714, %v3030
      %v3032 = vpop.f32.mrb[0].mxu0
      %v3033 = vpop.f32.mrb[0].mxu0
      %v3034 = vadd.f32 %v1714, %v3033
      %v3035 = vpop.f32.mrb[0].mxu0
      %3036 = vmatprep.mubr.bf16.mxu0 %v1265
      %3037 = vmatmul.mubr.bf16.gmra.mrb[0].mxu0 %v1264
      %v3038 = vpop.f32.mrb[0].mxu0
      %v3039 = vadd.f32 %v1714, %v3038
      %v3040 = vpop.f32.mrb[0].mxu0
      %v3041 = vpop.f32.mrb[0].mxu0
      %v3042 = vadd.f32 %v1714, %v3041
      %v3043 = vpop.f32.mrb[0].mxu0
      %3044 = vmatprep.mubr.bf16.mxu0 %v1270
      %3045 = vmatmul.mubr.bf16.gmra.mrb[0].mxu0 %v1269
      %v3046 = vpop.f32.mrb[0].mxu0
      %v3047 = vadd.f32 %v1714, %v3046
      %v3048 = vpop.f32.mrb[0].mxu0
      %v3049 = vpop.f32.mrb[0].mxu0
      %v3050 = vadd.f32 %v1714, %v3049
      %v3051 = vpop.f32.mrb[0].mxu0
      %3052 = vmatprep.mubr.bf16.mxu0 %v1275
      %3053 = vmatmul.mubr.bf16.gmra.mrb[0].mxu0 %v1274
      %v3054 = vpop.f32.mrb[0].mxu0
      %v3055 = vadd.f32 %v1714, %v3054
      %v3056 = vpop.f32.mrb[0].mxu0
      %v3057 = vpop.f32.mrb[0].mxu0
      %v3058 = vadd.f32 %v1714, %v3057
      %v3059 = vpop.f32.mrb[0].mxu0
      %3060 = vmatprep.mubr.bf16.mxu0 %v1280
      %3061 = vmatmul.mubr.bf16.gmra.mrb[0].mxu0 %v1279
      %v3062 = vpop.f32.mrb[0].mxu0
      %v3063 = vadd.f32 %v1714, %v3062
      %v3064 = vpop.f32.mrb[0].mxu0
      %v3065 = vpop.f32.mrb[0].mxu0
      %v3066 = vadd.f32 %v1714, %v3065
      %v3067 = vpop.f32.mrb[0].mxu0
      %3068 = vmatprep.mubr.bf16.mxu0 %v1285
      %3069 = vmatmul.mubr.bf16.gmra.mrb[0].mxu0 %v1284
      %v3070 = vpop.f32.mrb[0].mxu0
      %v3071 = vadd.f32 %v1714, %v3070
      %v3072 = vpop.f32.mrb[0].mxu0
      %v3073 = vpop.f32.mrb[0].mxu0
      %v3074 = vadd.f32 %v1714, %v3073
      %v3075 = vpop.f32.mrb[0].mxu0
      %3076 = vdwg.mxu0
      %3077 = vmatprep.subr.bf16.mxu0 0
      %3078 = vmatpush1.bf16.msra.mxu0 %v2532
      %3079 = vmatprep.subr.bf16.mxu0 0
      %3080 = vmatpush1.bf16.msra.mxu0 %v2533
      %3081 = vmatprep.subr.bf16.mxu0 0
      %3082 = vmatpush1.bf16.msra.mxu0 %v2534
      %3083 = vmatprep.subr.bf16.mxu0 0
      %3084 = vmatpush1.bf16.msra.mxu0 %v2535
      %3085 = vmatprep.subr.bf16.mxu0 0
      %3086 = vmatpush1.bf16.msra.mxu0 %v2536
      %3087 = vmatprep.subr.bf16.mxu0 0
      %3088 = vmatpush1.bf16.msra.mxu0 %v2537
      %3089 = vmatprep.subr.bf16.mxu0 0
      %3090 = vmatpush1.bf16.msra.mxu0 %v2538
      %3091 = vmatprep.subr.bf16.mxu0 0
      %3092 = vmatpush1.bf16.msra.mxu0 %v2539
      %3093 = vmatprep.subr.bf16.mxu0 0
      %3094 = vmatpush1.bf16.msra.mxu0 %v2540
      %3095 = vmatprep.subr.bf16.mxu0 0
      %3096 = vmatpush1.bf16.msra.mxu0 %v2541
      %3097 = vmatprep.subr.bf16.mxu0 0
      %3098 = vmatpush1.bf16.msra.mxu0 %v2542
      %3099 = vmatprep.subr.bf16.mxu0 0
      %3100 = vmatpush1.bf16.msra.mxu0 %v2543
      %3101 = vmatprep.subr.bf16.mxu0 0
      %3102 = vmatpush1.bf16.msra.mxu0 %v2544
      %3103 = vmatprep.subr.bf16.mxu0 0
      %3104 = vmatpush1.bf16.msra.mxu0 %v2545
      %3105 = vmatprep.subr.bf16.mxu0 0
      %3106 = vmatpush1.bf16.msra.mxu0 %v2546
      %3107 = vmatprep.subr.bf16.mxu0 0
      %3108 = vmatpush1.bf16.msra.mxu0 %v2547
      %3109 = vmatprep.mubr.bf16.mxu0 %v1212
      %3110 = vmatmul.mubr.bf16.gmra.mrb[0].mxu0 %v1211
      %v3111 = vpop.f32.mrb[0].mxu0
      %v3112 = vadd.f32 %v2951, %v3111
      %v3113 = vpop.f32.mrb[0].mxu0
      %v3114 = vpop.f32.mrb[0].mxu0
      %v3115 = vadd.f32 %v2954, %v3114
      %v3116 = vpop.f32.mrb[0].mxu0
      %3117 = vmatprep.mubr.bf16.mxu0 %v1217
      %3118 = vmatmul.mubr.bf16.gmra.mrb[0].mxu0 %v1216
      %v3119 = vpop.f32.mrb[0].mxu0
      %v3120 = vadd.f32 %v2959, %v3119
      %v3121 = vpop.f32.mrb[0].mxu0
      %v3122 = vpop.f32.mrb[0].mxu0
      %v3123 = vadd.f32 %v2962, %v3122
      %v3124 = vpop.f32.mrb[0].mxu0
      %3125 = vmatprep.mubr.bf16.mxu0 %v1222
      %3126 = vmatmul.mubr.bf16.gmra.mrb[0].mxu0 %v1221
      %v3127 = vpop.f32.mrb[0].mxu0
      %v3128 = vadd.f32 %v2967, %v3127
      %v3129 = vpop.f32.mrb[0].mxu0
      %v3130 = vpop.f32.mrb[0].mxu0
      %v3131 = vadd.f32 %v2970, %v3130
      %v3132 = vpop.f32.mrb[0].mxu0
      %3133 = vmatprep.mubr.bf16.mxu0 %v1227
      %3134 = vmatmul.mubr.bf16.gmra.mrb[0].mxu0 %v1226
      %v3135 = vpop.f32.mrb[0].mxu0
      %v3136 = vadd.f32 %v2975, %v3135
      %v3137 = vpop.f32.mrb[0].mxu0
      %v3138 = vpop.f32.mrb[0].mxu0
      %v3139 = vadd.f32 %v2978, %v3138
      %v3140 = vpop.f32.mrb[0].mxu0
      %3141 = vmatprep.mubr.bf16.mxu0 %v1232
      %3142 = vmatmul.mubr.bf16.gmra.mrb[0].mxu0 %v1231
      %v3143 = vpop.f32.mrb[0].mxu0
      %v3144 = vadd.f32 %v2983, %v3143
      %v3145 = vpop.f32.mrb[0].mxu0
      %v3146 = vpop.f32.mrb[0].mxu0
      %v3147 = vadd.f32 %v2986, %v3146
      %v3148 = vpop.f32.mrb[0].mxu0
      %3149 = vmatprep.mubr.bf16.mxu0 %v1237
      %3150 = vmatmul.mubr.bf16.gmra.mrb[0].mxu0 %v1236
      %v3151 = vpop.f32.mrb[0].mxu0
      %v3152 = vadd.f32 %v2991, %v3151
      %v3153 = vpop.f32.mrb[0].mxu0
      %v3154 = vpop.f32.mrb[0].mxu0
      %v3155 = vadd.f32 %v2994, %v3154
      %v3156 = vpop.f32.mrb[0].mxu0
      %3157 = vmatprep.mubr.bf16.mxu0 %v1242
      %3158 = vmatmul.mubr.bf16.gmra.mrb[0].mxu0 %v1241
      %v3159 = vpop.f32.mrb[0].mxu0
      %v3160 = vadd.f32 %v2999, %v3159
      %v3161 = vpop.f32.mrb[0].mxu0
      %v3162 = vpop.f32.mrb[0].mxu0
      %v3163 = vadd.f32 %v3002, %v3162
      %v3164 = vpop.f32.mrb[0].mxu0
      %3165 = vmatprep.mubr.bf16.mxu0 %v1247
      %3166 = vmatmul.mubr.bf16.gmra.mrb[0].mxu0 %v1246
      %v3167 = vpop.f32.mrb[0].mxu0
      %v3168 = vadd.f32 %v3007, %v3167
      %v3169 = vpop.f32.mrb[0].mxu0
      %v3170 = vpop.f32.mrb[0].mxu0
      %v3171 = vadd.f32 %v3010, %v3170
      %v3172 = vpop.f32.mrb[0].mxu0
      %3173 = vmatprep.mubr.bf16.mxu0 %v1252
      %3174 = vmatmul.mubr.bf16.gmra.mrb[0].mxu0 %v1251
      %v3175 = vpop.f32.mrb[0].mxu0
      %v3176 = vadd.f32 %v3015, %v3175
      %v3177 = vpop.f32.mrb[0].mxu0
      %v3178 = vpop.f32.mrb[0].mxu0
      %v3179 = vadd.f32 %v3018, %v3178
      %v3180 = vpop.f32.mrb[0].mxu0
      %3181 = vmatprep.mubr.bf16.mxu0 %v1257
      %3182 = vmatmul.mubr.bf16.gmra.mrb[0].mxu0 %v1256
      %v3183 = vpop.f32.mrb[0].mxu0
      %v3184 = vadd.f32 %v3023, %v3183
      %v3185 = vpop.f32.mrb[0].mxu0
      %v3186 = vpop.f32.mrb[0].mxu0
      %v3187 = vadd.f32 %v3026, %v3186
      %v3188 = vpop.f32.mrb[0].mxu0
      %3189 = vmatprep.mubr.bf16.mxu0 %v1262
      %3190 = vmatmul.mubr.bf16.gmra.mrb[0].mxu0 %v1261
      %v3191 = vpop.f32.mrb[0].mxu0
      %v3192 = vadd.f32 %v3031, %v3191
      %v3193 = vpop.f32.mrb[0].mxu0
      %v3194 = vpop.f32.mrb[0].mxu0
      %v3195 = vadd.f32 %v3034, %v3194
      %v3196 = vpop.f32.mrb[0].mxu0
      %3197 = vmatprep.mubr.bf16.mxu0 %v1267
      %3198 = vmatmul.mubr.bf16.gmra.mrb[0].mxu0 %v1266
      %v3199 = vpop.f32.mrb[0].mxu0
      %v3200 = vadd.f32 %v3039, %v3199
      %v3201 = vpop.f32.mrb[0].mxu0
      %v3202 = vpop.f32.mrb[0].mxu0
      %v3203 = vadd.f32 %v3042, %v3202
      %v3204 = vpop.f32.mrb[0].mxu0
      %3205 = vmatprep.mubr.bf16.mxu0 %v1272
      %3206 = vmatmul.mubr.bf16.gmra.mrb[0].mxu0 %v1271
      %v3207 = vpop.f32.mrb[0].mxu0
      %v3208 = vadd.f32 %v3047, %v3207
      %v3209 = vpop.f32.mrb[0].mxu0
      %v3210 = vpop.f32.mrb[0].mxu0
      %v3211 = vadd.f32 %v3050, %v3210
      %v3212 = vpop.f32.mrb[0].mxu0
      %3213 = vmatprep.mubr.bf16.mxu0 %v1277
      %3214 = vmatmul.mubr.bf16.gmra.mrb[0].mxu0 %v1276
      %v3215 = vpop.f32.mrb[0].mxu0
      %v3216 = vadd.f32 %v3055, %v3215
      %v3217 = vpop.f32.mrb[0].mxu0
      %v3218 = vpop.f32.mrb[0].mxu0
      %v3219 = vadd.f32 %v3058, %v3218
      %v3220 = vpop.f32.mrb[0].mxu0
      %3221 = vmatprep.mubr.bf16.mxu0 %v1282
      %3222 = vmatmul.mubr.bf16.gmra.mrb[0].mxu0 %v1281
      %v3223 = vpop.f32.mrb[0].mxu0
      %v3224 = vadd.f32 %v3063, %v3223
      %v3225 = vpop.f32.mrb[0].mxu0
      %v3226 = vpop.f32.mrb[0].mxu0
      %v3227 = vadd.f32 %v3066, %v3226
      %v3228 = vpop.f32.mrb[0].mxu0
      %3229 = vmatprep.mubr.bf16.mxu0 %v1287
      %3230 = vmatmul.mubr.bf16.gmra.mrb[0].mxu0 %v1286
      %v3231 = vpop.f32.mrb[0].mxu0
      %v3232 = vadd.f32 %v3071, %v3231
      %v3233 = vpop.f32.mrb[0].mxu0
      %v3234 = vpop.f32.mrb[0].mxu0
      %v3235 = vadd.f32 %v3074, %v3234
      %v3236 = vpop.f32.mrb[0].mxu0
      %3237 = vdwg.mxu0
      %3238 = vmatprep.subr.bf16.mxu0 0
      %3239 = vmatpush1.bf16.msra.mxu0 %v2548
      %3240 = vmatprep.subr.bf16.mxu0 0
      %3241 = vmatpush1.bf16.msra.mxu0 %v2549
      %3242 = vmatprep.subr.bf16.mxu0 0
      %3243 = vmatpush1.bf16.msra.mxu0 %v2550
      %3244 = vmatprep.subr.bf16.mxu0 0
      %3245 = vmatpush1.bf16.msra.mxu0 %v2551
      %3246 = vmatprep.subr.bf16.mxu0 0
      %3247 = vmatpush1.bf16.msra.mxu0 %v2552
      %3248 = vmatprep.subr.bf16.mxu0 0
      %3249 = vmatpush1.bf16.msra.mxu0 %v2553
      %3250 = vmatprep.subr.bf16.mxu0 0
      %3251 = vmatpush1.bf16.msra.mxu0 %v2554
      %3252 = vmatprep.subr.bf16.mxu0 0
      %3253 = vmatpush1.bf16.msra.mxu0 %v2555
      %3254 = vmatprep.subr.bf16.mxu0 0
      %3255 = vmatpush1.bf16.msra.mxu0 %v2556
      %3256 = vmatprep.subr.bf16.mxu0 0
      %3257 = vmatpush1.bf16.msra.mxu0 %v2557
      %3258 = vmatprep.subr.bf16.mxu0 0
      %3259 = vmatpush1.bf16.msra.mxu0 %v2558
      %3260 = vmatprep.subr.bf16.mxu0 0
      %3261 = vmatpush1.bf16.msra.mxu0 %v2559
      %3262 = vmatprep.subr.bf16.mxu0 0
      %3263 = vmatpush1.bf16.msra.mxu0 %v2560
      %3264 = vmatprep.subr.bf16.mxu0 0
      %3265 = vmatpush1.bf16.msra.mxu0 %v2561
      %3266 = vmatprep.subr.bf16.mxu0 0
      %3267 = vmatpush1.bf16.msra.mxu0 %v2562
      %3268 = vmatprep.subr.bf16.mxu0 0
      %3269 = vmatpush1.bf16.msra.mxu0 %v2563
      %3270 = vmatprep.mubr.bf16.mxu0 %v1214
      %3271 = vmatmul.mubr.bf16.gmra.mrb[0].mxu0 %v1213
      %v3272 = vpop.f32.mrb[0].mxu0
      %v3273 = vadd.f32 %v3112, %v3272
      %v3274 = vpop.f32.mrb[0].mxu0
      %v3275 = vpop.f32.mrb[0].mxu0
      %v3276 = vadd.f32 %v3115, %v3275
      %v3277 = vpop.f32.mrb[0].mxu0
      %3278 = vmatprep.mubr.bf16.mxu0 %v1219
      %3279 = vmatmul.mubr.bf16.gmra.mrb[0].mxu0 %v1218
      %v3280 = vpop.f32.mrb[0].mxu0
      %v3281 = vadd.f32 %v3120, %v3280
      %v3282 = vpop.f32.mrb[0].mxu0
      %v3283 = vpop.f32.mrb[0].mxu0
      %v3284 = vadd.f32 %v3123, %v3283
      %v3285 = vpop.f32.mrb[0].mxu0
      %3286 = vmatprep.mubr.bf16.mxu0 %v1224
      %3287 = vmatmul.mubr.bf16.gmra.mrb[0].mxu0 %v1223
      %v3288 = vpop.f32.mrb[0].mxu0
      %v3289 = vadd.f32 %v3128, %v3288
      %v3290 = vpop.f32.mrb[0].mxu0
      %v3291 = vpop.f32.mrb[0].mxu0
      %v3292 = vadd.f32 %v3131, %v3291
      %v3293 = vpop.f32.mrb[0].mxu0
      %3294 = vmatprep.mubr.bf16.mxu0 %v1229
      %3295 = vmatmul.mubr.bf16.gmra.mrb[0].mxu0 %v1228
      %v3296 = vpop.f32.mrb[0].mxu0
      %v3297 = vadd.f32 %v3136, %v3296
      %v3298 = vpop.f32.mrb[0].mxu0
      %v3299 = vpop.f32.mrb[0].mxu0
      %v3300 = vadd.f32 %v3139, %v3299
      %v3301 = vpop.f32.mrb[0].mxu0
      %3302 = vmatprep.mubr.bf16.mxu0 %v1234
      %3303 = vmatmul.mubr.bf16.gmra.mrb[0].mxu0 %v1233
      %v3304 = vpop.f32.mrb[0].mxu0
      %v3305 = vadd.f32 %v3144, %v3304
      %v3306 = vpop.f32.mrb[0].mxu0
      %v3307 = vpop.f32.mrb[0].mxu0
      %v3308 = vadd.f32 %v3147, %v3307
      %v3309 = vpop.f32.mrb[0].mxu0
      %3310 = vmatprep.mubr.bf16.mxu0 %v1239
      %3311 = vmatmul.mubr.bf16.gmra.mrb[0].mxu0 %v1238
      %v3312 = vpop.f32.mrb[0].mxu0
      %v3313 = vadd.f32 %v3152, %v3312
      %v3314 = vpop.f32.mrb[0].mxu0
      %v3315 = vpop.f32.mrb[0].mxu0
      %v3316 = vadd.f32 %v3155, %v3315
      %v3317 = vpop.f32.mrb[0].mxu0
      %3318 = vmatprep.mubr.bf16.mxu0 %v1244
      %3319 = vmatmul.mubr.bf16.gmra.mrb[0].mxu0 %v1243
      %v3320 = vpop.f32.mrb[0].mxu0
      %v3321 = vadd.f32 %v3160, %v3320
      %v3322 = vpop.f32.mrb[0].mxu0
      %v3323 = vpop.f32.mrb[0].mxu0
      %v3324 = vadd.f32 %v3163, %v3323
      %v3325 = vpop.f32.mrb[0].mxu0
      %3326 = vmatprep.mubr.bf16.mxu0 %v1249
      %3327 = vmatmul.mubr.bf16.gmra.mrb[0].mxu0 %v1248
      %v3328 = vpop.f32.mrb[0].mxu0
      %v3329 = vadd.f32 %v3168, %v3328
      %v3330 = vpop.f32.mrb[0].mxu0
      %v3331 = vpop.f32.mrb[0].mxu0
      %v3332 = vadd.f32 %v3171, %v3331
      %v3333 = vpop.f32.mrb[0].mxu0
      %3334 = vmatprep.mubr.bf16.mxu0 %v1254
      %3335 = vmatmul.mubr.bf16.gmra.mrb[0].mxu0 %v1253
      %v3336 = vpop.f32.mrb[0].mxu0
      %v3337 = vadd.f32 %v3176, %v3336
      %v3338 = vpop.f32.mrb[0].mxu0
      %v3339 = vpop.f32.mrb[0].mxu0
      %v3340 = vadd.f32 %v3179, %v3339
      %v3341 = vpop.f32.mrb[0].mxu0
      %3342 = vmatprep.mubr.bf16.mxu0 %v1259
      %3343 = vmatmul.mubr.bf16.gmra.mrb[0].mxu0 %v1258
      %v3344 = vpop.f32.mrb[0].mxu0
      %v3345 = vadd.f32 %v3184, %v3344
      %v3346 = vpop.f32.mrb[0].mxu0
      %v3347 = vpop.f32.mrb[0].mxu0
      %v3348 = vadd.f32 %v3187, %v3347
      %v3349 = vpop.f32.mrb[0].mxu0
      %3350 = vmatprep.mubr.bf16.mxu0 %v1264
      %3351 = vmatmul.mubr.bf16.gmra.mrb[0].mxu0 %v1263
      %v3352 = vpop.f32.mrb[0].mxu0
      %v3353 = vadd.f32 %v3192, %v3352
      %v3354 = vpop.f32.mrb[0].mxu0
      %v3355 = vpop.f32.mrb[0].mxu0
      %v3356 = vadd.f32 %v3195, %v3355
      %v3357 = vpop.f32.mrb[0].mxu0
      %3358 = vmatprep.mubr.bf16.mxu0 %v1269
      %3359 = vmatmul.mubr.bf16.gmra.mrb[0].mxu0 %v1268
      %v3360 = vpop.f32.mrb[0].mxu0
      %v3361 = vadd.f32 %v3200, %v3360
      %v3362 = vpop.f32.mrb[0].mxu0
      %v3363 = vpop.f32.mrb[0].mxu0
      %v3364 = vadd.f32 %v3203, %v3363
      %v3365 = vpop.f32.mrb[0].mxu0
      %3366 = vmatprep.mubr.bf16.mxu0 %v1274
      %3367 = vmatmul.mubr.bf16.gmra.mrb[0].mxu0 %v1273
      %v3368 = vpop.f32.mrb[0].mxu0
      %v3369 = vadd.f32 %v3208, %v3368
      %v3370 = vpop.f32.mrb[0].mxu0
      %v3371 = vpop.f32.mrb[0].mxu0
      %v3372 = vadd.f32 %v3211, %v3371
      %v3373 = vpop.f32.mrb[0].mxu0
      %3374 = vmatprep.mubr.bf16.mxu0 %v1279
      %3375 = vmatmul.mubr.bf16.gmra.mrb[0].mxu0 %v1278
      %v3376 = vpop.f32.mrb[0].mxu0
      %v3377 = vadd.f32 %v3216, %v3376
      %v3378 = vpop.f32.mrb[0].mxu0
      %v3379 = vpop.f32.mrb[0].mxu0
      %v3380 = vadd.f32 %v3219, %v3379
      %v3381 = vpop.f32.mrb[0].mxu0
      %3382 = vmatprep.mubr.bf16.mxu0 %v1284
      %3383 = vmatmul.mubr.bf16.gmra.mrb[0].mxu0 %v1283
      %v3384 = vpop.f32.mrb[0].mxu0
      %v3385 = vadd.f32 %v3224, %v3384
      %v3386 = vpop.f32.mrb[0].mxu0
      %v3387 = vpop.f32.mrb[0].mxu0
      %v3388 = vadd.f32 %v3227, %v3387
      %v3389 = vpop.f32.mrb[0].mxu0
      %3390 = vmatprep.mubr.bf16.mxu0 %v1289
      %3391 = vmatmul.mubr.bf16.gmra.mrb[0].mxu0 %v1288
      %v3392 = vpop.f32.mrb[0].mxu0
      %v3393 = vadd.f32 %v3232, %v3392
      %v3394 = vpop.f32.mrb[0].mxu0
      %v3395 = vpop.f32.mrb[0].mxu0
      %v3396 = vadd.f32 %v3235, %v3395
      %v3397 = vpop.f32.mrb[0].mxu0
      %3398 = vdwg.mxu0
      %3399 = vmatprep.subr.bf16.mxu0 0
      %3400 = vmatpush1.bf16.msra.mxu0 %v2564
      %3401 = vmatprep.subr.bf16.mxu0 0
      %3402 = vmatpush1.bf16.msra.mxu0 %v2565
      %3403 = vmatprep.subr.bf16.mxu0 0
      %3404 = vmatpush1.bf16.msra.mxu0 %v2566
      %3405 = vmatprep.subr.bf16.mxu0 0
      %3406 = vmatpush1.bf16.msra.mxu0 %v2567
      %3407 = vmatprep.subr.bf16.mxu0 0
      %3408 = vmatpush1.bf16.msra.mxu0 %v2568
      %3409 = vmatprep.subr.bf16.mxu0 0
      %3410 = vmatpush1.bf16.msra.mxu0 %v2569
      %3411 = vmatprep.subr.bf16.mxu0 0
      %3412 = vmatpush1.bf16.msra.mxu0 %v2570
      %3413 = vmatprep.subr.bf16.mxu0 0
      %3414 = vmatpush1.bf16.msra.mxu0 %v2571
      %3415 = vmatprep.subr.bf16.mxu0 0
      %3416 = vmatpush1.bf16.msra.mxu0 %v2572
      %3417 = vmatprep.subr.bf16.mxu0 0
      %3418 = vmatpush1.bf16.msra.mxu0 %v2573
      %3419 = vmatprep.subr.bf16.mxu0 0
      %3420 = vmatpush1.bf16.msra.mxu0 %v2574
      %3421 = vmatprep.subr.bf16.mxu0 0
      %3422 = vmatpush1.bf16.msra.mxu0 %v2575
      %3423 = vmatprep.subr.bf16.mxu0 0
      %3424 = vmatpush1.bf16.msra.mxu0 %v2576
      %3425 = vmatprep.subr.bf16.mxu0 0
      %3426 = vmatpush1.bf16.msra.mxu0 %v2577
      %3427 = vmatprep.subr.bf16.mxu0 0
      %3428 = vmatpush1.bf16.msra.mxu0 %v2578
      %3429 = vmatprep.subr.bf16.mxu0 0
      %3430 = vmatpush1.bf16.msra.mxu0 %v2579
      %3431 = vmatprep.mubr.bf16.mxu0 %v1216
      %3432 = vmatmul.mubr.bf16.gmra.mrb[0].mxu0 %v1215
      %v3433 = vpop.f32.mrb[0].mxu0
      %v3434 = vadd.f32 %v3273, %v3433
      %v3435 = vpop.f32.mrb[0].mxu0
      %v3436 = vpop.f32.mrb[0].mxu0
      %v3437 = vadd.f32 %v3276, %v3436
      %v3438 = vpop.f32.mrb[0].mxu0
      %3439 = vmatprep.mubr.bf16.mxu0 %v1221
      %3440 = vmatmul.mubr.bf16.gmra.mrb[0].mxu0 %v1220
      %v3441 = vpop.f32.mrb[0].mxu0
      %v3442 = vadd.f32 %v3281, %v3441
      %v3443 = vpop.f32.mrb[0].mxu0
      %v3444 = vpop.f32.mrb[0].mxu0
      %v3445 = vadd.f32 %v3284, %v3444
      %v3446 = vpop.f32.mrb[0].mxu0
      %3447 = vmatprep.mubr.bf16.mxu0 %v1226
      %3448 = vmatmul.mubr.bf16.gmra.mrb[0].mxu0 %v1225
      %v3449 = vpop.f32.mrb[0].mxu0
      %v3450 = vadd.f32 %v3289, %v3449
      %v3451 = vpop.f32.mrb[0].mxu0
      %v3452 = vpop.f32.mrb[0].mxu0
      %v3453 = vadd.f32 %v3292, %v3452
      %v3454 = vpop.f32.mrb[0].mxu0
      %3455 = vmatprep.mubr.bf16.mxu0 %v1231
      %3456 = vmatmul.mubr.bf16.gmra.mrb[0].mxu0 %v1230
      %v3457 = vpop.f32.mrb[0].mxu0
      %v3458 = vadd.f32 %v3297, %v3457
      %v3459 = vpop.f32.mrb[0].mxu0
      %v3460 = vpop.f32.mrb[0].mxu0
      %v3461 = vadd.f32 %v3300, %v3460
      %v3462 = vpop.f32.mrb[0].mxu0
      %3463 = vmatprep.mubr.bf16.mxu0 %v1236
      %3464 = vmatmul.mubr.bf16.gmra.mrb[0].mxu0 %v1235
      %v3465 = vpop.f32.mrb[0].mxu0
      %v3466 = vadd.f32 %v3305, %v3465
      %v3467 = vpop.f32.mrb[0].mxu0
      %v3468 = vpop.f32.mrb[0].mxu0
      %v3469 = vadd.f32 %v3308, %v3468
      %v3470 = vpop.f32.mrb[0].mxu0
      %3471 = vmatprep.mubr.bf16.mxu0 %v1241
      %3472 = vmatmul.mubr.bf16.gmra.mrb[0].mxu0 %v1240
      %v3473 = vpop.f32.mrb[0].mxu0
      %v3474 = vadd.f32 %v3313, %v3473
      %v3475 = vpop.f32.mrb[0].mxu0
      %v3476 = vpop.f32.mrb[0].mxu0
      %v3477 = vadd.f32 %v3316, %v3476
      %v3478 = vpop.f32.mrb[0].mxu0
      %3479 = vmatprep.mubr.bf16.mxu0 %v1246
      %3480 = vmatmul.mubr.bf16.gmra.mrb[0].mxu0 %v1245
      %v3481 = vpop.f32.mrb[0].mxu0
      %v3482 = vadd.f32 %v3321, %v3481
      %v3483 = vpop.f32.mrb[0].mxu0
      %v3484 = vpop.f32.mrb[0].mxu0
      %v3485 = vadd.f32 %v3324, %v3484
      %v3486 = vpop.f32.mrb[0].mxu0
      %3487 = vmatprep.mubr.bf16.mxu0 %v1251
      %3488 = vmatmul.mubr.bf16.gmra.mrb[0].mxu0 %v1250
      %v3489 = vpop.f32.mrb[0].mxu0
      %v3490 = vadd.f32 %v3329, %v3489
      %v3491 = vpop.f32.mrb[0].mxu0
      %v3492 = vpop.f32.mrb[0].mxu0
      %v3493 = vadd.f32 %v3332, %v3492
      %v3494 = vpop.f32.mrb[0].mxu0
      %3495 = vmatprep.mubr.bf16.mxu0 %v1256
      %3496 = vmatmul.mubr.bf16.gmra.mrb[0].mxu0 %v1255
      %v3497 = vpop.f32.mrb[0].mxu0
      %v3498 = vadd.f32 %v3337, %v3497
      %v3499 = vpop.f32.mrb[0].mxu0
      %v3500 = vpop.f32.mrb[0].mxu0
      %v3501 = vadd.f32 %v3340, %v3500
      %v3502 = vpop.f32.mrb[0].mxu0
      %3503 = vmatprep.mubr.bf16.mxu0 %v1261
      %3504 = vmatmul.mubr.bf16.gmra.mrb[0].mxu0 %v1260
      %v3505 = vpop.f32.mrb[0].mxu0
      %v3506 = vadd.f32 %v3345, %v3505
      %v3507 = vpop.f32.mrb[0].mxu0
      %v3508 = vpop.f32.mrb[0].mxu0
      %v3509 = vadd.f32 %v3348, %v3508
      %v3510 = vpop.f32.mrb[0].mxu0
      %3511 = vmatprep.mubr.bf16.mxu0 %v1266
      %3512 = vmatmul.mubr.bf16.gmra.mrb[0].mxu0 %v1265
      %v3513 = vpop.f32.mrb[0].mxu0
      %v3514 = vadd.f32 %v3353, %v3513
      %v3515 = vpop.f32.mrb[0].mxu0
      %v3516 = vpop.f32.mrb[0].mxu0
      %v3517 = vadd.f32 %v3356, %v3516
      %v3518 = vpop.f32.mrb[0].mxu0
      %3519 = vmatprep.mubr.bf16.mxu0 %v1271
      %3520 = vmatmul.mubr.bf16.gmra.mrb[0].mxu0 %v1270
      %v3521 = vpop.f32.mrb[0].mxu0
      %v3522 = vadd.f32 %v3361, %v3521
      %v3523 = vpop.f32.mrb[0].mxu0
      %v3524 = vpop.f32.mrb[0].mxu0
      %v3525 = vadd.f32 %v3364, %v3524
      %v3526 = vpop.f32.mrb[0].mxu0
      %3527 = vmatprep.mubr.bf16.mxu0 %v1276
      %3528 = vmatmul.mubr.bf16.gmra.mrb[0].mxu0 %v1275
      %v3529 = vpop.f32.mrb[0].mxu0
      %v3530 = vadd.f32 %v3369, %v3529
      %v3531 = vpop.f32.mrb[0].mxu0
      %v3532 = vpop.f32.mrb[0].mxu0
      %v3533 = vadd.f32 %v3372, %v3532
      %v3534 = vpop.f32.mrb[0].mxu0
      %3535 = vmatprep.mubr.bf16.mxu0 %v1281
      %3536 = vmatmul.mubr.bf16.gmra.mrb[0].mxu0 %v1280
      %v3537 = vpop.f32.mrb[0].mxu0
      %v3538 = vadd.f32 %v3377, %v3537
      %v3539 = vpop.f32.mrb[0].mxu0
      %v3540 = vpop.f32.mrb[0].mxu0
      %v3541 = vadd.f32 %v3380, %v3540
      %v3542 = vpop.f32.mrb[0].mxu0
      %3543 = vmatprep.mubr.bf16.mxu0 %v1286
      %3544 = vmatmul.mubr.bf16.gmra.mrb[0].mxu0 %v1285
      %v3545 = vpop.f32.mrb[0].mxu0
      %v3546 = vadd.f32 %v3385, %v3545
      %v3547 = vpop.f32.mrb[0].mxu0
      %v3548 = vpop.f32.mrb[0].mxu0
      %v3549 = vadd.f32 %v3388, %v3548
      %v3550 = vpop.f32.mrb[0].mxu0
      %3551 = vmatprep.mubr.bf16.mxu0 %v1291
      %3552 = vmatmul.mubr.bf16.gmra.mrb[0].mxu0 %v1290
      %v3553 = vpop.f32.mrb[0].mxu0
      %v3554 = vadd.f32 %v3393, %v3553
      %v3555 = vpop.f32.mrb[0].mxu0
      %v3556 = vpop.f32.mrb[0].mxu0
      %v3557 = vadd.f32 %v3396, %v3556
      %v3558 = vpop.f32.mrb[0].mxu0
      %3559 = vdwg.mxu0
      %3560 = vmatprep.subr.bf16.mxu0 0
      %3561 = vmatpush1.bf16.msra.mxu0 %v2580
      %3562 = vmatprep.subr.bf16.mxu0 0
      %3563 = vmatpush1.bf16.msra.mxu0 %v2581
      %3564 = vmatprep.subr.bf16.mxu0 0
      %3565 = vmatpush1.bf16.msra.mxu0 %v2582
      %3566 = vmatprep.subr.bf16.mxu0 0
      %3567 = vmatpush1.bf16.msra.mxu0 %v2583
      %3568 = vmatprep.subr.bf16.mxu0 0
      %3569 = vmatpush1.bf16.msra.mxu0 %v2584
      %3570 = vmatprep.subr.bf16.mxu0 0
      %3571 = vmatpush1.bf16.msra.mxu0 %v2585
      %3572 = vmatprep.subr.bf16.mxu0 0
      %3573 = vmatpush1.bf16.msra.mxu0 %v2586
      %3574 = vmatprep.subr.bf16.mxu0 0
      %3575 = vmatpush1.bf16.msra.mxu0 %v2587
      %3576 = vmatprep.subr.bf16.mxu0 0
      %3577 = vmatpush1.bf16.msra.mxu0 %v2588
      %3578 = vmatprep.subr.bf16.mxu0 0
      %3579 = vmatpush1.bf16.msra.mxu0 %v2589
      %3580 = vmatprep.subr.bf16.mxu0 0
      %3581 = vmatpush1.bf16.msra.mxu0 %v2590
      %3582 = vmatprep.subr.bf16.mxu0 0
      %3583 = vmatpush1.bf16.msra.mxu0 %v2591
      %3584 = vmatprep.subr.bf16.mxu0 0
      %3585 = vmatpush1.bf16.msra.mxu0 %v2592
      %3586 = vmatprep.subr.bf16.mxu0 0
      %3587 = vmatpush1.bf16.msra.mxu0 %v2593
      %3588 = vmatprep.subr.bf16.mxu0 0
      %3589 = vmatpush1.bf16.msra.mxu0 %v2594
      %3590 = vmatprep.subr.bf16.mxu0 0
      %3591 = vmatpush1.bf16.msra.mxu0 %v2595
      %3592 = vmatprep.mubr.bf16.mxu0 %v1218
      %3593 = vmatmul.mubr.bf16.gmra.mrb[0].mxu0 %v1217
      %v3594 = vpop.f32.mrb[0].mxu0
      %v3595 = vadd.f32 %v3434, %v3594
      %v3596 = vpop.f32.mrb[0].mxu0
      %v3597 = vpop.f32.mrb[0].mxu0
      %v3598 = vadd.f32 %v3437, %v3597
      %v3599 = vpop.f32.mrb[0].mxu0
      %3600 = vmatprep.mubr.bf16.mxu0 %v1223
      %3601 = vmatmul.mubr.bf16.gmra.mrb[0].mxu0 %v1222
      %v3602 = vpop.f32.mrb[0].mxu0
      %v3603 = vadd.f32 %v3442, %v3602
      %v3604 = vpop.f32.mrb[0].mxu0
      %v3605 = vpop.f32.mrb[0].mxu0
      %v3606 = vadd.f32 %v3445, %v3605
      %v3607 = vpop.f32.mrb[0].mxu0
      %3608 = vmatprep.mubr.bf16.mxu0 %v1228
      %3609 = vmatmul.mubr.bf16.gmra.mrb[0].mxu0 %v1227
      %v3610 = vpop.f32.mrb[0].mxu0
      %v3611 = vadd.f32 %v3450, %v3610
      %v3612 = vpop.f32.mrb[0].mxu0
      %v3613 = vpop.f32.mrb[0].mxu0
      %v3614 = vadd.f32 %v3453, %v3613
      %v3615 = vpop.f32.mrb[0].mxu0
      %3616 = vmatprep.mubr.bf16.mxu0 %v1233
      %3617 = vmatmul.mubr.bf16.gmra.mrb[0].mxu0 %v1232
      %v3618 = vpop.f32.mrb[0].mxu0
      %v3619 = vadd.f32 %v3458, %v3618
      %v3620 = vpop.f32.mrb[0].mxu0
      %v3621 = vpop.f32.mrb[0].mxu0
      %v3622 = vadd.f32 %v3461, %v3621
      %v3623 = vpop.f32.mrb[0].mxu0
      %3624 = vmatprep.mubr.bf16.mxu0 %v1238
      %3625 = vmatmul.mubr.bf16.gmra.mrb[0].mxu0 %v1237
      %v3626 = vpop.f32.mrb[0].mxu0
      %v3627 = vadd.f32 %v3466, %v3626
      %v3628 = vpop.f32.mrb[0].mxu0
      %v3629 = vpop.f32.mrb[0].mxu0
      %v3630 = vadd.f32 %v3469, %v3629
      %v3631 = vpop.f32.mrb[0].mxu0
      %3632 = vmatprep.mubr.bf16.mxu0 %v1243
      %3633 = vmatmul.mubr.bf16.gmra.mrb[0].mxu0 %v1242
      %v3634 = vpop.f32.mrb[0].mxu0
      %v3635 = vadd.f32 %v3474, %v3634
      %v3636 = vpop.f32.mrb[0].mxu0
      %v3637 = vpop.f32.mrb[0].mxu0
      %v3638 = vadd.f32 %v3477, %v3637
      %v3639 = vpop.f32.mrb[0].mxu0
      %3640 = vmatprep.mubr.bf16.mxu0 %v1248
      %3641 = vmatmul.mubr.bf16.gmra.mrb[0].mxu0 %v1247
      %v3642 = vpop.f32.mrb[0].mxu0
      %v3643 = vadd.f32 %v3482, %v3642
      %v3644 = vpop.f32.mrb[0].mxu0
      %v3645 = vpop.f32.mrb[0].mxu0
      %v3646 = vadd.f32 %v3485, %v3645
      %v3647 = vpop.f32.mrb[0].mxu0
      %3648 = vmatprep.mubr.bf16.mxu0 %v1253
      %3649 = vmatmul.mubr.bf16.gmra.mrb[0].mxu0 %v1252
      %v3650 = vpop.f32.mrb[0].mxu0
      %v3651 = vadd.f32 %v3490, %v3650
      %v3652 = vpop.f32.mrb[0].mxu0
      %v3653 = vpop.f32.mrb[0].mxu0
      %v3654 = vadd.f32 %v3493, %v3653
      %v3655 = vpop.f32.mrb[0].mxu0
      %3656 = vmatprep.mubr.bf16.mxu0 %v1258
      %3657 = vmatmul.mubr.bf16.gmra.mrb[0].mxu0 %v1257
      %v3658 = vpop.f32.mrb[0].mxu0
      %v3659 = vadd.f32 %v3498, %v3658
      %v3660 = vpop.f32.mrb[0].mxu0
      %v3661 = vpop.f32.mrb[0].mxu0
      %v3662 = vadd.f32 %v3501, %v3661
      %v3663 = vpop.f32.mrb[0].mxu0
      %3664 = vmatprep.mubr.bf16.mxu0 %v1263
      %3665 = vmatmul.mubr.bf16.gmra.mrb[0].mxu0 %v1262
      %v3666 = vpop.f32.mrb[0].mxu0
      %v3667 = vadd.f32 %v3506, %v3666
      %v3668 = vpop.f32.mrb[0].mxu0
      %v3669 = vpop.f32.mrb[0].mxu0
      %v3670 = vadd.f32 %v3509, %v3669
      %v3671 = vpop.f32.mrb[0].mxu0
      %3672 = vmatprep.mubr.bf16.mxu0 %v1268
      %3673 = vmatmul.mubr.bf16.gmra.mrb[0].mxu0 %v1267
      %v3674 = vpop.f32.mrb[0].mxu0
      %v3675 = vadd.f32 %v3514, %v3674
      %v3676 = vpop.f32.mrb[0].mxu0
      %v3677 = vpop.f32.mrb[0].mxu0
      %v3678 = vadd.f32 %v3517, %v3677
      %v3679 = vpop.f32.mrb[0].mxu0
      %3680 = vmatprep.mubr.bf16.mxu0 %v1273
      %3681 = vmatmul.mubr.bf16.gmra.mrb[0].mxu0 %v1272
      %v3682 = vpop.f32.mrb[0].mxu0
      %v3683 = vadd.f32 %v3522, %v3682
      %v3684 = vpop.f32.mrb[0].mxu0
      %v3685 = vpop.f32.mrb[0].mxu0
      %v3686 = vadd.f32 %v3525, %v3685
      %v3687 = vpop.f32.mrb[0].mxu0
      %3688 = vmatprep.mubr.bf16.mxu0 %v1278
      %3689 = vmatmul.mubr.bf16.gmra.mrb[0].mxu0 %v1277
      %v3690 = vpop.f32.mrb[0].mxu0
      %v3691 = vadd.f32 %v3530, %v3690
      %v3692 = vpop.f32.mrb[0].mxu0
      %v3693 = vpop.f32.mrb[0].mxu0
      %v3694 = vadd.f32 %v3533, %v3693
      %v3695 = vpop.f32.mrb[0].mxu0
      %3696 = vmatprep.mubr.bf16.mxu0 %v1283
      %3697 = vmatmul.mubr.bf16.gmra.mrb[0].mxu0 %v1282
      %v3698 = vpop.f32.mrb[0].mxu0
      %v3699 = vadd.f32 %v3538, %v3698
      %v3700 = vpop.f32.mrb[0].mxu0
      %v3701 = vpop.f32.mrb[0].mxu0
      %v3702 = vadd.f32 %v3541, %v3701
      %v3703 = vpop.f32.mrb[0].mxu0
      %3704 = vmatprep.mubr.bf16.mxu0 %v1288
      %3705 = vmatmul.mubr.bf16.gmra.mrb[0].mxu0 %v1287
      %v3706 = vpop.f32.mrb[0].mxu0
      %v3707 = vadd.f32 %v3546, %v3706
      %v3708 = vpop.f32.mrb[0].mxu0
      %v3709 = vpop.f32.mrb[0].mxu0
      %v3710 = vadd.f32 %v3549, %v3709
      %v3711 = vpop.f32.mrb[0].mxu0
      %3712 = vmatprep.mubr.bf16.mxu0 %v1293
      %3713 = vmatmul.mubr.bf16.gmra.mrb[0].mxu0 %v1292
      %v3714 = vpop.f32.mrb[0].mxu0
      %v3715 = vadd.f32 %v3554, %v3714
      %v3716 = vpop.f32.mrb[0].mxu0
      %v3717 = vpop.f32.mrb[0].mxu0
      %v3718 = vadd.f32 %v3557, %v3717
      %v3719 = vpop.f32.mrb[0].mxu0
      %3720 = vdwg.mxu0
      %3721 = vmatprep.subr.bf16.mxu0 0
      %3722 = vmatpush1.bf16.msra.mxu0 %v2596
      %3723 = vmatprep.subr.bf16.mxu0 0
      %3724 = vmatpush1.bf16.msra.mxu0 %v2597
      %3725 = vmatprep.subr.bf16.mxu0 0
      %3726 = vmatpush1.bf16.msra.mxu0 %v2598
      %3727 = vmatprep.subr.bf16.mxu0 0
      %3728 = vmatpush1.bf16.msra.mxu0 %v2599
      %3729 = vmatprep.subr.bf16.mxu0 0
      %3730 = vmatpush1.bf16.msra.mxu0 %v2600
      %3731 = vmatprep.subr.bf16.mxu0 0
      %3732 = vmatpush1.bf16.msra.mxu0 %v2601
      %3733 = vmatprep.subr.bf16.mxu0 0
      %3734 = vmatpush1.bf16.msra.mxu0 %v2602
      %3735 = vmatprep.subr.bf16.mxu0 0
      %3736 = vmatpush1.bf16.msra.mxu0 %v2603
      %3737 = vmatprep.subr.bf16.mxu0 0
      %3738 = vmatpush1.bf16.msra.mxu0 %v2604
      %3739 = vmatprep.subr.bf16.mxu0 0
      %3740 = vmatpush1.bf16.msra.mxu0 %v2605
      %3741 = vmatprep.subr.bf16.mxu0 0
      %3742 = vmatpush1.bf16.msra.mxu0 %v2606
      %3743 = vmatprep.subr.bf16.mxu0 0
      %3744 = vmatpush1.bf16.msra.mxu0 %v2607
      %3745 = vmatprep.subr.bf16.mxu0 0
      %3746 = vmatpush1.bf16.msra.mxu0 %v2608
      %3747 = vmatprep.subr.bf16.mxu0 0
      %3748 = vmatpush1.bf16.msra.mxu0 %v2609
      %3749 = vmatprep.subr.bf16.mxu0 0
      %3750 = vmatpush1.bf16.msra.mxu0 %v2610
      %3751 = vmatprep.subr.bf16.mxu0 0
      %3752 = vmatpush1.bf16.msra.mxu0 %v2611
      %3753 = vmatprep.mubr.bf16.mxu0 %v1220
      %3754 = vmatmul.mubr.bf16.gmra.mrb[0].mxu0 %v1219
      %v3755 = vpop.f32.mrb[0].mxu0
      %v3756 = vadd.f32 %v3595, %v3755
      %v3757 = vpop.f32.mrb[0].mxu0
      %v3758 = vpop.f32.mrb[0].mxu0
      %v3759 = vadd.f32 %v3598, %v3758
      %v3760 = vpop.f32.mrb[0].mxu0
      %3761 = vmatprep.mubr.bf16.mxu0 %v1225
      %3762 = vmatmul.mubr.bf16.gmra.mrb[0].mxu0 %v1224
      %v3763 = vpop.f32.mrb[0].mxu0
      %v3764 = vadd.f32 %v3603, %v3763
      %v3765 = vpop.f32.mrb[0].mxu0
      %v3766 = vpop.f32.mrb[0].mxu0
      %v3767 = vadd.f32 %v3606, %v3766
      %v3768 = vpop.f32.mrb[0].mxu0
      %3769 = vmatprep.mubr.bf16.mxu0 %v1230
      %3770 = vmatmul.mubr.bf16.gmra.mrb[0].mxu0 %v1229
      %v3771 = vpop.f32.mrb[0].mxu0
      %v3772 = vadd.f32 %v3611, %v3771
      %v3773 = vpop.f32.mrb[0].mxu0
      %v3774 = vpop.f32.mrb[0].mxu0
      %v3775 = vadd.f32 %v3614, %v3774
      %v3776 = vpop.f32.mrb[0].mxu0
      %3777 = vmatprep.mubr.bf16.mxu0 %v1235
      %3778 = vmatmul.mubr.bf16.gmra.mrb[0].mxu0 %v1234
      %v3779 = vpop.f32.mrb[0].mxu0
      %v3780 = vadd.f32 %v3619, %v3779
      %v3781 = vpop.f32.mrb[0].mxu0
      %v3782 = vpop.f32.mrb[0].mxu0
      %v3783 = vadd.f32 %v3622, %v3782
      %v3784 = vpop.f32.mrb[0].mxu0
      %3785 = vmatprep.mubr.bf16.mxu0 %v1240
      %3786 = vmatmul.mubr.bf16.gmra.mrb[0].mxu0 %v1239
      %v3787 = vpop.f32.mrb[0].mxu0
      %v3788 = vadd.f32 %v3627, %v3787
      %v3789 = vpop.f32.mrb[0].mxu0
      %v3790 = vpop.f32.mrb[0].mxu0
      %v3791 = vadd.f32 %v3630, %v3790
      %v3792 = vpop.f32.mrb[0].mxu0
      %3793 = vmatprep.mubr.bf16.mxu0 %v1245
      %3794 = vmatmul.mubr.bf16.gmra.mrb[0].mxu0 %v1244
      %v3795 = vpop.f32.mrb[0].mxu0
      %v3796 = vadd.f32 %v3635, %v3795
      %v3797 = vpop.f32.mrb[0].mxu0
      %v3798 = vpop.f32.mrb[0].mxu0
      %v3799 = vadd.f32 %v3638, %v3798
      %v3800 = vpop.f32.mrb[0].mxu0
      %3801 = vmatprep.mubr.bf16.mxu0 %v1250
      %3802 = vmatmul.mubr.bf16.gmra.mrb[0].mxu0 %v1249
      %v3803 = vpop.f32.mrb[0].mxu0
      %v3804 = vadd.f32 %v3643, %v3803
      %v3805 = vpop.f32.mrb[0].mxu0
      %v3806 = vpop.f32.mrb[0].mxu0
      %v3807 = vadd.f32 %v3646, %v3806
      %v3808 = vpop.f32.mrb[0].mxu0
      %3809 = vmatprep.mubr.bf16.mxu0 %v1255
      %3810 = vmatmul.mubr.bf16.gmra.mrb[0].mxu0 %v1254
      %v3811 = vpop.f32.mrb[0].mxu0
      %v3812 = vadd.f32 %v3651, %v3811
      %v3813 = vpop.f32.mrb[0].mxu0
      %v3814 = vpop.f32.mrb[0].mxu0
      %v3815 = vadd.f32 %v3654, %v3814
      %v3816 = vpop.f32.mrb[0].mxu0
      %3817 = vmatprep.mubr.bf16.mxu0 %v1260
      %3818 = vmatmul.mubr.bf16.gmra.mrb[0].mxu0 %v1259
      %v3819 = vpop.f32.mrb[0].mxu0
      %v3820 = vadd.f32 %v3659, %v3819
      %v3821 = vpop.f32.mrb[0].mxu0
      %v3822 = vpop.f32.mrb[0].mxu0
      %v3823 = vadd.f32 %v3662, %v3822
      %v3824 = vpop.f32.mrb[0].mxu0
      %3825 = vmatprep.mubr.bf16.mxu0 %v1265
      %3826 = vmatmul.mubr.bf16.gmra.mrb[0].mxu0 %v1264
      %v3827 = vpop.f32.mrb[0].mxu0
      %v3828 = vadd.f32 %v3667, %v3827
      %v3829 = vpop.f32.mrb[0].mxu0
      %v3830 = vpop.f32.mrb[0].mxu0
      %v3831 = vadd.f32 %v3670, %v3830
      %v3832 = vpop.f32.mrb[0].mxu0
      %3833 = vmatprep.mubr.bf16.mxu0 %v1270
      %3834 = vmatmul.mubr.bf16.gmra.mrb[0].mxu0 %v1269
      %v3835 = vpop.f32.mrb[0].mxu0
      %v3836 = vadd.f32 %v3675, %v3835
      %v3837 = vpop.f32.mrb[0].mxu0
      %v3838 = vpop.f32.mrb[0].mxu0
      %v3839 = vadd.f32 %v3678, %v3838
      %v3840 = vpop.f32.mrb[0].mxu0
      %3841 = vmatprep.mubr.bf16.mxu0 %v1275
      %3842 = vmatmul.mubr.bf16.gmra.mrb[0].mxu0 %v1274
      %v3843 = vpop.f32.mrb[0].mxu0
      %v3844 = vadd.f32 %v3683, %v3843
      %v3845 = vpop.f32.mrb[0].mxu0
      %v3846 = vpop.f32.mrb[0].mxu0
      %v3847 = vadd.f32 %v3686, %v3846
      %v3848 = vpop.f32.mrb[0].mxu0
      %3849 = vmatprep.mubr.bf16.mxu0 %v1280
      %3850 = vmatmul.mubr.bf16.gmra.mrb[0].mxu0 %v1279
      %v3851 = vpop.f32.mrb[0].mxu0
      %v3852 = vadd.f32 %v3691, %v3851
      %v3853 = vpop.f32.mrb[0].mxu0
      %v3854 = vpop.f32.mrb[0].mxu0
      %v3855 = vadd.f32 %v3694, %v3854
      %v3856 = vpop.f32.mrb[0].mxu0
      %3857 = vmatprep.mubr.bf16.mxu0 %v1285
      %3858 = vmatmul.mubr.bf16.gmra.mrb[0].mxu0 %v1284
      %v3859 = vpop.f32.mrb[0].mxu0
      %v3860 = vadd.f32 %v3699, %v3859
      %v3861 = vpop.f32.mrb[0].mxu0
      %v3862 = vpop.f32.mrb[0].mxu0
      %v3863 = vadd.f32 %v3702, %v3862
      %v3864 = vpop.f32.mrb[0].mxu0
      %3865 = vmatprep.mubr.bf16.mxu0 %v1290
      %3866 = vmatmul.mubr.bf16.gmra.mrb[0].mxu0 %v1289
      %v3867 = vpop.f32.mrb[0].mxu0
      %v3868 = vadd.f32 %v3707, %v3867
      %v3869 = vpop.f32.mrb[0].mxu0
      %v3870 = vpop.f32.mrb[0].mxu0
      %v3871 = vadd.f32 %v3710, %v3870
      %v3872 = vpop.f32.mrb[0].mxu0
      %3873 = vmatprep.mubr.bf16.mxu0 %v1295
      %3874 = vmatmul.mubr.bf16.gmra.mrb[0].mxu0 %v1294
      %v3875 = vpop.f32.mrb[0].mxu0
      %v3876 = vadd.f32 %v3715, %v3875
      %v3877 = vpop.f32.mrb[0].mxu0
      %v3878 = vpop.f32.mrb[0].mxu0
      %v3879 = vadd.f32 %v3718, %v3878
      %v3880 = vpop.f32.mrb[0].mxu0
      %3881 = vdwg.mxu0
      %3882 = vmatprep.subr.bf16.mxu0 0
      %3883 = vmatpush1.bf16.msra.mxu0 %v2612
      %3884 = vmatprep.subr.bf16.mxu0 0
      %3885 = vmatpush1.bf16.msra.mxu0 %v2613
      %3886 = vmatprep.subr.bf16.mxu0 0
      %3887 = vmatpush1.bf16.msra.mxu0 %v2614
      %3888 = vmatprep.subr.bf16.mxu0 0
      %3889 = vmatpush1.bf16.msra.mxu0 %v2615
      %3890 = vmatprep.subr.bf16.mxu0 0
      %3891 = vmatpush1.bf16.msra.mxu0 %v2616
      %3892 = vmatprep.subr.bf16.mxu0 0
      %3893 = vmatpush1.bf16.msra.mxu0 %v2617
      %3894 = vmatprep.subr.bf16.mxu0 0
      %3895 = vmatpush1.bf16.msra.mxu0 %v2618
      %3896 = vmatprep.subr.bf16.mxu0 0
      %3897 = vmatpush1.bf16.msra.mxu0 %v2619
      %3898 = vmatprep.subr.bf16.mxu0 0
      %3899 = vmatpush1.bf16.msra.mxu0 %v2620
      %3900 = vmatprep.subr.bf16.mxu0 0
      %3901 = vmatpush1.bf16.msra.mxu0 %v2621
      %3902 = vmatprep.subr.bf16.mxu0 0
      %3903 = vmatpush1.bf16.msra.mxu0 %v2622
      %3904 = vmatprep.subr.bf16.mxu0 0
      %3905 = vmatpush1.bf16.msra.mxu0 %v2623
      %3906 = vmatprep.subr.bf16.mxu0 0
      %3907 = vmatpush1.bf16.msra.mxu0 %v2624
      %3908 = vmatprep.subr.bf16.mxu0 0
      %3909 = vmatpush1.bf16.msra.mxu0 %v2625
      %3910 = vmatprep.subr.bf16.mxu0 0
      %3911 = vmatpush1.bf16.msra.mxu0 %v2626
      %3912 = vmatprep.subr.bf16.mxu0 0
      %3913 = vmatpush1.bf16.msra.mxu0 %v2627
      %3914 = vmatprep.mubr.bf16.mxu0 %v1222
      %3915 = vmatmul.mubr.bf16.gmra.mrb[0].mxu0 %v1221
      %v3916 = vpop.f32.mrb[0].mxu0
      %v3917 = vadd.f32 %v3756, %v3916
      %v3918 = vpop.f32.mrb[0].mxu0
      %v3919 = vpop.f32.mrb[0].mxu0
      %v3920 = vadd.f32 %v3759, %v3919
      %v3921 = vpop.f32.mrb[0].mxu0
      %3922 = vmatprep.mubr.bf16.mxu0 %v1227
      %3923 = vmatmul.mubr.bf16.gmra.mrb[0].mxu0 %v1226
      %v3924 = vpop.f32.mrb[0].mxu0
      %v3925 = vadd.f32 %v3764, %v3924
      %v3926 = vpop.f32.mrb[0].mxu0
      %v3927 = vpop.f32.mrb[0].mxu0
      %v3928 = vadd.f32 %v3767, %v3927
      %v3929 = vpop.f32.mrb[0].mxu0
      %3930 = vmatprep.mubr.bf16.mxu0 %v1232
      %3931 = vmatmul.mubr.bf16.gmra.mrb[0].mxu0 %v1231
      %v3932 = vpop.f32.mrb[0].mxu0
      %v3933 = vadd.f32 %v3772, %v3932
      %v3934 = vpop.f32.mrb[0].mxu0
      %v3935 = vpop.f32.mrb[0].mxu0
      %v3936 = vadd.f32 %v3775, %v3935
      %v3937 = vpop.f32.mrb[0].mxu0
      %3938 = vmatprep.mubr.bf16.mxu0 %v1237
      %3939 = vmatmul.mubr.bf16.gmra.mrb[0].mxu0 %v1236
      %v3940 = vpop.f32.mrb[0].mxu0
      %v3941 = vadd.f32 %v3780, %v3940
      %v3942 = vpop.f32.mrb[0].mxu0
      %v3943 = vpop.f32.mrb[0].mxu0
      %v3944 = vadd.f32 %v3783, %v3943
      %v3945 = vpop.f32.mrb[0].mxu0
      %3946 = vmatprep.mubr.bf16.mxu0 %v1242
      %3947 = vmatmul.mubr.bf16.gmra.mrb[0].mxu0 %v1241
      %v3948 = vpop.f32.mrb[0].mxu0
      %v3949 = vadd.f32 %v3788, %v3948
      %v3950 = vpop.f32.mrb[0].mxu0
      %v3951 = vpop.f32.mrb[0].mxu0
      %v3952 = vadd.f32 %v3791, %v3951
      %v3953 = vpop.f32.mrb[0].mxu0
      %3954 = vmatprep.mubr.bf16.mxu0 %v1247
      %3955 = vmatmul.mubr.bf16.gmra.mrb[0].mxu0 %v1246
      %v3956 = vpop.f32.mrb[0].mxu0
      %v3957 = vadd.f32 %v3796, %v3956
      %v3958 = vpop.f32.mrb[0].mxu0
      %v3959 = vpop.f32.mrb[0].mxu0
      %v3960 = vadd.f32 %v3799, %v3959
      %v3961 = vpop.f32.mrb[0].mxu0
      %3962 = vmatprep.mubr.bf16.mxu0 %v1252
      %3963 = vmatmul.mubr.bf16.gmra.mrb[0].mxu0 %v1251
      %v3964 = vpop.f32.mrb[0].mxu0
      %v3965 = vadd.f32 %v3804, %v3964
      %v3966 = vpop.f32.mrb[0].mxu0
      %v3967 = vpop.f32.mrb[0].mxu0
      %v3968 = vadd.f32 %v3807, %v3967
      %v3969 = vpop.f32.mrb[0].mxu0
      %3970 = vmatprep.mubr.bf16.mxu0 %v1257
      %3971 = vmatmul.mubr.bf16.gmra.mrb[0].mxu0 %v1256
      %v3972 = vpop.f32.mrb[0].mxu0
      %v3973 = vadd.f32 %v3812, %v3972
      %v3974 = vpop.f32.mrb[0].mxu0
      %v3975 = vpop.f32.mrb[0].mxu0
      %v3976 = vadd.f32 %v3815, %v3975
      %v3977 = vpop.f32.mrb[0].mxu0
      %3978 = vmatprep.mubr.bf16.mxu0 %v1262
      %3979 = vmatmul.mubr.bf16.gmra.mrb[0].mxu0 %v1261
      %v3980 = vpop.f32.mrb[0].mxu0
      %v3981 = vadd.f32 %v3820, %v3980
      %v3982 = vpop.f32.mrb[0].mxu0
      %v3983 = vpop.f32.mrb[0].mxu0
      %v3984 = vadd.f32 %v3823, %v3983
      %v3985 = vpop.f32.mrb[0].mxu0
      %3986 = vmatprep.mubr.bf16.mxu0 %v1267
      %3987 = vmatmul.mubr.bf16.gmra.mrb[0].mxu0 %v1266
      %v3988 = vpop.f32.mrb[0].mxu0
      %v3989 = vadd.f32 %v3828, %v3988
      %v3990 = vpop.f32.mrb[0].mxu0
      %v3991 = vpop.f32.mrb[0].mxu0
      %v3992 = vadd.f32 %v3831, %v3991
      %v3993 = vpop.f32.mrb[0].mxu0
      %3994 = vmatprep.mubr.bf16.mxu0 %v1272
      %3995 = vmatmul.mubr.bf16.gmra.mrb[0].mxu0 %v1271
      %v3996 = vpop.f32.mrb[0].mxu0
      %v3997 = vadd.f32 %v3836, %v3996
      %v3998 = vpop.f32.mrb[0].mxu0
      %v3999 = vpop.f32.mrb[0].mxu0
      %v4000 = vadd.f32 %v3839, %v3999
      %v4001 = vpop.f32.mrb[0].mxu0
      %4002 = vmatprep.mubr.bf16.mxu0 %v1277
      %4003 = vmatmul.mubr.bf16.gmra.mrb[0].mxu0 %v1276
      %v4004 = vpop.f32.mrb[0].mxu0
      %v4005 = vadd.f32 %v3844, %v4004
      %v4006 = vpop.f32.mrb[0].mxu0
      %v4007 = vpop.f32.mrb[0].mxu0
      %v4008 = vadd.f32 %v3847, %v4007
      %v4009 = vpop.f32.mrb[0].mxu0
      %4010 = vmatprep.mubr.bf16.mxu0 %v1282
      %4011 = vmatmul.mubr.bf16.gmra.mrb[0].mxu0 %v1281
      %v4012 = vpop.f32.mrb[0].mxu0
      %v4013 = vadd.f32 %v3852, %v4012
      %v4014 = vpop.f32.mrb[0].mxu0
      %v4015 = vpop.f32.mrb[0].mxu0
      %v4016 = vadd.f32 %v3855, %v4015
      %v4017 = vpop.f32.mrb[0].mxu0
      %4018 = vmatprep.mubr.bf16.mxu0 %v1287
      %4019 = vmatmul.mubr.bf16.gmra.mrb[0].mxu0 %v1286
      %v4020 = vpop.f32.mrb[0].mxu0
      %v4021 = vadd.f32 %v3860, %v4020
      %v4022 = vpop.f32.mrb[0].mxu0
      %v4023 = vpop.f32.mrb[0].mxu0
      %v4024 = vadd.f32 %v3863, %v4023
      %v4025 = vpop.f32.mrb[0].mxu0
      %4026 = vmatprep.mubr.bf16.mxu0 %v1292
      %4027 = vmatmul.mubr.bf16.gmra.mrb[0].mxu0 %v1291
      %v4028 = vpop.f32.mrb[0].mxu0
      %v4029 = vadd.f32 %v3868, %v4028
      %v4030 = vpop.f32.mrb[0].mxu0
      %v4031 = vpop.f32.mrb[0].mxu0
      %v4032 = vadd.f32 %v3871, %v4031
      %v4033 = vpop.f32.mrb[0].mxu0
      %4034 = vmatprep.mubr.bf16.mxu0 %v1297
      %4035 = vmatmul.mubr.bf16.gmra.mrb[0].mxu0 %v1296
      %v4036 = vpop.f32.mrb[0].mxu0
      %v4037 = vadd.f32 %v3876, %v4036
      %v4038 = vpop.f32.mrb[0].mxu0
      %v4039 = vpop.f32.mrb[0].mxu0
      %v4040 = vadd.f32 %v3879, %v4039
      %v4041 = vpop.f32.mrb[0].mxu0
      %4042 = vdwg.mxu0
      %4043 = vmatprep.subr.bf16.mxu0 0
      %4044 = vmatpush1.bf16.msra.mxu0 %v2628
      %4045 = vmatprep.subr.bf16.mxu0 0
      %4046 = vmatpush1.bf16.msra.mxu0 %v2629
      %4047 = vmatprep.subr.bf16.mxu0 0
      %4048 = vmatpush1.bf16.msra.mxu0 %v2630
      %4049 = vmatprep.subr.bf16.mxu0 0
      %4050 = vmatpush1.bf16.msra.mxu0 %v2631
      %4051 = vmatprep.subr.bf16.mxu0 0
      %4052 = vmatpush1.bf16.msra.mxu0 %v2632
      %4053 = vmatprep.subr.bf16.mxu0 0
      %4054 = vmatpush1.bf16.msra.mxu0 %v2633
      %4055 = vmatprep.subr.bf16.mxu0 0
      %4056 = vmatpush1.bf16.msra.mxu0 %v2634
      %4057 = vmatprep.subr.bf16.mxu0 0
      %4058 = vmatpush1.bf16.msra.mxu0 %v2635
      %4059 = vmatprep.subr.bf16.mxu0 0
      %4060 = vmatpush1.bf16.msra.mxu0 %v2636
      %4061 = vmatprep.subr.bf16.mxu0 0
      %4062 = vmatpush1.bf16.msra.mxu0 %v2637
      %4063 = vmatprep.subr.bf16.mxu0 0
      %4064 = vmatpush1.bf16.msra.mxu0 %v2638
      %4065 = vmatprep.subr.bf16.mxu0 0
      %4066 = vmatpush1.bf16.msra.mxu0 %v2639
      %4067 = vmatprep.subr.bf16.mxu0 0
      %4068 = vmatpush1.bf16.msra.mxu0 %v2640
      %4069 = vmatprep.subr.bf16.mxu0 0
      %4070 = vmatpush1.bf16.msra.mxu0 %v2641
      %4071 = vmatprep.subr.bf16.mxu0 0
      %4072 = vmatpush1.bf16.msra.mxu0 %v2642
      %4073 = vmatprep.subr.bf16.mxu0 0
      %4074 = vmatpush1.bf16.msra.mxu0 %v2643
      %4075 = vmatprep.mubr.bf16.mxu0 %v1224
      %4076 = vmatmul.mubr.bf16.gmra.mrb[0].mxu0 %v1223
      %v4077 = vpop.f32.mrb[0].mxu0
      %v4078 = vadd.f32 %v3917, %v4077
      %v4079 = vpop.f32.mrb[0].mxu0
      %v4080 = vpop.f32.mrb[0].mxu0
      %v4081 = vadd.f32 %v3920, %v4080
      %v4082 = vpop.f32.mrb[0].mxu0
      %4083 = vmatprep.mubr.bf16.mxu0 %v1229
      %4084 = vmatmul.mubr.bf16.gmra.mrb[0].mxu0 %v1228
      %v4085 = vpop.f32.mrb[0].mxu0
      %v4086 = vadd.f32 %v3925, %v4085
      %v4087 = vpop.f32.mrb[0].mxu0
      %v4088 = vpop.f32.mrb[0].mxu0
      %v4089 = vadd.f32 %v3928, %v4088
      %v4090 = vpop.f32.mrb[0].mxu0
      %4091 = vmatprep.mubr.bf16.mxu0 %v1234
      %4092 = vmatmul.mubr.bf16.gmra.mrb[0].mxu0 %v1233
      %v4093 = vpop.f32.mrb[0].mxu0
      %v4094 = vadd.f32 %v3933, %v4093
      %v4095 = vpop.f32.mrb[0].mxu0
      %v4096 = vpop.f32.mrb[0].mxu0
      %v4097 = vadd.f32 %v3936, %v4096
      %v4098 = vpop.f32.mrb[0].mxu0
      %4099 = vmatprep.mubr.bf16.mxu0 %v1239
      %4100 = vmatmul.mubr.bf16.gmra.mrb[0].mxu0 %v1238
      %v4101 = vpop.f32.mrb[0].mxu0
      %v4102 = vadd.f32 %v3941, %v4101
      %v4103 = vpop.f32.mrb[0].mxu0
      %v4104 = vpop.f32.mrb[0].mxu0
      %v4105 = vadd.f32 %v3944, %v4104
      %v4106 = vpop.f32.mrb[0].mxu0
      %4107 = vmatprep.mubr.bf16.mxu0 %v1244
      %4108 = vmatmul.mubr.bf16.gmra.mrb[0].mxu0 %v1243
      %v4109 = vpop.f32.mrb[0].mxu0
      %v4110 = vadd.f32 %v3949, %v4109
      %v4111 = vpop.f32.mrb[0].mxu0
      %v4112 = vpop.f32.mrb[0].mxu0
      %v4113 = vadd.f32 %v3952, %v4112
      %v4114 = vpop.f32.mrb[0].mxu0
      %4115 = vmatprep.mubr.bf16.mxu0 %v1249
      %4116 = vmatmul.mubr.bf16.gmra.mrb[0].mxu0 %v1248
      %v4117 = vpop.f32.mrb[0].mxu0
      %v4118 = vadd.f32 %v3957, %v4117
      %v4119 = vpop.f32.mrb[0].mxu0
      %v4120 = vpop.f32.mrb[0].mxu0
      %v4121 = vadd.f32 %v3960, %v4120
      %v4122 = vpop.f32.mrb[0].mxu0
      %4123 = vmatprep.mubr.bf16.mxu0 %v1254
      %4124 = vmatmul.mubr.bf16.gmra.mrb[0].mxu0 %v1253
      %v4125 = vpop.f32.mrb[0].mxu0
      %v4126 = vadd.f32 %v3965, %v4125
      %v4127 = vpop.f32.mrb[0].mxu0
      %v4128 = vpop.f32.mrb[0].mxu0
      %v4129 = vadd.f32 %v3968, %v4128
      %v4130 = vpop.f32.mrb[0].mxu0
      %4131 = vmatprep.mubr.bf16.mxu0 %v1259
      %4132 = vmatmul.mubr.bf16.gmra.mrb[0].mxu0 %v1258
      %v4133 = vpop.f32.mrb[0].mxu0
      %v4134 = vadd.f32 %v3973, %v4133
      %v4135 = vpop.f32.mrb[0].mxu0
      %v4136 = vpop.f32.mrb[0].mxu0
      %v4137 = vadd.f32 %v3976, %v4136
      %v4138 = vpop.f32.mrb[0].mxu0
      %4139 = vmatprep.mubr.bf16.mxu0 %v1264
      %4140 = vmatmul.mubr.bf16.gmra.mrb[0].mxu0 %v1263
      %v4141 = vpop.f32.mrb[0].mxu0
      %v4142 = vadd.f32 %v3981, %v4141
      %v4143 = vpop.f32.mrb[0].mxu0
      %v4144 = vpop.f32.mrb[0].mxu0
      %v4145 = vadd.f32 %v3984, %v4144
      %v4146 = vpop.f32.mrb[0].mxu0
      %4147 = vmatprep.mubr.bf16.mxu0 %v1269
      %4148 = vmatmul.mubr.bf16.gmra.mrb[0].mxu0 %v1268
      %v4149 = vpop.f32.mrb[0].mxu0
      %v4150 = vadd.f32 %v3989, %v4149
      %v4151 = vpop.f32.mrb[0].mxu0
      %v4152 = vpop.f32.mrb[0].mxu0
      %v4153 = vadd.f32 %v3992, %v4152
      %v4154 = vpop.f32.mrb[0].mxu0
      %4155 = vmatprep.mubr.bf16.mxu0 %v1274
      %4156 = vmatmul.mubr.bf16.gmra.mrb[0].mxu0 %v1273
      %v4157 = vpop.f32.mrb[0].mxu0
      %v4158 = vadd.f32 %v3997, %v4157
      %v4159 = vpop.f32.mrb[0].mxu0
      %v4160 = vpop.f32.mrb[0].mxu0
      %v4161 = vadd.f32 %v4000, %v4160
      %v4162 = vpop.f32.mrb[0].mxu0
      %4163 = vmatprep.mubr.bf16.mxu0 %v1279
      %4164 = vmatmul.mubr.bf16.gmra.mrb[0].mxu0 %v1278
      %v4165 = vpop.f32.mrb[0].mxu0
      %v4166 = vadd.f32 %v4005, %v4165
      %v4167 = vpop.f32.mrb[0].mxu0
      %v4168 = vpop.f32.mrb[0].mxu0
      %v4169 = vadd.f32 %v4008, %v4168
      %v4170 = vpop.f32.mrb[0].mxu0
      %4171 = vmatprep.mubr.bf16.mxu0 %v1284
      %4172 = vmatmul.mubr.bf16.gmra.mrb[0].mxu0 %v1283
      %v4173 = vpop.f32.mrb[0].mxu0
      %v4174 = vadd.f32 %v4013, %v4173
      %v4175 = vpop.f32.mrb[0].mxu0
      %v4176 = vpop.f32.mrb[0].mxu0
      %v4177 = vadd.f32 %v4016, %v4176
      %v4178 = vpop.f32.mrb[0].mxu0
      %4179 = vmatprep.mubr.bf16.mxu0 %v1289
      %4180 = vmatmul.mubr.bf16.gmra.mrb[0].mxu0 %v1288
      %v4181 = vpop.f32.mrb[0].mxu0
      %v4182 = vadd.f32 %v4021, %v4181
      %v4183 = vpop.f32.mrb[0].mxu0
      %v4184 = vpop.f32.mrb[0].mxu0
      %v4185 = vadd.f32 %v4024, %v4184
      %v4186 = vpop.f32.mrb[0].mxu0
      %4187 = vmatprep.mubr.bf16.mxu0 %v1294
      %4188 = vmatmul.mubr.bf16.gmra.mrb[0].mxu0 %v1293
      %v4189 = vpop.f32.mrb[0].mxu0
      %v4190 = vadd.f32 %v4029, %v4189
      %v4191 = vpop.f32.mrb[0].mxu0
      %v4192 = vpop.f32.mrb[0].mxu0
      %v4193 = vadd.f32 %v4032, %v4192
      %v4194 = vpop.f32.mrb[0].mxu0
      %4195 = vmatprep.mubr.bf16.mxu0 %v1299
      %4196 = vmatmul.mubr.bf16.gmra.mrb[0].mxu0 %v1298
      %v4197 = vpop.f32.mrb[0].mxu0
      %v4198 = vadd.f32 %v4037, %v4197
      %v4199 = vpop.f32.mrb[0].mxu0
      %v4200 = vpop.f32.mrb[0].mxu0
      %v4201 = vadd.f32 %v4040, %v4200
      %v4202 = vpop.f32.mrb[0].mxu0
      %4203 = vdwg.mxu0
      %4204 = vmatprep.subr.bf16.mxu0 0
      %4205 = vmatpush1.bf16.msra.mxu0 %v2644
      %4206 = vmatprep.subr.bf16.mxu0 0
      %4207 = vmatpush1.bf16.msra.mxu0 %v2645
      %4208 = vmatprep.subr.bf16.mxu0 0
      %4209 = vmatpush1.bf16.msra.mxu0 %v2646
      %4210 = vmatprep.subr.bf16.mxu0 0
      %4211 = vmatpush1.bf16.msra.mxu0 %v2647
      %4212 = vmatprep.subr.bf16.mxu0 0
      %4213 = vmatpush1.bf16.msra.mxu0 %v2648
      %4214 = vmatprep.subr.bf16.mxu0 0
      %4215 = vmatpush1.bf16.msra.mxu0 %v2649
      %4216 = vmatprep.subr.bf16.mxu0 0
      %4217 = vmatpush1.bf16.msra.mxu0 %v2650
      %4218 = vmatprep.subr.bf16.mxu0 0
      %4219 = vmatpush1.bf16.msra.mxu0 %v2651
      %4220 = vmatprep.subr.bf16.mxu0 0
      %4221 = vmatpush1.bf16.msra.mxu0 %v2652
      %4222 = vmatprep.subr.bf16.mxu0 0
      %4223 = vmatpush1.bf16.msra.mxu0 %v2653
      %4224 = vmatprep.subr.bf16.mxu0 0
      %4225 = vmatpush1.bf16.msra.mxu0 %v2654
      %4226 = vmatprep.subr.bf16.mxu0 0
      %4227 = vmatpush1.bf16.msra.mxu0 %v2655
      %4228 = vmatprep.subr.bf16.mxu0 0
      %4229 = vmatpush1.bf16.msra.mxu0 %v2656
      %4230 = vmatprep.subr.bf16.mxu0 0
      %4231 = vmatpush1.bf16.msra.mxu0 %v2657
      %4232 = vmatprep.subr.bf16.mxu0 0
      %4233 = vmatpush1.bf16.msra.mxu0 %v2658
      %4234 = vmatprep.subr.bf16.mxu0 0
      %4235 = vmatpush1.bf16.msra.mxu0 %v2659
      %4236 = vmatprep.mubr.bf16.mxu0 %v1226
      %4237 = vmatmul.mubr.bf16.gmra.mrb[0].mxu0 %v1225
      %v4238 = vpop.f32.mrb[0].mxu0
      %v4239 = vadd.f32 %v4078, %v4238
      %v4240 = vpop.f32.mrb[0].mxu0
      %v4241 = vpop.f32.mrb[0].mxu0
      %v4242 = vadd.f32 %v4081, %v4241
      %v4243 = vpop.f32.mrb[0].mxu0
      %4244 = vmatprep.mubr.bf16.mxu0 %v1231
      %4245 = vmatmul.mubr.bf16.gmra.mrb[0].mxu0 %v1230
      %v4246 = vpop.f32.mrb[0].mxu0
      %v4247 = vadd.f32 %v4086, %v4246
      %v4248 = vpop.f32.mrb[0].mxu0
      %v4249 = vpop.f32.mrb[0].mxu0
      %v4250 = vadd.f32 %v4089, %v4249
      %v4251 = vpop.f32.mrb[0].mxu0
      %4252 = vmatprep.mubr.bf16.mxu0 %v1236
      %4253 = vmatmul.mubr.bf16.gmra.mrb[0].mxu0 %v1235
      %v4254 = vpop.f32.mrb[0].mxu0
      %v4255 = vadd.f32 %v4094, %v4254
      %v4256 = vpop.f32.mrb[0].mxu0
      %v4257 = vpop.f32.mrb[0].mxu0
      %v4258 = vadd.f32 %v4097, %v4257
      %v4259 = vpop.f32.mrb[0].mxu0
      %4260 = vmatprep.mubr.bf16.mxu0 %v1241
      %4261 = vmatmul.mubr.bf16.gmra.mrb[0].mxu0 %v1240
      %v4262 = vpop.f32.mrb[0].mxu0
      %v4263 = vadd.f32 %v4102, %v4262
      %v4264 = vpop.f32.mrb[0].mxu0
      %v4265 = vpop.f32.mrb[0].mxu0
      %v4266 = vadd.f32 %v4105, %v4265
      %v4267 = vpop.f32.mrb[0].mxu0
      %4268 = vmatprep.mubr.bf16.mxu0 %v1246
      %4269 = vmatmul.mubr.bf16.gmra.mrb[0].mxu0 %v1245
      %v4270 = vpop.f32.mrb[0].mxu0
      %v4271 = vadd.f32 %v4110, %v4270
      %v4272 = vpop.f32.mrb[0].mxu0
      %v4273 = vpop.f32.mrb[0].mxu0
      %v4274 = vadd.f32 %v4113, %v4273
      %v4275 = vpop.f32.mrb[0].mxu0
      %4276 = vmatprep.mubr.bf16.mxu0 %v1251
      %4277 = vmatmul.mubr.bf16.gmra.mrb[0].mxu0 %v1250
      %v4278 = vpop.f32.mrb[0].mxu0
      %v4279 = vadd.f32 %v4118, %v4278
      %v4280 = vpop.f32.mrb[0].mxu0
      %v4281 = vpop.f32.mrb[0].mxu0
      %v4282 = vadd.f32 %v4121, %v4281
      %v4283 = vpop.f32.mrb[0].mxu0
      %4284 = vmatprep.mubr.bf16.mxu0 %v1256
      %4285 = vmatmul.mubr.bf16.gmra.mrb[0].mxu0 %v1255
      %v4286 = vpop.f32.mrb[0].mxu0
      %v4287 = vadd.f32 %v4126, %v4286
      %v4288 = vpop.f32.mrb[0].mxu0
      %v4289 = vpop.f32.mrb[0].mxu0
      %v4290 = vadd.f32 %v4129, %v4289
      %v4291 = vpop.f32.mrb[0].mxu0
      %4292 = vmatprep.mubr.bf16.mxu0 %v1261
      %4293 = vmatmul.mubr.bf16.gmra.mrb[0].mxu0 %v1260
      %v4294 = vpop.f32.mrb[0].mxu0
      %v4295 = vadd.f32 %v4134, %v4294
      %v4296 = vpop.f32.mrb[0].mxu0
      %v4297 = vpop.f32.mrb[0].mxu0
      %v4298 = vadd.f32 %v4137, %v4297
      %v4299 = vpop.f32.mrb[0].mxu0
      %4300 = vmatprep.mubr.bf16.mxu0 %v1266
      %4301 = vmatmul.mubr.bf16.gmra.mrb[0].mxu0 %v1265
      %v4302 = vpop.f32.mrb[0].mxu0
      %v4303 = vadd.f32 %v4142, %v4302
      %v4304 = vpop.f32.mrb[0].mxu0
      %v4305 = vpop.f32.mrb[0].mxu0
      %v4306 = vadd.f32 %v4145, %v4305
      %v4307 = vpop.f32.mrb[0].mxu0
      %4308 = vmatprep.mubr.bf16.mxu0 %v1271
      %4309 = vmatmul.mubr.bf16.gmra.mrb[0].mxu0 %v1270
      %v4310 = vpop.f32.mrb[0].mxu0
      %v4311 = vadd.f32 %v4150, %v4310
      %v4312 = vpop.f32.mrb[0].mxu0
      %v4313 = vpop.f32.mrb[0].mxu0
      %v4314 = vadd.f32 %v4153, %v4313
      %v4315 = vpop.f32.mrb[0].mxu0
      %4316 = vmatprep.mubr.bf16.mxu0 %v1276
      %4317 = vmatmul.mubr.bf16.gmra.mrb[0].mxu0 %v1275
      %v4318 = vpop.f32.mrb[0].mxu0
      %v4319 = vadd.f32 %v4158, %v4318
      %v4320 = vpop.f32.mrb[0].mxu0
      %v4321 = vpop.f32.mrb[0].mxu0
      %v4322 = vadd.f32 %v4161, %v4321
      %v4323 = vpop.f32.mrb[0].mxu0
      %4324 = vmatprep.mubr.bf16.mxu0 %v1281
      %4325 = vmatmul.mubr.bf16.gmra.mrb[0].mxu0 %v1280
      %v4326 = vpop.f32.mrb[0].mxu0
      %v4327 = vadd.f32 %v4166, %v4326
      %v4328 = vpop.f32.mrb[0].mxu0
      %v4329 = vpop.f32.mrb[0].mxu0
      %v4330 = vadd.f32 %v4169, %v4329
      %v4331 = vpop.f32.mrb[0].mxu0
      %4332 = vmatprep.mubr.bf16.mxu0 %v1286
      %4333 = vmatmul.mubr.bf16.gmra.mrb[0].mxu0 %v1285
      %v4334 = vpop.f32.mrb[0].mxu0
      %v4335 = vadd.f32 %v4174, %v4334
      %v4336 = vpop.f32.mrb[0].mxu0
      %v4337 = vpop.f32.mrb[0].mxu0
      %v4338 = vadd.f32 %v4177, %v4337
      %v4339 = vpop.f32.mrb[0].mxu0
      %4340 = vmatprep.mubr.bf16.mxu0 %v1291
      %4341 = vmatmul.mubr.bf16.gmra.mrb[0].mxu0 %v1290
      %v4342 = vpop.f32.mrb[0].mxu0
      %v4343 = vadd.f32 %v4182, %v4342
      %v4344 = vpop.f32.mrb[0].mxu0
      %v4345 = vpop.f32.mrb[0].mxu0
      %v4346 = vadd.f32 %v4185, %v4345
      %v4347 = vpop.f32.mrb[0].mxu0
      %4348 = vmatprep.mubr.bf16.mxu0 %v1296
      %4349 = vmatmul.mubr.bf16.gmra.mrb[0].mxu0 %v1295
      %v4350 = vpop.f32.mrb[0].mxu0
      %v4351 = vadd.f32 %v4190, %v4350
      %v4352 = vpop.f32.mrb[0].mxu0
      %v4353 = vpop.f32.mrb[0].mxu0
      %v4354 = vadd.f32 %v4193, %v4353
      %v4355 = vpop.f32.mrb[0].mxu0
      %4356 = vmatprep.mubr.bf16.mxu0 %v1301
      %4357 = vmatmul.mubr.bf16.gmra.mrb[0].mxu0 %v1300
      %v4358 = vpop.f32.mrb[0].mxu0
      %v4359 = vadd.f32 %v4198, %v4358
      %v4360 = vpop.f32.mrb[0].mxu0
      %v4361 = vpop.f32.mrb[0].mxu0
      %v4362 = vadd.f32 %v4201, %v4361
      %v4363 = vpop.f32.mrb[0].mxu0
      %4364 = vdwg.mxu0
      %4365 = vmatprep.subr.bf16.mxu0 0
      %4366 = vmatpush1.bf16.msra.mxu0 %v2660
      %4367 = vmatprep.subr.bf16.mxu0 0
      %4368 = vmatpush1.bf16.msra.mxu0 %v2661
      %4369 = vmatprep.subr.bf16.mxu0 0
      %4370 = vmatpush1.bf16.msra.mxu0 %v2662
      %4371 = vmatprep.subr.bf16.mxu0 0
      %4372 = vmatpush1.bf16.msra.mxu0 %v2663
      %4373 = vmatprep.subr.bf16.mxu0 0
      %4374 = vmatpush1.bf16.msra.mxu0 %v2664
      %4375 = vmatprep.subr.bf16.mxu0 0
      %4376 = vmatpush1.bf16.msra.mxu0 %v2665
      %4377 = vmatprep.subr.bf16.mxu0 0
      %4378 = vmatpush1.bf16.msra.mxu0 %v2666
      %4379 = vmatprep.subr.bf16.mxu0 0
      %4380 = vmatpush1.bf16.msra.mxu0 %v2667
      %4381 = vmatprep.subr.bf16.mxu0 0
      %4382 = vmatpush1.bf16.msra.mxu0 %v2668
      %4383 = vmatprep.subr.bf16.mxu0 0
      %4384 = vmatpush1.bf16.msra.mxu0 %v2669
      %4385 = vmatprep.subr.bf16.mxu0 0
      %4386 = vmatpush1.bf16.msra.mxu0 %v2670
      %4387 = vmatprep.subr.bf16.mxu0 0
      %4388 = vmatpush1.bf16.msra.mxu0 %v2671
      %4389 = vmatprep.subr.bf16.mxu0 0
      %4390 = vmatpush1.bf16.msra.mxu0 %v2672
      %4391 = vmatprep.subr.bf16.mxu0 0
      %4392 = vmatpush1.bf16.msra.mxu0 %v2673
      %4393 = vmatprep.subr.bf16.mxu0 0
      %4394 = vmatpush1.bf16.msra.mxu0 %v2674
      %4395 = vmatprep.subr.bf16.mxu0 0
      %4396 = vmatpush1.bf16.msra.mxu0 %v2675
      %4397 = vmatprep.mubr.bf16.mxu0 %v1228
      %4398 = vmatmul.mubr.bf16.gmra.mrb[0].mxu0 %v1227
      %v4399 = vpop.f32.mrb[0].mxu0
      %v4400 = vadd.f32 %v4239, %v4399
      %v4401 = vpop.f32.mrb[0].mxu0
      %v4402 = vpop.f32.mrb[0].mxu0
      %v4403 = vadd.f32 %v4242, %v4402
      %v4404 = vpop.f32.mrb[0].mxu0
      %4405 = vmatprep.mubr.bf16.mxu0 %v1233
      %4406 = vmatmul.mubr.bf16.gmra.mrb[0].mxu0 %v1232
      %v4407 = vpop.f32.mrb[0].mxu0
      %v4408 = vadd.f32 %v4247, %v4407
      %v4409 = vpop.f32.mrb[0].mxu0
      %v4410 = vpop.f32.mrb[0].mxu0
      %v4411 = vadd.f32 %v4250, %v4410
      %v4412 = vpop.f32.mrb[0].mxu0
      %4413 = vmatprep.mubr.bf16.mxu0 %v1238
      %4414 = vmatmul.mubr.bf16.gmra.mrb[0].mxu0 %v1237
      %v4415 = vpop.f32.mrb[0].mxu0
      %v4416 = vadd.f32 %v4255, %v4415
      %v4417 = vpop.f32.mrb[0].mxu0
      %v4418 = vpop.f32.mrb[0].mxu0
      %v4419 = vadd.f32 %v4258, %v4418
      %v4420 = vpop.f32.mrb[0].mxu0
      %4421 = vmatprep.mubr.bf16.mxu0 %v1243
      %4422 = vmatmul.mubr.bf16.gmra.mrb[0].mxu0 %v1242
      %v4423 = vpop.f32.mrb[0].mxu0
      %v4424 = vadd.f32 %v4263, %v4423
      %v4425 = vpop.f32.mrb[0].mxu0
      %v4426 = vpop.f32.mrb[0].mxu0
      %v4427 = vadd.f32 %v4266, %v4426
      %v4428 = vpop.f32.mrb[0].mxu0
      %4429 = vmatprep.mubr.bf16.mxu0 %v1248
      %4430 = vmatmul.mubr.bf16.gmra.mrb[0].mxu0 %v1247
      %v4431 = vpop.f32.mrb[0].mxu0
      %v4432 = vadd.f32 %v4271, %v4431
      %v4433 = vpop.f32.mrb[0].mxu0
      %v4434 = vpop.f32.mrb[0].mxu0
      %v4435 = vadd.f32 %v4274, %v4434
      %v4436 = vpop.f32.mrb[0].mxu0
      %4437 = vmatprep.mubr.bf16.mxu0 %v1253
      %4438 = vmatmul.mubr.bf16.gmra.mrb[0].mxu0 %v1252
      %v4439 = vpop.f32.mrb[0].mxu0
      %v4440 = vadd.f32 %v4279, %v4439
      %v4441 = vpop.f32.mrb[0].mxu0
      %v4442 = vpop.f32.mrb[0].mxu0
      %v4443 = vadd.f32 %v4282, %v4442
      %v4444 = vpop.f32.mrb[0].mxu0
      %4445 = vmatprep.mubr.bf16.mxu0 %v1258
      %4446 = vmatmul.mubr.bf16.gmra.mrb[0].mxu0 %v1257
      %v4447 = vpop.f32.mrb[0].mxu0
      %v4448 = vadd.f32 %v4287, %v4447
      %v4449 = vpop.f32.mrb[0].mxu0
      %v4450 = vpop.f32.mrb[0].mxu0
      %v4451 = vadd.f32 %v4290, %v4450
      %v4452 = vpop.f32.mrb[0].mxu0
      %4453 = vmatprep.mubr.bf16.mxu0 %v1263
      %4454 = vmatmul.mubr.bf16.gmra.mrb[0].mxu0 %v1262
      %v4455 = vpop.f32.mrb[0].mxu0
      %v4456 = vadd.f32 %v4295, %v4455
      %v4457 = vpop.f32.mrb[0].mxu0
      %v4458 = vpop.f32.mrb[0].mxu0
      %v4459 = vadd.f32 %v4298, %v4458
      %v4460 = vpop.f32.mrb[0].mxu0
      %4461 = vmatprep.mubr.bf16.mxu0 %v1268
      %4462 = vmatmul.mubr.bf16.gmra.mrb[0].mxu0 %v1267
      %v4463 = vpop.f32.mrb[0].mxu0
      %v4464 = vadd.f32 %v4303, %v4463
      %v4465 = vpop.f32.mrb[0].mxu0
      %v4466 = vpop.f32.mrb[0].mxu0
      %v4467 = vadd.f32 %v4306, %v4466
      %v4468 = vpop.f32.mrb[0].mxu0
      %4469 = vmatprep.mubr.bf16.mxu0 %v1273
      %4470 = vmatmul.mubr.bf16.gmra.mrb[0].mxu0 %v1272
      %v4471 = vpop.f32.mrb[0].mxu0
      %v4472 = vadd.f32 %v4311, %v4471
      %v4473 = vpop.f32.mrb[0].mxu0
      %v4474 = vpop.f32.mrb[0].mxu0
      %v4475 = vadd.f32 %v4314, %v4474
      %v4476 = vpop.f32.mrb[0].mxu0
      %4477 = vmatprep.mubr.bf16.mxu0 %v1278
      %4478 = vmatmul.mubr.bf16.gmra.mrb[0].mxu0 %v1277
      %v4479 = vpop.f32.mrb[0].mxu0
      %v4480 = vadd.f32 %v4319, %v4479
      %v4481 = vpop.f32.mrb[0].mxu0
      %v4482 = vpop.f32.mrb[0].mxu0
      %v4483 = vadd.f32 %v4322, %v4482
      %v4484 = vpop.f32.mrb[0].mxu0
      %4485 = vmatprep.mubr.bf16.mxu0 %v1283
      %4486 = vmatmul.mubr.bf16.gmra.mrb[0].mxu0 %v1282
      %v4487 = vpop.f32.mrb[0].mxu0
      %v4488 = vadd.f32 %v4327, %v4487
      %v4489 = vpop.f32.mrb[0].mxu0
      %v4490 = vpop.f32.mrb[0].mxu0
      %v4491 = vadd.f32 %v4330, %v4490
      %v4492 = vpop.f32.mrb[0].mxu0
      %4493 = vmatprep.mubr.bf16.mxu0 %v1288
      %4494 = vmatmul.mubr.bf16.gmra.mrb[0].mxu0 %v1287
      %v4495 = vpop.f32.mrb[0].mxu0
      %v4496 = vadd.f32 %v4335, %v4495
      %v4497 = vpop.f32.mrb[0].mxu0
      %v4498 = vpop.f32.mrb[0].mxu0
      %v4499 = vadd.f32 %v4338, %v4498
      %v4500 = vpop.f32.mrb[0].mxu0
      %4501 = vmatprep.mubr.bf16.mxu0 %v1293
      %4502 = vmatmul.mubr.bf16.gmra.mrb[0].mxu0 %v1292
      %v4503 = vpop.f32.mrb[0].mxu0
      %v4504 = vadd.f32 %v4343, %v4503
      %v4505 = vpop.f32.mrb[0].mxu0
      %v4506 = vpop.f32.mrb[0].mxu0
      %v4507 = vadd.f32 %v4346, %v4506
      %v4508 = vpop.f32.mrb[0].mxu0
      %4509 = vmatprep.mubr.bf16.mxu0 %v1298
      %4510 = vmatmul.mubr.bf16.gmra.mrb[0].mxu0 %v1297
      %v4511 = vpop.f32.mrb[0].mxu0
      %v4512 = vadd.f32 %v4351, %v4511
      %v4513 = vpop.f32.mrb[0].mxu0
      %v4514 = vpop.f32.mrb[0].mxu0
      %v4515 = vadd.f32 %v4354, %v4514
      %v4516 = vpop.f32.mrb[0].mxu0
      %4517 = vmatprep.mubr.bf16.mxu0 %v1303
      %4518 = vmatmul.mubr.bf16.gmra.mrb[0].mxu0 %v1302
      %v4519 = vpop.f32.mrb[0].mxu0
      %v4520 = vadd.f32 %v4359, %v4519
      %v4521 = vpop.f32.mrb[0].mxu0
      %v4522 = vpop.f32.mrb[0].mxu0
      %v4523 = vadd.f32 %v4362, %v4522
      %v4524 = vpop.f32.mrb[0].mxu0
      %4525 = vdwg.mxu0
      %4526 = vmatprep.subr.bf16.mxu0 0
      %4527 = vmatpush1.bf16.msra.mxu0 %v2676
      %4528 = vmatprep.subr.bf16.mxu0 0
      %4529 = vmatpush1.bf16.msra.mxu0 %v2677
      %4530 = vmatprep.subr.bf16.mxu0 0
      %4531 = vmatpush1.bf16.msra.mxu0 %v2678
      %4532 = vmatprep.subr.bf16.mxu0 0
      %4533 = vmatpush1.bf16.msra.mxu0 %v2679
      %4534 = vmatprep.subr.bf16.mxu0 0
      %4535 = vmatpush1.bf16.msra.mxu0 %v2680
      %4536 = vmatprep.subr.bf16.mxu0 0
      %4537 = vmatpush1.bf16.msra.mxu0 %v2681
      %4538 = vmatprep.subr.bf16.mxu0 0
      %4539 = vmatpush1.bf16.msra.mxu0 %v2682
      %4540 = vmatprep.subr.bf16.mxu0 0
      %4541 = vmatpush1.bf16.msra.mxu0 %v2683
      %4542 = vmatprep.subr.bf16.mxu0 0
      %4543 = vmatpush1.bf16.msra.mxu0 %v2684
      %4544 = vmatprep.subr.bf16.mxu0 0
      %4545 = vmatpush1.bf16.msra.mxu0 %v2685
      %4546 = vmatprep.subr.bf16.mxu0 0
      %4547 = vmatpush1.bf16.msra.mxu0 %v2686
      %4548 = vmatprep.subr.bf16.mxu0 0
      %4549 = vmatpush1.bf16.msra.mxu0 %v2687
      %4550 = vmatprep.subr.bf16.mxu0 0
      %4551 = vmatpush1.bf16.msra.mxu0 %v2688
      %4552 = vmatprep.subr.bf16.mxu0 0
      %4553 = vmatpush1.bf16.msra.mxu0 %v2689
      %4554 = vmatprep.subr.bf16.mxu0 0
      %4555 = vmatpush1.bf16.msra.mxu0 %v2690
      %4556 = vmatprep.subr.bf16.mxu0 0
      %4557 = vmatpush1.bf16.msra.mxu0 %v2691
      %4558 = vmatprep.mubr.bf16.mxu0 %v1230
      %4559 = vmatmul.mubr.bf16.gmra.mrb[0].mxu0 %v1229
      %v4560 = vpop.f32.mrb[0].mxu0
      %v4561 = vadd.f32 %v4400, %v4560
      %v4562 = vpop.f32.mrb[0].mxu0
      %v4563 = vpop.f32.mrb[0].mxu0
      %v4564 = vadd.f32 %v4403, %v4563
      %v4565 = vpop.f32.mrb[0].mxu0
      %4566 = vmatprep.mubr.bf16.mxu0 %v1235
      %4567 = vmatmul.mubr.bf16.gmra.mrb[0].mxu0 %v1234
      %v4568 = vpop.f32.mrb[0].mxu0
      %v4569 = vadd.f32 %v4408, %v4568
      %v4570 = vpop.f32.mrb[0].mxu0
      %v4571 = vpop.f32.mrb[0].mxu0
      %v4572 = vadd.f32 %v4411, %v4571
      %v4573 = vpop.f32.mrb[0].mxu0
      %4574 = vmatprep.mubr.bf16.mxu0 %v1240
      %4575 = vmatmul.mubr.bf16.gmra.mrb[0].mxu0 %v1239
      %v4576 = vpop.f32.mrb[0].mxu0
      %v4577 = vadd.f32 %v4416, %v4576
      %v4578 = vpop.f32.mrb[0].mxu0
      %v4579 = vpop.f32.mrb[0].mxu0
      %v4580 = vadd.f32 %v4419, %v4579
      %v4581 = vpop.f32.mrb[0].mxu0
      %4582 = vmatprep.mubr.bf16.mxu0 %v1245
      %4583 = vmatmul.mubr.bf16.gmra.mrb[0].mxu0 %v1244
      %v4584 = vpop.f32.mrb[0].mxu0
      %v4585 = vadd.f32 %v4424, %v4584
      %v4586 = vpop.f32.mrb[0].mxu0
      %v4587 = vpop.f32.mrb[0].mxu0
      %v4588 = vadd.f32 %v4427, %v4587
      %v4589 = vpop.f32.mrb[0].mxu0
      %4590 = vmatprep.mubr.bf16.mxu0 %v1250
      %4591 = vmatmul.mubr.bf16.gmra.mrb[0].mxu0 %v1249
      %v4592 = vpop.f32.mrb[0].mxu0
      %v4593 = vadd.f32 %v4432, %v4592
      %v4594 = vpop.f32.mrb[0].mxu0
      %v4595 = vpop.f32.mrb[0].mxu0
      %v4596 = vadd.f32 %v4435, %v4595
      %v4597 = vpop.f32.mrb[0].mxu0
      %4598 = vmatprep.mubr.bf16.mxu0 %v1255
      %4599 = vmatmul.mubr.bf16.gmra.mrb[0].mxu0 %v1254
      %v4600 = vpop.f32.mrb[0].mxu0
      %v4601 = vadd.f32 %v4440, %v4600
      %v4602 = vpop.f32.mrb[0].mxu0
      %v4603 = vpop.f32.mrb[0].mxu0
      %v4604 = vadd.f32 %v4443, %v4603
      %v4605 = vpop.f32.mrb[0].mxu0
      %4606 = vmatprep.mubr.bf16.mxu0 %v1260
      %4607 = vmatmul.mubr.bf16.gmra.mrb[0].mxu0 %v1259
      %v4608 = vpop.f32.mrb[0].mxu0
      %v4609 = vadd.f32 %v4448, %v4608
      %v4610 = vpop.f32.mrb[0].mxu0
      %v4611 = vpop.f32.mrb[0].mxu0
      %v4612 = vadd.f32 %v4451, %v4611
      %v4613 = vpop.f32.mrb[0].mxu0
      %4614 = vmatprep.mubr.bf16.mxu0 %v1265
      %4615 = vmatmul.mubr.bf16.gmra.mrb[0].mxu0 %v1264
      %v4616 = vpop.f32.mrb[0].mxu0
      %v4617 = vadd.f32 %v4456, %v4616
      %v4618 = vpop.f32.mrb[0].mxu0
      %v4619 = vpop.f32.mrb[0].mxu0
      %v4620 = vadd.f32 %v4459, %v4619
      %v4621 = vpop.f32.mrb[0].mxu0
      %4622 = vmatprep.mubr.bf16.mxu0 %v1270
      %4623 = vmatmul.mubr.bf16.gmra.mrb[0].mxu0 %v1269
      %v4624 = vpop.f32.mrb[0].mxu0
      %v4625 = vadd.f32 %v4464, %v4624
      %v4626 = vpop.f32.mrb[0].mxu0
      %v4627 = vpop.f32.mrb[0].mxu0
      %v4628 = vadd.f32 %v4467, %v4627
      %v4629 = vpop.f32.mrb[0].mxu0
      %4630 = vmatprep.mubr.bf16.mxu0 %v1275
      %4631 = vmatmul.mubr.bf16.gmra.mrb[0].mxu0 %v1274
      %v4632 = vpop.f32.mrb[0].mxu0
      %v4633 = vadd.f32 %v4472, %v4632
      %v4634 = vpop.f32.mrb[0].mxu0
      %v4635 = vpop.f32.mrb[0].mxu0
      %v4636 = vadd.f32 %v4475, %v4635
      %v4637 = vpop.f32.mrb[0].mxu0
      %4638 = vmatprep.mubr.bf16.mxu0 %v1280
      %4639 = vmatmul.mubr.bf16.gmra.mrb[0].mxu0 %v1279
      %v4640 = vpop.f32.mrb[0].mxu0
      %v4641 = vadd.f32 %v4480, %v4640
      %v4642 = vpop.f32.mrb[0].mxu0
      %v4643 = vpop.f32.mrb[0].mxu0
      %v4644 = vadd.f32 %v4483, %v4643
      %v4645 = vpop.f32.mrb[0].mxu0
      %4646 = vmatprep.mubr.bf16.mxu0 %v1285
      %4647 = vmatmul.mubr.bf16.gmra.mrb[0].mxu0 %v1284
      %v4648 = vpop.f32.mrb[0].mxu0
      %v4649 = vadd.f32 %v4488, %v4648
      %v4650 = vpop.f32.mrb[0].mxu0
      %v4651 = vpop.f32.mrb[0].mxu0
      %v4652 = vadd.f32 %v4491, %v4651
      %v4653 = vpop.f32.mrb[0].mxu0
      %4654 = vmatprep.mubr.bf16.mxu0 %v1290
      %4655 = vmatmul.mubr.bf16.gmra.mrb[0].mxu0 %v1289
      %v4656 = vpop.f32.mrb[0].mxu0
      %v4657 = vadd.f32 %v4496, %v4656
      %v4658 = vpop.f32.mrb[0].mxu0
      %v4659 = vpop.f32.mrb[0].mxu0
      %v4660 = vadd.f32 %v4499, %v4659
      %v4661 = vpop.f32.mrb[0].mxu0
      %4662 = vmatprep.mubr.bf16.mxu0 %v1295
      %4663 = vmatmul.mubr.bf16.gmra.mrb[0].mxu0 %v1294
      %v4664 = vpop.f32.mrb[0].mxu0
      %v4665 = vadd.f32 %v4504, %v4664
      %v4666 = vpop.f32.mrb[0].mxu0
      %v4667 = vpop.f32.mrb[0].mxu0
      %v4668 = vadd.f32 %v4507, %v4667
      %v4669 = vpop.f32.mrb[0].mxu0
      %4670 = vmatprep.mubr.bf16.mxu0 %v1300
      %4671 = vmatmul.mubr.bf16.gmra.mrb[0].mxu0 %v1299
      %v4672 = vpop.f32.mrb[0].mxu0
      %v4673 = vadd.f32 %v4512, %v4672
      %v4674 = vpop.f32.mrb[0].mxu0
      %v4675 = vpop.f32.mrb[0].mxu0
      %v4676 = vadd.f32 %v4515, %v4675
      %v4677 = vpop.f32.mrb[0].mxu0
      %4678 = vmatprep.mubr.bf16.mxu0 %v1305
      %4679 = vmatmul.mubr.bf16.gmra.mrb[0].mxu0 %v1304
      %v4680 = vpop.f32.mrb[0].mxu0
      %v4681 = vadd.f32 %v4520, %v4680
      %v4682 = vpop.f32.mrb[0].mxu0
      %v4683 = vpop.f32.mrb[0].mxu0
      %v4684 = vadd.f32 %v4523, %v4683
      %v4685 = vpop.f32.mrb[0].mxu0
      %4686 = vdwg.mxu0
      %4687 = vmatprep.subr.bf16.mxu0 0
      %4688 = vmatpush1.bf16.msra.mxu0 %v2692
      %4689 = vmatprep.subr.bf16.mxu0 0
      %4690 = vmatpush1.bf16.msra.mxu0 %v2693
      %4691 = vmatprep.subr.bf16.mxu0 0
      %4692 = vmatpush1.bf16.msra.mxu0 %v2694
      %4693 = vmatprep.subr.bf16.mxu0 0
      %4694 = vmatpush1.bf16.msra.mxu0 %v2695
      %4695 = vmatprep.subr.bf16.mxu0 0
      %4696 = vmatpush1.bf16.msra.mxu0 %v2696
      %4697 = vmatprep.subr.bf16.mxu0 0
      %4698 = vmatpush1.bf16.msra.mxu0 %v2697
      %4699 = vmatprep.subr.bf16.mxu0 0
      %4700 = vmatpush1.bf16.msra.mxu0 %v2698
      %4701 = vmatprep.subr.bf16.mxu0 0
      %4702 = vmatpush1.bf16.msra.mxu0 %v2699
      %4703 = vmatprep.subr.bf16.mxu0 0
      %4704 = vmatpush1.bf16.msra.mxu0 %v2700
      %4705 = vmatprep.subr.bf16.mxu0 0
      %4706 = vmatpush1.bf16.msra.mxu0 %v2701
      %4707 = vmatprep.subr.bf16.mxu0 0
      %4708 = vmatpush1.bf16.msra.mxu0 %v2702
      %4709 = vmatprep.subr.bf16.mxu0 0
      %4710 = vmatpush1.bf16.msra.mxu0 %v2703
      %4711 = vmatprep.subr.bf16.mxu0 0
      %4712 = vmatpush1.bf16.msra.mxu0 %v2704
      %4713 = vmatprep.subr.bf16.mxu0 0
      %4714 = vmatpush1.bf16.msra.mxu0 %v2705
      %4715 = vmatprep.subr.bf16.mxu0 0
      %4716 = vmatpush1.bf16.msra.mxu0 %v2706
      %4717 = vmatprep.subr.bf16.mxu0 0
      %4718 = vmatpush1.bf16.msra.mxu0 %v2707
      %4719 = vmatprep.mubr.bf16.mxu0 %v1232
      %4720 = vmatmul.mubr.bf16.gmra.mrb[0].mxu0 %v1231
      %v4721 = vpop.f32.mrb[0].mxu0
      %v4722 = vadd.f32 %v4561, %v4721
      %v4723 = vpop.f32.mrb[0].mxu0
      %v4724 = vpop.f32.mrb[0].mxu0
      %v4725 = vadd.f32 %v4564, %v4724
      %v4726 = vpop.f32.mrb[0].mxu0
      %4727 = vmatprep.mubr.bf16.mxu0 %v1237
      %4728 = vmatmul.mubr.bf16.gmra.mrb[0].mxu0 %v1236
      %v4729 = vpop.f32.mrb[0].mxu0
      %v4730 = vadd.f32 %v4569, %v4729
      %v4731 = vpop.f32.mrb[0].mxu0
      %v4732 = vpop.f32.mrb[0].mxu0
      %v4733 = vadd.f32 %v4572, %v4732
      %v4734 = vpop.f32.mrb[0].mxu0
      %4735 = vmatprep.mubr.bf16.mxu0 %v1242
      %4736 = vmatmul.mubr.bf16.gmra.mrb[0].mxu0 %v1241
      %v4737 = vpop.f32.mrb[0].mxu0
      %v4738 = vadd.f32 %v4577, %v4737
      %v4739 = vpop.f32.mrb[0].mxu0
      %v4740 = vpop.f32.mrb[0].mxu0
      %v4741 = vadd.f32 %v4580, %v4740
      %v4742 = vpop.f32.mrb[0].mxu0
      %4743 = vmatprep.mubr.bf16.mxu0 %v1247
      %4744 = vmatmul.mubr.bf16.gmra.mrb[0].mxu0 %v1246
      %v4745 = vpop.f32.mrb[0].mxu0
      %v4746 = vadd.f32 %v4585, %v4745
      %v4747 = vpop.f32.mrb[0].mxu0
      %v4748 = vpop.f32.mrb[0].mxu0
      %v4749 = vadd.f32 %v4588, %v4748
      %v4750 = vpop.f32.mrb[0].mxu0
      %4751 = vmatprep.mubr.bf16.mxu0 %v1252
      %4752 = vmatmul.mubr.bf16.gmra.mrb[0].mxu0 %v1251
      %v4753 = vpop.f32.mrb[0].mxu0
      %v4754 = vadd.f32 %v4593, %v4753
      %v4755 = vpop.f32.mrb[0].mxu0
      %v4756 = vpop.f32.mrb[0].mxu0
      %v4757 = vadd.f32 %v4596, %v4756
      %v4758 = vpop.f32.mrb[0].mxu0
      %4759 = vmatprep.mubr.bf16.mxu0 %v1257
      %4760 = vmatmul.mubr.bf16.gmra.mrb[0].mxu0 %v1256
      %v4761 = vpop.f32.mrb[0].mxu0
      %v4762 = vadd.f32 %v4601, %v4761
      %v4763 = vpop.f32.mrb[0].mxu0
      %v4764 = vpop.f32.mrb[0].mxu0
      %v4765 = vadd.f32 %v4604, %v4764
      %v4766 = vpop.f32.mrb[0].mxu0
      %4767 = vmatprep.mubr.bf16.mxu0 %v1262
      %4768 = vmatmul.mubr.bf16.gmra.mrb[0].mxu0 %v1261
      %v4769 = vpop.f32.mrb[0].mxu0
      %v4770 = vadd.f32 %v4609, %v4769
      %v4771 = vpop.f32.mrb[0].mxu0
      %v4772 = vpop.f32.mrb[0].mxu0
      %v4773 = vadd.f32 %v4612, %v4772
      %v4774 = vpop.f32.mrb[0].mxu0
      %4775 = vmatprep.mubr.bf16.mxu0 %v1267
      %4776 = vmatmul.mubr.bf16.gmra.mrb[0].mxu0 %v1266
      %v4777 = vpop.f32.mrb[0].mxu0
      %v4778 = vadd.f32 %v4617, %v4777
      %v4779 = vpop.f32.mrb[0].mxu0
      %v4780 = vpop.f32.mrb[0].mxu0
      %v4781 = vadd.f32 %v4620, %v4780
      %v4782 = vpop.f32.mrb[0].mxu0
      %4783 = vmatprep.mubr.bf16.mxu0 %v1272
      %4784 = vmatmul.mubr.bf16.gmra.mrb[0].mxu0 %v1271
      %v4785 = vpop.f32.mrb[0].mxu0
      %v4786 = vadd.f32 %v4625, %v4785
      %v4787 = vpop.f32.mrb[0].mxu0
      %v4788 = vpop.f32.mrb[0].mxu0
      %v4789 = vadd.f32 %v4628, %v4788
      %v4790 = vpop.f32.mrb[0].mxu0
      %4791 = vmatprep.mubr.bf16.mxu0 %v1277
      %4792 = vmatmul.mubr.bf16.gmra.mrb[0].mxu0 %v1276
      %v4793 = vpop.f32.mrb[0].mxu0
      %v4794 = vadd.f32 %v4633, %v4793
      %v4795 = vpop.f32.mrb[0].mxu0
      %v4796 = vpop.f32.mrb[0].mxu0
      %v4797 = vadd.f32 %v4636, %v4796
      %v4798 = vpop.f32.mrb[0].mxu0
      %4799 = vmatprep.mubr.bf16.mxu0 %v1282
      %4800 = vmatmul.mubr.bf16.gmra.mrb[0].mxu0 %v1281
      %v4801 = vpop.f32.mrb[0].mxu0
      %v4802 = vadd.f32 %v4641, %v4801
      %v4803 = vpop.f32.mrb[0].mxu0
      %v4804 = vpop.f32.mrb[0].mxu0
      %v4805 = vadd.f32 %v4644, %v4804
      %v4806 = vpop.f32.mrb[0].mxu0
      %4807 = vmatprep.mubr.bf16.mxu0 %v1287
      %4808 = vmatmul.mubr.bf16.gmra.mrb[0].mxu0 %v1286
      %v4809 = vpop.f32.mrb[0].mxu0
      %v4810 = vadd.f32 %v4649, %v4809
      %v4811 = vpop.f32.mrb[0].mxu0
      %v4812 = vpop.f32.mrb[0].mxu0
      %v4813 = vadd.f32 %v4652, %v4812
      %v4814 = vpop.f32.mrb[0].mxu0
      %4815 = vmatprep.mubr.bf16.mxu0 %v1292
      %4816 = vmatmul.mubr.bf16.gmra.mrb[0].mxu0 %v1291
      %v4817 = vpop.f32.mrb[0].mxu0
      %v4818 = vadd.f32 %v4657, %v4817
      %v4819 = vpop.f32.mrb[0].mxu0
      %v4820 = vpop.f32.mrb[0].mxu0
      %v4821 = vadd.f32 %v4660, %v4820
      %v4822 = vpop.f32.mrb[0].mxu0
      %4823 = vmatprep.mubr.bf16.mxu0 %v1297
      %4824 = vmatmul.mubr.bf16.gmra.mrb[0].mxu0 %v1296
      %v4825 = vpop.f32.mrb[0].mxu0
      %v4826 = vadd.f32 %v4665, %v4825
      %v4827 = vpop.f32.mrb[0].mxu0
      %v4828 = vpop.f32.mrb[0].mxu0
      %v4829 = vadd.f32 %v4668, %v4828
      %v4830 = vpop.f32.mrb[0].mxu0
      %4831 = vmatprep.mubr.bf16.mxu0 %v1302
      %4832 = vmatmul.mubr.bf16.gmra.mrb[0].mxu0 %v1301
      %v4833 = vpop.f32.mrb[0].mxu0
      %v4834 = vadd.f32 %v4673, %v4833
      %v4835 = vpop.f32.mrb[0].mxu0
      %v4836 = vpop.f32.mrb[0].mxu0
      %v4837 = vadd.f32 %v4676, %v4836
      %v4838 = vpop.f32.mrb[0].mxu0
      %4839 = vmatprep.mubr.bf16.mxu0 %v1307
      %4840 = vmatmul.mubr.bf16.gmra.mrb[0].mxu0 %v1306
      %v4841 = vpop.f32.mrb[0].mxu0
      %v4842 = vadd.f32 %v4681, %v4841
      %v4843 = vpop.f32.mrb[0].mxu0
      %v4844 = vpop.f32.mrb[0].mxu0
      %v4845 = vadd.f32 %v4684, %v4844
      %v4846 = vpop.f32.mrb[0].mxu0
      %4847 = vdwg.mxu0
      %4848 = vmatprep.subr.bf16.mxu0 0
      %4849 = vmatpush1.bf16.msra.mxu0 %v2708
      %4850 = vmatprep.subr.bf16.mxu0 0
      %4851 = vmatpush1.bf16.msra.mxu0 %v2709
      %4852 = vmatprep.subr.bf16.mxu0 0
      %4853 = vmatpush1.bf16.msra.mxu0 %v2710
      %4854 = vmatprep.subr.bf16.mxu0 0
      %4855 = vmatpush1.bf16.msra.mxu0 %v2711
      %4856 = vmatprep.subr.bf16.mxu0 0
      %4857 = vmatpush1.bf16.msra.mxu0 %v2712
      %4858 = vmatprep.subr.bf16.mxu0 0
      %4859 = vmatpush1.bf16.msra.mxu0 %v2713
      %4860 = vmatprep.subr.bf16.mxu0 0
      %4861 = vmatpush1.bf16.msra.mxu0 %v2714
      %4862 = vmatprep.subr.bf16.mxu0 0
      %4863 = vmatpush1.bf16.msra.mxu0 %v2715
      %4864 = vmatprep.subr.bf16.mxu0 0
      %4865 = vmatpush1.bf16.msra.mxu0 0
      %4866 = vmatprep.subr.bf16.mxu0 0
      %4867 = vmatpush1.bf16.msra.mxu0 0
      %4868 = vmatprep.subr.bf16.mxu0 0
      %4869 = vmatpush1.bf16.msra.mxu0 0
      %4870 = vmatprep.subr.bf16.mxu0 0
      %4871 = vmatpush1.bf16.msra.mxu0 0
      %4872 = vmatprep.subr.bf16.mxu0 0
      %4873 = vmatpush1.bf16.msra.mxu0 0
      %4874 = vmatprep.subr.bf16.mxu0 0
      %4875 = vmatpush1.bf16.msra.mxu0 0
      %4876 = vmatprep.subr.bf16.mxu0 0
      %4877 = vmatpush1.bf16.msra.mxu0 0
      %4878 = vmatprep.subr.bf16.mxu0 0
      %4879 = vmatpush1.bf16.msra.mxu0 0
      %4880 = vmatprep.mubr.bf16.mxu0 0
      %4881 = vmatmul.mubr.bf16.gmra.mrb[0].mxu0 %v1233
      %v4882 = vpop.f32.mrb[0].mxu0
      %v4883 = vadd.f32 %v4722, %v4882
      %v4884 = vpop.f32.mrb[0].mxu0
      %v4885 = vpop.f32.mrb[0].mxu0
      %v4886 = vadd.f32 %v4725, %v4885
      %v4887 = vpop.f32.mrb[0].mxu0
      %4888 = vmatprep.mubr.bf16.mxu0 0
      %4889 = vmatmul.mubr.bf16.gmra.mrb[0].mxu0 %v1238
      %v4890 = vpop.f32.mrb[0].mxu0
      %v4891 = vadd.f32 %v4730, %v4890
      %v4892 = vpop.f32.mrb[0].mxu0
      %v4893 = vpop.f32.mrb[0].mxu0
      %v4894 = vadd.f32 %v4733, %v4893
      %v4895 = vpop.f32.mrb[0].mxu0
      %4896 = vmatprep.mubr.bf16.mxu0 0
      %4897 = vmatmul.mubr.bf16.gmra.mrb[0].mxu0 %v1243
      %v4898 = vpop.f32.mrb[0].mxu0
      %v4899 = vadd.f32 %v4738, %v4898
      %v4900 = vpop.f32.mrb[0].mxu0
      %v4901 = vpop.f32.mrb[0].mxu0
      %v4902 = vadd.f32 %v4741, %v4901
      %v4903 = vpop.f32.mrb[0].mxu0
      %4904 = vmatprep.mubr.bf16.mxu0 0
      %4905 = vmatmul.mubr.bf16.gmra.mrb[0].mxu0 %v1248
      %v4906 = vpop.f32.mrb[0].mxu0
      %v4907 = vadd.f32 %v4746, %v4906
      %v4908 = vpop.f32.mrb[0].mxu0
      %v4909 = vpop.f32.mrb[0].mxu0
      %v4910 = vadd.f32 %v4749, %v4909
      %v4911 = vpop.f32.mrb[0].mxu0
      %4912 = vmatprep.mubr.bf16.mxu0 0
      %4913 = vmatmul.mubr.bf16.gmra.mrb[0].mxu0 %v1253
      %v4914 = vpop.f32.mrb[0].mxu0
      %v4915 = vadd.f32 %v4754, %v4914
      %v4916 = vpop.f32.mrb[0].mxu0
      %v4917 = vpop.f32.mrb[0].mxu0
      %v4918 = vadd.f32 %v4757, %v4917
      %v4919 = vpop.f32.mrb[0].mxu0
      %4920 = vmatprep.mubr.bf16.mxu0 0
      %4921 = vmatmul.mubr.bf16.gmra.mrb[0].mxu0 %v1258
      %v4922 = vpop.f32.mrb[0].mxu0
      %v4923 = vadd.f32 %v4762, %v4922
      %v4924 = vpop.f32.mrb[0].mxu0
      %v4925 = vpop.f32.mrb[0].mxu0
      %v4926 = vadd.f32 %v4765, %v4925
      %v4927 = vpop.f32.mrb[0].mxu0
      %4928 = vmatprep.mubr.bf16.mxu0 0
      %4929 = vmatmul.mubr.bf16.gmra.mrb[0].mxu0 %v1263
      %v4930 = vpop.f32.mrb[0].mxu0
      %v4931 = vadd.f32 %v4770, %v4930
      %v4932 = vpop.f32.mrb[0].mxu0
      %v4933 = vpop.f32.mrb[0].mxu0
      %v4934 = vadd.f32 %v4773, %v4933
      %v4935 = vpop.f32.mrb[0].mxu0
      %4936 = vmatprep.mubr.bf16.mxu0 0
      %4937 = vmatmul.mubr.bf16.gmra.mrb[0].mxu0 %v1268
      %v4938 = vpop.f32.mrb[0].mxu0
      %v4939 = vadd.f32 %v4778, %v4938
      %v4940 = vpop.f32.mrb[0].mxu0
      %v4941 = vpop.f32.mrb[0].mxu0
      %v4942 = vadd.f32 %v4781, %v4941
      %v4943 = vpop.f32.mrb[0].mxu0
      %4944 = vmatprep.mubr.bf16.mxu0 0
      %4945 = vmatmul.mubr.bf16.gmra.mrb[0].mxu0 %v1273
      %v4946 = vpop.f32.mrb[0].mxu0
      %v4947 = vadd.f32 %v4786, %v4946
      %v4948 = vpop.f32.mrb[0].mxu0
      %v4949 = vpop.f32.mrb[0].mxu0
      %v4950 = vadd.f32 %v4789, %v4949
      %v4951 = vpop.f32.mrb[0].mxu0
      %4952 = vmatprep.mubr.bf16.mxu0 0
      %4953 = vmatmul.mubr.bf16.gmra.mrb[0].mxu0 %v1278
      %v4954 = vpop.f32.mrb[0].mxu0
      %v4955 = vadd.f32 %v4794, %v4954
      %v4956 = vpop.f32.mrb[0].mxu0
      %v4957 = vpop.f32.mrb[0].mxu0
      %v4958 = vadd.f32 %v4797, %v4957
      %v4959 = vpop.f32.mrb[0].mxu0
      %4960 = vmatprep.mubr.bf16.mxu0 0
      %4961 = vmatmul.mubr.bf16.gmra.mrb[0].mxu0 %v1283
      %v4962 = vpop.f32.mrb[0].mxu0
      %v4963 = vadd.f32 %v4802, %v4962
      %v4964 = vpop.f32.mrb[0].mxu0
      %v4965 = vpop.f32.mrb[0].mxu0
      %v4966 = vadd.f32 %v4805, %v4965
      %v4967 = vpop.f32.mrb[0].mxu0
      %4968 = vmatprep.mubr.bf16.mxu0 0
      %4969 = vmatmul.mubr.bf16.gmra.mrb[0].mxu0 %v1288
      %v4970 = vpop.f32.mrb[0].mxu0
      %v4971 = vadd.f32 %v4810, %v4970
      %v4972 = vpop.f32.mrb[0].mxu0
      %v4973 = vpop.f32.mrb[0].mxu0
      %v4974 = vadd.f32 %v4813, %v4973
      %v4975 = vpop.f32.mrb[0].mxu0
      %4976 = vmatprep.mubr.bf16.mxu0 0
      %4977 = vmatmul.mubr.bf16.gmra.mrb[0].mxu0 %v1293
      %v4978 = vpop.f32.mrb[0].mxu0
      %v4979 = vadd.f32 %v4818, %v4978
      %v4980 = vpop.f32.mrb[0].mxu0
      %v4981 = vpop.f32.mrb[0].mxu0
      %v4982 = vadd.f32 %v4821, %v4981
      %v4983 = vpop.f32.mrb[0].mxu0
      %4984 = vmatprep.mubr.bf16.mxu0 0
      %4985 = vmatmul.mubr.bf16.gmra.mrb[0].mxu0 %v1298
      %v4986 = vpop.f32.mrb[0].mxu0
      %v4987 = vadd.f32 %v4826, %v4986
      %v4988 = vpop.f32.mrb[0].mxu0
      %v4989 = vpop.f32.mrb[0].mxu0
      %v4990 = vadd.f32 %v4829, %v4989
      %v4991 = vpop.f32.mrb[0].mxu0
      %4992 = vmatprep.mubr.bf16.mxu0 0
      %4993 = vmatmul.mubr.bf16.gmra.mrb[0].mxu0 %v1303
      %v4994 = vpop.f32.mrb[0].mxu0
      %v4995 = vadd.f32 %v4834, %v4994
      %v4996 = vpop.f32.mrb[0].mxu0
      %v4997 = vpop.f32.mrb[0].mxu0
      %v4998 = vadd.f32 %v4837, %v4997
      %v4999 = vpop.f32.mrb[0].mxu0
      %5000 = vmatprep.mubr.bf16.mxu0 0
      %5001 = vmatmul.mubr.bf16.gmra.mrb[0].mxu0 %v1308
      %v5002 = vpop.f32.mrb[0].mxu0
      %v5003 = vadd.f32 %v4842, %v5002
      %v5004 = vpop.f32.mrb[0].mxu0
      %v5005 = vpop.f32.mrb[0].mxu0
      %v5006 = vadd.f32 %v4845, %v5005
      %v5007 = vpop.f32.mrb[0].mxu0
      %5008 = vdwg.mxu0
      %5009 = vst [vmem:[%s276] sm:$0xff] %v4883
      %5010 = vst [vmem:[%s276 + $0x8] sm:$0xff] %v4886
      %5011 = vst [vmem:[%s276 + $0x10] sm:$0xff] %v4891
      %5012 = vst [vmem:[%s276 + $0x18] sm:$0xff] %v4894
      %5013 = vst [vmem:[%s276 + $0x20] sm:$0xff] %v4899
      %5014 = vst [vmem:[%s276 + $0x28] sm:$0xff] %v4902
      %5015 = vst [vmem:[%s276 + $0x30] sm:$0xff] %v4907
      %5016 = vst [vmem:[%s276 + $0x38] sm:$0xff] %v4910
      %5017 = vst [vmem:[%s276 + $0x40] sm:$0xff] %v4915
      %5018 = vst [vmem:[%s276 + $0x48] sm:$0xff] %v4918
      %5019 = vst [vmem:[%s276 + $0x50] sm:$0xff] %v4923
      %5020 = vst [vmem:[%s276 + $0x58] sm:$0xff] %v4926
      %5021 = vst [vmem:[%s276 + $0x60] sm:$0xff] %v4931
      %5022 = vst [vmem:[%s276 + $0x68] sm:$0xff] %v4934
      %5023 = vst [vmem:[%s276 + $0x70] sm:$0xff] %v4939
      %5024 = vst [vmem:[%s276 + $0x78] sm:$0xff] %v4942
      %5025 = vst [vmem:[%s276 + $0x80] sm:$0xff] %v4947
      %5026 = vst [vmem:[%s276 + $0x88] sm:$0xff] %v4950
      %5027 = vst [vmem:[%s276 + $0x90] sm:$0xff] %v4955
      %5028 = vst [vmem:[%s276 + $0x98] sm:$0xff] %v4958
      %5029 = vst [vmem:[%s276 + $0xa0] sm:$0xff] %v4963
      %5030 = vst [vmem:[%s276 + $0xa8] sm:$0xff] %v4966
      %5031 = vst [vmem:[%s276 + $0xb0] sm:$0xff] %v4971
      %5032 = vst [vmem:[%s276 + $0xb8] sm:$0xff] %v4974
      %5033 = vst [vmem:[%s276 + $0xc0] sm:$0xff] %v4979
      %5034 = vst [vmem:[%s276 + $0xc8] sm:$0xff] %v4982
      %5035 = vst [vmem:[%s276 + $0xd0] sm:$0xff] %v4987
      %5036 = vst [vmem:[%s276 + $0xd8] sm:$0xff] %v4990
      %5037 = vst [vmem:[%s276 + $0xe0] sm:$0xff] %v4995
      %5038 = vst [vmem:[%s276 + $0xe8] sm:$0xff] %v4998
      %5039 = vst [vmem:[%s276 + $0xf0] sm:$0xff] %v5003
      %5040 = vst [vmem:[%s276 + $0xf8] sm:$0xff] %v5006
      %p5041 = scmp.eq.s32.totalorder %s19, 0
      // Predicated region
      $region45: #{resblock_pallas.4} parent=43 // pred_check
        %p5042 = pneg %p5041
      $region46: #{resblock_pallas.4} parent=43 // pred_check_branch
        %5044 = sbr.rel (%p5042) target = $region48
      $region47: #{resblock_pallas.4} parent=43 // pred_region
        %5045 = vst [vmem:[%s7] sm:$0x3] 0.0
      $region48: #{resblock_pallas.4} parent=43 // pred_fallthru
        _
      %v5046 = vld [vmem:[%s7] sm:$0x3]
      %v5047 = vadd.f32 %v4883, %v4886
      %v5048 = vadd.f32 %v5047, %v4891
      %v5049 = vadd.f32 %v5048, %v4894
      %v5050 = vadd.f32 %v5049, %v4899
      %v5051 = vadd.f32 %v5050, %v4902
      %v5052 = vadd.f32 %v5051, %v4907
      %v5053 = vadd.f32 %v5052, %v4910
      %v5054 = vadd.f32 %v5053, %v4915
      %v5055 = vadd.f32 %v5054, %v4918
      %v5056 = vadd.f32 %v5055, %v4923
      %v5057 = vadd.f32 %v5056, %v4926
      %v5058 = vadd.f32 %v5057, %v4931
      %v5059 = vadd.f32 %v5058, %v4934
      %v5060 = vadd.f32 %v5059, %v4939
      %v5061 = vadd.f32 %v5060, %v4942
      %v5062 = vadd.f32 %v5061, %v4947
      %v5063 = vadd.f32 %v5062, %v4950
      %v5064 = vadd.f32 %v5063, %v4955
      %v5065 = vadd.f32 %v5064, %v4958
      %v5066 = vadd.f32 %v5065, %v4963
      %v5067 = vadd.f32 %v5066, %v4966
      %v5068 = vadd.f32 %v5067, %v4971
      %v5069 = vadd.f32 %v5068, %v4974
      %v5070 = vadd.f32 %v5069, %v4979
      %v5071 = vadd.f32 %v5070, %v4982
      %v5072 = vadd.f32 %v5071, %v4987
      %v5073 = vadd.f32 %v5072, %v4990
      %v5074 = vadd.f32 %v5073, %v4995
      %v5075 = vadd.f32 %v5074, %v4998
      %v5076 = vadd.f32 %v5075, %v5003
      %v5077 = vadd.f32 %v5076, %v5006
      %v5078 = vrot.slane %v5077, 4
      %v5079 = vadd.f32 %v5077, %v5078
      %v5080 = vrot.slane %v5079, 2
      %v5081 = vadd.f32 %v5079, %v5080
      %v5082 = vrot.slane %v5081, 1
      %v5083 = vadd.f32 %v5081, %v5082
      %v5084 = vmul.f32 %v4883, %v4883
      %v5085 = vmul.f32 %v4886, %v4886
      %v5086 = vmul.f32 %v4891, %v4891
      %v5087 = vmul.f32 %v4894, %v4894
      %v5088 = vmul.f32 %v4899, %v4899
      %v5089 = vmul.f32 %v4902, %v4902
      %v5090 = vmul.f32 %v4907, %v4907
      %v5091 = vmul.f32 %v4910, %v4910
      %v5092 = vmul.f32 %v4915, %v4915
      %v5093 = vmul.f32 %v4918, %v4918
      %v5094 = vmul.f32 %v4923, %v4923
      %v5095 = vmul.f32 %v4926, %v4926
      %v5096 = vmul.f32 %v4931, %v4931
      %v5097 = vmul.f32 %v4934, %v4934
      %v5098 = vmul.f32 %v4939, %v4939
      %v5099 = vmul.f32 %v4942, %v4942
      %v5100 = vmul.f32 %v4947, %v4947
      %v5101 = vmul.f32 %v4950, %v4950
      %v5102 = vmul.f32 %v4955, %v4955
      %v5103 = vmul.f32 %v4958, %v4958
      %v5104 = vmul.f32 %v4963, %v4963
      %v5105 = vmul.f32 %v4966, %v4966
      %v5106 = vmul.f32 %v4971, %v4971
      %v5107 = vmul.f32 %v4974, %v4974
      %v5108 = vmul.f32 %v4979, %v4979
      %v5109 = vmul.f32 %v4982, %v4982
      %v5110 = vmul.f32 %v4987, %v4987
      %v5111 = vmul.f32 %v4990, %v4990
      %v5112 = vmul.f32 %v4995, %v4995
      %v5113 = vmul.f32 %v4998, %v4998
      %v5114 = vmul.f32 %v5003, %v5003
      %v5115 = vmul.f32 %v5006, %v5006
      %v5116 = vadd.f32 %v5084, %v5085
      %v5117 = vadd.f32 %v5116, %v5086
      %v5118 = vadd.f32 %v5117, %v5087
      %v5119 = vadd.f32 %v5118, %v5088
      %v5120 = vadd.f32 %v5119, %v5089
      %v5121 = vadd.f32 %v5120, %v5090
      %v5122 = vadd.f32 %v5121, %v5091
      %v5123 = vadd.f32 %v5122, %v5092
      %v5124 = vadd.f32 %v5123, %v5093
      %v5125 = vadd.f32 %v5124, %v5094
      %v5126 = vadd.f32 %v5125, %v5095
      %v5127 = vadd.f32 %v5126, %v5096
      %v5128 = vadd.f32 %v5127, %v5097
      %v5129 = vadd.f32 %v5128, %v5098
      %v5130 = vadd.f32 %v5129, %v5099
      %v5131 = vadd.f32 %v5130, %v5100
      %v5132 = vadd.f32 %v5131, %v5101
      %v5133 = vadd.f32 %v5132, %v5102
      %v5134 = vadd.f32 %v5133, %v5103
      %v5135 = vadd.f32 %v5134, %v5104
      %v5136 = vadd.f32 %v5135, %v5105
      %v5137 = vadd.f32 %v5136, %v5106
      %v5138 = vadd.f32 %v5137, %v5107
      %v5139 = vadd.f32 %v5138, %v5108
      %v5140 = vadd.f32 %v5139, %v5109
      %v5141 = vadd.f32 %v5140, %v5110
      %v5142 = vadd.f32 %v5141, %v5111
      %v5143 = vadd.f32 %v5142, %v5112
      %v5144 = vadd.f32 %v5143, %v5113
      %v5145 = vadd.f32 %v5144, %v5114
      %v5146 = vadd.f32 %v5145, %v5115
      %v5147 = vrot.slane %v5146, 4
      %v5148 = vadd.f32 %v5146, %v5147
      %v5149 = vrot.slane %v5148, 2
      %v5150 = vadd.f32 %v5148, %v5149
      %v5151 = vrot.slane %v5150, 1
      %v5152 = vadd.f32 %v5150, %v5151
      %vm5153 = vcmask 1040384
      %v5154 = vsel %vm5153, %v5083, %v5152
      %v5155 = vadd.f32 %v5046, %v5154
      %5156 = vst [vmem:[%s7] sm:$0x3] %v5155
      %p5157 = scmp.lt.s32.totalorder %s19, 1
      %s5158 = scalar_select %p5157, %s19, 1
      %s5159 = smul.addr %s5158, 32
      %s5160 = smul.addr %s5159, 8
      %s5161 = scalar_lea.vmem %s6, %s5160
      // Predicated region
      $region49: #{resblock_pallas.4} parent=43 // pred_check
        %p5162 = pneg %p168
      $region50: #{resblock_pallas.4} parent=43 // pred_check_branch
        %5164 = sbr.rel (%p5162) target = $region52
      $region51: #{resblock_pallas.4} parent=43 // pred_region
        _
      $region52: #{resblock_pallas.4} parent=43 // pred_fallthru
        _
      // Predicated region
      $region53: #{resblock_pallas.4} parent=43 // pred_check
        %p5165 = pneg %p189
      $region54: #{resblock_pallas.4} parent=43 // pred_check_branch
        %5167 = sbr.rel (%p5165) target = $region56
      $region55: #{resblock_pallas.4} parent=43 // pred_region
        _
      $region56: #{resblock_pallas.4} parent=43 // pred_fallthru
        _
      // Predicated region
      $region57: #{resblock_pallas.4} parent=43 // pred_check
        %p5168 = pneg %p189
      $region58: #{resblock_pallas.4} parent=43 // pred_check_branch
        %5170 = sbr.rel (%p5168) target = $region60
      $region59: #{resblock_pallas.4} parent=43 // pred_region
        _
      $region60: #{resblock_pallas.4} parent=43 // pred_fallthru
        _
    $region44: #{resblock_pallas.4} parent=5 // pred_fallthru
      _
    %p5171 = scmp.le.s32.totalorder 2, %s14
    // Predicated region
    $region61: #{resblock_pallas.4} parent=5 // pred_check
      %p5172 = pneg %p5171
    $region62: #{resblock_pallas.4} parent=5 // pred_check_branch
      %5174 = sbr.rel (%p5172) target = $region64
    $region63: #{resblock_pallas.4} parent=5 // pred_region
      %s5175 = ssub.s32 %s14, 2
      // Predicated region
      $region65: #{resblock_pallas.4} parent=63 // pred_check
        %p5176 = pneg %p174
      $region66: #{resblock_pallas.4} parent=63 // pred_check_branch
        %5178 = sbr.rel (%p5176) target = $region68
      $region67: #{resblock_pallas.4} parent=63 // pred_region
        %p5179 = scmp.lt.s32.totalorder %s20, 1
        %s5180 = scalar_select %p5179, %s20, 1
        %s5181 = smul.addr %s5180, 32
        %s5182 = smul.addr %s5181, 8
        %s5183 = scalar_lea.vmem %s6, %s5182
      $region68: #{resblock_pallas.4} parent=63 // pred_fallthru
        _
    $region64: #{resblock_pallas.4} parent=5 // pred_fallthru
      _
  $region6: #{resblock_pallas.4} parent=0 // loop_footer
    %s18 = sadd.s32 1, %s14
  $region7: #{resblock_pallas.4} parent=0 // loop_footer_branch
    %13 = sbr.rel target = $region3
  $region8: #{resblock_pallas.4} parent=0 // loop_exit
    _

// kernel: resblock_pallas.3
$region0: #{resblock_pallas.3}
  #allocation0 [shape = 'u32[]', space=smem, size = 0x4, offset = 0x4, fixed_abs, tag = 'smem constant byte address 0x4 - core index']
  #allocation1 [shape = 'u32[144,128]{1,0:T(1,128)}', space=vmem, size = 0x12000, scoped, tag = 'internal scratch']
  %s0 = inlined_call_operand.vmem [shape: f32[2,20,20,128], index: 0, kind: input, shape index: {}]
  %s1 = inlined_call_operand.vmem [shape: bf16[3200,128], index: 1, kind: input, shape index: {}]
  %s2 = inlined_call_operand.vmem [shape: f32[1,128], index: 2, kind: input, shape index: {}]
  %s3 = inlined_call_operand.vmem [shape: f32[2,16,16,128], index: 3, kind: output, shape index: {0}]
  %s4 = inlined_call_operand.vmem [shape: f32[2,128], index: 4, kind: output, shape index: {1}]
  %5 = xla_tuple %s3, %s4
  %s6 = sld [smem:[#allocation0]]
  $region57: #{resblock_pallas.3} parent=0
    _
  %s8 = ssub.s32 1, %s6
  %s9 = scalar_select 0, %s8, %s6
  loop: start=0, step=1, limit=4
  $region2: #{resblock_pallas.3} parent=0 // loop_pre_header
    _
  $region3: #{resblock_pallas.3} parent=0 // loop_header
    %s11 = sphi 0, %s15
    %p12 = scmp.ge.s32.totalorder %s11, 4
    %s21 = sphi 0, %s23
    %s24 = sphi 0, %s21
    %s25 = sphi 0, %s24
    %s41 = sphi 0, %s25
    %s45 = sphi 0, %s45
    %s47 = sphi 0, %s45
    %s48 = sphi 0, %s47
    %s62 = sphi 0, %s48
    %s66 = sphi 0, %s66
    %s68 = sphi 0, %s66
    %s69 = sphi 0, %s68
    %s83 = sphi 0, %s69
    %s89 = sphi 0, %s91
    %s92 = sphi 0, %s89
    %s93 = sphi 0, %s92
    %s109 = sphi 0, %s93
    %s113 = sphi 0, %s113
    %s115 = sphi 0, %s113
    %s116 = sphi 0, %s115
    %s130 = sphi 0, %s116
  $region4: #{resblock_pallas.3} parent=0 // loop_header_branch
    %14 = sbr.rel (%p12) target = $region8
  $region5: #{resblock_pallas.3} parent=0 // loop_body
    %s16 = ssub.s32 %s11, 1
    %s17 = ssub.s32 %s11, 2
    %s18 = sadd.s32 %s11, 1
    %s19 = ssub.s32 %s11, %s18
    %p20 = scmp.eq.s32.totalorder %s19, 0
    %s22 = sadd.s32 %s21, 1
    %s23 = scalar_select %p20, %s21, %s22
    %p26 = pneg %p20
    %p27 = scmp.eq.s32.totalorder %s11, 1
    %p28 = por %p26, %p27
    %p29 = scmp.ne.s32.totalorder %s21, %s24
    %p30 = scmp.eq.s32.totalorder %s11, 0
    %p31 = por %p29, %p30
    %p32 = scmp.ne.s32.totalorder %s21, %s24
    %p33 = scmp.eq.s32.totalorder %s16, 1
    %p34 = por %p32, %p33
    %p35 = scmp.ne.s32.totalorder %s24, %s25
    %p36 = scmp.eq.s32.totalorder %s16, 0
    %p37 = por %p35, %p36
    %p38 = scmp.ne.s32.totalorder %s24, %s25
    %p39 = scmp.eq.s32.totalorder %s17, 1
    %p40 = por %p38, %p39
    %p42 = scmp.ne.s32.totalorder %s25, %s41
    %p43 = scmp.eq.s32.totalorder %s17, 0
    %p44 = por %p42, %p43
    %s46 = sadd.s32 %s45, 1
    %p49 = scmp.eq.s32.totalorder %s11, 1
    %p50 = scmp.ne.s32.totalorder %s45, %s47
    %p51 = scmp.eq.s32.totalorder %s11, 0
    %p52 = por %p50, %p51
    %p53 = scmp.ne.s32.totalorder %s45, %s47
    %p54 = scmp.eq.s32.totalorder %s16, 1
    %p55 = por %p53, %p54
    %p56 = scmp.ne.s32.totalorder %s47, %s48
    %p57 = scmp.eq.s32.totalorder %s16, 0
    %p58 = por %p56, %p57
    %p59 = scmp.ne.s32.totalorder %s47, %s48
    %p60 = scmp.eq.s32.totalorder %s17, 1
    %p61 = por %p59, %p60
    %p63 = scmp.ne.s32.totalorder %s48, %s62
    %p64 = scmp.eq.s32.totalorder %s17, 0
    %p65 = por %p63, %p64
    %s67 = sadd.s32 %s66, 1
    %p70 = scmp.eq.s32.totalorder %s11, 1
    %p71 = scmp.ne.s32.totalorder %s66, %s68
    %p72 = scmp.eq.s32.totalorder %s11, 0
    %p73 = por %p71, %p72
    %p74 = scmp.ne.s32.totalorder %s66, %s68
    %p75 = scmp.eq.s32.totalorder %s16, 1
    %p76 = por %p74, %p75
    %p77 = scmp.ne.s32.totalorder %s68, %s69
    %p78 = scmp.eq.s32.totalorder %s16, 0
    %p79 = por %p77, %p78
    %p80 = scmp.ne.s32.totalorder %s68, %s69
    %p81 = scmp.eq.s32.totalorder %s17, 1
    %p82 = por %p80, %p81
    %p84 = scmp.ne.s32.totalorder %s69, %s83
    %p85 = scmp.eq.s32.totalorder %s17, 0
    %p86 = por %p84, %p85
    %s87 = ssub.s32 %s11, %s18
    %p88 = scmp.eq.s32.totalorder %s87, 0
    %s90 = sadd.s32 %s89, 1
    %s91 = scalar_select %p88, %s89, %s90
    %p94 = pneg %p88
    %p95 = scmp.eq.s32.totalorder %s11, 1
    %p96 = por %p94, %p95
    %p97 = scmp.ne.s32.totalorder %s89, %s92
    %p98 = scmp.eq.s32.totalorder %s11, 0
    %p99 = por %p97, %p98
    %p100 = scmp.ne.s32.totalorder %s89, %s92
    %p101 = scmp.eq.s32.totalorder %s16, 1
    %p102 = por %p100, %p101
    %p103 = scmp.ne.s32.totalorder %s92, %s93
    %p104 = scmp.eq.s32.totalorder %s16, 0
    %p105 = por %p103, %p104
    %p106 = scmp.ne.s32.totalorder %s92, %s93
    %p107 = scmp.eq.s32.totalorder %s17, 1
    %p108 = por %p106, %p107
    %p110 = scmp.ne.s32.totalorder %s93, %s109
    %p111 = scmp.eq.s32.totalorder %s17, 0
    %p112 = por %p110, %p111
    %s114 = sadd.s32 %s113, 1
    %p117 = scmp.eq.s32.totalorder %s11, 1
    %p118 = scmp.ne.s32.totalorder %s113, %s115
    %p119 = scmp.eq.s32.totalorder %s11, 0
    %p120 = por %p118, %p119
    %p121 = scmp.ne.s32.totalorder %s113, %s115
    %p122 = scmp.eq.s32.totalorder %s16, 1
    %p123 = por %p121, %p122
    %p124 = scmp.ne.s32.totalorder %s115, %s116
    %p125 = scmp.eq.s32.totalorder %s16, 0
    %p126 = por %p124, %p125
    %p127 = scmp.ne.s32.totalorder %s115, %s116
    %p128 = scmp.eq.s32.totalorder %s17, 1
    %p129 = por %p127, %p128
    %p131 = scmp.ne.s32.totalorder %s116, %s130
    %p132 = scmp.eq.s32.totalorder %s17, 0
    %p133 = por %p131, %p132
    %p134 = scmp.le.s32.totalorder 1, %s11
    %p135 = scmp.lt.s32.totalorder %s11, 3
    %p136 = pnand %p134, %p135
    %p137 = pneg %p136
    // Predicated region
    $region9: #{resblock_pallas.3} parent=5 // pred_check
      _
    $region10: #{resblock_pallas.3} parent=5 // pred_check_branch
      %139 = sbr.rel (%p136) target = $region12
    $region11: #{resblock_pallas.3} parent=5 // pred_region
      %s140 = ssub.s32 %s11, 1
      // Predicated region
      $region13: #{resblock_pallas.3} parent=11 // pred_check
        %p141 = pneg %p58
      $region14: #{resblock_pallas.3} parent=11 // pred_check_branch
        %143 = sbr.rel (%p141) target = $region16
      $region15: #{resblock_pallas.3} parent=11 // pred_region
        _
      $region16: #{resblock_pallas.3} parent=11 // pred_fallthru
        _
      // Predicated region
      $region17: #{resblock_pallas.3} parent=11 // pred_check
        %p144 = pneg %p79
      $region18: #{resblock_pallas.3} parent=11 // pred_check_branch
        %146 = sbr.rel (%p144) target = $region20
      $region19: #{resblock_pallas.3} parent=11 // pred_region
        _
      $region20: #{resblock_pallas.3} parent=11 // pred_fallthru
        _
    $region12: #{resblock_pallas.3} parent=5 // pred_fallthru
      _
    %p147 = scmp.lt.s32.totalorder %s11, 2
    // Predicated region
    $region21: #{resblock_pallas.3} parent=5 // pred_check
      %p148 = pneg %p147
    $region22: #{resblock_pallas.3} parent=5 // pred_check_branch
      %150 = sbr.rel (%p148) target = $region24
    $region23: #{resblock_pallas.3} parent=5 // pred_region
      // Predicated region
      $region25: #{resblock_pallas.3} parent=23 // pred_check
        %p151 = pneg %p31
      $region26: #{resblock_pallas.3} parent=23 // pred_check_branch
        %153 = sbr.rel (%p151) target = $region28
      $region27: #{resblock_pallas.3} parent=23 // pred_region
        %p154 = scmp.lt.s32.totalorder %s11, 1
        %s155 = scalar_select %p154, %s11, 1
        %s156 = smul.addr %s155, 60
        %s157 = smul.addr %s156, 8
        %s158 = scalar_lea.vmem %s0, %s157
      $region28: #{resblock_pallas.3} parent=23 // pred_fallthru
        _
    $region24: #{resblock_pallas.3} parent=5 // pred_fallthru
      _
    %p159 = scmp.le.s32.totalorder 1, %s11
    %p160 = scmp.lt.s32.totalorder %s11, 3
    %p161 = pnand %p159, %p160
    %p162 = pneg %p161
    // Predicated region
    $region29: #{resblock_pallas.3} parent=5 // pred_check
      _
    $region30: #{resblock_pallas.3} parent=5 // pred_check_branch
      %164 = sbr.rel (%p161) target = $region32
    $region31: #{resblock_pallas.3} parent=5 // pred_region
      %s165 = ssub.s32 %s11, 1
      %p166 = scmp.lt.s32.totalorder %s16, 1
      %s167 = scalar_select %p166, %s16, 1
      %s168 = smul.addr %s167, 60
      %s169 = smul.addr %s168, 8
      %s170 = scalar_lea.vmem %s0, %s169
      %p171 = pneg %p37
      %p172 = pneg %p34
      %p173 = pneg %p58
      %p174 = pneg %p55
      %p175 = pneg %p79
      %p176 = pneg %p76
      %p177 = pneg %p105
      %p178 = pneg %p102
      %p179 = scmp.lt.s32.totalorder %s16, 1
      %s180 = scalar_select %p179, %s16, 1
      %s181 = smul.addr %s180, 32
      %s182 = smul.addr %s181, 8
      %s183 = scalar_lea.vmem %s3, %s182
      %p184 = pneg %p126
      %p185 = pneg %p123
      %p186 = scmp.lt.s32.totalorder %s16, 1
      %s187 = scalar_select %p186, %s16, 1
      %s188 = smul.addr %s187, 60
      %s189 = smul.addr %s188, 8
      %s190 = scalar_lea.vmem %s0, %s189
      %p191 = scmp.lt.s32.totalorder %s16, 1
      %s192 = scalar_select %p191, %s16, 1
      %s193 = smul.addr %s192, 32
      %s194 = smul.addr %s193, 8
      %s195 = scalar_lea.vmem %s3, %s194
      %v197 = vld [vmem:[%s190] sm:$0xff]
      %v198 = vld [vmem:[%s190 + $0x8] sm:$0xff]
      %v199 = vld [vmem:[%s190 + $0x10] sm:$0xf]
      %v200 = vld [vmem:[%s190 + $0x18] sm:$0xff]
      %v201 = vld [vmem:[%s190 + $0x20] sm:$0xff]
      %v202 = vld [vmem:[%s190 + $0x28] sm:$0xf]
      %v203 = vld [vmem:[%s190 + $0x30] sm:$0xff]
      %v204 = vld [vmem:[%s190 + $0x38] sm:$0xff]
      %v205 = vld [vmem:[%s190 + $0x40] sm:$0xf]
      %v206 = vld [vmem:[%s190 + $0x48] sm:$0xff]
      %v207 = vld [vmem:[%s190 + $0x50] sm:$0xff]
      %v208 = vld [vmem:[%s190 + $0x58] sm:$0xf]
      %v209 = vld [vmem:[%s190 + $0x60] sm:$0xff]
      %v210 = vld [vmem:[%s190 + $0x68] sm:$0xff]
      %v211 = vld [vmem:[%s190 + $0x70] sm:$0xf]
      %v212 = vld [vmem:[%s190 + $0x78] sm:$0xff]
      %v213 = vld [vmem:[%s190 + $0x80] sm:$0xff]
      %v214 = vld [vmem:[%s190 + $0x88] sm:$0xf]
      %v215 = vld [vmem:[%s190 + $0x90] sm:$0xff]
      %v216 = vld [vmem:[%s190 + $0x98] sm:$0xff]
      %v217 = vld [vmem:[%s190 + $0xa0] sm:$0xf]
      %v218 = vld [vmem:[%s190 + $0xa8] sm:$0xff]
      %v219 = vld [vmem:[%s190 + $0xb0] sm:$0xff]
      %v220 = vld [vmem:[%s190 + $0xb8] sm:$0xf]
      %v221 = vld [vmem:[%s190 + $0xc0] sm:$0xff]
      %v222 = vld [vmem:[%s190 + $0xc8] sm:$0xff]
      %v223 = vld [vmem:[%s190 + $0xd0] sm:$0xf]
      %v224 = vld [vmem:[%s190 + $0xd8] sm:$0xff]
      %v225 = vld [vmem:[%s190 + $0xe0] sm:$0xff]
      %v226 = vld [vmem:[%s190 + $0xe8] sm:$0xf]
      %v227 = vld [vmem:[%s190 + $0xf0] sm:$0xff]
      %v228 = vld [vmem:[%s190 + $0xf8] sm:$0xff]
      %v229 = vld [vmem:[%s190 + $0x100] sm:$0xf]
      %v230 = vld [vmem:[%s190 + $0x108] sm:$0xff]
      %v231 = vld [vmem:[%s190 + $0x110] sm:$0xff]
      %v232 = vld [vmem:[%s190 + $0x118] sm:$0xf]
      %v233 = vld [vmem:[%s190 + $0x120] sm:$0xff]
      %v234 = vld [vmem:[%s190 + $0x128] sm:$0xff]
      %v235 = vld [vmem:[%s190 + $0x130] sm:$0xf]
      %v236 = vld [vmem:[%s190 + $0x138] sm:$0xff]
      %v237 = vld [vmem:[%s190 + $0x140] sm:$0xff]
      %v238 = vld [vmem:[%s190 + $0x148] sm:$0xf]
      %v239 = vld [vmem:[%s190 + $0x150] sm:$0xff]
      %v240 = vld [vmem:[%s190 + $0x158] sm:$0xff]
      %v241 = vld [vmem:[%s190 + $0x160] sm:$0xf]
      %v242 = vld [vmem:[%s190 + $0x168] sm:$0xff]
      %v243 = vld [vmem:[%s190 + $0x170] sm:$0xff]
      %v244 = vld [vmem:[%s190 + $0x178] sm:$0xf]
      %v245 = vld [vmem:[%s190 + $0x180] sm:$0xff]
      %v246 = vld [vmem:[%s190 + $0x188] sm:$0xff]
      %v247 = vld [vmem:[%s190 + $0x190] sm:$0xf]
      %v248 = vld [vmem:[%s190 + $0x198] sm:$0xff]
      %v249 = vld [vmem:[%s190 + $0x1a0] sm:$0xff]
      %v250 = vld [vmem:[%s190 + $0x1a8] sm:$0xf]
      %v251 = vld [vmem:[%s190 + $0x1b0] sm:$0xff]
      %v252 = vld [vmem:[%s190 + $0x1b8] sm:$0xff]
      %v253 = vld [vmem:[%s190 + $0x1c0] sm:$0xf]
      %v254 = vld [vmem:[%s190 + $0x1c8] sm:$0xff]
      %v255 = vld [vmem:[%s190 + $0x1d0] sm:$0xff]
      %v256 = vld [vmem:[%s190 + $0x1d8] sm:$0xf]
      %vm305 = vcmask 1046528
      %v306 = vrot.slane %v197, 1
      %v307 = vrot.slane %v198, 1
      %v308 = vsel %vm305, %v306, %v307
      %v309 = vrot.slane %v199, 1
      %v310 = vsel %vm305, %v307, %v309
      %v311 = vrot.slane %v200, 1
      %v312 = vrot.slane %v201, 1
      %v313 = vsel %vm305, %v311, %v312
      %v314 = vrot.slane %v202, 1
      %v315 = vsel %vm305, %v312, %v314
      %v316 = vrot.slane %v203, 1
      %v317 = vrot.slane %v204, 1
      %v318 = vsel %vm305, %v316, %v317
      %v319 = vrot.slane %v205, 1
      %v320 = vsel %vm305, %v317, %v319
      %v321 = vrot.slane %v206, 1
      %v322 = vrot.slane %v207, 1
      %v323 = vsel %vm305, %v321, %v322
      %v324 = vrot.slane %v208, 1
      %v325 = vsel %vm305, %v322, %v324
      %v326 = vrot.slane %v209, 1
      %v327 = vrot.slane %v210, 1
      %v328 = vsel %vm305, %v326, %v327
      %v329 = vrot.slane %v211, 1
      %v330 = vsel %vm305, %v327, %v329
      %v331 = vrot.slane %v212, 1
      %v332 = vrot.slane %v213, 1
      %v333 = vsel %vm305, %v331, %v332
      %v334 = vrot.slane %v214, 1
      %v335 = vsel %vm305, %v332, %v334
      %v336 = vrot.slane %v215, 1
      %v337 = vrot.slane %v216, 1
      %v338 = vsel %vm305, %v336, %v337
      %v339 = vrot.slane %v217, 1
      %v340 = vsel %vm305, %v337, %v339
      %v341 = vrot.slane %v218, 1
      %v342 = vrot.slane %v219, 1
      %v343 = vsel %vm305, %v341, %v342
      %v344 = vrot.slane %v220, 1
      %v345 = vsel %vm305, %v342, %v344
      %v346 = vrot.slane %v221, 1
      %v347 = vrot.slane %v222, 1
      %v348 = vsel %vm305, %v346, %v347
      %v349 = vrot.slane %v223, 1
      %v350 = vsel %vm305, %v347, %v349
      %v351 = vrot.slane %v224, 1
      %v352 = vrot.slane %v225, 1
      %v353 = vsel %vm305, %v351, %v352
      %v354 = vrot.slane %v226, 1
      %v355 = vsel %vm305, %v352, %v354
      %v356 = vrot.slane %v227, 1
      %v357 = vrot.slane %v228, 1
      %v358 = vsel %vm305, %v356, %v357
      %v359 = vrot.slane %v229, 1
      %v360 = vsel %vm305, %v357, %v359
      %v361 = vrot.slane %v230, 1
      %v362 = vrot.slane %v231, 1
      %v363 = vsel %vm305, %v361, %v362
      %v364 = vrot.slane %v232, 1
      %v365 = vsel %vm305, %v362, %v364
      %v366 = vrot.slane %v233, 1
      %v367 = vrot.slane %v234, 1
      %v368 = vsel %vm305, %v366, %v367
      %v369 = vrot.slane %v235, 1
      %v370 = vsel %vm305, %v367, %v369
      %v371 = vrot.slane %v236, 1
      %v372 = vrot.slane %v237, 1
      %v373 = vsel %vm305, %v371, %v372
      %v374 = vrot.slane %v238, 1
      %v375 = vsel %vm305, %v372, %v374
      %v376 = vrot.slane %v239, 1
      %v377 = vrot.slane %v240, 1
      %v378 = vsel %vm305, %v376, %v377
      %v379 = vrot.slane %v241, 1
      %v380 = vsel %vm305, %v377, %v379
      %v381 = vrot.slane %v242, 1
      %v382 = vrot.slane %v243, 1
      %v383 = vsel %vm305, %v381, %v382
      %v384 = vrot.slane %v244, 1
      %v385 = vsel %vm305, %v382, %v384
      %vm418 = vcmask 1045504
      %v419 = vrot.slane %v197, 2
      %v420 = vrot.slane %v198, 2
      %v421 = vsel %vm418, %v419, %v420
      %v422 = vrot.slane %v199, 2
      %v423 = vsel %vm418, %v420, %v422
      %v424 = vrot.slane %v200, 2
      %v425 = vrot.slane %v201, 2
      %v426 = vsel %vm418, %v424, %v425
      %v427 = vrot.slane %v202, 2
      %v428 = vsel %vm418, %v425, %v427
      %v429 = vrot.slane %v203, 2
      %v430 = vrot.slane %v204, 2
      %v431 = vsel %vm418, %v429, %v430
      %v432 = vrot.slane %v205, 2
      %v433 = vsel %vm418, %v430, %v432
      %v434 = vrot.slane %v206, 2
      %v435 = vrot.slane %v207, 2
      %v436 = vsel %vm418, %v434, %v435
      %v437 = vrot.slane %v208, 2
      %v438 = vsel %vm418, %v435, %v437
      %v439 = vrot.slane %v209, 2
      %v440 = vrot.slane %v210, 2
      %v441 = vsel %vm418, %v439, %v440
      %v442 = vrot.slane %v211, 2
      %v443 = vsel %vm418, %v440, %v442
      %v444 = vrot.slane %v212, 2
      %v445 = vrot.slane %v213, 2
      %v446 = vsel %vm418, %v444, %v445
      %v447 = vrot.slane %v214, 2
      %v448 = vsel %vm418, %v445, %v447
      %v449 = vrot.slane %v215, 2
      %v450 = vrot.slane %v216, 2
      %v451 = vsel %vm418, %v449, %v450
      %v452 = vrot.slane %v217, 2
      %v453 = vsel %vm418, %v450, %v452
      %v454 = vrot.slane %v218, 2
      %v455 = vrot.slane %v219, 2
      %v456 = vsel %vm418, %v454, %v455
      %v457 = vrot.slane %v220, 2
      %v458 = vsel %vm418, %v455, %v457
      %v459 = vrot.slane %v221, 2
      %v460 = vrot.slane %v222, 2
      %v461 = vsel %vm418, %v459, %v460
      %v462 = vrot.slane %v223, 2
      %v463 = vsel %vm418, %v460, %v462
      %v464 = vrot.slane %v224, 2
      %v465 = vrot.slane %v225, 2
      %v466 = vsel %vm418, %v464, %v465
      %v467 = vrot.slane %v226, 2
      %v468 = vsel %vm418, %v465, %v467
      %v469 = vrot.slane %v227, 2
      %v470 = vrot.slane %v228, 2
      %v471 = vsel %vm418, %v469, %v470
      %v472 = vrot.slane %v229, 2
      %v473 = vsel %vm418, %v470, %v472
      %v474 = vrot.slane %v230, 2
      %v475 = vrot.slane %v231, 2
      %v476 = vsel %vm418, %v474, %v475
      %v477 = vrot.slane %v232, 2
      %v478 = vsel %vm418, %v475, %v477
      %v479 = vrot.slane %v233, 2
      %v480 = vrot.slane %v234, 2
      %v481 = vsel %vm418, %v479, %v480
      %v482 = vrot.slane %v235, 2
      %v483 = vsel %vm418, %v480, %v482
      %v484 = vrot.slane %v236, 2
      %v485 = vrot.slane %v237, 2
      %v486 = vsel %vm418, %v484, %v485
      %v487 = vrot.slane %v238, 2
      %v488 = vsel %vm418, %v485, %v487
      %v489 = vrot.slane %v239, 2
      %v490 = vrot.slane %v240, 2
      %v491 = vsel %vm418, %v489, %v490
      %v492 = vrot.slane %v241, 2
      %v493 = vsel %vm418, %v490, %v492
      %v494 = vrot.slane %v242, 2
      %v495 = vrot.slane %v243, 2
      %v496 = vsel %vm418, %v494, %v495
      %v497 = vrot.slane %v244, 2
      %v498 = vsel %vm418, %v495, %v497
      %vm531 = vcmask 1044480
      %v532 = vrot.slane %v197, 3
      %v533 = vrot.slane %v198, 3
      %v534 = vsel %vm531, %v532, %v533
      %v535 = vrot.slane %v199, 3
      %v536 = vsel %vm531, %v533, %v535
      %v537 = vrot.slane %v200, 3
      %v538 = vrot.slane %v201, 3
      %v539 = vsel %vm531, %v537, %v538
      %v540 = vrot.slane %v202, 3
      %v541 = vsel %vm531, %v538, %v540
      %v542 = vrot.slane %v203, 3
      %v543 = vrot.slane %v204, 3
      %v544 = vsel %vm531, %v542, %v543
      %v545 = vrot.slane %v205, 3
      %v546 = vsel %vm531, %v543, %v545
      %v547 = vrot.slane %v206, 3
      %v548 = vrot.slane %v207, 3
      %v549 = vsel %vm531, %v547, %v548
      %v550 = vrot.slane %v208, 3
      %v551 = vsel %vm531, %v548, %v550
      %v552 = vrot.slane %v209, 3
      %v553 = vrot.slane %v210, 3
      %v554 = vsel %vm531, %v552, %v553
      %v555 = vrot.slane %v211, 3
      %v556 = vsel %vm531, %v553, %v555
      %v557 = vrot.slane %v212, 3
      %v558 = vrot.slane %v213, 3
      %v559 = vsel %vm531, %v557, %v558
      %v560 = vrot.slane %v214, 3
      %v561 = vsel %vm531, %v558, %v560
      %v562 = vrot.slane %v215, 3
      %v563 = vrot.slane %v216, 3
      %v564 = vsel %vm531, %v562, %v563
      %v565 = vrot.slane %v217, 3
      %v566 = vsel %vm531, %v563, %v565
      %v567 = vrot.slane %v218, 3
      %v568 = vrot.slane %v219, 3
      %v569 = vsel %vm531, %v567, %v568
      %v570 = vrot.slane %v220, 3
      %v571 = vsel %vm531, %v568, %v570
      %v572 = vrot.slane %v221, 3
      %v573 = vrot.slane %v222, 3
      %v574 = vsel %vm531, %v572, %v573
      %v575 = vrot.slane %v223, 3
      %v576 = vsel %vm531, %v573, %v575
      %v577 = vrot.slane %v224, 3
      %v578 = vrot.slane %v225, 3
      %v579 = vsel %vm531, %v577, %v578
      %v580 = vrot.slane %v226, 3
      %v581 = vsel %vm531, %v578, %v580
      %v582 = vrot.slane %v227, 3
      %v583 = vrot.slane %v228, 3
      %v584 = vsel %vm531, %v582, %v583
      %v585 = vrot.slane %v229, 3
      %v586 = vsel %vm531, %v583, %v585
      %v587 = vrot.slane %v230, 3
      %v588 = vrot.slane %v231, 3
      %v589 = vsel %vm531, %v587, %v588
      %v590 = vrot.slane %v232, 3
      %v591 = vsel %vm531, %v588, %v590
      %v592 = vrot.slane %v233, 3
      %v593 = vrot.slane %v234, 3
      %v594 = vsel %vm531, %v592, %v593
      %v595 = vrot.slane %v235, 3
      %v596 = vsel %vm531, %v593, %v595
      %v597 = vrot.slane %v236, 3
      %v598 = vrot.slane %v237, 3
      %v599 = vsel %vm531, %v597, %v598
      %v600 = vrot.slane %v238, 3
      %v601 = vsel %vm531, %v598, %v600
      %v602 = vrot.slane %v239, 3
      %v603 = vrot.slane %v240, 3
      %v604 = vsel %vm531, %v602, %v603
      %v605 = vrot.slane %v241, 3
      %v606 = vsel %vm531, %v603, %v605
      %v607 = vrot.slane %v242, 3
      %v608 = vrot.slane %v243, 3
      %v609 = vsel %vm531, %v607, %v608
      %v610 = vrot.slane %v244, 3
      %v611 = vsel %vm531, %v608, %v610
      %vm644 = vcmask 1043456
      %v645 = vrot.slane %v197, 4
      %v646 = vrot.slane %v198, 4
      %v647 = vsel %vm644, %v645, %v646
      %v648 = vrot.slane %v199, 4
      %v649 = vsel %vm644, %v646, %v648
      %v650 = vrot.slane %v200, 4
      %v651 = vrot.slane %v201, 4
      %v652 = vsel %vm644, %v650, %v651
      %v653 = vrot.slane %v202, 4
      %v654 = vsel %vm644, %v651, %v653
      %v655 = vrot.slane %v203, 4
      %v656 = vrot.slane %v204, 4
      %v657 = vsel %vm644, %v655, %v656
      %v658 = vrot.slane %v205, 4
      %v659 = vsel %vm644, %v656, %v658
      %v660 = vrot.slane %v206, 4
      %v661 = vrot.slane %v207, 4
      %v662 = vsel %vm644, %v660, %v661
      %v663 = vrot.slane %v208, 4
      %v664 = vsel %vm644, %v661, %v663
      %v665 = vrot.slane %v209, 4
      %v666 = vrot.slane %v210, 4
      %v667 = vsel %vm644, %v665, %v666
      %v668 = vrot.slane %v211, 4
      %v669 = vsel %vm644, %v666, %v668
      %v670 = vrot.slane %v212, 4
      %v671 = vrot.slane %v213, 4
      %v672 = vsel %vm644, %v670, %v671
      %v673 = vrot.slane %v214, 4
      %v674 = vsel %vm644, %v671, %v673
      %v675 = vrot.slane %v215, 4
      %v676 = vrot.slane %v216, 4
      %v677 = vsel %vm644, %v675, %v676
      %v678 = vrot.slane %v217, 4
      %v679 = vsel %vm644, %v676, %v678
      %v680 = vrot.slane %v218, 4
      %v681 = vrot.slane %v219, 4
      %v682 = vsel %vm644, %v680, %v681
      %v683 = vrot.slane %v220, 4
      %v684 = vsel %vm644, %v681, %v683
      %v685 = vrot.slane %v221, 4
      %v686 = vrot.slane %v222, 4
      %v687 = vsel %vm644, %v685, %v686
      %v688 = vrot.slane %v223, 4
      %v689 = vsel %vm644, %v686, %v688
      %v690 = vrot.slane %v224, 4
      %v691 = vrot.slane %v225, 4
      %v692 = vsel %vm644, %v690, %v691
      %v693 = vrot.slane %v226, 4
      %v694 = vsel %vm644, %v691, %v693
      %v695 = vrot.slane %v227, 4
      %v696 = vrot.slane %v228, 4
      %v697 = vsel %vm644, %v695, %v696
      %v698 = vrot.slane %v229, 4
      %v699 = vsel %vm644, %v696, %v698
      %v700 = vrot.slane %v230, 4
      %v701 = vrot.slane %v231, 4
      %v702 = vsel %vm644, %v700, %v701
      %v703 = vrot.slane %v232, 4
      %v704 = vsel %vm644, %v701, %v703
      %v705 = vrot.slane %v233, 4
      %v706 = vrot.slane %v234, 4
      %v707 = vsel %vm644, %v705, %v706
      %v708 = vrot.slane %v235, 4
      %v709 = vsel %vm644, %v706, %v708
      %v710 = vrot.slane %v236, 4
      %v711 = vrot.slane %v237, 4
      %v712 = vsel %vm644, %v710, %v711
      %v713 = vrot.slane %v238, 4
      %v714 = vsel %vm644, %v711, %v713
      %v715 = vrot.slane %v239, 4
      %v716 = vrot.slane %v240, 4
      %v717 = vsel %vm644, %v715, %v716
      %v718 = vrot.slane %v241, 4
      %v719 = vsel %vm644, %v716, %v718
      %v720 = vrot.slane %v242, 4
      %v721 = vrot.slane %v243, 4
      %v722 = vsel %vm644, %v720, %v721
      %v723 = vrot.slane %v244, 4
      %v724 = vsel %vm644, %v721, %v723
      %v760 = vrot.slane %v245, 1
      %v761 = vrot.slane %v246, 1
      %v762 = vsel %vm305, %v760, %v761
      %v763 = vrot.slane %v247, 1
      %v764 = vsel %vm305, %v761, %v763
      %v767 = vrot.slane %v245, 2
      %v768 = vrot.slane %v246, 2
      %v769 = vsel %vm418, %v767, %v768
      %v770 = vrot.slane %v247, 2
      %v771 = vsel %vm418, %v768, %v770
      %v774 = vrot.slane %v245, 3
      %v775 = vrot.slane %v246, 3
      %v776 = vsel %vm531, %v774, %v775
      %v777 = vrot.slane %v247, 3
      %v778 = vsel %vm531, %v775, %v777
      %v781 = vrot.slane %v245, 4
      %v782 = vrot.slane %v246, 4
      %v783 = vsel %vm644, %v781, %v782
      %v784 = vrot.slane %v247, 4
      %v785 = vsel %vm644, %v782, %v784
      %v791 = vrot.slane %v248, 1
      %v792 = vrot.slane %v249, 1
      %v793 = vsel %vm305, %v791, %v792
      %v794 = vrot.slane %v250, 1
      %v795 = vsel %vm305, %v792, %v794
      %v798 = vrot.slane %v248, 2
      %v799 = vrot.slane %v249, 2
      %v800 = vsel %vm418, %v798, %v799
      %v801 = vrot.slane %v250, 2
      %v802 = vsel %vm418, %v799, %v801
      %v805 = vrot.slane %v248, 3
      %v806 = vrot.slane %v249, 3
      %v807 = vsel %vm531, %v805, %v806
      %v808 = vrot.slane %v250, 3
      %v809 = vsel %vm531, %v806, %v808
      %v812 = vrot.slane %v248, 4
      %v813 = vrot.slane %v249, 4
      %v814 = vsel %vm644, %v812, %v813
      %v815 = vrot.slane %v250, 4
      %v816 = vsel %vm644, %v813, %v815
      %v822 = vrot.slane %v251, 1
      %v823 = vrot.slane %v252, 1
      %v824 = vsel %vm305, %v822, %v823
      %v825 = vrot.slane %v253, 1
      %v826 = vsel %vm305, %v823, %v825
      %v829 = vrot.slane %v251, 2
      %v830 = vrot.slane %v252, 2
      %v831 = vsel %vm418, %v829, %v830
      %v832 = vrot.slane %v253, 2
      %v833 = vsel %vm418, %v830, %v832
      %v836 = vrot.slane %v251, 3
      %v837 = vrot.slane %v252, 3
      %v838 = vsel %vm531, %v836, %v837
      %v839 = vrot.slane %v253, 3
      %v840 = vsel %vm531, %v837, %v839
      %v843 = vrot.slane %v251, 4
      %v844 = vrot.slane %v252, 4
      %v845 = vsel %vm644, %v843, %v844
      %v846 = vrot.slane %v253, 4
      %v847 = vsel %vm644, %v844, %v846
      %v853 = vrot.slane %v254, 1
      %v854 = vrot.slane %v255, 1
      %v855 = vsel %vm305, %v853, %v854
      %v856 = vrot.slane %v256, 1
      %v857 = vsel %vm305, %v854, %v856
      %v860 = vrot.slane %v254, 2
      %v861 = vrot.slane %v255, 2
      %v862 = vsel %vm418, %v860, %v861
      %v863 = vrot.slane %v256, 2
      %v864 = vsel %vm418, %v861, %v863
      %v867 = vrot.slane %v254, 3
      %v868 = vrot.slane %v255, 3
      %v869 = vsel %vm531, %v867, %v868
      %v870 = vrot.slane %v256, 3
      %v871 = vsel %vm531, %v868, %v870
      %v874 = vrot.slane %v254, 4
      %v875 = vrot.slane %v255, 4
      %v876 = vsel %vm644, %v874, %v875
      %v877 = vrot.slane %v256, 4
      %v878 = vsel %vm644, %v875, %v877
      %v881 = vpack.c.bf16 %v198, %v197
      %v882 = vpack.c.bf16 %v310, %v308
      %v883 = vpack.c.bf16 %v423, %v421
      %v884 = vpack.c.bf16 %v536, %v534
      %v885 = vpack.c.bf16 %v649, %v647
      %v886 = vpack.c.bf16 %v201, %v200
      %v887 = vpack.c.bf16 %v315, %v313
      %v888 = vpack.c.bf16 %v428, %v426
      %v889 = vpack.c.bf16 %v541, %v539
      %v890 = vpack.c.bf16 %v654, %v652
      %v891 = vpack.c.bf16 %v204, %v203
      %v892 = vpack.c.bf16 %v320, %v318
      %v893 = vpack.c.bf16 %v433, %v431
      %v894 = vpack.c.bf16 %v546, %v544
      %v895 = vpack.c.bf16 %v659, %v657
      %v896 = vpack.c.bf16 %v207, %v206
      %v897 = vpack.c.bf16 %v325, %v323
      %v898 = vpack.c.bf16 %v438, %v436
      %v899 = vpack.c.bf16 %v551, %v549
      %v900 = vpack.c.bf16 %v664, %v662
      %v901 = vpack.c.bf16 %v210, %v209
      %v902 = vpack.c.bf16 %v330, %v328
      %v903 = vpack.c.bf16 %v443, %v441
      %v904 = vpack.c.bf16 %v556, %v554
      %v905 = vpack.c.bf16 %v669, %v667
      %v906 = vpack.c.bf16 %v213, %v212
      %v907 = vpack.c.bf16 %v335, %v333
      %v908 = vpack.c.bf16 %v448, %v446
      %v909 = vpack.c.bf16 %v561, %v559
      %v910 = vpack.c.bf16 %v674, %v672
      %v911 = vpack.c.bf16 %v216, %v215
      %v912 = vpack.c.bf16 %v340, %v338
      %v913 = vpack.c.bf16 %v453, %v451
      %v914 = vpack.c.bf16 %v566, %v564
      %v915 = vpack.c.bf16 %v679, %v677
      %v916 = vpack.c.bf16 %v219, %v218
      %v917 = vpack.c.bf16 %v345, %v343
      %v918 = vpack.c.bf16 %v458, %v456
      %v919 = vpack.c.bf16 %v571, %v569
      %v920 = vpack.c.bf16 %v684, %v682
      %v921 = vpack.c.bf16 %v222, %v221
      %v922 = vpack.c.bf16 %v350, %v348
      %v923 = vpack.c.bf16 %v463, %v461
      %v924 = vpack.c.bf16 %v576, %v574
      %v925 = vpack.c.bf16 %v689, %v687
      %v926 = vpack.c.bf16 %v225, %v224
      %v927 = vpack.c.bf16 %v355, %v353
      %v928 = vpack.c.bf16 %v468, %v466
      %v929 = vpack.c.bf16 %v581, %v579
      %v930 = vpack.c.bf16 %v694, %v692
      %v931 = vpack.c.bf16 %v228, %v227
      %v932 = vpack.c.bf16 %v360, %v358
      %v933 = vpack.c.bf16 %v473, %v471
      %v934 = vpack.c.bf16 %v586, %v584
      %v935 = vpack.c.bf16 %v699, %v697
      %v936 = vpack.c.bf16 %v231, %v230
      %v937 = vpack.c.bf16 %v365, %v363
      %v938 = vpack.c.bf16 %v478, %v476
      %v939 = vpack.c.bf16 %v591, %v589
      %v940 = vpack.c.bf16 %v704, %v702
      %v941 = vpack.c.bf16 %v234, %v233
      %v942 = vpack.c.bf16 %v370, %v368
      %v943 = vpack.c.bf16 %v483, %v481
      %v944 = vpack.c.bf16 %v596, %v594
      %v945 = vpack.c.bf16 %v709, %v707
      %v946 = vpack.c.bf16 %v237, %v236
      %v947 = vpack.c.bf16 %v375, %v373
      %v948 = vpack.c.bf16 %v488, %v486
      %v949 = vpack.c.bf16 %v601, %v599
      %v950 = vpack.c.bf16 %v714, %v712
      %v951 = vpack.c.bf16 %v240, %v239
      %v952 = vpack.c.bf16 %v380, %v378
      %v953 = vpack.c.bf16 %v493, %v491
      %v954 = vpack.c.bf16 %v606, %v604
      %v955 = vpack.c.bf16 %v719, %v717
      %v956 = vpack.c.bf16 %v243, %v242
      %v957 = vpack.c.bf16 %v385, %v383
      %v958 = vpack.c.bf16 %v498, %v496
      %v959 = vpack.c.bf16 %v611, %v609
      %v960 = vpack.c.bf16 %v724, %v722
      %v961 = vpack.c.bf16 %v246, %v245
      %v962 = vpack.c.bf16 %v764, %v762
      %v963 = vpack.c.bf16 %v771, %v769
      %v964 = vpack.c.bf16 %v778, %v776
      %v965 = vpack.c.bf16 %v785, %v783
      %v966 = vpack.c.bf16 %v249, %v248
      %v967 = vpack.c.bf16 %v795, %v793
      %v968 = vpack.c.bf16 %v802, %v800
      %v969 = vpack.c.bf16 %v809, %v807
      %v970 = vpack.c.bf16 %v816, %v814
      %v971 = vpack.c.bf16 %v252, %v251
      %v972 = vpack.c.bf16 %v826, %v824
      %v973 = vpack.c.bf16 %v833, %v831
      %v974 = vpack.c.bf16 %v840, %v838
      %v975 = vpack.c.bf16 %v847, %v845
      %v976 = vpack.c.bf16 %v255, %v254
      %v977 = vpack.c.bf16 %v857, %v855
      %v978 = vpack.c.bf16 %v864, %v862
      %v979 = vpack.c.bf16 %v871, %v869
      %v980 = vpack.c.bf16 %v878, %v876
      %v981 = vld [vmem:[%s1] sm:$0xf]
      %v982 = vld [vmem:[%s1 + $0x4] sm:$0xf]
      %v983 = vld [vmem:[%s1 + $0x8] sm:$0xf]
      %v984 = vld [vmem:[%s1 + $0xc] sm:$0xf]
      %v985 = vld [vmem:[%s1 + $0x10] sm:$0xf]
      %v986 = vld [vmem:[%s1 + $0x14] sm:$0xf]
      %v987 = vld [vmem:[%s1 + $0x18] sm:$0xf]
      %v988 = vld [vmem:[%s1 + $0x1c] sm:$0xf]
      %v989 = vld [vmem:[%s1 + $0x20] sm:$0xf]
      %v990 = vld [vmem:[%s1 + $0x24] sm:$0xf]
      %v991 = vld [vmem:[%s1 + $0x28] sm:$0xf]
      %v992 = vld [vmem:[%s1 + $0x2c] sm:$0xf]
      %v993 = vld [vmem:[%s1 + $0x30] sm:$0xf]
      %v994 = vld [vmem:[%s1 + $0x34] sm:$0xf]
      %v995 = vld [vmem:[%s1 + $0x38] sm:$0xf]
      %v996 = vld [vmem:[%s1 + $0x3c] sm:$0xf]
      %v997 = vld [vmem:[%s1 + $0x40] sm:$0xf]
      %v998 = vld [vmem:[%s1 + $0x44] sm:$0xf]
      %v999 = vld [vmem:[%s1 + $0x48] sm:$0xf]
      %v1000 = vld [vmem:[%s1 + $0x4c] sm:$0xf]
      %v1001 = vld [vmem:[%s1 + $0x50] sm:$0xf]
      %v1002 = vld [vmem:[%s1 + $0x54] sm:$0xf]
      %v1003 = vld [vmem:[%s1 + $0x58] sm:$0xf]
      %v1004 = vld [vmem:[%s1 + $0x5c] sm:$0xf]
      %v1005 = vld [vmem:[%s1 + $0x60] sm:$0xf]
      %v1006 = vld [vmem:[%s1 + $0x64] sm:$0xf]
      %v1007 = vld [vmem:[%s1 + $0x68] sm:$0xf]
      %v1008 = vld [vmem:[%s1 + $0x6c] sm:$0xf]
      %v1009 = vld [vmem:[%s1 + $0x70] sm:$0xf]
      %v1010 = vld [vmem:[%s1 + $0x74] sm:$0xf]
      %v1011 = vld [vmem:[%s1 + $0x78] sm:$0xf]
      %v1012 = vld [vmem:[%s1 + $0x7c] sm:$0xf]
      %v1013 = vld [vmem:[%s1 + $0x80] sm:$0xf]
      %v1014 = vld [vmem:[%s1 + $0x84] sm:$0xf]
      %v1015 = vld [vmem:[%s1 + $0x88] sm:$0xf]
      %v1016 = vld [vmem:[%s1 + $0x8c] sm:$0xf]
      %v1017 = vld [vmem:[%s1 + $0x90] sm:$0xf]
      %v1018 = vld [vmem:[%s1 + $0x94] sm:$0xf]
      %v1019 = vld [vmem:[%s1 + $0x98] sm:$0xf]
      %v1020 = vld [vmem:[%s1 + $0x9c] sm:$0xf]
      %v1021 = vld [vmem:[%s1 + $0xa0] sm:$0xf]
      %v1022 = vld [vmem:[%s1 + $0xa4] sm:$0xf]
      %v1023 = vld [vmem:[%s1 + $0xa8] sm:$0xf]
      %v1024 = vld [vmem:[%s1 + $0xac] sm:$0xf]
      %v1025 = vld [vmem:[%s1 + $0xb0] sm:$0xf]
      %v1026 = vld [vmem:[%s1 + $0xb4] sm:$0xf]
      %v1027 = vld [vmem:[%s1 + $0xb8] sm:$0xf]
      %v1028 = vld [vmem:[%s1 + $0xbc] sm:$0xf]
      %v1029 = vld [vmem:[%s1 + $0xc0] sm:$0xf]
      %v1030 = vld [vmem:[%s1 + $0xc4] sm:$0xf]
      %v1031 = vld [vmem:[%s1 + $0xc8] sm:$0xf]
      %v1032 = vld [vmem:[%s1 + $0xcc] sm:$0xf]
      %v1033 = vld [vmem:[%s1 + $0xd0] sm:$0xf]
      %v1034 = vld [vmem:[%s1 + $0xd4] sm:$0xf]
      %v1035 = vld [vmem:[%s1 + $0xd8] sm:$0xf]
      %v1036 = vld [vmem:[%s1 + $0xdc] sm:$0xf]
      %v1037 = vld [vmem:[%s1 + $0xe0] sm:$0xf]
      %v1038 = vld [vmem:[%s1 + $0xe4] sm:$0xf]
      %v1039 = vld [vmem:[%s1 + $0xe8] sm:$0xf]
      %v1040 = vld [vmem:[%s1 + $0xec] sm:$0xf]
      %v1041 = vld [vmem:[%s1 + $0xf0] sm:$0xf]
      %v1042 = vld [vmem:[%s1 + $0xf4] sm:$0xf]
      %v1043 = vld [vmem:[%s1 + $0xf8] sm:$0xf]
      %v1044 = vld [vmem:[%s1 + $0xfc] sm:$0xf]
      %v1045 = vld [vmem:[%s1 + $0x100] sm:$0xf]
      %v1046 = vld [vmem:[%s1 + $0x104] sm:$0xf]
      %v1047 = vld [vmem:[%s1 + $0x108] sm:$0xf]
      %v1048 = vld [vmem:[%s1 + $0x10c] sm:$0xf]
      %v1049 = vld [vmem:[%s1 + $0x110] sm:$0xf]
      %v1050 = vld [vmem:[%s1 + $0x114] sm:$0xf]
      %v1051 = vld [vmem:[%s1 + $0x118] sm:$0xf]
      %v1052 = vld [vmem:[%s1 + $0x11c] sm:$0xf]
      %v1053 = vld [vmem:[%s1 + $0x120] sm:$0xf]
      %v1054 = vld [vmem:[%s1 + $0x124] sm:$0xf]
      %v1055 = vld [vmem:[%s1 + $0x128] sm:$0xf]
      %v1056 = vld [vmem:[%s1 + $0x12c] sm:$0xf]
      %v1057 = vld [vmem:[%s1 + $0x130] sm:$0xf]
      %v1058 = vld [vmem:[%s1 + $0x134] sm:$0xf]
      %v1059 = vld [vmem:[%s1 + $0x138] sm:$0xf]
      %v1060 = vld [vmem:[%s1 + $0x13c] sm:$0xf]
      %v1061 = vld [vmem:[%s1 + $0x140] sm:$0xf]
      %v1062 = vld [vmem:[%s1 + $0x144] sm:$0xf]
      %v1063 = vld [vmem:[%s1 + $0x148] sm:$0xf]
      %v1064 = vld [vmem:[%s1 + $0x14c] sm:$0xf]
      %v1065 = vld [vmem:[%s1 + $0x150] sm:$0xf]
      %v1066 = vld [vmem:[%s1 + $0x154] sm:$0xf]
      %v1067 = vld [vmem:[%s1 + $0x158] sm:$0xf]
      %v1068 = vld [vmem:[%s1 + $0x15c] sm:$0xf]
      %v1069 = vld [vmem:[%s1 + $0x160] sm:$0xf]
      %v1070 = vld [vmem:[%s1 + $0x164] sm:$0xf]
      %v1071 = vld [vmem:[%s1 + $0x168] sm:$0xf]
      %v1072 = vld [vmem:[%s1 + $0x16c] sm:$0xf]
      %v1073 = vld [vmem:[%s1 + $0x170] sm:$0xf]
      %v1074 = vld [vmem:[%s1 + $0x174] sm:$0xf]
      %v1075 = vld [vmem:[%s1 + $0x178] sm:$0xf]
      %v1076 = vld [vmem:[%s1 + $0x17c] sm:$0xf]
      %v1077 = vld [vmem:[%s1 + $0x180] sm:$0xf]
      %v1078 = vld [vmem:[%s1 + $0x184] sm:$0xf]
      %v1079 = vld [vmem:[%s1 + $0x188] sm:$0xf]
      %v1080 = vld [vmem:[%s1 + $0x18c] sm:$0xf]
      %v1081 = vld [vmem:[%s1 + $0x190] sm:$0xf]
      %v1082 = vld [vmem:[%s1 + $0x194] sm:$0xf]
      %v1083 = vld [vmem:[%s1 + $0x198] sm:$0xf]
      %v1084 = vld [vmem:[%s1 + $0x19c] sm:$0xf]
      %v1085 = vld [vmem:[%s1 + $0x1a0] sm:$0xf]
      %v1086 = vld [vmem:[%s1 + $0x1a4] sm:$0xf]
      %v1087 = vld [vmem:[%s1 + $0x1a8] sm:$0xf]
      %v1088 = vld [vmem:[%s1 + $0x1ac] sm:$0xf]
      %v1089 = vld [vmem:[%s1 + $0x1b0] sm:$0xf]
      %v1090 = vld [vmem:[%s1 + $0x1b4] sm:$0xf]
      %v1091 = vld [vmem:[%s1 + $0x1b8] sm:$0xf]
      %v1092 = vld [vmem:[%s1 + $0x1bc] sm:$0xf]
      %v1093 = vld [vmem:[%s1 + $0x1c0] sm:$0xf]
      %v1094 = vld [vmem:[%s1 + $0x1c4] sm:$0xf]
      %v1095 = vld [vmem:[%s1 + $0x1c8] sm:$0xf]
      %v1096 = vld [vmem:[%s1 + $0x1cc] sm:$0xf]
      %v1097 = vld [vmem:[%s1 + $0x1d0] sm:$0xf]
      %v1098 = vld [vmem:[%s1 + $0x1d4] sm:$0xf]
      %v1099 = vld [vmem:[%s1 + $0x1d8] sm:$0xf]
      %v1100 = vld [vmem:[%s1 + $0x1dc] sm:$0xf]
      %v1101 = vld [vmem:[%s1 + $0x1e0] sm:$0xf]
      %v1102 = vld [vmem:[%s1 + $0x1e4] sm:$0xf]
      %v1103 = vld [vmem:[%s1 + $0x1e8] sm:$0xf]
      %v1104 = vld [vmem:[%s1 + $0x1ec] sm:$0xf]
      %v1105 = vld [vmem:[%s1 + $0x1f0] sm:$0xf]
      %v1106 = vld [vmem:[%s1 + $0x1f4] sm:$0xf]
      %v1107 = vld [vmem:[%s1 + $0x1f8] sm:$0xf]
      %v1108 = vld [vmem:[%s1 + $0x1fc] sm:$0xf]
      %v1109 = vld [vmem:[%s1 + $0x200] sm:$0xf]
      %v1110 = vld [vmem:[%s1 + $0x204] sm:$0xf]
      %v1111 = vld [vmem:[%s1 + $0x208] sm:$0xf]
      %v1112 = vld [vmem:[%s1 + $0x20c] sm:$0xf]
      %v1113 = vld [vmem:[%s1 + $0x210] sm:$0xf]
      %v1114 = vld [vmem:[%s1 + $0x214] sm:$0xf]
      %v1115 = vld [vmem:[%s1 + $0x218] sm:$0xf]
      %v1116 = vld [vmem:[%s1 + $0x21c] sm:$0xf]
      %v1117 = vld [vmem:[%s1 + $0x220] sm:$0xf]
      %v1118 = vld [vmem:[%s1 + $0x224] sm:$0xf]
      %v1119 = vld [vmem:[%s1 + $0x228] sm:$0xf]
      %v1120 = vld [vmem:[%s1 + $0x22c] sm:$0xf]
      %v1121 = vld [vmem:[%s1 + $0x230] sm:$0xf]
      %v1122 = vld [vmem:[%s1 + $0x234] sm:$0xf]
      %v1123 = vld [vmem:[%s1 + $0x238] sm:$0xf]
      %v1124 = vld [vmem:[%s1 + $0x23c] sm:$0xf]
      %v1125 = vld [vmem:[%s1 + $0x240] sm:$0xf]
      %v1126 = vld [vmem:[%s1 + $0x244] sm:$0xf]
      %v1127 = vld [vmem:[%s1 + $0x248] sm:$0xf]
      %v1128 = vld [vmem:[%s1 + $0x24c] sm:$0xf]
      %v1129 = vld [vmem:[%s1 + $0x250] sm:$0xf]
      %v1130 = vld [vmem:[%s1 + $0x254] sm:$0xf]
      %v1131 = vld [vmem:[%s1 + $0x258] sm:$0xf]
      %v1132 = vld [vmem:[%s1 + $0x25c] sm:$0xf]
      %v1133 = vld [vmem:[%s1 + $0x260] sm:$0xf]
      %v1134 = vld [vmem:[%s1 + $0x264] sm:$0xf]
      %v1135 = vld [vmem:[%s1 + $0x268] sm:$0xf]
      %v1136 = vld [vmem:[%s1 + $0x26c] sm:$0xf]
      %v1137 = vld [vmem:[%s1 + $0x270] sm:$0xf]
      %v1138 = vld [vmem:[%s1 + $0x274] sm:$0xf]
      %v1139 = vld [vmem:[%s1 + $0x278] sm:$0xf]
      %v1140 = vld [vmem:[%s1 + $0x27c] sm:$0xf]
      %v1141 = vld [vmem:[%s1 + $0x280] sm:$0xf]
      %v1142 = vld [vmem:[%s1 + $0x284] sm:$0xf]
      %v1143 = vld [vmem:[%s1 + $0x288] sm:$0xf]
      %v1144 = vld [vmem:[%s1 + $0x28c] sm:$0xf]
      %v1145 = vld [vmem:[%s1 + $0x290] sm:$0xf]
      %v1146 = vld [vmem:[%s1 + $0x294] sm:$0xf]
      %v1147 = vld [vmem:[%s1 + $0x298] sm:$0xf]
      %v1148 = vld [vmem:[%s1 + $0x29c] sm:$0xf]
      %v1149 = vld [vmem:[%s1 + $0x2a0] sm:$0xf]
      %v1150 = vld [vmem:[%s1 + $0x2a4] sm:$0xf]
      %v1151 = vld [vmem:[%s1 + $0x2a8] sm:$0xf]
      %v1152 = vld [vmem:[%s1 + $0x2ac] sm:$0xf]
      %v1153 = vld [vmem:[%s1 + $0x2b0] sm:$0xf]
      %v1154 = vld [vmem:[%s1 + $0x2b4] sm:$0xf]
      %v1155 = vld [vmem:[%s1 + $0x2b8] sm:$0xf]
      %v1156 = vld [vmem:[%s1 + $0x2bc] sm:$0xf]
      %v1157 = vld [vmem:[%s1 + $0x2c0] sm:$0xf]
      %v1158 = vld [vmem:[%s1 + $0x2c4] sm:$0xf]
      %v1159 = vld [vmem:[%s1 + $0x2c8] sm:$0xf]
      %v1160 = vld [vmem:[%s1 + $0x2cc] sm:$0xf]
      %v1161 = vld [vmem:[%s1 + $0x2d0] sm:$0xf]
      %v1162 = vld [vmem:[%s1 + $0x2d4] sm:$0xf]
      %v1163 = vld [vmem:[%s1 + $0x2d8] sm:$0xf]
      %v1164 = vld [vmem:[%s1 + $0x2dc] sm:$0xf]
      %v1165 = vld [vmem:[%s1 + $0x2e0] sm:$0xf]
      %v1166 = vld [vmem:[%s1 + $0x2e4] sm:$0xf]
      %v1167 = vld [vmem:[%s1 + $0x2e8] sm:$0xf]
      %v1168 = vld [vmem:[%s1 + $0x2ec] sm:$0xf]
      %v1169 = vld [vmem:[%s1 + $0x2f0] sm:$0xf]
      %v1170 = vld [vmem:[%s1 + $0x2f4] sm:$0xf]
      %v1171 = vld [vmem:[%s1 + $0x2f8] sm:$0xf]
      %v1172 = vld [vmem:[%s1 + $0x2fc] sm:$0xf]
      %v1173 = vld [vmem:[%s1 + $0x300] sm:$0xf]
      %v1174 = vld [vmem:[%s1 + $0x304] sm:$0xf]
      %v1175 = vld [vmem:[%s1 + $0x308] sm:$0xf]
      %v1176 = vld [vmem:[%s1 + $0x30c] sm:$0xf]
      %v1177 = vld [vmem:[%s1 + $0x310] sm:$0xf]
      %v1178 = vld [vmem:[%s1 + $0x314] sm:$0xf]
      %v1179 = vld [vmem:[%s1 + $0x318] sm:$0xf]
      %v1180 = vld [vmem:[%s1 + $0x31c] sm:$0xf]
      %v1181 = vld [vmem:[%s1 + $0x320] sm:$0xf]
      %v1182 = vld [vmem:[%s1 + $0x324] sm:$0xf]
      %v1183 = vld [vmem:[%s1 + $0x328] sm:$0xf]
      %v1184 = vld [vmem:[%s1 + $0x32c] sm:$0xf]
      %v1185 = vld [vmem:[%s1 + $0x330] sm:$0xf]
      %v1186 = vld [vmem:[%s1 + $0x334] sm:$0xf]
      %v1187 = vld [vmem:[%s1 + $0x338] sm:$0xf]
      %v1188 = vld [vmem:[%s1 + $0x33c] sm:$0xf]
      %v1189 = vld [vmem:[%s1 + $0x340] sm:$0xf]
      %v1190 = vld [vmem:[%s1 + $0x344] sm:$0xf]
      %v1191 = vld [vmem:[%s1 + $0x348] sm:$0xf]
      %v1192 = vld [vmem:[%s1 + $0x34c] sm:$0xf]
      %v1193 = vld [vmem:[%s1 + $0x350] sm:$0xf]
      %v1194 = vld [vmem:[%s1 + $0x354] sm:$0xf]
      %v1195 = vld [vmem:[%s1 + $0x358] sm:$0xf]
      %v1196 = vld [vmem:[%s1 + $0x35c] sm:$0xf]
      %v1197 = vld [vmem:[%s1 + $0x360] sm:$0xf]
      %v1198 = vld [vmem:[%s1 + $0x364] sm:$0xf]
      %v1199 = vld [vmem:[%s1 + $0x368] sm:$0xf]
      %v1200 = vld [vmem:[%s1 + $0x36c] sm:$0xf]
      %v1201 = vld [vmem:[%s1 + $0x370] sm:$0xf]
      %v1202 = vld [vmem:[%s1 + $0x374] sm:$0xf]
      %v1203 = vld [vmem:[%s1 + $0x378] sm:$0xf]
      %v1204 = vld [vmem:[%s1 + $0x37c] sm:$0xf]
      %v1205 = vld [vmem:[%s1 + $0x380] sm:$0xf]
      %v1206 = vld [vmem:[%s1 + $0x384] sm:$0xf]
      %v1207 = vld [vmem:[%s1 + $0x388] sm:$0xf]
      %v1208 = vld [vmem:[%s1 + $0x38c] sm:$0xf]
      %v1209 = vld [vmem:[%s1 + $0x390] sm:$0xf]
      %v1210 = vld [vmem:[%s1 + $0x394] sm:$0xf]
      %v1211 = vld [vmem:[%s1 + $0x398] sm:$0xf]
      %v1212 = vld [vmem:[%s1 + $0x39c] sm:$0xf]
      %v1213 = vld [vmem:[%s1 + $0x3a0] sm:$0xf]
      %v1214 = vld [vmem:[%s1 + $0x3a4] sm:$0xf]
      %v1215 = vld [vmem:[%s1 + $0x3a8] sm:$0xf]
      %v1216 = vld [vmem:[%s1 + $0x3ac] sm:$0xf]
      %v1217 = vld [vmem:[%s1 + $0x3b0] sm:$0xf]
      %v1218 = vld [vmem:[%s1 + $0x3b4] sm:$0xf]
      %v1219 = vld [vmem:[%s1 + $0x3b8] sm:$0xf]
      %v1220 = vld [vmem:[%s1 + $0x3bc] sm:$0xf]
      %v1221 = vld [vmem:[%s1 + $0x3c0] sm:$0xf]
      %v1222 = vld [vmem:[%s1 + $0x3c4] sm:$0xf]
      %v1223 = vld [vmem:[%s1 + $0x3c8] sm:$0xf]
      %v1224 = vld [vmem:[%s1 + $0x3cc] sm:$0xf]
      %v1225 = vld [vmem:[%s1 + $0x3d0] sm:$0xf]
      %v1226 = vld [vmem:[%s1 + $0x3d4] sm:$0xf]
      %v1227 = vld [vmem:[%s1 + $0x3d8] sm:$0xf]
      %v1228 = vld [vmem:[%s1 + $0x3dc] sm:$0xf]
      %v1229 = vld [vmem:[%s1 + $0x3e0] sm:$0xf]
      %v1230 = vld [vmem:[%s1 + $0x3e4] sm:$0xf]
      %v1231 = vld [vmem:[%s1 + $0x3e8] sm:$0xf]
      %v1232 = vld [vmem:[%s1 + $0x3ec] sm:$0xf]
      %v1233 = vld [vmem:[%s1 + $0x3f0] sm:$0xf]
      %v1234 = vld [vmem:[%s1 + $0x3f4] sm:$0xf]
      %v1235 = vld [vmem:[%s1 + $0x3f8] sm:$0xf]
      %v1236 = vld [vmem:[%s1 + $0x3fc] sm:$0xf]
      %v1237 = vld [vmem:[%s1 + $0x400] sm:$0xf]
      %v1238 = vld [vmem:[%s1 + $0x404] sm:$0xf]
      %v1239 = vld [vmem:[%s1 + $0x408] sm:$0xf]
      %v1240 = vld [vmem:[%s1 + $0x40c] sm:$0xf]
      %v1241 = vld [vmem:[%s1 + $0x410] sm:$0xf]
      %v1242 = vld [vmem:[%s1 + $0x414] sm:$0xf]
      %v1243 = vld [vmem:[%s1 + $0x418] sm:$0xf]
      %v1244 = vld [vmem:[%s1 + $0x41c] sm:$0xf]
      %v1245 = vld [vmem:[%s1 + $0x420] sm:$0xf]
      %v1246 = vld [vmem:[%s1 + $0x424] sm:$0xf]
      %v1247 = vld [vmem:[%s1 + $0x428] sm:$0xf]
      %v1248 = vld [vmem:[%s1 + $0x42c] sm:$0xf]
      %v1249 = vld [vmem:[%s1 + $0x430] sm:$0xf]
      %v1250 = vld [vmem:[%s1 + $0x434] sm:$0xf]
      %v1251 = vld [vmem:[%s1 + $0x438] sm:$0xf]
      %v1252 = vld [vmem:[%s1 + $0x43c] sm:$0xf]
      %v1253 = vld [vmem:[%s1 + $0x440] sm:$0xf]
      %v1254 = vld [vmem:[%s1 + $0x444] sm:$0xf]
      %v1255 = vld [vmem:[%s1 + $0x448] sm:$0xf]
      %v1256 = vld [vmem:[%s1 + $0x44c] sm:$0xf]
      %v1257 = vld [vmem:[%s1 + $0x450] sm:$0xf]
      %v1258 = vld [vmem:[%s1 + $0x454] sm:$0xf]
      %v1259 = vld [vmem:[%s1 + $0x458] sm:$0xf]
      %v1260 = vld [vmem:[%s1 + $0x45c] sm:$0xf]
      %v1261 = vld [vmem:[%s1 + $0x460] sm:$0xf]
      %v1262 = vld [vmem:[%s1 + $0x464] sm:$0xf]
      %v1263 = vld [vmem:[%s1 + $0x468] sm:$0xf]
      %v1264 = vld [vmem:[%s1 + $0x46c] sm:$0xf]
      %v1265 = vld [vmem:[%s1 + $0x470] sm:$0xf]
      %v1266 = vld [vmem:[%s1 + $0x474] sm:$0xf]
      %v1267 = vld [vmem:[%s1 + $0x478] sm:$0xf]
      %v1268 = vld [vmem:[%s1 + $0x47c] sm:$0xf]
      %v1269 = vld [vmem:[%s1 + $0x480] sm:$0xf]
      %v1270 = vld [vmem:[%s1 + $0x484] sm:$0xf]
      %v1271 = vld [vmem:[%s1 + $0x488] sm:$0xf]
      %v1272 = vld [vmem:[%s1 + $0x48c] sm:$0xf]
      %v1273 = vld [vmem:[%s1 + $0x490] sm:$0xf]
      %v1274 = vld [vmem:[%s1 + $0x494] sm:$0xf]
      %v1275 = vld [vmem:[%s1 + $0x498] sm:$0xf]
      %v1276 = vld [vmem:[%s1 + $0x49c] sm:$0xf]
      %v1277 = vld [vmem:[%s1 + $0x4a0] sm:$0xf]
      %v1278 = vld [vmem:[%s1 + $0x4a4] sm:$0xf]
      %v1279 = vld [vmem:[%s1 + $0x4a8] sm:$0xf]
      %v1280 = vld [vmem:[%s1 + $0x4ac] sm:$0xf]
      %v1281 = vld [vmem:[%s1 + $0x4b0] sm:$0xf]
      %v1282 = vld [vmem:[%s1 + $0x4b4] sm:$0xf]
      %v1283 = vld [vmem:[%s1 + $0x4b8] sm:$0xf]
      %v1284 = vld [vmem:[%s1 + $0x4bc] sm:$0xf]
      %v1285 = vld [vmem:[%s1 + $0x4c0] sm:$0xf]
      %v1286 = vld [vmem:[%s1 + $0x4c4] sm:$0xf]
      %v1287 = vld [vmem:[%s1 + $0x4c8] sm:$0xf]
      %v1288 = vld [vmem:[%s1 + $0x4cc] sm:$0xf]
      %v1289 = vld [vmem:[%s1 + $0x4d0] sm:$0xf]
      %v1290 = vld [vmem:[%s1 + $0x4d4] sm:$0xf]
      %v1291 = vld [vmem:[%s1 + $0x4d8] sm:$0xf]
      %v1292 = vld [vmem:[%s1 + $0x4dc] sm:$0xf]
      %v1293 = vld [vmem:[%s1 + $0x4e0] sm:$0xf]
      %v1294 = vld [vmem:[%s1 + $0x4e4] sm:$0xf]
      %v1295 = vld [vmem:[%s1 + $0x4e8] sm:$0xf]
      %v1296 = vld [vmem:[%s1 + $0x4ec] sm:$0xf]
      %v1297 = vld [vmem:[%s1 + $0x4f0] sm:$0xf]
      %v1298 = vld [vmem:[%s1 + $0x4f4] sm:$0xf]
      %v1299 = vld [vmem:[%s1 + $0x4f8] sm:$0xf]
      %v1300 = vld [vmem:[%s1 + $0x4fc] sm:$0xf]
      %v1301 = vld [vmem:[%s1 + $0x500] sm:$0xf]
      %v1302 = vld [vmem:[%s1 + $0x504] sm:$0xf]
      %v1303 = vld [vmem:[%s1 + $0x508] sm:$0xf]
      %v1304 = vld [vmem:[%s1 + $0x50c] sm:$0xf]
      %v1305 = vld [vmem:[%s1 + $0x510] sm:$0xf]
      %v1306 = vld [vmem:[%s1 + $0x514] sm:$0xf]
      %v1307 = vld [vmem:[%s1 + $0x518] sm:$0xf]
      %v1308 = vld [vmem:[%s1 + $0x51c] sm:$0xf]
      %v1309 = vld [vmem:[%s1 + $0x520] sm:$0xf]
      %v1310 = vld [vmem:[%s1 + $0x524] sm:$0xf]
      %v1311 = vld [vmem:[%s1 + $0x528] sm:$0xf]
      %v1312 = vld [vmem:[%s1 + $0x52c] sm:$0xf]
      %v1313 = vld [vmem:[%s1 + $0x530] sm:$0xf]
      %v1314 = vld [vmem:[%s1 + $0x534] sm:$0xf]
      %v1315 = vld [vmem:[%s1 + $0x538] sm:$0xf]
      %v1316 = vld [vmem:[%s1 + $0x53c] sm:$0xf]
      %v1317 = vld [vmem:[%s1 + $0x540] sm:$0xf]
      %v1318 = vld [vmem:[%s1 + $0x544] sm:$0xf]
      %v1319 = vld [vmem:[%s1 + $0x548] sm:$0xf]
      %v1320 = vld [vmem:[%s1 + $0x54c] sm:$0xf]
      %v1321 = vld [vmem:[%s1 + $0x550] sm:$0xf]
      %v1322 = vld [vmem:[%s1 + $0x554] sm:$0xf]
      %v1323 = vld [vmem:[%s1 + $0x558] sm:$0xf]
      %v1324 = vld [vmem:[%s1 + $0x55c] sm:$0xf]
      %v1325 = vld [vmem:[%s1 + $0x560] sm:$0xf]
      %v1326 = vld [vmem:[%s1 + $0x564] sm:$0xf]
      %v1327 = vld [vmem:[%s1 + $0x568] sm:$0xf]
      %v1328 = vld [vmem:[%s1 + $0x56c] sm:$0xf]
      %v1329 = vld [vmem:[%s1 + $0x570] sm:$0xf]
      %v1330 = vld [vmem:[%s1 + $0x574] sm:$0xf]
      %v1331 = vld [vmem:[%s1 + $0x578] sm:$0xf]
      %v1332 = vld [vmem:[%s1 + $0x57c] sm:$0xf]
      %v1333 = vld [vmem:[%s1 + $0x580] sm:$0xf]
      %v1334 = vld [vmem:[%s1 + $0x584] sm:$0xf]
      %v1335 = vld [vmem:[%s1 + $0x588] sm:$0xf]
      %v1336 = vld [vmem:[%s1 + $0x58c] sm:$0xf]
      %v1337 = vld [vmem:[%s1 + $0x590] sm:$0xf]
      %v1338 = vld [vmem:[%s1 + $0x594] sm:$0xf]
      %v1339 = vld [vmem:[%s1 + $0x598] sm:$0xf]
      %v1340 = vld [vmem:[%s1 + $0x59c] sm:$0xf]
      %v1341 = vld [vmem:[%s1 + $0x5a0] sm:$0xf]
      %v1342 = vld [vmem:[%s1 + $0x5a4] sm:$0xf]
      %v1343 = vld [vmem:[%s1 + $0x5a8] sm:$0xf]
      %v1344 = vld [vmem:[%s1 + $0x5ac] sm:$0xf]
      %v1345 = vld [vmem:[%s1 + $0x5b0] sm:$0xf]
      %v1346 = vld [vmem:[%s1 + $0x5b4] sm:$0xf]
      %v1347 = vld [vmem:[%s1 + $0x5b8] sm:$0xf]
      %v1348 = vld [vmem:[%s1 + $0x5bc] sm:$0xf]
      %v1349 = vld [vmem:[%s1 + $0x5c0] sm:$0xf]
      %v1350 = vld [vmem:[%s1 + $0x5c4] sm:$0xf]
      %v1351 = vld [vmem:[%s1 + $0x5c8] sm:$0xf]
      %v1352 = vld [vmem:[%s1 + $0x5cc] sm:$0xf]
      %v1353 = vld [vmem:[%s1 + $0x5d0] sm:$0xf]
      %v1354 = vld [vmem:[%s1 + $0x5d4] sm:$0xf]
      %v1355 = vld [vmem:[%s1 + $0x5d8] sm:$0xf]
      %v1356 = vld [vmem:[%s1 + $0x5dc] sm:$0xf]
      %v1357 = vld [vmem:[%s1 + $0x5e0] sm:$0xf]
      %v1358 = vld [vmem:[%s1 + $0x5e4] sm:$0xf]
      %v1359 = vld [vmem:[%s1 + $0x5e8] sm:$0xf]
      %v1360 = vld [vmem:[%s1 + $0x5ec] sm:$0xf]
      %v1361 = vld [vmem:[%s1 + $0x5f0] sm:$0xf]
      %v1362 = vld [vmem:[%s1 + $0x5f4] sm:$0xf]
      %v1363 = vld [vmem:[%s1 + $0x5f8] sm:$0xf]
      %v1364 = vld [vmem:[%s1 + $0x5fc] sm:$0xf]
      %v1365 = vld [vmem:[%s1 + $0x600] sm:$0xf]
      %v1366 = vld [vmem:[%s1 + $0x604] sm:$0xf]
      %v1367 = vld [vmem:[%s1 + $0x608] sm:$0xf]
      %v1368 = vld [vmem:[%s1 + $0x60c] sm:$0xf]
      %v1369 = vld [vmem:[%s1 + $0x610] sm:$0xf]
      %v1370 = vld [vmem:[%s1 + $0x614] sm:$0xf]
      %v1371 = vld [vmem:[%s1 + $0x618] sm:$0xf]
      %v1372 = vld [vmem:[%s1 + $0x61c] sm:$0xf]
      %v1373 = vld [vmem:[%s1 + $0x620] sm:$0xf]
      %v1374 = vld [vmem:[%s1 + $0x624] sm:$0xf]
      %v1375 = vld [vmem:[%s1 + $0x628] sm:$0xf]
      %v1376 = vld [vmem:[%s1 + $0x62c] sm:$0xf]
      %v1377 = vld [vmem:[%s1 + $0x630] sm:$0xf]
      %v1378 = vld [vmem:[%s1 + $0x634] sm:$0xf]
      %v1379 = vld [vmem:[%s1 + $0x638] sm:$0xf]
      %v1380 = vld [vmem:[%s1 + $0x63c] sm:$0xf]
      %v1381 = vld [vmem:[%s2] sm:$0x1]
      %v1383 = vlaneseq
      %v1384 = vshrl.u32 %v1383, 7
      %v1385 = vsub.s32 0, %v1384
      %v1386 = vrot.slane %v1381, %v1385
      %v1788 = vunpack.c.l.b16 %v981
      %v1789 = vunpack.c.l.b16 %v982
      %v1790 = vunpack.c.l.b16 %v983
      %v1791 = vunpack.c.l.b16 %v984
      %v1792 = vunpack.c.l.b16 %v985
      %v1793 = vunpack.c.l.b16 %v986
      %v1794 = vunpack.c.l.b16 %v987
      %v1795 = vunpack.c.l.b16 %v988
      %v1796 = vunpack.c.l.b16 %v989
      %v1797 = vunpack.c.l.b16 %v990
      %v1798 = vunpack.c.l.b16 %v991
      %v1799 = vunpack.c.l.b16 %v992
      %v1800 = vunpack.c.l.b16 %v993
      %v1801 = vunpack.c.l.b16 %v994
      %v1802 = vunpack.c.l.b16 %v995
      %v1803 = vunpack.c.l.b16 %v996
      %v1804 = vunpack.c.l.b16 %v997
      %v1805 = vunpack.c.l.b16 %v998
      %v1806 = vunpack.c.l.b16 %v999
      %v1807 = vunpack.c.l.b16 %v1000
      %v1808 = vunpack.c.l.b16 %v1001
      %v1809 = vunpack.c.l.b16 %v1002
      %v1810 = vunpack.c.l.b16 %v1003
      %v1811 = vunpack.c.l.b16 %v1004
      %v1812 = vunpack.c.l.b16 %v1005
      %v1813 = vunpack.c.l.b16 %v1006
      %v1814 = vunpack.c.l.b16 %v1007
      %v1815 = vunpack.c.l.b16 %v1008
      %v1816 = vunpack.c.l.b16 %v1009
      %v1817 = vunpack.c.l.b16 %v1010
      %v1818 = vunpack.c.l.b16 %v1011
      %v1819 = vunpack.c.l.b16 %v1012
      %v1820 = vunpack.c.l.b16 %v1013
      %v1821 = vunpack.c.l.b16 %v1014
      %v1822 = vunpack.c.l.b16 %v1015
      %v1823 = vunpack.c.l.b16 %v1016
      %v1824 = vunpack.c.l.b16 %v1017
      %v1825 = vunpack.c.l.b16 %v1018
      %v1826 = vunpack.c.l.b16 %v1019
      %v1827 = vunpack.c.l.b16 %v1020
      %v1828 = vunpack.c.l.b16 %v1021
      %v1829 = vunpack.c.l.b16 %v1022
      %v1830 = vunpack.c.l.b16 %v1023
      %v1831 = vunpack.c.l.b16 %v1024
      %v1832 = vunpack.c.l.b16 %v1025
      %v1833 = vunpack.c.l.b16 %v1026
      %v1834 = vunpack.c.l.b16 %v1027
      %v1835 = vunpack.c.l.b16 %v1028
      %v1836 = vunpack.c.l.b16 %v1029
      %v1837 = vunpack.c.l.b16 %v1030
      %v1838 = vunpack.c.l.b16 %v1031
      %v1839 = vunpack.c.l.b16 %v1032
      %v1840 = vunpack.c.l.b16 %v1033
      %v1841 = vunpack.c.l.b16 %v1034
      %v1842 = vunpack.c.l.b16 %v1035
      %v1843 = vunpack.c.l.b16 %v1036
      %v1844 = vunpack.c.l.b16 %v1037
      %v1845 = vunpack.c.l.b16 %v1038
      %v1846 = vunpack.c.l.b16 %v1039
      %v1847 = vunpack.c.l.b16 %v1040
      %v1848 = vunpack.c.l.b16 %v1041
      %v1849 = vunpack.c.l.b16 %v1042
      %v1850 = vunpack.c.l.b16 %v1043
      %v1851 = vunpack.c.l.b16 %v1044
      %v1852 = vunpack.c.l.b16 %v1045
      %v1853 = vunpack.c.l.b16 %v1046
      %v1854 = vunpack.c.l.b16 %v1047
      %v1855 = vunpack.c.l.b16 %v1048
      %v1856 = vunpack.c.l.b16 %v1049
      %v1857 = vunpack.c.l.b16 %v1050
      %v1858 = vunpack.c.l.b16 %v1051
      %v1859 = vunpack.c.l.b16 %v1052
      %v1860 = vunpack.c.l.b16 %v1053
      %v1861 = vunpack.c.l.b16 %v1054
      %v1862 = vunpack.c.l.b16 %v1055
      %v1863 = vunpack.c.l.b16 %v1056
      %v1864 = vunpack.c.l.b16 %v1057
      %v1865 = vunpack.c.l.b16 %v1058
      %v1866 = vunpack.c.l.b16 %v1059
      %v1867 = vunpack.c.l.b16 %v1060
      %v1868 = vunpack.c.l.b16 %v1061
      %v1869 = vunpack.c.l.b16 %v1062
      %v1870 = vunpack.c.l.b16 %v1063
      %v1871 = vunpack.c.l.b16 %v1064
      %v1872 = vunpack.c.l.b16 %v1065
      %v1873 = vunpack.c.l.b16 %v1066
      %v1874 = vunpack.c.l.b16 %v1067
      %v1875 = vunpack.c.l.b16 %v1068
      %v1876 = vunpack.c.l.b16 %v1069
      %v1877 = vunpack.c.l.b16 %v1070
      %v1878 = vunpack.c.l.b16 %v1071
      %v1879 = vunpack.c.l.b16 %v1072
      %v1880 = vunpack.c.l.b16 %v1073
      %v1881 = vunpack.c.l.b16 %v1074
      %v1882 = vunpack.c.l.b16 %v1075
      %v1883 = vunpack.c.l.b16 %v1076
      %v1884 = vunpack.c.l.b16 %v1077
      %v1885 = vunpack.c.l.b16 %v1078
      %v1886 = vunpack.c.l.b16 %v1079
      %v1887 = vunpack.c.l.b16 %v1080
      %v1888 = vunpack.c.l.b16 %v1081
      %v1889 = vunpack.c.l.b16 %v1082
      %v1890 = vunpack.c.l.b16 %v1083
      %v1891 = vunpack.c.l.b16 %v1084
      %v1892 = vunpack.c.l.b16 %v1085
      %v1893 = vunpack.c.l.b16 %v1086
      %v1894 = vunpack.c.l.b16 %v1087
      %v1895 = vunpack.c.l.b16 %v1088
      %v1896 = vunpack.c.l.b16 %v1089
      %v1897 = vunpack.c.l.b16 %v1090
      %v1898 = vunpack.c.l.b16 %v1091
      %v1899 = vunpack.c.l.b16 %v1092
      %v1900 = vunpack.c.l.b16 %v1093
      %v1901 = vunpack.c.l.b16 %v1094
      %v1902 = vunpack.c.l.b16 %v1095
      %v1903 = vunpack.c.l.b16 %v1096
      %v1904 = vunpack.c.l.b16 %v1097
      %v1905 = vunpack.c.l.b16 %v1098
      %v1906 = vunpack.c.l.b16 %v1099
      %v1907 = vunpack.c.l.b16 %v1100
      %v1908 = vunpack.c.l.b16 %v1101
      %v1909 = vunpack.c.l.b16 %v1102
      %v1910 = vunpack.c.l.b16 %v1103
      %v1911 = vunpack.c.l.b16 %v1104
      %v1912 = vunpack.c.l.b16 %v1105
      %v1913 = vunpack.c.l.b16 %v1106
      %v1914 = vunpack.c.l.b16 %v1107
      %v1915 = vunpack.c.l.b16 %v1108
      %v1916 = vunpack.c.l.b16 %v1109
      %v1917 = vunpack.c.l.b16 %v1110
      %v1918 = vunpack.c.l.b16 %v1111
      %v1919 = vunpack.c.l.b16 %v1112
      %v1920 = vunpack.c.l.b16 %v1113
      %v1921 = vunpack.c.l.b16 %v1114
      %v1922 = vunpack.c.l.b16 %v1115
      %v1923 = vunpack.c.l.b16 %v1116
      %v1924 = vunpack.c.l.b16 %v1117
      %v1925 = vunpack.c.l.b16 %v1118
      %v1926 = vunpack.c.l.b16 %v1119
      %v1927 = vunpack.c.l.b16 %v1120
      %v1928 = vunpack.c.l.b16 %v1121
      %v1929 = vunpack.c.l.b16 %v1122
      %v1930 = vunpack.c.l.b16 %v1123
      %v1931 = vunpack.c.l.b16 %v1124
      %v1932 = vunpack.c.l.b16 %v1125
      %v1933 = vunpack.c.l.b16 %v1126
      %v1934 = vunpack.c.l.b16 %v1127
      %v1935 = vunpack.c.l.b16 %v1128
      %v1936 = vunpack.c.l.b16 %v1129
      %v1937 = vunpack.c.l.b16 %v1130
      %v1938 = vunpack.c.l.b16 %v1131
      %v1939 = vunpack.c.l.b16 %v1132
      %v1940 = vunpack.c.l.b16 %v1133
      %v1941 = vunpack.c.l.b16 %v1134
      %v1942 = vunpack.c.l.b16 %v1135
      %v1943 = vunpack.c.l.b16 %v1136
      %v1944 = vunpack.c.l.b16 %v1137
      %v1945 = vunpack.c.l.b16 %v1138
      %v1946 = vunpack.c.l.b16 %v1139
      %v1947 = vunpack.c.l.b16 %v1140
      %v1948 = vunpack.c.l.b16 %v1141
      %v1949 = vunpack.c.l.b16 %v1142
      %v1950 = vunpack.c.l.b16 %v1143
      %v1951 = vunpack.c.l.b16 %v1144
      %v1952 = vunpack.c.l.b16 %v1145
      %v1953 = vunpack.c.l.b16 %v1146
      %v1954 = vunpack.c.l.b16 %v1147
      %v1955 = vunpack.c.l.b16 %v1148
      %v1956 = vunpack.c.l.b16 %v1149
      %v1957 = vunpack.c.l.b16 %v1150
      %v1958 = vunpack.c.l.b16 %v1151
      %v1959 = vunpack.c.l.b16 %v1152
      %v1960 = vunpack.c.l.b16 %v1153
      %v1961 = vunpack.c.l.b16 %v1154
      %v1962 = vunpack.c.l.b16 %v1155
      %v1963 = vunpack.c.l.b16 %v1156
      %v1964 = vunpack.c.l.b16 %v1157
      %v1965 = vunpack.c.l.b16 %v1158
      %v1966 = vunpack.c.l.b16 %v1159
      %v1967 = vunpack.c.l.b16 %v1160
      %v1968 = vunpack.c.l.b16 %v1161
      %v1969 = vunpack.c.l.b16 %v1162
      %v1970 = vunpack.c.l.b16 %v1163
      %v1971 = vunpack.c.l.b16 %v1164
      %v1972 = vunpack.c.l.b16 %v1165
      %v1973 = vunpack.c.l.b16 %v1166
      %v1974 = vunpack.c.l.b16 %v1167
      %v1975 = vunpack.c.l.b16 %v1168
      %v1976 = vunpack.c.l.b16 %v1169
      %v1977 = vunpack.c.l.b16 %v1170
      %v1978 = vunpack.c.l.b16 %v1171
      %v1979 = vunpack.c.l.b16 %v1172
      %v1980 = vunpack.c.l.b16 %v1173
      %v1981 = vunpack.c.l.b16 %v1174
      %v1982 = vunpack.c.l.b16 %v1175
      %v1983 = vunpack.c.l.b16 %v1176
      %v1984 = vunpack.c.l.b16 %v1177
      %v1985 = vunpack.c.l.b16 %v1178
      %v1986 = vunpack.c.l.b16 %v1179
      %v1987 = vunpack.c.l.b16 %v1180
      %v1988 = vunpack.c.l.b16 %v1181
      %v1989 = vunpack.c.l.b16 %v1182
      %v1990 = vunpack.c.l.b16 %v1183
      %v1991 = vunpack.c.l.b16 %v1184
      %v1992 = vunpack.c.l.b16 %v1185
      %v1993 = vunpack.c.l.b16 %v1186
      %v1994 = vunpack.c.l.b16 %v1187
      %v1995 = vunpack.c.l.b16 %v1188
      %v1996 = vunpack.c.l.b16 %v1189
      %v1997 = vunpack.c.l.b16 %v1190
      %v1998 = vunpack.c.l.b16 %v1191
      %v1999 = vunpack.c.l.b16 %v1192
      %v2000 = vunpack.c.l.b16 %v1193
      %v2001 = vunpack.c.l.b16 %v1194
      %v2002 = vunpack.c.l.b16 %v1195
      %v2003 = vunpack.c.l.b16 %v1196
      %v2004 = vunpack.c.l.b16 %v1197
      %v2005 = vunpack.c.l.b16 %v1198
      %v2006 = vunpack.c.l.b16 %v1199
      %v2007 = vunpack.c.l.b16 %v1200
      %v2008 = vunpack.c.l.b16 %v1201
      %v2009 = vunpack.c.l.b16 %v1202
      %v2010 = vunpack.c.l.b16 %v1203
      %v2011 = vunpack.c.l.b16 %v1204
      %v2012 = vunpack.c.l.b16 %v1205
      %v2013 = vunpack.c.l.b16 %v1206
      %v2014 = vunpack.c.l.b16 %v1207
      %v2015 = vunpack.c.l.b16 %v1208
      %v2016 = vunpack.c.l.b16 %v1209
      %v2017 = vunpack.c.l.b16 %v1210
      %v2018 = vunpack.c.l.b16 %v1211
      %v2019 = vunpack.c.l.b16 %v1212
      %v2020 = vunpack.c.l.b16 %v1213
      %v2021 = vunpack.c.l.b16 %v1214
      %v2022 = vunpack.c.l.b16 %v1215
      %v2023 = vunpack.c.l.b16 %v1216
      %v2024 = vunpack.c.l.b16 %v1217
      %v2025 = vunpack.c.l.b16 %v1218
      %v2026 = vunpack.c.l.b16 %v1219
      %v2027 = vunpack.c.l.b16 %v1220
      %v2028 = vunpack.c.l.b16 %v1221
      %v2029 = vunpack.c.l.b16 %v1222
      %v2030 = vunpack.c.l.b16 %v1223
      %v2031 = vunpack.c.l.b16 %v1224
      %v2032 = vunpack.c.l.b16 %v1225
      %v2033 = vunpack.c.l.b16 %v1226
      %v2034 = vunpack.c.l.b16 %v1227
      %v2035 = vunpack.c.l.b16 %v1228
      %v2036 = vunpack.c.l.b16 %v1229
      %v2037 = vunpack.c.l.b16 %v1230
      %v2038 = vunpack.c.l.b16 %v1231
      %v2039 = vunpack.c.l.b16 %v1232
      %v2040 = vunpack.c.l.b16 %v1233
      %v2041 = vunpack.c.l.b16 %v1234
      %v2042 = vunpack.c.l.b16 %v1235
      %v2043 = vunpack.c.l.b16 %v1236
      %v2044 = vunpack.c.l.b16 %v1237
      %v2045 = vunpack.c.l.b16 %v1238
      %v2046 = vunpack.c.l.b16 %v1239
      %v2047 = vunpack.c.l.b16 %v1240
      %v2048 = vunpack.c.l.b16 %v1241
      %v2049 = vunpack.c.l.b16 %v1242
      %v2050 = vunpack.c.l.b16 %v1243
      %v2051 = vunpack.c.l.b16 %v1244
      %v2052 = vunpack.c.l.b16 %v1245
      %v2053 = vunpack.c.l.b16 %v1246
      %v2054 = vunpack.c.l.b16 %v1247
      %v2055 = vunpack.c.l.b16 %v1248
      %v2056 = vunpack.c.l.b16 %v1249
      %v2057 = vunpack.c.l.b16 %v1250
      %v2058 = vunpack.c.l.b16 %v1251
      %v2059 = vunpack.c.l.b16 %v1252
      %v2060 = vunpack.c.l.b16 %v1253
      %v2061 = vunpack.c.l.b16 %v1254
      %v2062 = vunpack.c.l.b16 %v1255
      %v2063 = vunpack.c.l.b16 %v1256
      %v2064 = vunpack.c.l.b16 %v1257
      %v2065 = vunpack.c.l.b16 %v1258
      %v2066 = vunpack.c.l.b16 %v1259
      %v2067 = vunpack.c.l.b16 %v1260
      %v2068 = vunpack.c.l.b16 %v1261
      %v2069 = vunpack.c.l.b16 %v1262
      %v2070 = vunpack.c.l.b16 %v1263
      %v2071 = vunpack.c.l.b16 %v1264
      %v2072 = vunpack.c.l.b16 %v1265
      %v2073 = vunpack.c.l.b16 %v1266
      %v2074 = vunpack.c.l.b16 %v1267
      %v2075 = vunpack.c.l.b16 %v1268
      %v2076 = vunpack.c.l.b16 %v1269
      %v2077 = vunpack.c.l.b16 %v1270
      %v2078 = vunpack.c.l.b16 %v1271
      %v2079 = vunpack.c.l.b16 %v1272
      %v2080 = vunpack.c.l.b16 %v1273
      %v2081 = vunpack.c.l.b16 %v1274
      %v2082 = vunpack.c.l.b16 %v1275
      %v2083 = vunpack.c.l.b16 %v1276
      %v2084 = vunpack.c.l.b16 %v1277
      %v2085 = vunpack.c.l.b16 %v1278
      %v2086 = vunpack.c.l.b16 %v1279
      %v2087 = vunpack.c.l.b16 %v1280
      %v2088 = vunpack.c.l.b16 %v1281
      %v2089 = vunpack.c.l.b16 %v1282
      %v2090 = vunpack.c.l.b16 %v1283
      %v2091 = vunpack.c.l.b16 %v1284
      %v2092 = vunpack.c.l.b16 %v1285
      %v2093 = vunpack.c.l.b16 %v1286
      %v2094 = vunpack.c.l.b16 %v1287
      %v2095 = vunpack.c.l.b16 %v1288
      %v2096 = vunpack.c.l.b16 %v1289
      %v2097 = vunpack.c.l.b16 %v1290
      %v2098 = vunpack.c.l.b16 %v1291
      %v2099 = vunpack.c.l.b16 %v1292
      %v2100 = vunpack.c.l.b16 %v1293
      %v2101 = vunpack.c.l.b16 %v1294
      %v2102 = vunpack.c.l.b16 %v1295
      %v2103 = vunpack.c.l.b16 %v1296
      %v2104 = vunpack.c.l.b16 %v1297
      %v2105 = vunpack.c.l.b16 %v1298
      %v2106 = vunpack.c.l.b16 %v1299
      %v2107 = vunpack.c.l.b16 %v1300
      %v2108 = vunpack.c.l.b16 %v1301
      %v2109 = vunpack.c.l.b16 %v1302
      %v2110 = vunpack.c.l.b16 %v1303
      %v2111 = vunpack.c.l.b16 %v1304
      %v2112 = vunpack.c.l.b16 %v1305
      %v2113 = vunpack.c.l.b16 %v1306
      %v2114 = vunpack.c.l.b16 %v1307
      %v2115 = vunpack.c.l.b16 %v1308
      %v2116 = vunpack.c.l.b16 %v1309
      %v2117 = vunpack.c.l.b16 %v1310
      %v2118 = vunpack.c.l.b16 %v1311
      %v2119 = vunpack.c.l.b16 %v1312
      %v2120 = vunpack.c.l.b16 %v1313
      %v2121 = vunpack.c.l.b16 %v1314
      %v2122 = vunpack.c.l.b16 %v1315
      %v2123 = vunpack.c.l.b16 %v1316
      %v2124 = vunpack.c.l.b16 %v1317
      %v2125 = vunpack.c.l.b16 %v1318
      %v2126 = vunpack.c.l.b16 %v1319
      %v2127 = vunpack.c.l.b16 %v1320
      %v2128 = vunpack.c.l.b16 %v1321
      %v2129 = vunpack.c.l.b16 %v1322
      %v2130 = vunpack.c.l.b16 %v1323
      %v2131 = vunpack.c.l.b16 %v1324
      %v2132 = vunpack.c.l.b16 %v1325
      %v2133 = vunpack.c.l.b16 %v1326
      %v2134 = vunpack.c.l.b16 %v1327
      %v2135 = vunpack.c.l.b16 %v1328
      %v2136 = vunpack.c.l.b16 %v1329
      %v2137 = vunpack.c.l.b16 %v1330
      %v2138 = vunpack.c.l.b16 %v1331
      %v2139 = vunpack.c.l.b16 %v1332
      %v2140 = vunpack.c.l.b16 %v1333
      %v2141 = vunpack.c.l.b16 %v1334
      %v2142 = vunpack.c.l.b16 %v1335
      %v2143 = vunpack.c.l.b16 %v1336
      %v2144 = vunpack.c.l.b16 %v1337
      %v2145 = vunpack.c.l.b16 %v1338
      %v2146 = vunpack.c.l.b16 %v1339
      %v2147 = vunpack.c.l.b16 %v1340
      %v2148 = vunpack.c.l.b16 %v1341
      %v2149 = vunpack.c.l.b16 %v1342
      %v2150 = vunpack.c.l.b16 %v1343
      %v2151 = vunpack.c.l.b16 %v1344
      %v2152 = vunpack.c.l.b16 %v1345
      %v2153 = vunpack.c.l.b16 %v1346
      %v2154 = vunpack.c.l.b16 %v1347
      %v2155 = vunpack.c.l.b16 %v1348
      %v2156 = vunpack.c.l.b16 %v1349
      %v2157 = vunpack.c.l.b16 %v1350
      %v2158 = vunpack.c.l.b16 %v1351
      %v2159 = vunpack.c.l.b16 %v1352
      %v2160 = vunpack.c.l.b16 %v1353
      %v2161 = vunpack.c.l.b16 %v1354
      %v2162 = vunpack.c.l.b16 %v1355
      %v2163 = vunpack.c.l.b16 %v1356
      %v2164 = vunpack.c.l.b16 %v1357
      %v2165 = vunpack.c.l.b16 %v1358
      %v2166 = vunpack.c.l.b16 %v1359
      %v2167 = vunpack.c.l.b16 %v1360
      %v2168 = vunpack.c.l.b16 %v1361
      %v2169 = vunpack.c.l.b16 %v1362
      %v2170 = vunpack.c.l.b16 %v1363
      %v2171 = vunpack.c.l.b16 %v1364
      %v2172 = vunpack.c.l.b16 %v1365
      %v2173 = vunpack.c.l.b16 %v1366
      %v2174 = vunpack.c.l.b16 %v1367
      %v2175 = vunpack.c.l.b16 %v1368
      %v2176 = vunpack.c.l.b16 %v1369
      %v2177 = vunpack.c.l.b16 %v1370
      %v2178 = vunpack.c.l.b16 %v1371
      %v2179 = vunpack.c.l.b16 %v1372
      %v2180 = vunpack.c.l.b16 %v1373
      %v2181 = vunpack.c.l.b16 %v1374
      %v2182 = vunpack.c.l.b16 %v1375
      %v2183 = vunpack.c.l.b16 %v1376
      %v2184 = vunpack.c.l.b16 %v1377
      %v2185 = vunpack.c.l.b16 %v1378
      %v2186 = vunpack.c.l.b16 %v1379
      %v2187 = vunpack.c.l.b16 %v1380
      %v2188 = vpack.c.b16 %v1789, %v1788
      %v2189 = vpack.c.b16 %v1791, %v1790
      %v2190 = vpack.c.b16 %v1793, %v1792
      %v2191 = vpack.c.b16 %v1795, %v1794
      %v2192 = vpack.c.b16 %v1797, %v1796
      %v2193 = vpack.c.b16 %v1799, %v1798
      %v2194 = vpack.c.b16 %v1801, %v1800
      %v2195 = vpack.c.b16 %v1803, %v1802
      %v2196 = vpack.c.b16 %v1805, %v1804
      %v2197 = vpack.c.b16 %v1807, %v1806
      %v2198 = vpack.c.b16 %v1809, %v1808
      %v2199 = vpack.c.b16 %v1811, %v1810
      %v2200 = vpack.c.b16 %v1813, %v1812
      %v2201 = vpack.c.b16 %v1815, %v1814
      %v2202 = vpack.c.b16 %v1817, %v1816
      %v2203 = vpack.c.b16 %v1819, %v1818
      %v2204 = vpack.c.b16 %v1821, %v1820
      %v2205 = vpack.c.b16 %v1823, %v1822
      %v2206 = vpack.c.b16 %v1825, %v1824
      %v2207 = vpack.c.b16 %v1827, %v1826
      %v2208 = vpack.c.b16 %v1829, %v1828
      %v2209 = vpack.c.b16 %v1831, %v1830
      %v2210 = vpack.c.b16 %v1833, %v1832
      %v2211 = vpack.c.b16 %v1835, %v1834
      %v2212 = vpack.c.b16 %v1837, %v1836
      %v2213 = vpack.c.b16 %v1839, %v1838
      %v2214 = vpack.c.b16 %v1841, %v1840
      %v2215 = vpack.c.b16 %v1843, %v1842
      %v2216 = vpack.c.b16 %v1845, %v1844
      %v2217 = vpack.c.b16 %v1847, %v1846
      %v2218 = vpack.c.b16 %v1849, %v1848
      %v2219 = vpack.c.b16 %v1851, %v1850
      %v2220 = vpack.c.b16 %v1853, %v1852
      %v2221 = vpack.c.b16 %v1855, %v1854
      %v2222 = vpack.c.b16 %v1857, %v1856
      %v2223 = vpack.c.b16 %v1859, %v1858
      %v2224 = vpack.c.b16 %v1861, %v1860
      %v2225 = vpack.c.b16 %v1863, %v1862
      %v2226 = vpack.c.b16 %v1865, %v1864
      %v2227 = vpack.c.b16 %v1867, %v1866
      %v2228 = vpack.c.b16 %v1869, %v1868
      %v2229 = vpack.c.b16 %v1871, %v1870
      %v2230 = vpack.c.b16 %v1873, %v1872
      %v2231 = vpack.c.b16 %v1875, %v1874
      %v2232 = vpack.c.b16 %v1877, %v1876
      %v2233 = vpack.c.b16 %v1879, %v1878
      %v2234 = vpack.c.b16 %v1881, %v1880
      %v2235 = vpack.c.b16 %v1883, %v1882
      %v2236 = vpack.c.b16 %v1885, %v1884
      %v2237 = vpack.c.b16 %v1887, %v1886
      %v2238 = vpack.c.b16 %v1889, %v1888
      %v2239 = vpack.c.b16 %v1891, %v1890
      %v2240 = vpack.c.b16 %v1893, %v1892
      %v2241 = vpack.c.b16 %v1895, %v1894
      %v2242 = vpack.c.b16 %v1897, %v1896
      %v2243 = vpack.c.b16 %v1899, %v1898
      %v2244 = vpack.c.b16 %v1901, %v1900
      %v2245 = vpack.c.b16 %v1903, %v1902
      %v2246 = vpack.c.b16 %v1905, %v1904
      %v2247 = vpack.c.b16 %v1907, %v1906
      %v2248 = vpack.c.b16 %v1909, %v1908
      %v2249 = vpack.c.b16 %v1911, %v1910
      %v2250 = vpack.c.b16 %v1913, %v1912
      %v2251 = vpack.c.b16 %v1915, %v1914
      %v2252 = vpack.c.b16 %v1917, %v1916
      %v2253 = vpack.c.b16 %v1919, %v1918
      %v2254 = vpack.c.b16 %v1921, %v1920
      %v2255 = vpack.c.b16 %v1923, %v1922
      %v2256 = vpack.c.b16 %v1925, %v1924
      %v2257 = vpack.c.b16 %v1927, %v1926
      %v2258 = vpack.c.b16 %v1929, %v1928
      %v2259 = vpack.c.b16 %v1931, %v1930
      %v2260 = vpack.c.b16 %v1933, %v1932
      %v2261 = vpack.c.b16 %v1935, %v1934
      %v2262 = vpack.c.b16 %v1937, %v1936
      %v2263 = vpack.c.b16 %v1939, %v1938
      %v2264 = vpack.c.b16 %v1941, %v1940
      %v2265 = vpack.c.b16 %v1943, %v1942
      %v2266 = vpack.c.b16 %v1945, %v1944
      %v2267 = vpack.c.b16 %v1947, %v1946
      %v2268 = vpack.c.b16 %v1949, %v1948
      %v2269 = vpack.c.b16 %v1951, %v1950
      %v2270 = vpack.c.b16 %v1953, %v1952
      %v2271 = vpack.c.b16 %v1955, %v1954
      %v2272 = vpack.c.b16 %v1957, %v1956
      %v2273 = vpack.c.b16 %v1959, %v1958
      %v2274 = vpack.c.b16 %v1961, %v1960
      %v2275 = vpack.c.b16 %v1963, %v1962
      %v2276 = vpack.c.b16 %v1965, %v1964
      %v2277 = vpack.c.b16 %v1967, %v1966
      %v2278 = vpack.c.b16 %v1969, %v1968
      %v2279 = vpack.c.b16 %v1971, %v1970
      %v2280 = vpack.c.b16 %v1973, %v1972
      %v2281 = vpack.c.b16 %v1975, %v1974
      %v2282 = vpack.c.b16 %v1977, %v1976
      %v2283 = vpack.c.b16 %v1979, %v1978
      %v2284 = vpack.c.b16 %v1981, %v1980
      %v2285 = vpack.c.b16 %v1983, %v1982
      %v2286 = vpack.c.b16 %v1985, %v1984
      %v2287 = vpack.c.b16 %v1987, %v1986
      %v2288 = vpack.c.b16 %v1989, %v1988
      %v2289 = vpack.c.b16 %v1991, %v1990
      %v2290 = vpack.c.b16 %v1993, %v1992
      %v2291 = vpack.c.b16 %v1995, %v1994
      %v2292 = vpack.c.b16 %v1997, %v1996
      %v2293 = vpack.c.b16 %v1999, %v1998
      %v2294 = vpack.c.b16 %v2001, %v2000
      %v2295 = vpack.c.b16 %v2003, %v2002
      %v2296 = vpack.c.b16 %v2005, %v2004
      %v2297 = vpack.c.b16 %v2007, %v2006
      %v2298 = vpack.c.b16 %v2009, %v2008
      %v2299 = vpack.c.b16 %v2011, %v2010
      %v2300 = vpack.c.b16 %v2013, %v2012
      %v2301 = vpack.c.b16 %v2015, %v2014
      %v2302 = vpack.c.b16 %v2017, %v2016
      %v2303 = vpack.c.b16 %v2019, %v2018
      %v2304 = vpack.c.b16 %v2021, %v2020
      %v2305 = vpack.c.b16 %v2023, %v2022
      %v2306 = vpack.c.b16 %v2025, %v2024
      %v2307 = vpack.c.b16 %v2027, %v2026
      %v2308 = vpack.c.b16 %v2029, %v2028
      %v2309 = vpack.c.b16 %v2031, %v2030
      %v2310 = vpack.c.b16 %v2033, %v2032
      %v2311 = vpack.c.b16 %v2035, %v2034
      %v2312 = vpack.c.b16 %v2037, %v2036
      %v2313 = vpack.c.b16 %v2039, %v2038
      %v2314 = vpack.c.b16 %v2041, %v2040
      %v2315 = vpack.c.b16 %v2043, %v2042
      %v2316 = vpack.c.b16 %v2045, %v2044
      %v2317 = vpack.c.b16 %v2047, %v2046
      %v2318 = vpack.c.b16 %v2049, %v2048
      %v2319 = vpack.c.b16 %v2051, %v2050
      %v2320 = vpack.c.b16 %v2053, %v2052
      %v2321 = vpack.c.b16 %v2055, %v2054
      %v2322 = vpack.c.b16 %v2057, %v2056
      %v2323 = vpack.c.b16 %v2059, %v2058
      %v2324 = vpack.c.b16 %v2061, %v2060
      %v2325 = vpack.c.b16 %v2063, %v2062
      %v2326 = vpack.c.b16 %v2065, %v2064
      %v2327 = vpack.c.b16 %v2067, %v2066
      %v2328 = vpack.c.b16 %v2069, %v2068
      %v2329 = vpack.c.b16 %v2071, %v2070
      %v2330 = vpack.c.b16 %v2073, %v2072
      %v2331 = vpack.c.b16 %v2075, %v2074
      %v2332 = vpack.c.b16 %v2077, %v2076
      %v2333 = vpack.c.b16 %v2079, %v2078
      %v2334 = vpack.c.b16 %v2081, %v2080
      %v2335 = vpack.c.b16 %v2083, %v2082
      %v2336 = vpack.c.b16 %v2085, %v2084
      %v2337 = vpack.c.b16 %v2087, %v2086
      %v2338 = vpack.c.b16 %v2089, %v2088
      %v2339 = vpack.c.b16 %v2091, %v2090
      %v2340 = vpack.c.b16 %v2093, %v2092
      %v2341 = vpack.c.b16 %v2095, %v2094
      %v2342 = vpack.c.b16 %v2097, %v2096
      %v2343 = vpack.c.b16 %v2099, %v2098
      %v2344 = vpack.c.b16 %v2101, %v2100
      %v2345 = vpack.c.b16 %v2103, %v2102
      %v2346 = vpack.c.b16 %v2105, %v2104
      %v2347 = vpack.c.b16 %v2107, %v2106
      %v2348 = vpack.c.b16 %v2109, %v2108
      %v2349 = vpack.c.b16 %v2111, %v2110
      %v2350 = vpack.c.b16 %v2113, %v2112
      %v2351 = vpack.c.b16 %v2115, %v2114
      %v2352 = vpack.c.b16 %v2117, %v2116
      %v2353 = vpack.c.b16 %v2119, %v2118
      %v2354 = vpack.c.b16 %v2121, %v2120
      %v2355 = vpack.c.b16 %v2123, %v2122
      %v2356 = vpack.c.b16 %v2125, %v2124
      %v2357 = vpack.c.b16 %v2127, %v2126
      %v2358 = vpack.c.b16 %v2129, %v2128
      %v2359 = vpack.c.b16 %v2131, %v2130
      %v2360 = vpack.c.b16 %v2133, %v2132
      %v2361 = vpack.c.b16 %v2135, %v2134
      %v2362 = vpack.c.b16 %v2137, %v2136
      %v2363 = vpack.c.b16 %v2139, %v2138
      %v2364 = vpack.c.b16 %v2141, %v2140
      %v2365 = vpack.c.b16 %v2143, %v2142
      %v2366 = vpack.c.b16 %v2145, %v2144
      %v2367 = vpack.c.b16 %v2147, %v2146
      %v2368 = vpack.c.b16 %v2149, %v2148
      %v2369 = vpack.c.b16 %v2151, %v2150
      %v2370 = vpack.c.b16 %v2153, %v2152
      %v2371 = vpack.c.b16 %v2155, %v2154
      %v2372 = vpack.c.b16 %v2157, %v2156
      %v2373 = vpack.c.b16 %v2159, %v2158
      %v2374 = vpack.c.b16 %v2161, %v2160
      %v2375 = vpack.c.b16 %v2163, %v2162
      %v2376 = vpack.c.b16 %v2165, %v2164
      %v2377 = vpack.c.b16 %v2167, %v2166
      %v2378 = vpack.c.b16 %v2169, %v2168
      %v2379 = vpack.c.b16 %v2171, %v2170
      %v2380 = vpack.c.b16 %v2173, %v2172
      %v2381 = vpack.c.b16 %v2175, %v2174
      %v2382 = vpack.c.b16 %v2177, %v2176
      %v2383 = vpack.c.b16 %v2179, %v2178
      %v2384 = vpack.c.b16 %v2181, %v2180
      %v2385 = vpack.c.b16 %v2183, %v2182
      %v2386 = vpack.c.b16 %v2185, %v2184
      %v2387 = vpack.c.b16 %v2187, %v2186
      %2588 = vmatprep.subr.bf16.mxu0 0
      %2589 = vmatpush1.bf16.msra.mxu0 %v2188
      %2590 = vmatprep.subr.bf16.mxu0 0
      %2591 = vmatpush1.bf16.msra.mxu0 %v2189
      %2592 = vmatprep.subr.bf16.mxu0 0
      %2593 = vmatpush1.bf16.msra.mxu0 %v2190
      %2594 = vmatprep.subr.bf16.mxu0 0
      %2595 = vmatpush1.bf16.msra.mxu0 %v2191
      %2596 = vmatprep.subr.bf16.mxu0 0
      %2597 = vmatpush1.bf16.msra.mxu0 %v2192
      %2598 = vmatprep.subr.bf16.mxu0 0
      %2599 = vmatpush1.bf16.msra.mxu0 %v2193
      %2600 = vmatprep.subr.bf16.mxu0 0
      %2601 = vmatpush1.bf16.msra.mxu0 %v2194
      %2602 = vmatprep.subr.bf16.mxu0 0
      %2603 = vmatpush1.bf16.msra.mxu0 %v2195
      %2604 = vmatprep.subr.bf16.mxu0 0
      %2605 = vmatpush1.bf16.msra.mxu0 %v2196
      %2606 = vmatprep.subr.bf16.mxu0 0
      %2607 = vmatpush1.bf16.msra.mxu0 %v2197
      %2608 = vmatprep.subr.bf16.mxu0 0
      %2609 = vmatpush1.bf16.msra.mxu0 %v2198
      %2610 = vmatprep.subr.bf16.mxu0 0
      %2611 = vmatpush1.bf16.msra.mxu0 %v2199
      %2612 = vmatprep.subr.bf16.mxu0 0
      %2613 = vmatpush1.bf16.msra.mxu0 %v2200
      %2614 = vmatprep.subr.bf16.mxu0 0
      %2615 = vmatpush1.bf16.msra.mxu0 %v2201
      %2616 = vmatprep.subr.bf16.mxu0 0
      %2617 = vmatpush1.bf16.msra.mxu0 %v2202
      %2618 = vmatprep.subr.bf16.mxu0 0
      %2619 = vmatpush1.bf16.msra.mxu0 %v2203
      %2620 = vmatprep.mubr.bf16.mxu0 %v882
      %2621 = vmatmul.mubr.bf16.gmra.mrb[0].mxu0 %v881
      %v2622 = vpop.f32.mrb[0].mxu0
      %v2623 = vadd.f32 %v1386, %v2622
      %v2624 = vpop.f32.mrb[0].mxu0
      %v2625 = vpop.f32.mrb[0].mxu0
      %v2626 = vadd.f32 %v1386, %v2625
      %v2627 = vpop.f32.mrb[0].mxu0
      %2628 = vmatprep.mubr.bf16.mxu0 %v887
      %2629 = vmatmul.mubr.bf16.gmra.mrb[0].mxu0 %v886
      %v2630 = vpop.f32.mrb[0].mxu0
      %v2631 = vadd.f32 %v1386, %v2630
      %v2632 = vpop.f32.mrb[0].mxu0
      %v2633 = vpop.f32.mrb[0].mxu0
      %v2634 = vadd.f32 %v1386, %v2633
      %v2635 = vpop.f32.mrb[0].mxu0
      %2636 = vmatprep.mubr.bf16.mxu0 %v892
      %2637 = vmatmul.mubr.bf16.gmra.mrb[0].mxu0 %v891
      %v2638 = vpop.f32.mrb[0].mxu0
      %v2639 = vadd.f32 %v1386, %v2638
      %v2640 = vpop.f32.mrb[0].mxu0
      %v2641 = vpop.f32.mrb[0].mxu0
      %v2642 = vadd.f32 %v1386, %v2641
      %v2643 = vpop.f32.mrb[0].mxu0
      %2644 = vmatprep.mubr.bf16.mxu0 %v897
      %2645 = vmatmul.mubr.bf16.gmra.mrb[0].mxu0 %v896
      %v2646 = vpop.f32.mrb[0].mxu0
      %v2647 = vadd.f32 %v1386, %v2646
      %v2648 = vpop.f32.mrb[0].mxu0
      %v2649 = vpop.f32.mrb[0].mxu0
      %v2650 = vadd.f32 %v1386, %v2649
      %v2651 = vpop.f32.mrb[0].mxu0
      %2652 = vmatprep.mubr.bf16.mxu0 %v902
      %2653 = vmatmul.mubr.bf16.gmra.mrb[0].mxu0 %v901
      %v2654 = vpop.f32.mrb[0].mxu0
      %v2655 = vadd.f32 %v1386, %v2654
      %v2656 = vpop.f32.mrb[0].mxu0
      %v2657 = vpop.f32.mrb[0].mxu0
      %v2658 = vadd.f32 %v1386, %v2657
      %v2659 = vpop.f32.mrb[0].mxu0
      %2660 = vmatprep.mubr.bf16.mxu0 %v907
      %2661 = vmatmul.mubr.bf16.gmra.mrb[0].mxu0 %v906
      %v2662 = vpop.f32.mrb[0].mxu0
      %v2663 = vadd.f32 %v1386, %v2662
      %v2664 = vpop.f32.mrb[0].mxu0
      %v2665 = vpop.f32.mrb[0].mxu0
      %v2666 = vadd.f32 %v1386, %v2665
      %v2667 = vpop.f32.mrb[0].mxu0
      %2668 = vmatprep.mubr.bf16.mxu0 %v912
      %2669 = vmatmul.mubr.bf16.gmra.mrb[0].mxu0 %v911
      %v2670 = vpop.f32.mrb[0].mxu0
      %v2671 = vadd.f32 %v1386, %v2670
      %v2672 = vpop.f32.mrb[0].mxu0
      %v2673 = vpop.f32.mrb[0].mxu0
      %v2674 = vadd.f32 %v1386, %v2673
      %v2675 = vpop.f32.mrb[0].mxu0
      %2676 = vmatprep.mubr.bf16.mxu0 %v917
      %2677 = vmatmul.mubr.bf16.gmra.mrb[0].mxu0 %v916
      %v2678 = vpop.f32.mrb[0].mxu0
      %v2679 = vadd.f32 %v1386, %v2678
      %v2680 = vpop.f32.mrb[0].mxu0
      %v2681 = vpop.f32.mrb[0].mxu0
      %v2682 = vadd.f32 %v1386, %v2681
      %v2683 = vpop.f32.mrb[0].mxu0
      %2684 = vmatprep.mubr.bf16.mxu0 %v922
      %2685 = vmatmul.mubr.bf16.gmra.mrb[0].mxu0 %v921
      %v2686 = vpop.f32.mrb[0].mxu0
      %v2687 = vadd.f32 %v1386, %v2686
      %v2688 = vpop.f32.mrb[0].mxu0
      %v2689 = vpop.f32.mrb[0].mxu0
      %v2690 = vadd.f32 %v1386, %v2689
      %v2691 = vpop.f32.mrb[0].mxu0
      %2692 = vmatprep.mubr.bf16.mxu0 %v927
      %2693 = vmatmul.mubr.bf16.gmra.mrb[0].mxu0 %v926
      %v2694 = vpop.f32.mrb[0].mxu0
      %v2695 = vadd.f32 %v1386, %v2694
      %v2696 = vpop.f32.mrb[0].mxu0
      %v2697 = vpop.f32.mrb[0].mxu0
      %v2698 = vadd.f32 %v1386, %v2697
      %v2699 = vpop.f32.mrb[0].mxu0
      %2700 = vmatprep.mubr.bf16.mxu0 %v932
      %2701 = vmatmul.mubr.bf16.gmra.mrb[0].mxu0 %v931
      %v2702 = vpop.f32.mrb[0].mxu0
      %v2703 = vadd.f32 %v1386, %v2702
      %v2704 = vpop.f32.mrb[0].mxu0
      %v2705 = vpop.f32.mrb[0].mxu0
      %v2706 = vadd.f32 %v1386, %v2705
      %v2707 = vpop.f32.mrb[0].mxu0
      %2708 = vmatprep.mubr.bf16.mxu0 %v937
      %2709 = vmatmul.mubr.bf16.gmra.mrb[0].mxu0 %v936
      %v2710 = vpop.f32.mrb[0].mxu0
      %v2711 = vadd.f32 %v1386, %v2710
      %v2712 = vpop.f32.mrb[0].mxu0
      %v2713 = vpop.f32.mrb[0].mxu0
      %v2714 = vadd.f32 %v1386, %v2713
      %v2715 = vpop.f32.mrb[0].mxu0
      %2716 = vmatprep.mubr.bf16.mxu0 %v942
      %2717 = vmatmul.mubr.bf16.gmra.mrb[0].mxu0 %v941
      %v2718 = vpop.f32.mrb[0].mxu0
      %v2719 = vadd.f32 %v1386, %v2718
      %v2720 = vpop.f32.mrb[0].mxu0
      %v2721 = vpop.f32.mrb[0].mxu0
      %v2722 = vadd.f32 %v1386, %v2721
      %v2723 = vpop.f32.mrb[0].mxu0
      %2724 = vmatprep.mubr.bf16.mxu0 %v947
      %2725 = vmatmul.mubr.bf16.gmra.mrb[0].mxu0 %v946
      %v2726 = vpop.f32.mrb[0].mxu0
      %v2727 = vadd.f32 %v1386, %v2726
      %v2728 = vpop.f32.mrb[0].mxu0
      %v2729 = vpop.f32.mrb[0].mxu0
      %v2730 = vadd.f32 %v1386, %v2729
      %v2731 = vpop.f32.mrb[0].mxu0
      %2732 = vmatprep.mubr.bf16.mxu0 %v952
      %2733 = vmatmul.mubr.bf16.gmra.mrb[0].mxu0 %v951
      %v2734 = vpop.f32.mrb[0].mxu0
      %v2735 = vadd.f32 %v1386, %v2734
      %v2736 = vpop.f32.mrb[0].mxu0
      %v2737 = vpop.f32.mrb[0].mxu0
      %v2738 = vadd.f32 %v1386, %v2737
      %v2739 = vpop.f32.mrb[0].mxu0
      %2740 = vmatprep.mubr.bf16.mxu0 %v957
      %2741 = vmatmul.mubr.bf16.gmra.mrb[0].mxu0 %v956
      %v2742 = vpop.f32.mrb[0].mxu0
      %v2743 = vadd.f32 %v1386, %v2742
      %v2744 = vpop.f32.mrb[0].mxu0
      %v2745 = vpop.f32.mrb[0].mxu0
      %v2746 = vadd.f32 %v1386, %v2745
      %v2747 = vpop.f32.mrb[0].mxu0
      %2748 = vdwg.mxu0
      %2749 = vmatprep.subr.bf16.mxu0 0
      %2750 = vmatpush1.bf16.msra.mxu0 %v2204
      %2751 = vmatprep.subr.bf16.mxu0 0
      %2752 = vmatpush1.bf16.msra.mxu0 %v2205
      %2753 = vmatprep.subr.bf16.mxu0 0
      %2754 = vmatpush1.bf16.msra.mxu0 %v2206
      %2755 = vmatprep.subr.bf16.mxu0 0
      %2756 = vmatpush1.bf16.msra.mxu0 %v2207
      %2757 = vmatprep.subr.bf16.mxu0 0
      %2758 = vmatpush1.bf16.msra.mxu0 %v2208
      %2759 = vmatprep.subr.bf16.mxu0 0
      %2760 = vmatpush1.bf16.msra.mxu0 %v2209
      %2761 = vmatprep.subr.bf16.mxu0 0
      %2762 = vmatpush1.bf16.msra.mxu0 %v2210
      %2763 = vmatprep.subr.bf16.mxu0 0
      %2764 = vmatpush1.bf16.msra.mxu0 %v2211
      %2765 = vmatprep.subr.bf16.mxu0 0
      %2766 = vmatpush1.bf16.msra.mxu0 %v2212
      %2767 = vmatprep.subr.bf16.mxu0 0
      %2768 = vmatpush1.bf16.msra.mxu0 %v2213
      %2769 = vmatprep.subr.bf16.mxu0 0
      %2770 = vmatpush1.bf16.msra.mxu0 %v2214
      %2771 = vmatprep.subr.bf16.mxu0 0
      %2772 = vmatpush1.bf16.msra.mxu0 %v2215
      %2773 = vmatprep.subr.bf16.mxu0 0
      %2774 = vmatpush1.bf16.msra.mxu0 %v2216
      %2775 = vmatprep.subr.bf16.mxu0 0
      %2776 = vmatpush1.bf16.msra.mxu0 %v2217
      %2777 = vmatprep.subr.bf16.mxu0 0
      %2778 = vmatpush1.bf16.msra.mxu0 %v2218
      %2779 = vmatprep.subr.bf16.mxu0 0
      %2780 = vmatpush1.bf16.msra.mxu0 %v2219
      %2781 = vmatprep.mubr.bf16.mxu0 %v884
      %2782 = vmatmul.mubr.bf16.gmra.mrb[0].mxu0 %v883
      %v2783 = vpop.f32.mrb[0].mxu0
      %v2784 = vadd.f32 %v2623, %v2783
      %v2785 = vpop.f32.mrb[0].mxu0
      %v2786 = vpop.f32.mrb[0].mxu0
      %v2787 = vadd.f32 %v2626, %v2786
      %v2788 = vpop.f32.mrb[0].mxu0
      %2789 = vmatprep.mubr.bf16.mxu0 %v889
      %2790 = vmatmul.mubr.bf16.gmra.mrb[0].mxu0 %v888
      %v2791 = vpop.f32.mrb[0].mxu0
      %v2792 = vadd.f32 %v2631, %v2791
      %v2793 = vpop.f32.mrb[0].mxu0
      %v2794 = vpop.f32.mrb[0].mxu0
      %v2795 = vadd.f32 %v2634, %v2794
      %v2796 = vpop.f32.mrb[0].mxu0
      %2797 = vmatprep.mubr.bf16.mxu0 %v894
      %2798 = vmatmul.mubr.bf16.gmra.mrb[0].mxu0 %v893
      %v2799 = vpop.f32.mrb[0].mxu0
      %v2800 = vadd.f32 %v2639, %v2799
      %v2801 = vpop.f32.mrb[0].mxu0
      %v2802 = vpop.f32.mrb[0].mxu0
      %v2803 = vadd.f32 %v2642, %v2802
      %v2804 = vpop.f32.mrb[0].mxu0
      %2805 = vmatprep.mubr.bf16.mxu0 %v899
      %2806 = vmatmul.mubr.bf16.gmra.mrb[0].mxu0 %v898
      %v2807 = vpop.f32.mrb[0].mxu0
      %v2808 = vadd.f32 %v2647, %v2807
      %v2809 = vpop.f32.mrb[0].mxu0
      %v2810 = vpop.f32.mrb[0].mxu0
      %v2811 = vadd.f32 %v2650, %v2810
      %v2812 = vpop.f32.mrb[0].mxu0
      %2813 = vmatprep.mubr.bf16.mxu0 %v904
      %2814 = vmatmul.mubr.bf16.gmra.mrb[0].mxu0 %v903
      %v2815 = vpop.f32.mrb[0].mxu0
      %v2816 = vadd.f32 %v2655, %v2815
      %v2817 = vpop.f32.mrb[0].mxu0
      %v2818 = vpop.f32.mrb[0].mxu0
      %v2819 = vadd.f32 %v2658, %v2818
      %v2820 = vpop.f32.mrb[0].mxu0
      %2821 = vmatprep.mubr.bf16.mxu0 %v909
      %2822 = vmatmul.mubr.bf16.gmra.mrb[0].mxu0 %v908
      %v2823 = vpop.f32.mrb[0].mxu0
      %v2824 = vadd.f32 %v2663, %v2823
      %v2825 = vpop.f32.mrb[0].mxu0
      %v2826 = vpop.f32.mrb[0].mxu0
      %v2827 = vadd.f32 %v2666, %v2826
      %v2828 = vpop.f32.mrb[0].mxu0
      %2829 = vmatprep.mubr.bf16.mxu0 %v914
      %2830 = vmatmul.mubr.bf16.gmra.mrb[0].mxu0 %v913
      %v2831 = vpop.f32.mrb[0].mxu0
      %v2832 = vadd.f32 %v2671, %v2831
      %v2833 = vpop.f32.mrb[0].mxu0
      %v2834 = vpop.f32.mrb[0].mxu0
      %v2835 = vadd.f32 %v2674, %v2834
      %v2836 = vpop.f32.mrb[0].mxu0
      %2837 = vmatprep.mubr.bf16.mxu0 %v919
      %2838 = vmatmul.mubr.bf16.gmra.mrb[0].mxu0 %v918
      %v2839 = vpop.f32.mrb[0].mxu0
      %v2840 = vadd.f32 %v2679, %v2839
      %v2841 = vpop.f32.mrb[0].mxu0
      %v2842 = vpop.f32.mrb[0].mxu0
      %v2843 = vadd.f32 %v2682, %v2842
      %v2844 = vpop.f32.mrb[0].mxu0
      %2845 = vmatprep.mubr.bf16.mxu0 %v924
      %2846 = vmatmul.mubr.bf16.gmra.mrb[0].mxu0 %v923
      %v2847 = vpop.f32.mrb[0].mxu0
      %v2848 = vadd.f32 %v2687, %v2847
      %v2849 = vpop.f32.mrb[0].mxu0
      %v2850 = vpop.f32.mrb[0].mxu0
      %v2851 = vadd.f32 %v2690, %v2850
      %v2852 = vpop.f32.mrb[0].mxu0
      %2853 = vmatprep.mubr.bf16.mxu0 %v929
      %2854 = vmatmul.mubr.bf16.gmra.mrb[0].mxu0 %v928
      %v2855 = vpop.f32.mrb[0].mxu0
      %v2856 = vadd.f32 %v2695, %v2855
      %v2857 = vpop.f32.mrb[0].mxu0
      %v2858 = vpop.f32.mrb[0].mxu0
      %v2859 = vadd.f32 %v2698, %v2858
      %v2860 = vpop.f32.mrb[0].mxu0
      %2861 = vmatprep.mubr.bf16.mxu0 %v934
      %2862 = vmatmul.mubr.bf16.gmra.mrb[0].mxu0 %v933
      %v2863 = vpop.f32.mrb[0].mxu0
      %v2864 = vadd.f32 %v2703, %v2863
      %v2865 = vpop.f32.mrb[0].mxu0
      %v2866 = vpop.f32.mrb[0].mxu0
      %v2867 = vadd.f32 %v2706, %v2866
      %v2868 = vpop.f32.mrb[0].mxu0
      %2869 = vmatprep.mubr.bf16.mxu0 %v939
      %2870 = vmatmul.mubr.bf16.gmra.mrb[0].mxu0 %v938
      %v2871 = vpop.f32.mrb[0].mxu0
      %v2872 = vadd.f32 %v2711, %v2871
      %v2873 = vpop.f32.mrb[0].mxu0
      %v2874 = vpop.f32.mrb[0].mxu0
      %v2875 = vadd.f32 %v2714, %v2874
      %v2876 = vpop.f32.mrb[0].mxu0
      %2877 = vmatprep.mubr.bf16.mxu0 %v944
      %2878 = vmatmul.mubr.bf16.gmra.mrb[0].mxu0 %v943
      %v2879 = vpop.f32.mrb[0].mxu0
      %v2880 = vadd.f32 %v2719, %v2879
      %v2881 = vpop.f32.mrb[0].mxu0
      %v2882 = vpop.f32.mrb[0].mxu0
      %v2883 = vadd.f32 %v2722, %v2882
      %v2884 = vpop.f32.mrb[0].mxu0
      %2885 = vmatprep.mubr.bf16.mxu0 %v949
      %2886 = vmatmul.mubr.bf16.gmra.mrb[0].mxu0 %v948
      %v2887 = vpop.f32.mrb[0].mxu0
      %v2888 = vadd.f32 %v2727, %v2887
      %v2889 = vpop.f32.mrb[0].mxu0
      %v2890 = vpop.f32.mrb[0].mxu0
      %v2891 = vadd.f32 %v2730, %v2890
      %v2892 = vpop.f32.mrb[0].mxu0
      %2893 = vmatprep.mubr.bf16.mxu0 %v954
      %2894 = vmatmul.mubr.bf16.gmra.mrb[0].mxu0 %v953
      %v2895 = vpop.f32.mrb[0].mxu0
      %v2896 = vadd.f32 %v2735, %v2895
      %v2897 = vpop.f32.mrb[0].mxu0
      %v2898 = vpop.f32.mrb[0].mxu0
      %v2899 = vadd.f32 %v2738, %v2898
      %v2900 = vpop.f32.mrb[0].mxu0
      %2901 = vmatprep.mubr.bf16.mxu0 %v959
      %2902 = vmatmul.mubr.bf16.gmra.mrb[0].mxu0 %v958
      %v2903 = vpop.f32.mrb[0].mxu0
      %v2904 = vadd.f32 %v2743, %v2903
      %v2905 = vpop.f32.mrb[0].mxu0
      %v2906 = vpop.f32.mrb[0].mxu0
      %v2907 = vadd.f32 %v2746, %v2906
      %v2908 = vpop.f32.mrb[0].mxu0
      %2909 = vdwg.mxu0
      %2910 = vmatprep.subr.bf16.mxu0 0
      %2911 = vmatpush1.bf16.msra.mxu0 %v2220
      %2912 = vmatprep.subr.bf16.mxu0 0
      %2913 = vmatpush1.bf16.msra.mxu0 %v2221
      %2914 = vmatprep.subr.bf16.mxu0 0
      %2915 = vmatpush1.bf16.msra.mxu0 %v2222
      %2916 = vmatprep.subr.bf16.mxu0 0
      %2917 = vmatpush1.bf16.msra.mxu0 %v2223
      %2918 = vmatprep.subr.bf16.mxu0 0
      %2919 = vmatpush1.bf16.msra.mxu0 %v2224
      %2920 = vmatprep.subr.bf16.mxu0 0
      %2921 = vmatpush1.bf16.msra.mxu0 %v2225
      %2922 = vmatprep.subr.bf16.mxu0 0
      %2923 = vmatpush1.bf16.msra.mxu0 %v2226
      %2924 = vmatprep.subr.bf16.mxu0 0
      %2925 = vmatpush1.bf16.msra.mxu0 %v2227
      %2926 = vmatprep.subr.bf16.mxu0 0
      %2927 = vmatpush1.bf16.msra.mxu0 %v2228
      %2928 = vmatprep.subr.bf16.mxu0 0
      %2929 = vmatpush1.bf16.msra.mxu0 %v2229
      %2930 = vmatprep.subr.bf16.mxu0 0
      %2931 = vmatpush1.bf16.msra.mxu0 %v2230
      %2932 = vmatprep.subr.bf16.mxu0 0
      %2933 = vmatpush1.bf16.msra.mxu0 %v2231
      %2934 = vmatprep.subr.bf16.mxu0 0
      %2935 = vmatpush1.bf16.msra.mxu0 %v2232
      %2936 = vmatprep.subr.bf16.mxu0 0
      %2937 = vmatpush1.bf16.msra.mxu0 %v2233
      %2938 = vmatprep.subr.bf16.mxu0 0
      %2939 = vmatpush1.bf16.msra.mxu0 %v2234
      %2940 = vmatprep.subr.bf16.mxu0 0
      %2941 = vmatpush1.bf16.msra.mxu0 %v2235
      %2942 = vmatprep.mubr.bf16.mxu0 %v886
      %2943 = vmatmul.mubr.bf16.gmra.mrb[0].mxu0 %v885
      %v2944 = vpop.f32.mrb[0].mxu0
      %v2945 = vadd.f32 %v2784, %v2944
      %v2946 = vpop.f32.mrb[0].mxu0
      %v2947 = vpop.f32.mrb[0].mxu0
      %v2948 = vadd.f32 %v2787, %v2947
      %v2949 = vpop.f32.mrb[0].mxu0
      %2950 = vmatprep.mubr.bf16.mxu0 %v891
      %2951 = vmatmul.mubr.bf16.gmra.mrb[0].mxu0 %v890
      %v2952 = vpop.f32.mrb[0].mxu0
      %v2953 = vadd.f32 %v2792, %v2952
      %v2954 = vpop.f32.mrb[0].mxu0
      %v2955 = vpop.f32.mrb[0].mxu0
      %v2956 = vadd.f32 %v2795, %v2955
      %v2957 = vpop.f32.mrb[0].mxu0
      %2958 = vmatprep.mubr.bf16.mxu0 %v896
      %2959 = vmatmul.mubr.bf16.gmra.mrb[0].mxu0 %v895
      %v2960 = vpop.f32.mrb[0].mxu0
      %v2961 = vadd.f32 %v2800, %v2960
      %v2962 = vpop.f32.mrb[0].mxu0
      %v2963 = vpop.f32.mrb[0].mxu0
      %v2964 = vadd.f32 %v2803, %v2963
      %v2965 = vpop.f32.mrb[0].mxu0
      %2966 = vmatprep.mubr.bf16.mxu0 %v901
      %2967 = vmatmul.mubr.bf16.gmra.mrb[0].mxu0 %v900
      %v2968 = vpop.f32.mrb[0].mxu0
      %v2969 = vadd.f32 %v2808, %v2968
      %v2970 = vpop.f32.mrb[0].mxu0
      %v2971 = vpop.f32.mrb[0].mxu0
      %v2972 = vadd.f32 %v2811, %v2971
      %v2973 = vpop.f32.mrb[0].mxu0
      %2974 = vmatprep.mubr.bf16.mxu0 %v906
      %2975 = vmatmul.mubr.bf16.gmra.mrb[0].mxu0 %v905
      %v2976 = vpop.f32.mrb[0].mxu0
      %v2977 = vadd.f32 %v2816, %v2976
      %v2978 = vpop.f32.mrb[0].mxu0
      %v2979 = vpop.f32.mrb[0].mxu0
      %v2980 = vadd.f32 %v2819, %v2979
      %v2981 = vpop.f32.mrb[0].mxu0
      %2982 = vmatprep.mubr.bf16.mxu0 %v911
      %2983 = vmatmul.mubr.bf16.gmra.mrb[0].mxu0 %v910
      %v2984 = vpop.f32.mrb[0].mxu0
      %v2985 = vadd.f32 %v2824, %v2984
      %v2986 = vpop.f32.mrb[0].mxu0
      %v2987 = vpop.f32.mrb[0].mxu0
      %v2988 = vadd.f32 %v2827, %v2987
      %v2989 = vpop.f32.mrb[0].mxu0
      %2990 = vmatprep.mubr.bf16.mxu0 %v916
      %2991 = vmatmul.mubr.bf16.gmra.mrb[0].mxu0 %v915
      %v2992 = vpop.f32.mrb[0].mxu0
      %v2993 = vadd.f32 %v2832, %v2992
      %v2994 = vpop.f32.mrb[0].mxu0
      %v2995 = vpop.f32.mrb[0].mxu0
      %v2996 = vadd.f32 %v2835, %v2995
      %v2997 = vpop.f32.mrb[0].mxu0
      %2998 = vmatprep.mubr.bf16.mxu0 %v921
      %2999 = vmatmul.mubr.bf16.gmra.mrb[0].mxu0 %v920
      %v3000 = vpop.f32.mrb[0].mxu0
      %v3001 = vadd.f32 %v2840, %v3000
      %v3002 = vpop.f32.mrb[0].mxu0
      %v3003 = vpop.f32.mrb[0].mxu0
      %v3004 = vadd.f32 %v2843, %v3003
      %v3005 = vpop.f32.mrb[0].mxu0
      %3006 = vmatprep.mubr.bf16.mxu0 %v926
      %3007 = vmatmul.mubr.bf16.gmra.mrb[0].mxu0 %v925
      %v3008 = vpop.f32.mrb[0].mxu0
      %v3009 = vadd.f32 %v2848, %v3008
      %v3010 = vpop.f32.mrb[0].mxu0
      %v3011 = vpop.f32.mrb[0].mxu0
      %v3012 = vadd.f32 %v2851, %v3011
      %v3013 = vpop.f32.mrb[0].mxu0
      %3014 = vmatprep.mubr.bf16.mxu0 %v931
      %3015 = vmatmul.mubr.bf16.gmra.mrb[0].mxu0 %v930
      %v3016 = vpop.f32.mrb[0].mxu0
      %v3017 = vadd.f32 %v2856, %v3016
      %v3018 = vpop.f32.mrb[0].mxu0
      %v3019 = vpop.f32.mrb[0].mxu0
      %v3020 = vadd.f32 %v2859, %v3019
      %v3021 = vpop.f32.mrb[0].mxu0
      %3022 = vmatprep.mubr.bf16.mxu0 %v936
      %3023 = vmatmul.mubr.bf16.gmra.mrb[0].mxu0 %v935
      %v3024 = vpop.f32.mrb[0].mxu0
      %v3025 = vadd.f32 %v2864, %v3024
      %v3026 = vpop.f32.mrb[0].mxu0
      %v3027 = vpop.f32.mrb[0].mxu0
      %v3028 = vadd.f32 %v2867, %v3027
      %v3029 = vpop.f32.mrb[0].mxu0
      %3030 = vmatprep.mubr.bf16.mxu0 %v941
      %3031 = vmatmul.mubr.bf16.gmra.mrb[0].mxu0 %v940
      %v3032 = vpop.f32.mrb[0].mxu0
      %v3033 = vadd.f32 %v2872, %v3032
      %v3034 = vpop.f32.mrb[0].mxu0
      %v3035 = vpop.f32.mrb[0].mxu0
      %v3036 = vadd.f32 %v2875, %v3035
      %v3037 = vpop.f32.mrb[0].mxu0
      %3038 = vmatprep.mubr.bf16.mxu0 %v946
      %3039 = vmatmul.mubr.bf16.gmra.mrb[0].mxu0 %v945
      %v3040 = vpop.f32.mrb[0].mxu0
      %v3041 = vadd.f32 %v2880, %v3040
      %v3042 = vpop.f32.mrb[0].mxu0
      %v3043 = vpop.f32.mrb[0].mxu0
      %v3044 = vadd.f32 %v2883, %v3043
      %v3045 = vpop.f32.mrb[0].mxu0
      %3046 = vmatprep.mubr.bf16.mxu0 %v951
      %3047 = vmatmul.mubr.bf16.gmra.mrb[0].mxu0 %v950
      %v3048 = vpop.f32.mrb[0].mxu0
      %v3049 = vadd.f32 %v2888, %v3048
      %v3050 = vpop.f32.mrb[0].mxu0
      %v3051 = vpop.f32.mrb[0].mxu0
      %v3052 = vadd.f32 %v2891, %v3051
      %v3053 = vpop.f32.mrb[0].mxu0
      %3054 = vmatprep.mubr.bf16.mxu0 %v956
      %3055 = vmatmul.mubr.bf16.gmra.mrb[0].mxu0 %v955
      %v3056 = vpop.f32.mrb[0].mxu0
      %v3057 = vadd.f32 %v2896, %v3056
      %v3058 = vpop.f32.mrb[0].mxu0
      %v3059 = vpop.f32.mrb[0].mxu0
      %v3060 = vadd.f32 %v2899, %v3059
      %v3061 = vpop.f32.mrb[0].mxu0
      %3062 = vmatprep.mubr.bf16.mxu0 %v961
      %3063 = vmatmul.mubr.bf16.gmra.mrb[0].mxu0 %v960
      %v3064 = vpop.f32.mrb[0].mxu0
      %v3065 = vadd.f32 %v2904, %v3064
      %v3066 = vpop.f32.mrb[0].mxu0
      %v3067 = vpop.f32.mrb[0].mxu0
      %v3068 = vadd.f32 %v2907, %v3067
      %v3069 = vpop.f32.mrb[0].mxu0
      %3070 = vdwg.mxu0
      %3071 = vmatprep.subr.bf16.mxu0 0
      %3072 = vmatpush1.bf16.msra.mxu0 %v2236
      %3073 = vmatprep.subr.bf16.mxu0 0
      %3074 = vmatpush1.bf16.msra.mxu0 %v2237
      %3075 = vmatprep.subr.bf16.mxu0 0
      %3076 = vmatpush1.bf16.msra.mxu0 %v2238
      %3077 = vmatprep.subr.bf16.mxu0 0
      %3078 = vmatpush1.bf16.msra.mxu0 %v2239
      %3079 = vmatprep.subr.bf16.mxu0 0
      %3080 = vmatpush1.bf16.msra.mxu0 %v2240
      %3081 = vmatprep.subr.bf16.mxu0 0
      %3082 = vmatpush1.bf16.msra.mxu0 %v2241
      %3083 = vmatprep.subr.bf16.mxu0 0
      %3084 = vmatpush1.bf16.msra.mxu0 %v2242
      %3085 = vmatprep.subr.bf16.mxu0 0
      %3086 = vmatpush1.bf16.msra.mxu0 %v2243
      %3087 = vmatprep.subr.bf16.mxu0 0
      %3088 = vmatpush1.bf16.msra.mxu0 %v2244
      %3089 = vmatprep.subr.bf16.mxu0 0
      %3090 = vmatpush1.bf16.msra.mxu0 %v2245
      %3091 = vmatprep.subr.bf16.mxu0 0
      %3092 = vmatpush1.bf16.msra.mxu0 %v2246
      %3093 = vmatprep.subr.bf16.mxu0 0
      %3094 = vmatpush1.bf16.msra.mxu0 %v2247
      %3095 = vmatprep.subr.bf16.mxu0 0
      %3096 = vmatpush1.bf16.msra.mxu0 %v2248
      %3097 = vmatprep.subr.bf16.mxu0 0
      %3098 = vmatpush1.bf16.msra.mxu0 %v2249
      %3099 = vmatprep.subr.bf16.mxu0 0
      %3100 = vmatpush1.bf16.msra.mxu0 %v2250
      %3101 = vmatprep.subr.bf16.mxu0 0
      %3102 = vmatpush1.bf16.msra.mxu0 %v2251
      %3103 = vmatprep.mubr.bf16.mxu0 %v888
      %3104 = vmatmul.mubr.bf16.gmra.mrb[0].mxu0 %v887
      %v3105 = vpop.f32.mrb[0].mxu0
      %v3106 = vadd.f32 %v2945, %v3105
      %v3107 = vpop.f32.mrb[0].mxu0
      %v3108 = vpop.f32.mrb[0].mxu0
      %v3109 = vadd.f32 %v2948, %v3108
      %v3110 = vpop.f32.mrb[0].mxu0
      %3111 = vmatprep.mubr.bf16.mxu0 %v893
      %3112 = vmatmul.mubr.bf16.gmra.mrb[0].mxu0 %v892
      %v3113 = vpop.f32.mrb[0].mxu0
      %v3114 = vadd.f32 %v2953, %v3113
      %v3115 = vpop.f32.mrb[0].mxu0
      %v3116 = vpop.f32.mrb[0].mxu0
      %v3117 = vadd.f32 %v2956, %v3116
      %v3118 = vpop.f32.mrb[0].mxu0
      %3119 = vmatprep.mubr.bf16.mxu0 %v898
      %3120 = vmatmul.mubr.bf16.gmra.mrb[0].mxu0 %v897
      %v3121 = vpop.f32.mrb[0].mxu0
      %v3122 = vadd.f32 %v2961, %v3121
      %v3123 = vpop.f32.mrb[0].mxu0
      %v3124 = vpop.f32.mrb[0].mxu0
      %v3125 = vadd.f32 %v2964, %v3124
      %v3126 = vpop.f32.mrb[0].mxu0
      %3127 = vmatprep.mubr.bf16.mxu0 %v903
      %3128 = vmatmul.mubr.bf16.gmra.mrb[0].mxu0 %v902
      %v3129 = vpop.f32.mrb[0].mxu0
      %v3130 = vadd.f32 %v2969, %v3129
      %v3131 = vpop.f32.mrb[0].mxu0
      %v3132 = vpop.f32.mrb[0].mxu0
      %v3133 = vadd.f32 %v2972, %v3132
      %v3134 = vpop.f32.mrb[0].mxu0
      %3135 = vmatprep.mubr.bf16.mxu0 %v908
      %3136 = vmatmul.mubr.bf16.gmra.mrb[0].mxu0 %v907
      %v3137 = vpop.f32.mrb[0].mxu0
      %v3138 = vadd.f32 %v2977, %v3137
      %v3139 = vpop.f32.mrb[0].mxu0
      %v3140 = vpop.f32.mrb[0].mxu0
      %v3141 = vadd.f32 %v2980, %v3140
      %v3142 = vpop.f32.mrb[0].mxu0
      %3143 = vmatprep.mubr.bf16.mxu0 %v913
      %3144 = vmatmul.mubr.bf16.gmra.mrb[0].mxu0 %v912
      %v3145 = vpop.f32.mrb[0].mxu0
      %v3146 = vadd.f32 %v2985, %v3145
      %v3147 = vpop.f32.mrb[0].mxu0
      %v3148 = vpop.f32.mrb[0].mxu0
      %v3149 = vadd.f32 %v2988, %v3148
      %v3150 = vpop.f32.mrb[0].mxu0
      %3151 = vmatprep.mubr.bf16.mxu0 %v918
      %3152 = vmatmul.mubr.bf16.gmra.mrb[0].mxu0 %v917
      %v3153 = vpop.f32.mrb[0].mxu0
      %v3154 = vadd.f32 %v2993, %v3153
      %v3155 = vpop.f32.mrb[0].mxu0
      %v3156 = vpop.f32.mrb[0].mxu0
      %v3157 = vadd.f32 %v2996, %v3156
      %v3158 = vpop.f32.mrb[0].mxu0
      %3159 = vmatprep.mubr.bf16.mxu0 %v923
      %3160 = vmatmul.mubr.bf16.gmra.mrb[0].mxu0 %v922
      %v3161 = vpop.f32.mrb[0].mxu0
      %v3162 = vadd.f32 %v3001, %v3161
      %v3163 = vpop.f32.mrb[0].mxu0
      %v3164 = vpop.f32.mrb[0].mxu0
      %v3165 = vadd.f32 %v3004, %v3164
      %v3166 = vpop.f32.mrb[0].mxu0
      %3167 = vmatprep.mubr.bf16.mxu0 %v928
      %3168 = vmatmul.mubr.bf16.gmra.mrb[0].mxu0 %v927
      %v3169 = vpop.f32.mrb[0].mxu0
      %v3170 = vadd.f32 %v3009, %v3169
      %v3171 = vpop.f32.mrb[0].mxu0
      %v3172 = vpop.f32.mrb[0].mxu0
      %v3173 = vadd.f32 %v3012, %v3172
      %v3174 = vpop.f32.mrb[0].mxu0
      %3175 = vmatprep.mubr.bf16.mxu0 %v933
      %3176 = vmatmul.mubr.bf16.gmra.mrb[0].mxu0 %v932
      %v3177 = vpop.f32.mrb[0].mxu0
      %v3178 = vadd.f32 %v3017, %v3177
      %v3179 = vpop.f32.mrb[0].mxu0
      %v3180 = vpop.f32.mrb[0].mxu0
      %v3181 = vadd.f32 %v3020, %v3180
      %v3182 = vpop.f32.mrb[0].mxu0
      %3183 = vmatprep.mubr.bf16.mxu0 %v938
      %3184 = vmatmul.mubr.bf16.gmra.mrb[0].mxu0 %v937
      %v3185 = vpop.f32.mrb[0].mxu0
      %v3186 = vadd.f32 %v3025, %v3185
      %v3187 = vpop.f32.mrb[0].mxu0
      %v3188 = vpop.f32.mrb[0].mxu0
      %v3189 = vadd.f32 %v3028, %v3188
      %v3190 = vpop.f32.mrb[0].mxu0
      %3191 = vmatprep.mubr.bf16.mxu0 %v943
      %3192 = vmatmul.mubr.bf16.gmra.mrb[0].mxu0 %v942
      %v3193 = vpop.f32.mrb[0].mxu0
      %v3194 = vadd.f32 %v3033, %v3193
      %v3195 = vpop.f32.mrb[0].mxu0
      %v3196 = vpop.f32.mrb[0].mxu0
      %v3197 = vadd.f32 %v3036, %v3196
      %v3198 = vpop.f32.mrb[0].mxu0
      %3199 = vmatprep.mubr.bf16.mxu0 %v948
      %3200 = vmatmul.mubr.bf16.gmra.mrb[0].mxu0 %v947
      %v3201 = vpop.f32.mrb[0].mxu0
      %v3202 = vadd.f32 %v3041, %v3201
      %v3203 = vpop.f32.mrb[0].mxu0
      %v3204 = vpop.f32.mrb[0].mxu0
      %v3205 = vadd.f32 %v3044, %v3204
      %v3206 = vpop.f32.mrb[0].mxu0
      %3207 = vmatprep.mubr.bf16.mxu0 %v953
      %3208 = vmatmul.mubr.bf16.gmra.mrb[0].mxu0 %v952
      %v3209 = vpop.f32.mrb[0].mxu0
      %v3210 = vadd.f32 %v3049, %v3209
      %v3211 = vpop.f32.mrb[0].mxu0
      %v3212 = vpop.f32.mrb[0].mxu0
      %v3213 = vadd.f32 %v3052, %v3212
      %v3214 = vpop.f32.mrb[0].mxu0
      %3215 = vmatprep.mubr.bf16.mxu0 %v958
      %3216 = vmatmul.mubr.bf16.gmra.mrb[0].mxu0 %v957
      %v3217 = vpop.f32.mrb[0].mxu0
      %v3218 = vadd.f32 %v3057, %v3217
      %v3219 = vpop.f32.mrb[0].mxu0
      %v3220 = vpop.f32.mrb[0].mxu0
      %v3221 = vadd.f32 %v3060, %v3220
      %v3222 = vpop.f32.mrb[0].mxu0
      %3223 = vmatprep.mubr.bf16.mxu0 %v963
      %3224 = vmatmul.mubr.bf16.gmra.mrb[0].mxu0 %v962
      %v3225 = vpop.f32.mrb[0].mxu0
      %v3226 = vadd.f32 %v3065, %v3225
      %v3227 = vpop.f32.mrb[0].mxu0
      %v3228 = vpop.f32.mrb[0].mxu0
      %v3229 = vadd.f32 %v3068, %v3228
      %v3230 = vpop.f32.mrb[0].mxu0
      %3231 = vdwg.mxu0
      %3232 = vmatprep.subr.bf16.mxu0 0
      %3233 = vmatpush1.bf16.msra.mxu0 %v2252
      %3234 = vmatprep.subr.bf16.mxu0 0
      %3235 = vmatpush1.bf16.msra.mxu0 %v2253
      %3236 = vmatprep.subr.bf16.mxu0 0
      %3237 = vmatpush1.bf16.msra.mxu0 %v2254
      %3238 = vmatprep.subr.bf16.mxu0 0
      %3239 = vmatpush1.bf16.msra.mxu0 %v2255
      %3240 = vmatprep.subr.bf16.mxu0 0
      %3241 = vmatpush1.bf16.msra.mxu0 %v2256
      %3242 = vmatprep.subr.bf16.mxu0 0
      %3243 = vmatpush1.bf16.msra.mxu0 %v2257
      %3244 = vmatprep.subr.bf16.mxu0 0
      %3245 = vmatpush1.bf16.msra.mxu0 %v2258
      %3246 = vmatprep.subr.bf16.mxu0 0
      %3247 = vmatpush1.bf16.msra.mxu0 %v2259
      %3248 = vmatprep.subr.bf16.mxu0 0
      %3249 = vmatpush1.bf16.msra.mxu0 %v2260
      %3250 = vmatprep.subr.bf16.mxu0 0
      %3251 = vmatpush1.bf16.msra.mxu0 %v2261
      %3252 = vmatprep.subr.bf16.mxu0 0
      %3253 = vmatpush1.bf16.msra.mxu0 %v2262
      %3254 = vmatprep.subr.bf16.mxu0 0
      %3255 = vmatpush1.bf16.msra.mxu0 %v2263
      %3256 = vmatprep.subr.bf16.mxu0 0
      %3257 = vmatpush1.bf16.msra.mxu0 %v2264
      %3258 = vmatprep.subr.bf16.mxu0 0
      %3259 = vmatpush1.bf16.msra.mxu0 %v2265
      %3260 = vmatprep.subr.bf16.mxu0 0
      %3261 = vmatpush1.bf16.msra.mxu0 %v2266
      %3262 = vmatprep.subr.bf16.mxu0 0
      %3263 = vmatpush1.bf16.msra.mxu0 %v2267
      %3264 = vmatprep.mubr.bf16.mxu0 %v890
      %3265 = vmatmul.mubr.bf16.gmra.mrb[0].mxu0 %v889
      %v3266 = vpop.f32.mrb[0].mxu0
      %v3267 = vadd.f32 %v3106, %v3266
      %v3268 = vpop.f32.mrb[0].mxu0
      %v3269 = vpop.f32.mrb[0].mxu0
      %v3270 = vadd.f32 %v3109, %v3269
      %v3271 = vpop.f32.mrb[0].mxu0
      %3272 = vmatprep.mubr.bf16.mxu0 %v895
      %3273 = vmatmul.mubr.bf16.gmra.mrb[0].mxu0 %v894
      %v3274 = vpop.f32.mrb[0].mxu0
      %v3275 = vadd.f32 %v3114, %v3274
      %v3276 = vpop.f32.mrb[0].mxu0
      %v3277 = vpop.f32.mrb[0].mxu0
      %v3278 = vadd.f32 %v3117, %v3277
      %v3279 = vpop.f32.mrb[0].mxu0
      %3280 = vmatprep.mubr.bf16.mxu0 %v900
      %3281 = vmatmul.mubr.bf16.gmra.mrb[0].mxu0 %v899
      %v3282 = vpop.f32.mrb[0].mxu0
      %v3283 = vadd.f32 %v3122, %v3282
      %v3284 = vpop.f32.mrb[0].mxu0
      %v3285 = vpop.f32.mrb[0].mxu0
      %v3286 = vadd.f32 %v3125, %v3285
      %v3287 = vpop.f32.mrb[0].mxu0
      %3288 = vmatprep.mubr.bf16.mxu0 %v905
      %3289 = vmatmul.mubr.bf16.gmra.mrb[0].mxu0 %v904
      %v3290 = vpop.f32.mrb[0].mxu0
      %v3291 = vadd.f32 %v3130, %v3290
      %v3292 = vpop.f32.mrb[0].mxu0
      %v3293 = vpop.f32.mrb[0].mxu0
      %v3294 = vadd.f32 %v3133, %v3293
      %v3295 = vpop.f32.mrb[0].mxu0
      %3296 = vmatprep.mubr.bf16.mxu0 %v910
      %3297 = vmatmul.mubr.bf16.gmra.mrb[0].mxu0 %v909
      %v3298 = vpop.f32.mrb[0].mxu0
      %v3299 = vadd.f32 %v3138, %v3298
      %v3300 = vpop.f32.mrb[0].mxu0
      %v3301 = vpop.f32.mrb[0].mxu0
      %v3302 = vadd.f32 %v3141, %v3301
      %v3303 = vpop.f32.mrb[0].mxu0
      %3304 = vmatprep.mubr.bf16.mxu0 %v915
      %3305 = vmatmul.mubr.bf16.gmra.mrb[0].mxu0 %v914
      %v3306 = vpop.f32.mrb[0].mxu0
      %v3307 = vadd.f32 %v3146, %v3306
      %v3308 = vpop.f32.mrb[0].mxu0
      %v3309 = vpop.f32.mrb[0].mxu0
      %v3310 = vadd.f32 %v3149, %v3309
      %v3311 = vpop.f32.mrb[0].mxu0
      %3312 = vmatprep.mubr.bf16.mxu0 %v920
      %3313 = vmatmul.mubr.bf16.gmra.mrb[0].mxu0 %v919
      %v3314 = vpop.f32.mrb[0].mxu0
      %v3315 = vadd.f32 %v3154, %v3314
      %v3316 = vpop.f32.mrb[0].mxu0
      %v3317 = vpop.f32.mrb[0].mxu0
      %v3318 = vadd.f32 %v3157, %v3317
      %v3319 = vpop.f32.mrb[0].mxu0
      %3320 = vmatprep.mubr.bf16.mxu0 %v925
      %3321 = vmatmul.mubr.bf16.gmra.mrb[0].mxu0 %v924
      %v3322 = vpop.f32.mrb[0].mxu0
      %v3323 = vadd.f32 %v3162, %v3322
      %v3324 = vpop.f32.mrb[0].mxu0
      %v3325 = vpop.f32.mrb[0].mxu0
      %v3326 = vadd.f32 %v3165, %v3325
      %v3327 = vpop.f32.mrb[0].mxu0
      %3328 = vmatprep.mubr.bf16.mxu0 %v930
      %3329 = vmatmul.mubr.bf16.gmra.mrb[0].mxu0 %v929
      %v3330 = vpop.f32.mrb[0].mxu0
      %v3331 = vadd.f32 %v3170, %v3330
      %v3332 = vpop.f32.mrb[0].mxu0
      %v3333 = vpop.f32.mrb[0].mxu0
      %v3334 = vadd.f32 %v3173, %v3333
      %v3335 = vpop.f32.mrb[0].mxu0
      %3336 = vmatprep.mubr.bf16.mxu0 %v935
      %3337 = vmatmul.mubr.bf16.gmra.mrb[0].mxu0 %v934
      %v3338 = vpop.f32.mrb[0].mxu0
      %v3339 = vadd.f32 %v3178, %v3338
      %v3340 = vpop.f32.mrb[0].mxu0
      %v3341 = vpop.f32.mrb[0].mxu0
      %v3342 = vadd.f32 %v3181, %v3341
      %v3343 = vpop.f32.mrb[0].mxu0
      %3344 = vmatprep.mubr.bf16.mxu0 %v940
      %3345 = vmatmul.mubr.bf16.gmra.mrb[0].mxu0 %v939
      %v3346 = vpop.f32.mrb[0].mxu0
      %v3347 = vadd.f32 %v3186, %v3346
      %v3348 = vpop.f32.mrb[0].mxu0
      %v3349 = vpop.f32.mrb[0].mxu0
      %v3350 = vadd.f32 %v3189, %v3349
      %v3351 = vpop.f32.mrb[0].mxu0
      %3352 = vmatprep.mubr.bf16.mxu0 %v945
      %3353 = vmatmul.mubr.bf16.gmra.mrb[0].mxu0 %v944
      %v3354 = vpop.f32.mrb[0].mxu0
      %v3355 = vadd.f32 %v3194, %v3354
      %v3356 = vpop.f32.mrb[0].mxu0
      %v3357 = vpop.f32.mrb[0].mxu0
      %v3358 = vadd.f32 %v3197, %v3357
      %v3359 = vpop.f32.mrb[0].mxu0
      %3360 = vmatprep.mubr.bf16.mxu0 %v950
      %3361 = vmatmul.mubr.bf16.gmra.mrb[0].mxu0 %v949
      %v3362 = vpop.f32.mrb[0].mxu0
      %v3363 = vadd.f32 %v3202, %v3362
      %v3364 = vpop.f32.mrb[0].mxu0
      %v3365 = vpop.f32.mrb[0].mxu0
      %v3366 = vadd.f32 %v3205, %v3365
      %v3367 = vpop.f32.mrb[0].mxu0
      %3368 = vmatprep.mubr.bf16.mxu0 %v955
      %3369 = vmatmul.mubr.bf16.gmra.mrb[0].mxu0 %v954
      %v3370 = vpop.f32.mrb[0].mxu0
      %v3371 = vadd.f32 %v3210, %v3370
      %v3372 = vpop.f32.mrb[0].mxu0
      %v3373 = vpop.f32.mrb[0].mxu0
      %v3374 = vadd.f32 %v3213, %v3373
      %v3375 = vpop.f32.mrb[0].mxu0
      %3376 = vmatprep.mubr.bf16.mxu0 %v960
      %3377 = vmatmul.mubr.bf16.gmra.mrb[0].mxu0 %v959
      %v3378 = vpop.f32.mrb[0].mxu0
      %v3379 = vadd.f32 %v3218, %v3378
      %v3380 = vpop.f32.mrb[0].mxu0
      %v3381 = vpop.f32.mrb[0].mxu0
      %v3382 = vadd.f32 %v3221, %v3381
      %v3383 = vpop.f32.mrb[0].mxu0
      %3384 = vmatprep.mubr.bf16.mxu0 %v965
      %3385 = vmatmul.mubr.bf16.gmra.mrb[0].mxu0 %v964
      %v3386 = vpop.f32.mrb[0].mxu0
      %v3387 = vadd.f32 %v3226, %v3386
      %v3388 = vpop.f32.mrb[0].mxu0
      %v3389 = vpop.f32.mrb[0].mxu0
      %v3390 = vadd.f32 %v3229, %v3389
      %v3391 = vpop.f32.mrb[0].mxu0
      %3392 = vdwg.mxu0
      %3393 = vmatprep.subr.bf16.mxu0 0
      %3394 = vmatpush1.bf16.msra.mxu0 %v2268
      %3395 = vmatprep.subr.bf16.mxu0 0
      %3396 = vmatpush1.bf16.msra.mxu0 %v2269
      %3397 = vmatprep.subr.bf16.mxu0 0
      %3398 = vmatpush1.bf16.msra.mxu0 %v2270
      %3399 = vmatprep.subr.bf16.mxu0 0
      %3400 = vmatpush1.bf16.msra.mxu0 %v2271
      %3401 = vmatprep.subr.bf16.mxu0 0
      %3402 = vmatpush1.bf16.msra.mxu0 %v2272
      %3403 = vmatprep.subr.bf16.mxu0 0
      %3404 = vmatpush1.bf16.msra.mxu0 %v2273
      %3405 = vmatprep.subr.bf16.mxu0 0
      %3406 = vmatpush1.bf16.msra.mxu0 %v2274
      %3407 = vmatprep.subr.bf16.mxu0 0
      %3408 = vmatpush1.bf16.msra.mxu0 %v2275
      %3409 = vmatprep.subr.bf16.mxu0 0
      %3410 = vmatpush1.bf16.msra.mxu0 %v2276
      %3411 = vmatprep.subr.bf16.mxu0 0
      %3412 = vmatpush1.bf16.msra.mxu0 %v2277
      %3413 = vmatprep.subr.bf16.mxu0 0
      %3414 = vmatpush1.bf16.msra.mxu0 %v2278
      %3415 = vmatprep.subr.bf16.mxu0 0
      %3416 = vmatpush1.bf16.msra.mxu0 %v2279
      %3417 = vmatprep.subr.bf16.mxu0 0
      %3418 = vmatpush1.bf16.msra.mxu0 %v2280
      %3419 = vmatprep.subr.bf16.mxu0 0
      %3420 = vmatpush1.bf16.msra.mxu0 %v2281
      %3421 = vmatprep.subr.bf16.mxu0 0
      %3422 = vmatpush1.bf16.msra.mxu0 %v2282
      %3423 = vmatprep.subr.bf16.mxu0 0
      %3424 = vmatpush1.bf16.msra.mxu0 %v2283
      %3425 = vmatprep.mubr.bf16.mxu0 %v892
      %3426 = vmatmul.mubr.bf16.gmra.mrb[0].mxu0 %v891
      %v3427 = vpop.f32.mrb[0].mxu0
      %v3428 = vadd.f32 %v3267, %v3427
      %v3429 = vpop.f32.mrb[0].mxu0
      %v3430 = vpop.f32.mrb[0].mxu0
      %v3431 = vadd.f32 %v3270, %v3430
      %v3432 = vpop.f32.mrb[0].mxu0
      %3433 = vmatprep.mubr.bf16.mxu0 %v897
      %3434 = vmatmul.mubr.bf16.gmra.mrb[0].mxu0 %v896
      %v3435 = vpop.f32.mrb[0].mxu0
      %v3436 = vadd.f32 %v3275, %v3435
      %v3437 = vpop.f32.mrb[0].mxu0
      %v3438 = vpop.f32.mrb[0].mxu0
      %v3439 = vadd.f32 %v3278, %v3438
      %v3440 = vpop.f32.mrb[0].mxu0
      %3441 = vmatprep.mubr.bf16.mxu0 %v902
      %3442 = vmatmul.mubr.bf16.gmra.mrb[0].mxu0 %v901
      %v3443 = vpop.f32.mrb[0].mxu0
      %v3444 = vadd.f32 %v3283, %v3443
      %v3445 = vpop.f32.mrb[0].mxu0
      %v3446 = vpop.f32.mrb[0].mxu0
      %v3447 = vadd.f32 %v3286, %v3446
      %v3448 = vpop.f32.mrb[0].mxu0
      %3449 = vmatprep.mubr.bf16.mxu0 %v907
      %3450 = vmatmul.mubr.bf16.gmra.mrb[0].mxu0 %v906
      %v3451 = vpop.f32.mrb[0].mxu0
      %v3452 = vadd.f32 %v3291, %v3451
      %v3453 = vpop.f32.mrb[0].mxu0
      %v3454 = vpop.f32.mrb[0].mxu0
      %v3455 = vadd.f32 %v3294, %v3454
      %v3456 = vpop.f32.mrb[0].mxu0
      %3457 = vmatprep.mubr.bf16.mxu0 %v912
      %3458 = vmatmul.mubr.bf16.gmra.mrb[0].mxu0 %v911
      %v3459 = vpop.f32.mrb[0].mxu0
      %v3460 = vadd.f32 %v3299, %v3459
      %v3461 = vpop.f32.mrb[0].mxu0
      %v3462 = vpop.f32.mrb[0].mxu0
      %v3463 = vadd.f32 %v3302, %v3462
      %v3464 = vpop.f32.mrb[0].mxu0
      %3465 = vmatprep.mubr.bf16.mxu0 %v917
      %3466 = vmatmul.mubr.bf16.gmra.mrb[0].mxu0 %v916
      %v3467 = vpop.f32.mrb[0].mxu0
      %v3468 = vadd.f32 %v3307, %v3467
      %v3469 = vpop.f32.mrb[0].mxu0
      %v3470 = vpop.f32.mrb[0].mxu0
      %v3471 = vadd.f32 %v3310, %v3470
      %v3472 = vpop.f32.mrb[0].mxu0
      %3473 = vmatprep.mubr.bf16.mxu0 %v922
      %3474 = vmatmul.mubr.bf16.gmra.mrb[0].mxu0 %v921
      %v3475 = vpop.f32.mrb[0].mxu0
      %v3476 = vadd.f32 %v3315, %v3475
      %v3477 = vpop.f32.mrb[0].mxu0
      %v3478 = vpop.f32.mrb[0].mxu0
      %v3479 = vadd.f32 %v3318, %v3478
      %v3480 = vpop.f32.mrb[0].mxu0
      %3481 = vmatprep.mubr.bf16.mxu0 %v927
      %3482 = vmatmul.mubr.bf16.gmra.mrb[0].mxu0 %v926
      %v3483 = vpop.f32.mrb[0].mxu0
      %v3484 = vadd.f32 %v3323, %v3483
      %v3485 = vpop.f32.mrb[0].mxu0
      %v3486 = vpop.f32.mrb[0].mxu0
      %v3487 = vadd.f32 %v3326, %v3486
      %v3488 = vpop.f32.mrb[0].mxu0
      %3489 = vmatprep.mubr.bf16.mxu0 %v932
      %3490 = vmatmul.mubr.bf16.gmra.mrb[0].mxu0 %v931
      %v3491 = vpop.f32.mrb[0].mxu0
      %v3492 = vadd.f32 %v3331, %v3491
      %v3493 = vpop.f32.mrb[0].mxu0
      %v3494 = vpop.f32.mrb[0].mxu0
      %v3495 = vadd.f32 %v3334, %v3494
      %v3496 = vpop.f32.mrb[0].mxu0
      %3497 = vmatprep.mubr.bf16.mxu0 %v937
      %3498 = vmatmul.mubr.bf16.gmra.mrb[0].mxu0 %v936
      %v3499 = vpop.f32.mrb[0].mxu0
      %v3500 = vadd.f32 %v3339, %v3499
      %v3501 = vpop.f32.mrb[0].mxu0
      %v3502 = vpop.f32.mrb[0].mxu0
      %v3503 = vadd.f32 %v3342, %v3502
      %v3504 = vpop.f32.mrb[0].mxu0
      %3505 = vmatprep.mubr.bf16.mxu0 %v942
      %3506 = vmatmul.mubr.bf16.gmra.mrb[0].mxu0 %v941
      %v3507 = vpop.f32.mrb[0].mxu0
      %v3508 = vadd.f32 %v3347, %v3507
      %v3509 = vpop.f32.mrb[0].mxu0
      %v3510 = vpop.f32.mrb[0].mxu0
      %v3511 = vadd.f32 %v3350, %v3510
      %v3512 = vpop.f32.mrb[0].mxu0
      %3513 = vmatprep.mubr.bf16.mxu0 %v947
      %3514 = vmatmul.mubr.bf16.gmra.mrb[0].mxu0 %v946
      %v3515 = vpop.f32.mrb[0].mxu0
      %v3516 = vadd.f32 %v3355, %v3515
      %v3517 = vpop.f32.mrb[0].mxu0
      %v3518 = vpop.f32.mrb[0].mxu0
      %v3519 = vadd.f32 %v3358, %v3518
      %v3520 = vpop.f32.mrb[0].mxu0
      %3521 = vmatprep.mubr.bf16.mxu0 %v952
      %3522 = vmatmul.mubr.bf16.gmra.mrb[0].mxu0 %v951
      %v3523 = vpop.f32.mrb[0].mxu0
      %v3524 = vadd.f32 %v3363, %v3523
      %v3525 = vpop.f32.mrb[0].mxu0
      %v3526 = vpop.f32.mrb[0].mxu0
      %v3527 = vadd.f32 %v3366, %v3526
      %v3528 = vpop.f32.mrb[0].mxu0
      %3529 = vmatprep.mubr.bf16.mxu0 %v957
      %3530 = vmatmul.mubr.bf16.gmra.mrb[0].mxu0 %v956
      %v3531 = vpop.f32.mrb[0].mxu0
      %v3532 = vadd.f32 %v3371, %v3531
      %v3533 = vpop.f32.mrb[0].mxu0
      %v3534 = vpop.f32.mrb[0].mxu0
      %v3535 = vadd.f32 %v3374, %v3534
      %v3536 = vpop.f32.mrb[0].mxu0
      %3537 = vmatprep.mubr.bf16.mxu0 %v962
      %3538 = vmatmul.mubr.bf16.gmra.mrb[0].mxu0 %v961
      %v3539 = vpop.f32.mrb[0].mxu0
      %v3540 = vadd.f32 %v3379, %v3539
      %v3541 = vpop.f32.mrb[0].mxu0
      %v3542 = vpop.f32.mrb[0].mxu0
      %v3543 = vadd.f32 %v3382, %v3542
      %v3544 = vpop.f32.mrb[0].mxu0
      %3545 = vmatprep.mubr.bf16.mxu0 %v967
      %3546 = vmatmul.mubr.bf16.gmra.mrb[0].mxu0 %v966
      %v3547 = vpop.f32.mrb[0].mxu0
      %v3548 = vadd.f32 %v3387, %v3547
      %v3549 = vpop.f32.mrb[0].mxu0
      %v3550 = vpop.f32.mrb[0].mxu0
      %v3551 = vadd.f32 %v3390, %v3550
      %v3552 = vpop.f32.mrb[0].mxu0
      %3553 = vdwg.mxu0
      %3554 = vmatprep.subr.bf16.mxu0 0
      %3555 = vmatpush1.bf16.msra.mxu0 %v2284
      %3556 = vmatprep.subr.bf16.mxu0 0
      %3557 = vmatpush1.bf16.msra.mxu0 %v2285
      %3558 = vmatprep.subr.bf16.mxu0 0
      %3559 = vmatpush1.bf16.msra.mxu0 %v2286
      %3560 = vmatprep.subr.bf16.mxu0 0
      %3561 = vmatpush1.bf16.msra.mxu0 %v2287
      %3562 = vmatprep.subr.bf16.mxu0 0
      %3563 = vmatpush1.bf16.msra.mxu0 %v2288
      %3564 = vmatprep.subr.bf16.mxu0 0
      %3565 = vmatpush1.bf16.msra.mxu0 %v2289
      %3566 = vmatprep.subr.bf16.mxu0 0
      %3567 = vmatpush1.bf16.msra.mxu0 %v2290
      %3568 = vmatprep.subr.bf16.mxu0 0
      %3569 = vmatpush1.bf16.msra.mxu0 %v2291
      %3570 = vmatprep.subr.bf16.mxu0 0
      %3571 = vmatpush1.bf16.msra.mxu0 %v2292
      %3572 = vmatprep.subr.bf16.mxu0 0
      %3573 = vmatpush1.bf16.msra.mxu0 %v2293
      %3574 = vmatprep.subr.bf16.mxu0 0
      %3575 = vmatpush1.bf16.msra.mxu0 %v2294
      %3576 = vmatprep.subr.bf16.mxu0 0
      %3577 = vmatpush1.bf16.msra.mxu0 %v2295
      %3578 = vmatprep.subr.bf16.mxu0 0
      %3579 = vmatpush1.bf16.msra.mxu0 %v2296
      %3580 = vmatprep.subr.bf16.mxu0 0
      %3581 = vmatpush1.bf16.msra.mxu0 %v2297
      %3582 = vmatprep.subr.bf16.mxu0 0
      %3583 = vmatpush1.bf16.msra.mxu0 %v2298
      %3584 = vmatprep.subr.bf16.mxu0 0
      %3585 = vmatpush1.bf16.msra.mxu0 %v2299
      %3586 = vmatprep.mubr.bf16.mxu0 %v894
      %3587 = vmatmul.mubr.bf16.gmra.mrb[0].mxu0 %v893
      %v3588 = vpop.f32.mrb[0].mxu0
      %v3589 = vadd.f32 %v3428, %v3588
      %v3590 = vpop.f32.mrb[0].mxu0
      %v3591 = vpop.f32.mrb[0].mxu0
      %v3592 = vadd.f32 %v3431, %v3591
      %v3593 = vpop.f32.mrb[0].mxu0
      %3594 = vmatprep.mubr.bf16.mxu0 %v899
      %3595 = vmatmul.mubr.bf16.gmra.mrb[0].mxu0 %v898
      %v3596 = vpop.f32.mrb[0].mxu0
      %v3597 = vadd.f32 %v3436, %v3596
      %v3598 = vpop.f32.mrb[0].mxu0
      %v3599 = vpop.f32.mrb[0].mxu0
      %v3600 = vadd.f32 %v3439, %v3599
      %v3601 = vpop.f32.mrb[0].mxu0
      %3602 = vmatprep.mubr.bf16.mxu0 %v904
      %3603 = vmatmul.mubr.bf16.gmra.mrb[0].mxu0 %v903
      %v3604 = vpop.f32.mrb[0].mxu0
      %v3605 = vadd.f32 %v3444, %v3604
      %v3606 = vpop.f32.mrb[0].mxu0
      %v3607 = vpop.f32.mrb[0].mxu0
      %v3608 = vadd.f32 %v3447, %v3607
      %v3609 = vpop.f32.mrb[0].mxu0
      %3610 = vmatprep.mubr.bf16.mxu0 %v909
      %3611 = vmatmul.mubr.bf16.gmra.mrb[0].mxu0 %v908
      %v3612 = vpop.f32.mrb[0].mxu0
      %v3613 = vadd.f32 %v3452, %v3612
      %v3614 = vpop.f32.mrb[0].mxu0
      %v3615 = vpop.f32.mrb[0].mxu0
      %v3616 = vadd.f32 %v3455, %v3615
      %v3617 = vpop.f32.mrb[0].mxu0
      %3618 = vmatprep.mubr.bf16.mxu0 %v914
      %3619 = vmatmul.mubr.bf16.gmra.mrb[0].mxu0 %v913
      %v3620 = vpop.f32.mrb[0].mxu0
      %v3621 = vadd.f32 %v3460, %v3620
      %v3622 = vpop.f32.mrb[0].mxu0
      %v3623 = vpop.f32.mrb[0].mxu0
      %v3624 = vadd.f32 %v3463, %v3623
      %v3625 = vpop.f32.mrb[0].mxu0
      %3626 = vmatprep.mubr.bf16.mxu0 %v919
      %3627 = vmatmul.mubr.bf16.gmra.mrb[0].mxu0 %v918
      %v3628 = vpop.f32.mrb[0].mxu0
      %v3629 = vadd.f32 %v3468, %v3628
      %v3630 = vpop.f32.mrb[0].mxu0
      %v3631 = vpop.f32.mrb[0].mxu0
      %v3632 = vadd.f32 %v3471, %v3631
      %v3633 = vpop.f32.mrb[0].mxu0
      %3634 = vmatprep.mubr.bf16.mxu0 %v924
      %3635 = vmatmul.mubr.bf16.gmra.mrb[0].mxu0 %v923
      %v3636 = vpop.f32.mrb[0].mxu0
      %v3637 = vadd.f32 %v3476, %v3636
      %v3638 = vpop.f32.mrb[0].mxu0
      %v3639 = vpop.f32.mrb[0].mxu0
      %v3640 = vadd.f32 %v3479, %v3639
      %v3641 = vpop.f32.mrb[0].mxu0
      %3642 = vmatprep.mubr.bf16.mxu0 %v929
      %3643 = vmatmul.mubr.bf16.gmra.mrb[0].mxu0 %v928
      %v3644 = vpop.f32.mrb[0].mxu0
      %v3645 = vadd.f32 %v3484, %v3644
      %v3646 = vpop.f32.mrb[0].mxu0
      %v3647 = vpop.f32.mrb[0].mxu0
      %v3648 = vadd.f32 %v3487, %v3647
      %v3649 = vpop.f32.mrb[0].mxu0
      %3650 = vmatprep.mubr.bf16.mxu0 %v934
      %3651 = vmatmul.mubr.bf16.gmra.mrb[0].mxu0 %v933
      %v3652 = vpop.f32.mrb[0].mxu0
      %v3653 = vadd.f32 %v3492, %v3652
      %v3654 = vpop.f32.mrb[0].mxu0
      %v3655 = vpop.f32.mrb[0].mxu0
      %v3656 = vadd.f32 %v3495, %v3655
      %v3657 = vpop.f32.mrb[0].mxu0
      %3658 = vmatprep.mubr.bf16.mxu0 %v939
      %3659 = vmatmul.mubr.bf16.gmra.mrb[0].mxu0 %v938
      %v3660 = vpop.f32.mrb[0].mxu0
      %v3661 = vadd.f32 %v3500, %v3660
      %v3662 = vpop.f32.mrb[0].mxu0
      %v3663 = vpop.f32.mrb[0].mxu0
      %v3664 = vadd.f32 %v3503, %v3663
      %v3665 = vpop.f32.mrb[0].mxu0
      %3666 = vmatprep.mubr.bf16.mxu0 %v944
      %3667 = vmatmul.mubr.bf16.gmra.mrb[0].mxu0 %v943
      %v3668 = vpop.f32.mrb[0].mxu0
      %v3669 = vadd.f32 %v3508, %v3668
      %v3670 = vpop.f32.mrb[0].mxu0
      %v3671 = vpop.f32.mrb[0].mxu0
      %v3672 = vadd.f32 %v3511, %v3671
      %v3673 = vpop.f32.mrb[0].mxu0
      %3674 = vmatprep.mubr.bf16.mxu0 %v949
      %3675 = vmatmul.mubr.bf16.gmra.mrb[0].mxu0 %v948
      %v3676 = vpop.f32.mrb[0].mxu0
      %v3677 = vadd.f32 %v3516, %v3676
      %v3678 = vpop.f32.mrb[0].mxu0
      %v3679 = vpop.f32.mrb[0].mxu0
      %v3680 = vadd.f32 %v3519, %v3679
      %v3681 = vpop.f32.mrb[0].mxu0
      %3682 = vmatprep.mubr.bf16.mxu0 %v954
      %3683 = vmatmul.mubr.bf16.gmra.mrb[0].mxu0 %v953
      %v3684 = vpop.f32.mrb[0].mxu0
      %v3685 = vadd.f32 %v3524, %v3684
      %v3686 = vpop.f32.mrb[0].mxu0
      %v3687 = vpop.f32.mrb[0].mxu0
      %v3688 = vadd.f32 %v3527, %v3687
      %v3689 = vpop.f32.mrb[0].mxu0
      %3690 = vmatprep.mubr.bf16.mxu0 %v959
      %3691 = vmatmul.mubr.bf16.gmra.mrb[0].mxu0 %v958
      %v3692 = vpop.f32.mrb[0].mxu0
      %v3693 = vadd.f32 %v3532, %v3692
      %v3694 = vpop.f32.mrb[0].mxu0
      %v3695 = vpop.f32.mrb[0].mxu0
      %v3696 = vadd.f32 %v3535, %v3695
      %v3697 = vpop.f32.mrb[0].mxu0
      %3698 = vmatprep.mubr.bf16.mxu0 %v964
      %3699 = vmatmul.mubr.bf16.gmra.mrb[0].mxu0 %v963
      %v3700 = vpop.f32.mrb[0].mxu0
      %v3701 = vadd.f32 %v3540, %v3700
      %v3702 = vpop.f32.mrb[0].mxu0
      %v3703 = vpop.f32.mrb[0].mxu0
      %v3704 = vadd.f32 %v3543, %v3703
      %v3705 = vpop.f32.mrb[0].mxu0
      %3706 = vmatprep.mubr.bf16.mxu0 %v969
      %3707 = vmatmul.mubr.bf16.gmra.mrb[0].mxu0 %v968
      %v3708 = vpop.f32.mrb[0].mxu0
      %v3709 = vadd.f32 %v3548, %v3708
      %v3710 = vpop.f32.mrb[0].mxu0
      %v3711 = vpop.f32.mrb[0].mxu0
      %v3712 = vadd.f32 %v3551, %v3711
      %v3713 = vpop.f32.mrb[0].mxu0
      %3714 = vdwg.mxu0
      %3715 = vmatprep.subr.bf16.mxu0 0
      %3716 = vmatpush1.bf16.msra.mxu0 %v2300
      %3717 = vmatprep.subr.bf16.mxu0 0
      %3718 = vmatpush1.bf16.msra.mxu0 %v2301
      %3719 = vmatprep.subr.bf16.mxu0 0
      %3720 = vmatpush1.bf16.msra.mxu0 %v2302
      %3721 = vmatprep.subr.bf16.mxu0 0
      %3722 = vmatpush1.bf16.msra.mxu0 %v2303
      %3723 = vmatprep.subr.bf16.mxu0 0
      %3724 = vmatpush1.bf16.msra.mxu0 %v2304
      %3725 = vmatprep.subr.bf16.mxu0 0
      %3726 = vmatpush1.bf16.msra.mxu0 %v2305
      %3727 = vmatprep.subr.bf16.mxu0 0
      %3728 = vmatpush1.bf16.msra.mxu0 %v2306
      %3729 = vmatprep.subr.bf16.mxu0 0
      %3730 = vmatpush1.bf16.msra.mxu0 %v2307
      %3731 = vmatprep.subr.bf16.mxu0 0
      %3732 = vmatpush1.bf16.msra.mxu0 %v2308
      %3733 = vmatprep.subr.bf16.mxu0 0
      %3734 = vmatpush1.bf16.msra.mxu0 %v2309
      %3735 = vmatprep.subr.bf16.mxu0 0
      %3736 = vmatpush1.bf16.msra.mxu0 %v2310
      %3737 = vmatprep.subr.bf16.mxu0 0
      %3738 = vmatpush1.bf16.msra.mxu0 %v2311
      %3739 = vmatprep.subr.bf16.mxu0 0
      %3740 = vmatpush1.bf16.msra.mxu0 %v2312
      %3741 = vmatprep.subr.bf16.mxu0 0
      %3742 = vmatpush1.bf16.msra.mxu0 %v2313
      %3743 = vmatprep.subr.bf16.mxu0 0
      %3744 = vmatpush1.bf16.msra.mxu0 %v2314
      %3745 = vmatprep.subr.bf16.mxu0 0
      %3746 = vmatpush1.bf16.msra.mxu0 %v2315
      %3747 = vmatprep.mubr.bf16.mxu0 %v896
      %3748 = vmatmul.mubr.bf16.gmra.mrb[0].mxu0 %v895
      %v3749 = vpop.f32.mrb[0].mxu0
      %v3750 = vadd.f32 %v3589, %v3749
      %v3751 = vpop.f32.mrb[0].mxu0
      %v3752 = vpop.f32.mrb[0].mxu0
      %v3753 = vadd.f32 %v3592, %v3752
      %v3754 = vpop.f32.mrb[0].mxu0
      %3755 = vmatprep.mubr.bf16.mxu0 %v901
      %3756 = vmatmul.mubr.bf16.gmra.mrb[0].mxu0 %v900
      %v3757 = vpop.f32.mrb[0].mxu0
      %v3758 = vadd.f32 %v3597, %v3757
      %v3759 = vpop.f32.mrb[0].mxu0
      %v3760 = vpop.f32.mrb[0].mxu0
      %v3761 = vadd.f32 %v3600, %v3760
      %v3762 = vpop.f32.mrb[0].mxu0
      %3763 = vmatprep.mubr.bf16.mxu0 %v906
      %3764 = vmatmul.mubr.bf16.gmra.mrb[0].mxu0 %v905
      %v3765 = vpop.f32.mrb[0].mxu0
      %v3766 = vadd.f32 %v3605, %v3765
      %v3767 = vpop.f32.mrb[0].mxu0
      %v3768 = vpop.f32.mrb[0].mxu0
      %v3769 = vadd.f32 %v3608, %v3768
      %v3770 = vpop.f32.mrb[0].mxu0
      %3771 = vmatprep.mubr.bf16.mxu0 %v911
      %3772 = vmatmul.mubr.bf16.gmra.mrb[0].mxu0 %v910
      %v3773 = vpop.f32.mrb[0].mxu0
      %v3774 = vadd.f32 %v3613, %v3773
      %v3775 = vpop.f32.mrb[0].mxu0
      %v3776 = vpop.f32.mrb[0].mxu0
      %v3777 = vadd.f32 %v3616, %v3776
      %v3778 = vpop.f32.mrb[0].mxu0
      %3779 = vmatprep.mubr.bf16.mxu0 %v916
      %3780 = vmatmul.mubr.bf16.gmra.mrb[0].mxu0 %v915
      %v3781 = vpop.f32.mrb[0].mxu0
      %v3782 = vadd.f32 %v3621, %v3781
      %v3783 = vpop.f32.mrb[0].mxu0
      %v3784 = vpop.f32.mrb[0].mxu0
      %v3785 = vadd.f32 %v3624, %v3784
      %v3786 = vpop.f32.mrb[0].mxu0
      %3787 = vmatprep.mubr.bf16.mxu0 %v921
      %3788 = vmatmul.mubr.bf16.gmra.mrb[0].mxu0 %v920
      %v3789 = vpop.f32.mrb[0].mxu0
      %v3790 = vadd.f32 %v3629, %v3789
      %v3791 = vpop.f32.mrb[0].mxu0
      %v3792 = vpop.f32.mrb[0].mxu0
      %v3793 = vadd.f32 %v3632, %v3792
      %v3794 = vpop.f32.mrb[0].mxu0
      %3795 = vmatprep.mubr.bf16.mxu0 %v926
      %3796 = vmatmul.mubr.bf16.gmra.mrb[0].mxu0 %v925
      %v3797 = vpop.f32.mrb[0].mxu0
      %v3798 = vadd.f32 %v3637, %v3797
      %v3799 = vpop.f32.mrb[0].mxu0
      %v3800 = vpop.f32.mrb[0].mxu0
      %v3801 = vadd.f32 %v3640, %v3800
      %v3802 = vpop.f32.mrb[0].mxu0
      %3803 = vmatprep.mubr.bf16.mxu0 %v931
      %3804 = vmatmul.mubr.bf16.gmra.mrb[0].mxu0 %v930
      %v3805 = vpop.f32.mrb[0].mxu0
      %v3806 = vadd.f32 %v3645, %v3805
      %v3807 = vpop.f32.mrb[0].mxu0
      %v3808 = vpop.f32.mrb[0].mxu0
      %v3809 = vadd.f32 %v3648, %v3808
      %v3810 = vpop.f32.mrb[0].mxu0
      %3811 = vmatprep.mubr.bf16.mxu0 %v936
      %3812 = vmatmul.mubr.bf16.gmra.mrb[0].mxu0 %v935
      %v3813 = vpop.f32.mrb[0].mxu0
      %v3814 = vadd.f32 %v3653, %v3813
      %v3815 = vpop.f32.mrb[0].mxu0
      %v3816 = vpop.f32.mrb[0].mxu0
      %v3817 = vadd.f32 %v3656, %v3816
      %v3818 = vpop.f32.mrb[0].mxu0
      %3819 = vmatprep.mubr.bf16.mxu0 %v941
      %3820 = vmatmul.mubr.bf16.gmra.mrb[0].mxu0 %v940
      %v3821 = vpop.f32.mrb[0].mxu0
      %v3822 = vadd.f32 %v3661, %v3821
      %v3823 = vpop.f32.mrb[0].mxu0
      %v3824 = vpop.f32.mrb[0].mxu0
      %v3825 = vadd.f32 %v3664, %v3824
      %v3826 = vpop.f32.mrb[0].mxu0
      %3827 = vmatprep.mubr.bf16.mxu0 %v946
      %3828 = vmatmul.mubr.bf16.gmra.mrb[0].mxu0 %v945
      %v3829 = vpop.f32.mrb[0].mxu0
      %v3830 = vadd.f32 %v3669, %v3829
      %v3831 = vpop.f32.mrb[0].mxu0
      %v3832 = vpop.f32.mrb[0].mxu0
      %v3833 = vadd.f32 %v3672, %v3832
      %v3834 = vpop.f32.mrb[0].mxu0
      %3835 = vmatprep.mubr.bf16.mxu0 %v951
      %3836 = vmatmul.mubr.bf16.gmra.mrb[0].mxu0 %v950
      %v3837 = vpop.f32.mrb[0].mxu0
      %v3838 = vadd.f32 %v3677, %v3837
      %v3839 = vpop.f32.mrb[0].mxu0
      %v3840 = vpop.f32.mrb[0].mxu0
      %v3841 = vadd.f32 %v3680, %v3840
      %v3842 = vpop.f32.mrb[0].mxu0
      %3843 = vmatprep.mubr.bf16.mxu0 %v956
      %3844 = vmatmul.mubr.bf16.gmra.mrb[0].mxu0 %v955
      %v3845 = vpop.f32.mrb[0].mxu0
      %v3846 = vadd.f32 %v3685, %v3845
      %v3847 = vpop.f32.mrb[0].mxu0
      %v3848 = vpop.f32.mrb[0].mxu0
      %v3849 = vadd.f32 %v3688, %v3848
      %v3850 = vpop.f32.mrb[0].mxu0
      %3851 = vmatprep.mubr.bf16.mxu0 %v961
      %3852 = vmatmul.mubr.bf16.gmra.mrb[0].mxu0 %v960
      %v3853 = vpop.f32.mrb[0].mxu0
      %v3854 = vadd.f32 %v3693, %v3853
      %v3855 = vpop.f32.mrb[0].mxu0
      %v3856 = vpop.f32.mrb[0].mxu0
      %v3857 = vadd.f32 %v3696, %v3856
      %v3858 = vpop.f32.mrb[0].mxu0
      %3859 = vmatprep.mubr.bf16.mxu0 %v966
      %3860 = vmatmul.mubr.bf16.gmra.mrb[0].mxu0 %v965
      %v3861 = vpop.f32.mrb[0].mxu0
      %v3862 = vadd.f32 %v3701, %v3861
      %v3863 = vpop.f32.mrb[0].mxu0
      %v3864 = vpop.f32.mrb[0].mxu0
      %v3865 = vadd.f32 %v3704, %v3864
      %v3866 = vpop.f32.mrb[0].mxu0
      %3867 = vmatprep.mubr.bf16.mxu0 %v971
      %3868 = vmatmul.mubr.bf16.gmra.mrb[0].mxu0 %v970
      %v3869 = vpop.f32.mrb[0].mxu0
      %v3870 = vadd.f32 %v3709, %v3869
      %v3871 = vpop.f32.mrb[0].mxu0
      %v3872 = vpop.f32.mrb[0].mxu0
      %v3873 = vadd.f32 %v3712, %v3872
      %v3874 = vpop.f32.mrb[0].mxu0
      %3875 = vdwg.mxu0
      %3876 = vmatprep.subr.bf16.mxu0 0
      %3877 = vmatpush1.bf16.msra.mxu0 %v2316
      %3878 = vmatprep.subr.bf16.mxu0 0
      %3879 = vmatpush1.bf16.msra.mxu0 %v2317
      %3880 = vmatprep.subr.bf16.mxu0 0
      %3881 = vmatpush1.bf16.msra.mxu0 %v2318
      %3882 = vmatprep.subr.bf16.mxu0 0
      %3883 = vmatpush1.bf16.msra.mxu0 %v2319
      %3884 = vmatprep.subr.bf16.mxu0 0
      %3885 = vmatpush1.bf16.msra.mxu0 %v2320
      %3886 = vmatprep.subr.bf16.mxu0 0
      %3887 = vmatpush1.bf16.msra.mxu0 %v2321
      %3888 = vmatprep.subr.bf16.mxu0 0
      %3889 = vmatpush1.bf16.msra.mxu0 %v2322
      %3890 = vmatprep.subr.bf16.mxu0 0
      %3891 = vmatpush1.bf16.msra.mxu0 %v2323
      %3892 = vmatprep.subr.bf16.mxu0 0
      %3893 = vmatpush1.bf16.msra.mxu0 %v2324
      %3894 = vmatprep.subr.bf16.mxu0 0
      %3895 = vmatpush1.bf16.msra.mxu0 %v2325
      %3896 = vmatprep.subr.bf16.mxu0 0
      %3897 = vmatpush1.bf16.msra.mxu0 %v2326
      %3898 = vmatprep.subr.bf16.mxu0 0
      %3899 = vmatpush1.bf16.msra.mxu0 %v2327
      %3900 = vmatprep.subr.bf16.mxu0 0
      %3901 = vmatpush1.bf16.msra.mxu0 %v2328
      %3902 = vmatprep.subr.bf16.mxu0 0
      %3903 = vmatpush1.bf16.msra.mxu0 %v2329
      %3904 = vmatprep.subr.bf16.mxu0 0
      %3905 = vmatpush1.bf16.msra.mxu0 %v2330
      %3906 = vmatprep.subr.bf16.mxu0 0
      %3907 = vmatpush1.bf16.msra.mxu0 %v2331
      %3908 = vmatprep.mubr.bf16.mxu0 %v898
      %3909 = vmatmul.mubr.bf16.gmra.mrb[0].mxu0 %v897
      %v3910 = vpop.f32.mrb[0].mxu0
      %v3911 = vadd.f32 %v3750, %v3910
      %v3912 = vpop.f32.mrb[0].mxu0
      %v3913 = vpop.f32.mrb[0].mxu0
      %v3914 = vadd.f32 %v3753, %v3913
      %v3915 = vpop.f32.mrb[0].mxu0
      %3916 = vmatprep.mubr.bf16.mxu0 %v903
      %3917 = vmatmul.mubr.bf16.gmra.mrb[0].mxu0 %v902
      %v3918 = vpop.f32.mrb[0].mxu0
      %v3919 = vadd.f32 %v3758, %v3918
      %v3920 = vpop.f32.mrb[0].mxu0
      %v3921 = vpop.f32.mrb[0].mxu0
      %v3922 = vadd.f32 %v3761, %v3921
      %v3923 = vpop.f32.mrb[0].mxu0
      %3924 = vmatprep.mubr.bf16.mxu0 %v908
      %3925 = vmatmul.mubr.bf16.gmra.mrb[0].mxu0 %v907
      %v3926 = vpop.f32.mrb[0].mxu0
      %v3927 = vadd.f32 %v3766, %v3926
      %v3928 = vpop.f32.mrb[0].mxu0
      %v3929 = vpop.f32.mrb[0].mxu0
      %v3930 = vadd.f32 %v3769, %v3929
      %v3931 = vpop.f32.mrb[0].mxu0
      %3932 = vmatprep.mubr.bf16.mxu0 %v913
      %3933 = vmatmul.mubr.bf16.gmra.mrb[0].mxu0 %v912
      %v3934 = vpop.f32.mrb[0].mxu0
      %v3935 = vadd.f32 %v3774, %v3934
      %v3936 = vpop.f32.mrb[0].mxu0
      %v3937 = vpop.f32.mrb[0].mxu0
      %v3938 = vadd.f32 %v3777, %v3937
      %v3939 = vpop.f32.mrb[0].mxu0
      %3940 = vmatprep.mubr.bf16.mxu0 %v918
      %3941 = vmatmul.mubr.bf16.gmra.mrb[0].mxu0 %v917
      %v3942 = vpop.f32.mrb[0].mxu0
      %v3943 = vadd.f32 %v3782, %v3942
      %v3944 = vpop.f32.mrb[0].mxu0
      %v3945 = vpop.f32.mrb[0].mxu0
      %v3946 = vadd.f32 %v3785, %v3945
      %v3947 = vpop.f32.mrb[0].mxu0
      %3948 = vmatprep.mubr.bf16.mxu0 %v923
      %3949 = vmatmul.mubr.bf16.gmra.mrb[0].mxu0 %v922
      %v3950 = vpop.f32.mrb[0].mxu0
      %v3951 = vadd.f32 %v3790, %v3950
      %v3952 = vpop.f32.mrb[0].mxu0
      %v3953 = vpop.f32.mrb[0].mxu0
      %v3954 = vadd.f32 %v3793, %v3953
      %v3955 = vpop.f32.mrb[0].mxu0
      %3956 = vmatprep.mubr.bf16.mxu0 %v928
      %3957 = vmatmul.mubr.bf16.gmra.mrb[0].mxu0 %v927
      %v3958 = vpop.f32.mrb[0].mxu0
      %v3959 = vadd.f32 %v3798, %v3958
      %v3960 = vpop.f32.mrb[0].mxu0
      %v3961 = vpop.f32.mrb[0].mxu0
      %v3962 = vadd.f32 %v3801, %v3961
      %v3963 = vpop.f32.mrb[0].mxu0
      %3964 = vmatprep.mubr.bf16.mxu0 %v933
      %3965 = vmatmul.mubr.bf16.gmra.mrb[0].mxu0 %v932
      %v3966 = vpop.f32.mrb[0].mxu0
      %v3967 = vadd.f32 %v3806, %v3966
      %v3968 = vpop.f32.mrb[0].mxu0
      %v3969 = vpop.f32.mrb[0].mxu0
      %v3970 = vadd.f32 %v3809, %v3969
      %v3971 = vpop.f32.mrb[0].mxu0
      %3972 = vmatprep.mubr.bf16.mxu0 %v938
      %3973 = vmatmul.mubr.bf16.gmra.mrb[0].mxu0 %v937
      %v3974 = vpop.f32.mrb[0].mxu0
      %v3975 = vadd.f32 %v3814, %v3974
      %v3976 = vpop.f32.mrb[0].mxu0
      %v3977 = vpop.f32.mrb[0].mxu0
      %v3978 = vadd.f32 %v3817, %v3977
      %v3979 = vpop.f32.mrb[0].mxu0
      %3980 = vmatprep.mubr.bf16.mxu0 %v943
      %3981 = vmatmul.mubr.bf16.gmra.mrb[0].mxu0 %v942
      %v3982 = vpop.f32.mrb[0].mxu0
      %v3983 = vadd.f32 %v3822, %v3982
      %v3984 = vpop.f32.mrb[0].mxu0
      %v3985 = vpop.f32.mrb[0].mxu0
      %v3986 = vadd.f32 %v3825, %v3985
      %v3987 = vpop.f32.mrb[0].mxu0
      %3988 = vmatprep.mubr.bf16.mxu0 %v948
      %3989 = vmatmul.mubr.bf16.gmra.mrb[0].mxu0 %v947
      %v3990 = vpop.f32.mrb[0].mxu0
      %v3991 = vadd.f32 %v3830, %v3990
      %v3992 = vpop.f32.mrb[0].mxu0
      %v3993 = vpop.f32.mrb[0].mxu0
      %v3994 = vadd.f32 %v3833, %v3993
      %v3995 = vpop.f32.mrb[0].mxu0
      %3996 = vmatprep.mubr.bf16.mxu0 %v953
      %3997 = vmatmul.mubr.bf16.gmra.mrb[0].mxu0 %v952
      %v3998 = vpop.f32.mrb[0].mxu0
      %v3999 = vadd.f32 %v3838, %v3998
      %v4000 = vpop.f32.mrb[0].mxu0
      %v4001 = vpop.f32.mrb[0].mxu0
      %v4002 = vadd.f32 %v3841, %v4001
      %v4003 = vpop.f32.mrb[0].mxu0
      %4004 = vmatprep.mubr.bf16.mxu0 %v958
      %4005 = vmatmul.mubr.bf16.gmra.mrb[0].mxu0 %v957
      %v4006 = vpop.f32.mrb[0].mxu0
      %v4007 = vadd.f32 %v3846, %v4006
      %v4008 = vpop.f32.mrb[0].mxu0
      %v4009 = vpop.f32.mrb[0].mxu0
      %v4010 = vadd.f32 %v3849, %v4009
      %v4011 = vpop.f32.mrb[0].mxu0
      %4012 = vmatprep.mubr.bf16.mxu0 %v963
      %4013 = vmatmul.mubr.bf16.gmra.mrb[0].mxu0 %v962
      %v4014 = vpop.f32.mrb[0].mxu0
      %v4015 = vadd.f32 %v3854, %v4014
      %v4016 = vpop.f32.mrb[0].mxu0
      %v4017 = vpop.f32.mrb[0].mxu0
      %v4018 = vadd.f32 %v3857, %v4017
      %v4019 = vpop.f32.mrb[0].mxu0
      %4020 = vmatprep.mubr.bf16.mxu0 %v968
      %4021 = vmatmul.mubr.bf16.gmra.mrb[0].mxu0 %v967
      %v4022 = vpop.f32.mrb[0].mxu0
      %v4023 = vadd.f32 %v3862, %v4022
      %v4024 = vpop.f32.mrb[0].mxu0
      %v4025 = vpop.f32.mrb[0].mxu0
      %v4026 = vadd.f32 %v3865, %v4025
      %v4027 = vpop.f32.mrb[0].mxu0
      %4028 = vmatprep.mubr.bf16.mxu0 %v973
      %4029 = vmatmul.mubr.bf16.gmra.mrb[0].mxu0 %v972
      %v4030 = vpop.f32.mrb[0].mxu0
      %v4031 = vadd.f32 %v3870, %v4030
      %v4032 = vpop.f32.mrb[0].mxu0
      %v4033 = vpop.f32.mrb[0].mxu0
      %v4034 = vadd.f32 %v3873, %v4033
      %v4035 = vpop.f32.mrb[0].mxu0
      %4036 = vdwg.mxu0
      %4037 = vmatprep.subr.bf16.mxu0 0
      %4038 = vmatpush1.bf16.msra.mxu0 %v2332
      %4039 = vmatprep.subr.bf16.mxu0 0
      %4040 = vmatpush1.bf16.msra.mxu0 %v2333
      %4041 = vmatprep.subr.bf16.mxu0 0
      %4042 = vmatpush1.bf16.msra.mxu0 %v2334
      %4043 = vmatprep.subr.bf16.mxu0 0
      %4044 = vmatpush1.bf16.msra.mxu0 %v2335
      %4045 = vmatprep.subr.bf16.mxu0 0
      %4046 = vmatpush1.bf16.msra.mxu0 %v2336
      %4047 = vmatprep.subr.bf16.mxu0 0
      %4048 = vmatpush1.bf16.msra.mxu0 %v2337
      %4049 = vmatprep.subr.bf16.mxu0 0
      %4050 = vmatpush1.bf16.msra.mxu0 %v2338
      %4051 = vmatprep.subr.bf16.mxu0 0
      %4052 = vmatpush1.bf16.msra.mxu0 %v2339
      %4053 = vmatprep.subr.bf16.mxu0 0
      %4054 = vmatpush1.bf16.msra.mxu0 %v2340
      %4055 = vmatprep.subr.bf16.mxu0 0
      %4056 = vmatpush1.bf16.msra.mxu0 %v2341
      %4057 = vmatprep.subr.bf16.mxu0 0
      %4058 = vmatpush1.bf16.msra.mxu0 %v2342
      %4059 = vmatprep.subr.bf16.mxu0 0
      %4060 = vmatpush1.bf16.msra.mxu0 %v2343
      %4061 = vmatprep.subr.bf16.mxu0 0
      %4062 = vmatpush1.bf16.msra.mxu0 %v2344
      %4063 = vmatprep.subr.bf16.mxu0 0
      %4064 = vmatpush1.bf16.msra.mxu0 %v2345
      %4065 = vmatprep.subr.bf16.mxu0 0
      %4066 = vmatpush1.bf16.msra.mxu0 %v2346
      %4067 = vmatprep.subr.bf16.mxu0 0
      %4068 = vmatpush1.bf16.msra.mxu0 %v2347
      %4069 = vmatprep.mubr.bf16.mxu0 %v900
      %4070 = vmatmul.mubr.bf16.gmra.mrb[0].mxu0 %v899
      %v4071 = vpop.f32.mrb[0].mxu0
      %v4072 = vadd.f32 %v3911, %v4071
      %v4073 = vpop.f32.mrb[0].mxu0
      %v4074 = vpop.f32.mrb[0].mxu0
      %v4075 = vadd.f32 %v3914, %v4074
      %v4076 = vpop.f32.mrb[0].mxu0
      %4077 = vmatprep.mubr.bf16.mxu0 %v905
      %4078 = vmatmul.mubr.bf16.gmra.mrb[0].mxu0 %v904
      %v4079 = vpop.f32.mrb[0].mxu0
      %v4080 = vadd.f32 %v3919, %v4079
      %v4081 = vpop.f32.mrb[0].mxu0
      %v4082 = vpop.f32.mrb[0].mxu0
      %v4083 = vadd.f32 %v3922, %v4082
      %v4084 = vpop.f32.mrb[0].mxu0
      %4085 = vmatprep.mubr.bf16.mxu0 %v910
      %4086 = vmatmul.mubr.bf16.gmra.mrb[0].mxu0 %v909
      %v4087 = vpop.f32.mrb[0].mxu0
      %v4088 = vadd.f32 %v3927, %v4087
      %v4089 = vpop.f32.mrb[0].mxu0
      %v4090 = vpop.f32.mrb[0].mxu0
      %v4091 = vadd.f32 %v3930, %v4090
      %v4092 = vpop.f32.mrb[0].mxu0
      %4093 = vmatprep.mubr.bf16.mxu0 %v915
      %4094 = vmatmul.mubr.bf16.gmra.mrb[0].mxu0 %v914
      %v4095 = vpop.f32.mrb[0].mxu0
      %v4096 = vadd.f32 %v3935, %v4095
      %v4097 = vpop.f32.mrb[0].mxu0
      %v4098 = vpop.f32.mrb[0].mxu0
      %v4099 = vadd.f32 %v3938, %v4098
      %v4100 = vpop.f32.mrb[0].mxu0
      %4101 = vmatprep.mubr.bf16.mxu0 %v920
      %4102 = vmatmul.mubr.bf16.gmra.mrb[0].mxu0 %v919
      %v4103 = vpop.f32.mrb[0].mxu0
      %v4104 = vadd.f32 %v3943, %v4103
      %v4105 = vpop.f32.mrb[0].mxu0
      %v4106 = vpop.f32.mrb[0].mxu0
      %v4107 = vadd.f32 %v3946, %v4106
      %v4108 = vpop.f32.mrb[0].mxu0
      %4109 = vmatprep.mubr.bf16.mxu0 %v925
      %4110 = vmatmul.mubr.bf16.gmra.mrb[0].mxu0 %v924
      %v4111 = vpop.f32.mrb[0].mxu0
      %v4112 = vadd.f32 %v3951, %v4111
      %v4113 = vpop.f32.mrb[0].mxu0
      %v4114 = vpop.f32.mrb[0].mxu0
      %v4115 = vadd.f32 %v3954, %v4114
      %v4116 = vpop.f32.mrb[0].mxu0
      %4117 = vmatprep.mubr.bf16.mxu0 %v930
      %4118 = vmatmul.mubr.bf16.gmra.mrb[0].mxu0 %v929
      %v4119 = vpop.f32.mrb[0].mxu0
      %v4120 = vadd.f32 %v3959, %v4119
      %v4121 = vpop.f32.mrb[0].mxu0
      %v4122 = vpop.f32.mrb[0].mxu0
      %v4123 = vadd.f32 %v3962, %v4122
      %v4124 = vpop.f32.mrb[0].mxu0
      %4125 = vmatprep.mubr.bf16.mxu0 %v935
      %4126 = vmatmul.mubr.bf16.gmra.mrb[0].mxu0 %v934
      %v4127 = vpop.f32.mrb[0].mxu0
      %v4128 = vadd.f32 %v3967, %v4127
      %v4129 = vpop.f32.mrb[0].mxu0
      %v4130 = vpop.f32.mrb[0].mxu0
      %v4131 = vadd.f32 %v3970, %v4130
      %v4132 = vpop.f32.mrb[0].mxu0
      %4133 = vmatprep.mubr.bf16.mxu0 %v940
      %4134 = vmatmul.mubr.bf16.gmra.mrb[0].mxu0 %v939
      %v4135 = vpop.f32.mrb[0].mxu0
      %v4136 = vadd.f32 %v3975, %v4135
      %v4137 = vpop.f32.mrb[0].mxu0
      %v4138 = vpop.f32.mrb[0].mxu0
      %v4139 = vadd.f32 %v3978, %v4138
      %v4140 = vpop.f32.mrb[0].mxu0
      %4141 = vmatprep.mubr.bf16.mxu0 %v945
      %4142 = vmatmul.mubr.bf16.gmra.mrb[0].mxu0 %v944
      %v4143 = vpop.f32.mrb[0].mxu0
      %v4144 = vadd.f32 %v3983, %v4143
      %v4145 = vpop.f32.mrb[0].mxu0
      %v4146 = vpop.f32.mrb[0].mxu0
      %v4147 = vadd.f32 %v3986, %v4146
      %v4148 = vpop.f32.mrb[0].mxu0
      %4149 = vmatprep.mubr.bf16.mxu0 %v950
      %4150 = vmatmul.mubr.bf16.gmra.mrb[0].mxu0 %v949
      %v4151 = vpop.f32.mrb[0].mxu0
      %v4152 = vadd.f32 %v3991, %v4151
      %v4153 = vpop.f32.mrb[0].mxu0
      %v4154 = vpop.f32.mrb[0].mxu0
      %v4155 = vadd.f32 %v3994, %v4154
      %v4156 = vpop.f32.mrb[0].mxu0
      %4157 = vmatprep.mubr.bf16.mxu0 %v955
      %4158 = vmatmul.mubr.bf16.gmra.mrb[0].mxu0 %v954
      %v4159 = vpop.f32.mrb[0].mxu0
      %v4160 = vadd.f32 %v3999, %v4159
      %v4161 = vpop.f32.mrb[0].mxu0
      %v4162 = vpop.f32.mrb[0].mxu0
      %v4163 = vadd.f32 %v4002, %v4162
      %v4164 = vpop.f32.mrb[0].mxu0
      %4165 = vmatprep.mubr.bf16.mxu0 %v960
      %4166 = vmatmul.mubr.bf16.gmra.mrb[0].mxu0 %v959
      %v4167 = vpop.f32.mrb[0].mxu0
      %v4168 = vadd.f32 %v4007, %v4167
      %v4169 = vpop.f32.mrb[0].mxu0
      %v4170 = vpop.f32.mrb[0].mxu0
      %v4171 = vadd.f32 %v4010, %v4170
      %v4172 = vpop.f32.mrb[0].mxu0
      %4173 = vmatprep.mubr.bf16.mxu0 %v965
      %4174 = vmatmul.mubr.bf16.gmra.mrb[0].mxu0 %v964
      %v4175 = vpop.f32.mrb[0].mxu0
      %v4176 = vadd.f32 %v4015, %v4175
      %v4177 = vpop.f32.mrb[0].mxu0
      %v4178 = vpop.f32.mrb[0].mxu0
      %v4179 = vadd.f32 %v4018, %v4178
      %v4180 = vpop.f32.mrb[0].mxu0
      %4181 = vmatprep.mubr.bf16.mxu0 %v970
      %4182 = vmatmul.mubr.bf16.gmra.mrb[0].mxu0 %v969
      %v4183 = vpop.f32.mrb[0].mxu0
      %v4184 = vadd.f32 %v4023, %v4183
      %v4185 = vpop.f32.mrb[0].mxu0
      %v4186 = vpop.f32.mrb[0].mxu0
      %v4187 = vadd.f32 %v4026, %v4186
      %v4188 = vpop.f32.mrb[0].mxu0
      %4189 = vmatprep.mubr.bf16.mxu0 %v975
      %4190 = vmatmul.mubr.bf16.gmra.mrb[0].mxu0 %v974
      %v4191 = vpop.f32.mrb[0].mxu0
      %v4192 = vadd.f32 %v4031, %v4191
      %v4193 = vpop.f32.mrb[0].mxu0
      %v4194 = vpop.f32.mrb[0].mxu0
      %v4195 = vadd.f32 %v4034, %v4194
      %v4196 = vpop.f32.mrb[0].mxu0
      %4197 = vdwg.mxu0
      %4198 = vmatprep.subr.bf16.mxu0 0
      %4199 = vmatpush1.bf16.msra.mxu0 %v2348
      %4200 = vmatprep.subr.bf16.mxu0 0
      %4201 = vmatpush1.bf16.msra.mxu0 %v2349
      %4202 = vmatprep.subr.bf16.mxu0 0
      %4203 = vmatpush1.bf16.msra.mxu0 %v2350
      %4204 = vmatprep.subr.bf16.mxu0 0
      %4205 = vmatpush1.bf16.msra.mxu0 %v2351
      %4206 = vmatprep.subr.bf16.mxu0 0
      %4207 = vmatpush1.bf16.msra.mxu0 %v2352
      %4208 = vmatprep.subr.bf16.mxu0 0
      %4209 = vmatpush1.bf16.msra.mxu0 %v2353
      %4210 = vmatprep.subr.bf16.mxu0 0
      %4211 = vmatpush1.bf16.msra.mxu0 %v2354
      %4212 = vmatprep.subr.bf16.mxu0 0
      %4213 = vmatpush1.bf16.msra.mxu0 %v2355
      %4214 = vmatprep.subr.bf16.mxu0 0
      %4215 = vmatpush1.bf16.msra.mxu0 %v2356
      %4216 = vmatprep.subr.bf16.mxu0 0
      %4217 = vmatpush1.bf16.msra.mxu0 %v2357
      %4218 = vmatprep.subr.bf16.mxu0 0
      %4219 = vmatpush1.bf16.msra.mxu0 %v2358
      %4220 = vmatprep.subr.bf16.mxu0 0
      %4221 = vmatpush1.bf16.msra.mxu0 %v2359
      %4222 = vmatprep.subr.bf16.mxu0 0
      %4223 = vmatpush1.bf16.msra.mxu0 %v2360
      %4224 = vmatprep.subr.bf16.mxu0 0
      %4225 = vmatpush1.bf16.msra.mxu0 %v2361
      %4226 = vmatprep.subr.bf16.mxu0 0
      %4227 = vmatpush1.bf16.msra.mxu0 %v2362
      %4228 = vmatprep.subr.bf16.mxu0 0
      %4229 = vmatpush1.bf16.msra.mxu0 %v2363
      %4230 = vmatprep.mubr.bf16.mxu0 %v902
      %4231 = vmatmul.mubr.bf16.gmra.mrb[0].mxu0 %v901
      %v4232 = vpop.f32.mrb[0].mxu0
      %v4233 = vadd.f32 %v4072, %v4232
      %v4234 = vpop.f32.mrb[0].mxu0
      %v4235 = vpop.f32.mrb[0].mxu0
      %v4236 = vadd.f32 %v4075, %v4235
      %v4237 = vpop.f32.mrb[0].mxu0
      %4238 = vmatprep.mubr.bf16.mxu0 %v907
      %4239 = vmatmul.mubr.bf16.gmra.mrb[0].mxu0 %v906
      %v4240 = vpop.f32.mrb[0].mxu0
      %v4241 = vadd.f32 %v4080, %v4240
      %v4242 = vpop.f32.mrb[0].mxu0
      %v4243 = vpop.f32.mrb[0].mxu0
      %v4244 = vadd.f32 %v4083, %v4243
      %v4245 = vpop.f32.mrb[0].mxu0
      %4246 = vmatprep.mubr.bf16.mxu0 %v912
      %4247 = vmatmul.mubr.bf16.gmra.mrb[0].mxu0 %v911
      %v4248 = vpop.f32.mrb[0].mxu0
      %v4249 = vadd.f32 %v4088, %v4248
      %v4250 = vpop.f32.mrb[0].mxu0
      %v4251 = vpop.f32.mrb[0].mxu0
      %v4252 = vadd.f32 %v4091, %v4251
      %v4253 = vpop.f32.mrb[0].mxu0
      %4254 = vmatprep.mubr.bf16.mxu0 %v917
      %4255 = vmatmul.mubr.bf16.gmra.mrb[0].mxu0 %v916
      %v4256 = vpop.f32.mrb[0].mxu0
      %v4257 = vadd.f32 %v4096, %v4256
      %v4258 = vpop.f32.mrb[0].mxu0
      %v4259 = vpop.f32.mrb[0].mxu0
      %v4260 = vadd.f32 %v4099, %v4259
      %v4261 = vpop.f32.mrb[0].mxu0
      %4262 = vmatprep.mubr.bf16.mxu0 %v922
      %4263 = vmatmul.mubr.bf16.gmra.mrb[0].mxu0 %v921
      %v4264 = vpop.f32.mrb[0].mxu0
      %v4265 = vadd.f32 %v4104, %v4264
      %v4266 = vpop.f32.mrb[0].mxu0
      %v4267 = vpop.f32.mrb[0].mxu0
      %v4268 = vadd.f32 %v4107, %v4267
      %v4269 = vpop.f32.mrb[0].mxu0
      %4270 = vmatprep.mubr.bf16.mxu0 %v927
      %4271 = vmatmul.mubr.bf16.gmra.mrb[0].mxu0 %v926
      %v4272 = vpop.f32.mrb[0].mxu0
      %v4273 = vadd.f32 %v4112, %v4272
      %v4274 = vpop.f32.mrb[0].mxu0
      %v4275 = vpop.f32.mrb[0].mxu0
      %v4276 = vadd.f32 %v4115, %v4275
      %v4277 = vpop.f32.mrb[0].mxu0
      %4278 = vmatprep.mubr.bf16.mxu0 %v932
      %4279 = vmatmul.mubr.bf16.gmra.mrb[0].mxu0 %v931
      %v4280 = vpop.f32.mrb[0].mxu0
      %v4281 = vadd.f32 %v4120, %v4280
      %v4282 = vpop.f32.mrb[0].mxu0
      %v4283 = vpop.f32.mrb[0].mxu0
      %v4284 = vadd.f32 %v4123, %v4283
      %v4285 = vpop.f32.mrb[0].mxu0
      %4286 = vmatprep.mubr.bf16.mxu0 %v937
      %4287 = vmatmul.mubr.bf16.gmra.mrb[0].mxu0 %v936
      %v4288 = vpop.f32.mrb[0].mxu0
      %v4289 = vadd.f32 %v4128, %v4288
      %v4290 = vpop.f32.mrb[0].mxu0
      %v4291 = vpop.f32.mrb[0].mxu0
      %v4292 = vadd.f32 %v4131, %v4291
      %v4293 = vpop.f32.mrb[0].mxu0
      %4294 = vmatprep.mubr.bf16.mxu0 %v942
      %4295 = vmatmul.mubr.bf16.gmra.mrb[0].mxu0 %v941
      %v4296 = vpop.f32.mrb[0].mxu0
      %v4297 = vadd.f32 %v4136, %v4296
      %v4298 = vpop.f32.mrb[0].mxu0
      %v4299 = vpop.f32.mrb[0].mxu0
      %v4300 = vadd.f32 %v4139, %v4299
      %v4301 = vpop.f32.mrb[0].mxu0
      %4302 = vmatprep.mubr.bf16.mxu0 %v947
      %4303 = vmatmul.mubr.bf16.gmra.mrb[0].mxu0 %v946
      %v4304 = vpop.f32.mrb[0].mxu0
      %v4305 = vadd.f32 %v4144, %v4304
      %v4306 = vpop.f32.mrb[0].mxu0
      %v4307 = vpop.f32.mrb[0].mxu0
      %v4308 = vadd.f32 %v4147, %v4307
      %v4309 = vpop.f32.mrb[0].mxu0
      %4310 = vmatprep.mubr.bf16.mxu0 %v952
      %4311 = vmatmul.mubr.bf16.gmra.mrb[0].mxu0 %v951
      %v4312 = vpop.f32.mrb[0].mxu0
      %v4313 = vadd.f32 %v4152, %v4312
      %v4314 = vpop.f32.mrb[0].mxu0
      %v4315 = vpop.f32.mrb[0].mxu0
      %v4316 = vadd.f32 %v4155, %v4315
      %v4317 = vpop.f32.mrb[0].mxu0
      %4318 = vmatprep.mubr.bf16.mxu0 %v957
      %4319 = vmatmul.mubr.bf16.gmra.mrb[0].mxu0 %v956
      %v4320 = vpop.f32.mrb[0].mxu0
      %v4321 = vadd.f32 %v4160, %v4320
      %v4322 = vpop.f32.mrb[0].mxu0
      %v4323 = vpop.f32.mrb[0].mxu0
      %v4324 = vadd.f32 %v4163, %v4323
      %v4325 = vpop.f32.mrb[0].mxu0
      %4326 = vmatprep.mubr.bf16.mxu0 %v962
      %4327 = vmatmul.mubr.bf16.gmra.mrb[0].mxu0 %v961
      %v4328 = vpop.f32.mrb[0].mxu0
      %v4329 = vadd.f32 %v4168, %v4328
      %v4330 = vpop.f32.mrb[0].mxu0
      %v4331 = vpop.f32.mrb[0].mxu0
      %v4332 = vadd.f32 %v4171, %v4331
      %v4333 = vpop.f32.mrb[0].mxu0
      %4334 = vmatprep.mubr.bf16.mxu0 %v967
      %4335 = vmatmul.mubr.bf16.gmra.mrb[0].mxu0 %v966
      %v4336 = vpop.f32.mrb[0].mxu0
      %v4337 = vadd.f32 %v4176, %v4336
      %v4338 = vpop.f32.mrb[0].mxu0
      %v4339 = vpop.f32.mrb[0].mxu0
      %v4340 = vadd.f32 %v4179, %v4339
      %v4341 = vpop.f32.mrb[0].mxu0
      %4342 = vmatprep.mubr.bf16.mxu0 %v972
      %4343 = vmatmul.mubr.bf16.gmra.mrb[0].mxu0 %v971
      %v4344 = vpop.f32.mrb[0].mxu0
      %v4345 = vadd.f32 %v4184, %v4344
      %v4346 = vpop.f32.mrb[0].mxu0
      %v4347 = vpop.f32.mrb[0].mxu0
      %v4348 = vadd.f32 %v4187, %v4347
      %v4349 = vpop.f32.mrb[0].mxu0
      %4350 = vmatprep.mubr.bf16.mxu0 %v977
      %4351 = vmatmul.mubr.bf16.gmra.mrb[0].mxu0 %v976
      %v4352 = vpop.f32.mrb[0].mxu0
      %v4353 = vadd.f32 %v4192, %v4352
      %v4354 = vpop.f32.mrb[0].mxu0
      %v4355 = vpop.f32.mrb[0].mxu0
      %v4356 = vadd.f32 %v4195, %v4355
      %v4357 = vpop.f32.mrb[0].mxu0
      %4358 = vdwg.mxu0
      %4359 = vmatprep.subr.bf16.mxu0 0
      %4360 = vmatpush1.bf16.msra.mxu0 %v2364
      %4361 = vmatprep.subr.bf16.mxu0 0
      %4362 = vmatpush1.bf16.msra.mxu0 %v2365
      %4363 = vmatprep.subr.bf16.mxu0 0
      %4364 = vmatpush1.bf16.msra.mxu0 %v2366
      %4365 = vmatprep.subr.bf16.mxu0 0
      %4366 = vmatpush1.bf16.msra.mxu0 %v2367
      %4367 = vmatprep.subr.bf16.mxu0 0
      %4368 = vmatpush1.bf16.msra.mxu0 %v2368
      %4369 = vmatprep.subr.bf16.mxu0 0
      %4370 = vmatpush1.bf16.msra.mxu0 %v2369
      %4371 = vmatprep.subr.bf16.mxu0 0
      %4372 = vmatpush1.bf16.msra.mxu0 %v2370
      %4373 = vmatprep.subr.bf16.mxu0 0
      %4374 = vmatpush1.bf16.msra.mxu0 %v2371
      %4375 = vmatprep.subr.bf16.mxu0 0
      %4376 = vmatpush1.bf16.msra.mxu0 %v2372
      %4377 = vmatprep.subr.bf16.mxu0 0
      %4378 = vmatpush1.bf16.msra.mxu0 %v2373
      %4379 = vmatprep.subr.bf16.mxu0 0
      %4380 = vmatpush1.bf16.msra.mxu0 %v2374
      %4381 = vmatprep.subr.bf16.mxu0 0
      %4382 = vmatpush1.bf16.msra.mxu0 %v2375
      %4383 = vmatprep.subr.bf16.mxu0 0
      %4384 = vmatpush1.bf16.msra.mxu0 %v2376
      %4385 = vmatprep.subr.bf16.mxu0 0
      %4386 = vmatpush1.bf16.msra.mxu0 %v2377
      %4387 = vmatprep.subr.bf16.mxu0 0
      %4388 = vmatpush1.bf16.msra.mxu0 %v2378
      %4389 = vmatprep.subr.bf16.mxu0 0
      %4390 = vmatpush1.bf16.msra.mxu0 %v2379
      %4391 = vmatprep.mubr.bf16.mxu0 %v904
      %4392 = vmatmul.mubr.bf16.gmra.mrb[0].mxu0 %v903
      %v4393 = vpop.f32.mrb[0].mxu0
      %v4394 = vadd.f32 %v4233, %v4393
      %v4395 = vpop.f32.mrb[0].mxu0
      %v4396 = vpop.f32.mrb[0].mxu0
      %v4397 = vadd.f32 %v4236, %v4396
      %v4398 = vpop.f32.mrb[0].mxu0
      %4399 = vmatprep.mubr.bf16.mxu0 %v909
      %4400 = vmatmul.mubr.bf16.gmra.mrb[0].mxu0 %v908
      %v4401 = vpop.f32.mrb[0].mxu0
      %v4402 = vadd.f32 %v4241, %v4401
      %v4403 = vpop.f32.mrb[0].mxu0
      %v4404 = vpop.f32.mrb[0].mxu0
      %v4405 = vadd.f32 %v4244, %v4404
      %v4406 = vpop.f32.mrb[0].mxu0
      %4407 = vmatprep.mubr.bf16.mxu0 %v914
      %4408 = vmatmul.mubr.bf16.gmra.mrb[0].mxu0 %v913
      %v4409 = vpop.f32.mrb[0].mxu0
      %v4410 = vadd.f32 %v4249, %v4409
      %v4411 = vpop.f32.mrb[0].mxu0
      %v4412 = vpop.f32.mrb[0].mxu0
      %v4413 = vadd.f32 %v4252, %v4412
      %v4414 = vpop.f32.mrb[0].mxu0
      %4415 = vmatprep.mubr.bf16.mxu0 %v919
      %4416 = vmatmul.mubr.bf16.gmra.mrb[0].mxu0 %v918
      %v4417 = vpop.f32.mrb[0].mxu0
      %v4418 = vadd.f32 %v4257, %v4417
      %v4419 = vpop.f32.mrb[0].mxu0
      %v4420 = vpop.f32.mrb[0].mxu0
      %v4421 = vadd.f32 %v4260, %v4420
      %v4422 = vpop.f32.mrb[0].mxu0
      %4423 = vmatprep.mubr.bf16.mxu0 %v924
      %4424 = vmatmul.mubr.bf16.gmra.mrb[0].mxu0 %v923
      %v4425 = vpop.f32.mrb[0].mxu0
      %v4426 = vadd.f32 %v4265, %v4425
      %v4427 = vpop.f32.mrb[0].mxu0
      %v4428 = vpop.f32.mrb[0].mxu0
      %v4429 = vadd.f32 %v4268, %v4428
      %v4430 = vpop.f32.mrb[0].mxu0
      %4431 = vmatprep.mubr.bf16.mxu0 %v929
      %4432 = vmatmul.mubr.bf16.gmra.mrb[0].mxu0 %v928
      %v4433 = vpop.f32.mrb[0].mxu0
      %v4434 = vadd.f32 %v4273, %v4433
      %v4435 = vpop.f32.mrb[0].mxu0
      %v4436 = vpop.f32.mrb[0].mxu0
      %v4437 = vadd.f32 %v4276, %v4436
      %v4438 = vpop.f32.mrb[0].mxu0
      %4439 = vmatprep.mubr.bf16.mxu0 %v934
      %4440 = vmatmul.mubr.bf16.gmra.mrb[0].mxu0 %v933
      %v4441 = vpop.f32.mrb[0].mxu0
      %v4442 = vadd.f32 %v4281, %v4441
      %v4443 = vpop.f32.mrb[0].mxu0
      %v4444 = vpop.f32.mrb[0].mxu0
      %v4445 = vadd.f32 %v4284, %v4444
      %v4446 = vpop.f32.mrb[0].mxu0
      %4447 = vmatprep.mubr.bf16.mxu0 %v939
      %4448 = vmatmul.mubr.bf16.gmra.mrb[0].mxu0 %v938
      %v4449 = vpop.f32.mrb[0].mxu0
      %v4450 = vadd.f32 %v4289, %v4449
      %v4451 = vpop.f32.mrb[0].mxu0
      %v4452 = vpop.f32.mrb[0].mxu0
      %v4453 = vadd.f32 %v4292, %v4452
      %v4454 = vpop.f32.mrb[0].mxu0
      %4455 = vmatprep.mubr.bf16.mxu0 %v944
      %4456 = vmatmul.mubr.bf16.gmra.mrb[0].mxu0 %v943
      %v4457 = vpop.f32.mrb[0].mxu0
      %v4458 = vadd.f32 %v4297, %v4457
      %v4459 = vpop.f32.mrb[0].mxu0
      %v4460 = vpop.f32.mrb[0].mxu0
      %v4461 = vadd.f32 %v4300, %v4460
      %v4462 = vpop.f32.mrb[0].mxu0
      %4463 = vmatprep.mubr.bf16.mxu0 %v949
      %4464 = vmatmul.mubr.bf16.gmra.mrb[0].mxu0 %v948
      %v4465 = vpop.f32.mrb[0].mxu0
      %v4466 = vadd.f32 %v4305, %v4465
      %v4467 = vpop.f32.mrb[0].mxu0
      %v4468 = vpop.f32.mrb[0].mxu0
      %v4469 = vadd.f32 %v4308, %v4468
      %v4470 = vpop.f32.mrb[0].mxu0
      %4471 = vmatprep.mubr.bf16.mxu0 %v954
      %4472 = vmatmul.mubr.bf16.gmra.mrb[0].mxu0 %v953
      %v4473 = vpop.f32.mrb[0].mxu0
      %v4474 = vadd.f32 %v4313, %v4473
      %v4475 = vpop.f32.mrb[0].mxu0
      %v4476 = vpop.f32.mrb[0].mxu0
      %v4477 = vadd.f32 %v4316, %v4476
      %v4478 = vpop.f32.mrb[0].mxu0
      %4479 = vmatprep.mubr.bf16.mxu0 %v959
      %4480 = vmatmul.mubr.bf16.gmra.mrb[0].mxu0 %v958
      %v4481 = vpop.f32.mrb[0].mxu0
      %v4482 = vadd.f32 %v4321, %v4481
      %v4483 = vpop.f32.mrb[0].mxu0
      %v4484 = vpop.f32.mrb[0].mxu0
      %v4485 = vadd.f32 %v4324, %v4484
      %v4486 = vpop.f32.mrb[0].mxu0
      %4487 = vmatprep.mubr.bf16.mxu0 %v964
      %4488 = vmatmul.mubr.bf16.gmra.mrb[0].mxu0 %v963
      %v4489 = vpop.f32.mrb[0].mxu0
      %v4490 = vadd.f32 %v4329, %v4489
      %v4491 = vpop.f32.mrb[0].mxu0
      %v4492 = vpop.f32.mrb[0].mxu0
      %v4493 = vadd.f32 %v4332, %v4492
      %v4494 = vpop.f32.mrb[0].mxu0
      %4495 = vmatprep.mubr.bf16.mxu0 %v969
      %4496 = vmatmul.mubr.bf16.gmra.mrb[0].mxu0 %v968
      %v4497 = vpop.f32.mrb[0].mxu0
      %v4498 = vadd.f32 %v4337, %v4497
      %v4499 = vpop.f32.mrb[0].mxu0
      %v4500 = vpop.f32.mrb[0].mxu0
      %v4501 = vadd.f32 %v4340, %v4500
      %v4502 = vpop.f32.mrb[0].mxu0
      %4503 = vmatprep.mubr.bf16.mxu0 %v974
      %4504 = vmatmul.mubr.bf16.gmra.mrb[0].mxu0 %v973
      %v4505 = vpop.f32.mrb[0].mxu0
      %v4506 = vadd.f32 %v4345, %v4505
      %v4507 = vpop.f32.mrb[0].mxu0
      %v4508 = vpop.f32.mrb[0].mxu0
      %v4509 = vadd.f32 %v4348, %v4508
      %v4510 = vpop.f32.mrb[0].mxu0
      %4511 = vmatprep.mubr.bf16.mxu0 %v979
      %4512 = vmatmul.mubr.bf16.gmra.mrb[0].mxu0 %v978
      %v4513 = vpop.f32.mrb[0].mxu0
      %v4514 = vadd.f32 %v4353, %v4513
      %v4515 = vpop.f32.mrb[0].mxu0
      %v4516 = vpop.f32.mrb[0].mxu0
      %v4517 = vadd.f32 %v4356, %v4516
      %v4518 = vpop.f32.mrb[0].mxu0
      %4519 = vdwg.mxu0
      %4520 = vmatprep.subr.bf16.mxu0 0
      %4521 = vmatpush1.bf16.msra.mxu0 %v2380
      %4522 = vmatprep.subr.bf16.mxu0 0
      %4523 = vmatpush1.bf16.msra.mxu0 %v2381
      %4524 = vmatprep.subr.bf16.mxu0 0
      %4525 = vmatpush1.bf16.msra.mxu0 %v2382
      %4526 = vmatprep.subr.bf16.mxu0 0
      %4527 = vmatpush1.bf16.msra.mxu0 %v2383
      %4528 = vmatprep.subr.bf16.mxu0 0
      %4529 = vmatpush1.bf16.msra.mxu0 %v2384
      %4530 = vmatprep.subr.bf16.mxu0 0
      %4531 = vmatpush1.bf16.msra.mxu0 %v2385
      %4532 = vmatprep.subr.bf16.mxu0 0
      %4533 = vmatpush1.bf16.msra.mxu0 %v2386
      %4534 = vmatprep.subr.bf16.mxu0 0
      %4535 = vmatpush1.bf16.msra.mxu0 %v2387
      %4536 = vmatprep.subr.bf16.mxu0 0
      %4537 = vmatpush1.bf16.msra.mxu0 0
      %4538 = vmatprep.subr.bf16.mxu0 0
      %4539 = vmatpush1.bf16.msra.mxu0 0
      %4540 = vmatprep.subr.bf16.mxu0 0
      %4541 = vmatpush1.bf16.msra.mxu0 0
      %4542 = vmatprep.subr.bf16.mxu0 0
      %4543 = vmatpush1.bf16.msra.mxu0 0
      %4544 = vmatprep.subr.bf16.mxu0 0
      %4545 = vmatpush1.bf16.msra.mxu0 0
      %4546 = vmatprep.subr.bf16.mxu0 0
      %4547 = vmatpush1.bf16.msra.mxu0 0
      %4548 = vmatprep.subr.bf16.mxu0 0
      %4549 = vmatpush1.bf16.msra.mxu0 0
      %4550 = vmatprep.subr.bf16.mxu0 0
      %4551 = vmatpush1.bf16.msra.mxu0 0
      %4552 = vmatprep.mubr.bf16.mxu0 0
      %4553 = vmatmul.mubr.bf16.gmra.mrb[0].mxu0 %v905
      %v4554 = vpop.f32.mrb[0].mxu0
      %v4555 = vadd.f32 %v4394, %v4554
      %v4556 = vpop.f32.mrb[0].mxu0
      %v4557 = vpop.f32.mrb[0].mxu0
      %v4558 = vadd.f32 %v4397, %v4557
      %v4559 = vpop.f32.mrb[0].mxu0
      %4560 = vmatprep.mubr.bf16.mxu0 0
      %4561 = vmatmul.mubr.bf16.gmra.mrb[0].mxu0 %v910
      %v4562 = vpop.f32.mrb[0].mxu0
      %v4563 = vadd.f32 %v4402, %v4562
      %v4564 = vpop.f32.mrb[0].mxu0
      %v4565 = vpop.f32.mrb[0].mxu0
      %v4566 = vadd.f32 %v4405, %v4565
      %v4567 = vpop.f32.mrb[0].mxu0
      %4568 = vmatprep.mubr.bf16.mxu0 0
      %4569 = vmatmul.mubr.bf16.gmra.mrb[0].mxu0 %v915
      %v4570 = vpop.f32.mrb[0].mxu0
      %v4571 = vadd.f32 %v4410, %v4570
      %v4572 = vpop.f32.mrb[0].mxu0
      %v4573 = vpop.f32.mrb[0].mxu0
      %v4574 = vadd.f32 %v4413, %v4573
      %v4575 = vpop.f32.mrb[0].mxu0
      %4576 = vmatprep.mubr.bf16.mxu0 0
      %4577 = vmatmul.mubr.bf16.gmra.mrb[0].mxu0 %v920
      %v4578 = vpop.f32.mrb[0].mxu0
      %v4579 = vadd.f32 %v4418, %v4578
      %v4580 = vpop.f32.mrb[0].mxu0
      %v4581 = vpop.f32.mrb[0].mxu0
      %v4582 = vadd.f32 %v4421, %v4581
      %v4583 = vpop.f32.mrb[0].mxu0
      %4584 = vmatprep.mubr.bf16.mxu0 0
      %4585 = vmatmul.mubr.bf16.gmra.mrb[0].mxu0 %v925
      %v4586 = vpop.f32.mrb[0].mxu0
      %v4587 = vadd.f32 %v4426, %v4586
      %v4588 = vpop.f32.mrb[0].mxu0
      %v4589 = vpop.f32.mrb[0].mxu0
      %v4590 = vadd.f32 %v4429, %v4589
      %v4591 = vpop.f32.mrb[0].mxu0
      %4592 = vmatprep.mubr.bf16.mxu0 0
      %4593 = vmatmul.mubr.bf16.gmra.mrb[0].mxu0 %v930
      %v4594 = vpop.f32.mrb[0].mxu0
      %v4595 = vadd.f32 %v4434, %v4594
      %v4596 = vpop.f32.mrb[0].mxu0
      %v4597 = vpop.f32.mrb[0].mxu0
      %v4598 = vadd.f32 %v4437, %v4597
      %v4599 = vpop.f32.mrb[0].mxu0
      %4600 = vmatprep.mubr.bf16.mxu0 0
      %4601 = vmatmul.mubr.bf16.gmra.mrb[0].mxu0 %v935
      %v4602 = vpop.f32.mrb[0].mxu0
      %v4603 = vadd.f32 %v4442, %v4602
      %v4604 = vpop.f32.mrb[0].mxu0
      %v4605 = vpop.f32.mrb[0].mxu0
      %v4606 = vadd.f32 %v4445, %v4605
      %v4607 = vpop.f32.mrb[0].mxu0
      %4608 = vmatprep.mubr.bf16.mxu0 0
      %4609 = vmatmul.mubr.bf16.gmra.mrb[0].mxu0 %v940
      %v4610 = vpop.f32.mrb[0].mxu0
      %v4611 = vadd.f32 %v4450, %v4610
      %v4612 = vpop.f32.mrb[0].mxu0
      %v4613 = vpop.f32.mrb[0].mxu0
      %v4614 = vadd.f32 %v4453, %v4613
      %v4615 = vpop.f32.mrb[0].mxu0
      %4616 = vmatprep.mubr.bf16.mxu0 0
      %4617 = vmatmul.mubr.bf16.gmra.mrb[0].mxu0 %v945
      %v4618 = vpop.f32.mrb[0].mxu0
      %v4619 = vadd.f32 %v4458, %v4618
      %v4620 = vpop.f32.mrb[0].mxu0
      %v4621 = vpop.f32.mrb[0].mxu0
      %v4622 = vadd.f32 %v4461, %v4621
      %v4623 = vpop.f32.mrb[0].mxu0
      %4624 = vmatprep.mubr.bf16.mxu0 0
      %4625 = vmatmul.mubr.bf16.gmra.mrb[0].mxu0 %v950
      %v4626 = vpop.f32.mrb[0].mxu0
      %v4627 = vadd.f32 %v4466, %v4626
      %v4628 = vpop.f32.mrb[0].mxu0
      %v4629 = vpop.f32.mrb[0].mxu0
      %v4630 = vadd.f32 %v4469, %v4629
      %v4631 = vpop.f32.mrb[0].mxu0
      %4632 = vmatprep.mubr.bf16.mxu0 0
      %4633 = vmatmul.mubr.bf16.gmra.mrb[0].mxu0 %v955
      %v4634 = vpop.f32.mrb[0].mxu0
      %v4635 = vadd.f32 %v4474, %v4634
      %v4636 = vpop.f32.mrb[0].mxu0
      %v4637 = vpop.f32.mrb[0].mxu0
      %v4638 = vadd.f32 %v4477, %v4637
      %v4639 = vpop.f32.mrb[0].mxu0
      %4640 = vmatprep.mubr.bf16.mxu0 0
      %4641 = vmatmul.mubr.bf16.gmra.mrb[0].mxu0 %v960
      %v4642 = vpop.f32.mrb[0].mxu0
      %v4643 = vadd.f32 %v4482, %v4642
      %v4644 = vpop.f32.mrb[0].mxu0
      %v4645 = vpop.f32.mrb[0].mxu0
      %v4646 = vadd.f32 %v4485, %v4645
      %v4647 = vpop.f32.mrb[0].mxu0
      %4648 = vmatprep.mubr.bf16.mxu0 0
      %4649 = vmatmul.mubr.bf16.gmra.mrb[0].mxu0 %v965
      %v4650 = vpop.f32.mrb[0].mxu0
      %v4651 = vadd.f32 %v4490, %v4650
      %v4652 = vpop.f32.mrb[0].mxu0
      %v4653 = vpop.f32.mrb[0].mxu0
      %v4654 = vadd.f32 %v4493, %v4653
      %v4655 = vpop.f32.mrb[0].mxu0
      %4656 = vmatprep.mubr.bf16.mxu0 0
      %4657 = vmatmul.mubr.bf16.gmra.mrb[0].mxu0 %v970
      %v4658 = vpop.f32.mrb[0].mxu0
      %v4659 = vadd.f32 %v4498, %v4658
      %v4660 = vpop.f32.mrb[0].mxu0
      %v4661 = vpop.f32.mrb[0].mxu0
      %v4662 = vadd.f32 %v4501, %v4661
      %v4663 = vpop.f32.mrb[0].mxu0
      %4664 = vmatprep.mubr.bf16.mxu0 0
      %4665 = vmatmul.mubr.bf16.gmra.mrb[0].mxu0 %v975
      %v4666 = vpop.f32.mrb[0].mxu0
      %v4667 = vadd.f32 %v4506, %v4666
      %v4668 = vpop.f32.mrb[0].mxu0
      %v4669 = vpop.f32.mrb[0].mxu0
      %v4670 = vadd.f32 %v4509, %v4669
      %v4671 = vpop.f32.mrb[0].mxu0
      %4672 = vmatprep.mubr.bf16.mxu0 0
      %4673 = vmatmul.mubr.bf16.gmra.mrb[0].mxu0 %v980
      %v4674 = vpop.f32.mrb[0].mxu0
      %v4675 = vadd.f32 %v4514, %v4674
      %v4676 = vpop.f32.mrb[0].mxu0
      %v4677 = vpop.f32.mrb[0].mxu0
      %v4678 = vadd.f32 %v4517, %v4677
      %v4679 = vpop.f32.mrb[0].mxu0
      %4680 = vdwg.mxu0
      %4681 = vst [vmem:[%s195] sm:$0xff] %v4555
      %4682 = vst [vmem:[%s195 + $0x8] sm:$0xff] %v4558
      %4683 = vst [vmem:[%s195 + $0x10] sm:$0xff] %v4563
      %4684 = vst [vmem:[%s195 + $0x18] sm:$0xff] %v4566
      %4685 = vst [vmem:[%s195 + $0x20] sm:$0xff] %v4571
      %4686 = vst [vmem:[%s195 + $0x28] sm:$0xff] %v4574
      %4687 = vst [vmem:[%s195 + $0x30] sm:$0xff] %v4579
      %4688 = vst [vmem:[%s195 + $0x38] sm:$0xff] %v4582
      %4689 = vst [vmem:[%s195 + $0x40] sm:$0xff] %v4587
      %4690 = vst [vmem:[%s195 + $0x48] sm:$0xff] %v4590
      %4691 = vst [vmem:[%s195 + $0x50] sm:$0xff] %v4595
      %4692 = vst [vmem:[%s195 + $0x58] sm:$0xff] %v4598
      %4693 = vst [vmem:[%s195 + $0x60] sm:$0xff] %v4603
      %4694 = vst [vmem:[%s195 + $0x68] sm:$0xff] %v4606
      %4695 = vst [vmem:[%s195 + $0x70] sm:$0xff] %v4611
      %4696 = vst [vmem:[%s195 + $0x78] sm:$0xff] %v4614
      %4697 = vst [vmem:[%s195 + $0x80] sm:$0xff] %v4619
      %4698 = vst [vmem:[%s195 + $0x88] sm:$0xff] %v4622
      %4699 = vst [vmem:[%s195 + $0x90] sm:$0xff] %v4627
      %4700 = vst [vmem:[%s195 + $0x98] sm:$0xff] %v4630
      %4701 = vst [vmem:[%s195 + $0xa0] sm:$0xff] %v4635
      %4702 = vst [vmem:[%s195 + $0xa8] sm:$0xff] %v4638
      %4703 = vst [vmem:[%s195 + $0xb0] sm:$0xff] %v4643
      %4704 = vst [vmem:[%s195 + $0xb8] sm:$0xff] %v4646
      %4705 = vst [vmem:[%s195 + $0xc0] sm:$0xff] %v4651
      %4706 = vst [vmem:[%s195 + $0xc8] sm:$0xff] %v4654
      %4707 = vst [vmem:[%s195 + $0xd0] sm:$0xff] %v4659
      %4708 = vst [vmem:[%s195 + $0xd8] sm:$0xff] %v4662
      %4709 = vst [vmem:[%s195 + $0xe0] sm:$0xff] %v4667
      %4710 = vst [vmem:[%s195 + $0xe8] sm:$0xff] %v4670
      %4711 = vst [vmem:[%s195 + $0xf0] sm:$0xff] %v4675
      %4712 = vst [vmem:[%s195 + $0xf8] sm:$0xff] %v4678
      %p4713 = scmp.eq.s32.totalorder %s16, 0
      // Predicated region
      $region33: #{resblock_pallas.3} parent=31 // pred_check
        %p4714 = pneg %p4713
      $region34: #{resblock_pallas.3} parent=31 // pred_check_branch
        %4716 = sbr.rel (%p4714) target = $region36
      $region35: #{resblock_pallas.3} parent=31 // pred_region
        %4717 = vst [vmem:[%s4] sm:$0x3] 0.0
      $region36: #{resblock_pallas.3} parent=31 // pred_fallthru
        _
      %v4718 = vld [vmem:[%s4] sm:$0x3]
      %v4719 = vadd.f32 %v4555, %v4558
      %v4720 = vadd.f32 %v4719, %v4563
      %v4721 = vadd.f32 %v4720, %v4566
      %v4722 = vadd.f32 %v4721, %v4571
      %v4723 = vadd.f32 %v4722, %v4574
      %v4724 = vadd.f32 %v4723, %v4579
      %v4725 = vadd.f32 %v4724, %v4582
      %v4726 = vadd.f32 %v4725, %v4587
      %v4727 = vadd.f32 %v4726, %v4590
      %v4728 = vadd.f32 %v4727, %v4595
      %v4729 = vadd.f32 %v4728, %v4598
      %v4730 = vadd.f32 %v4729, %v4603
      %v4731 = vadd.f32 %v4730, %v4606
      %v4732 = vadd.f32 %v4731, %v4611
      %v4733 = vadd.f32 %v4732, %v4614
      %v4734 = vadd.f32 %v4733, %v4619
      %v4735 = vadd.f32 %v4734, %v4622
      %v4736 = vadd.f32 %v4735, %v4627
      %v4737 = vadd.f32 %v4736, %v4630
      %v4738 = vadd.f32 %v4737, %v4635
      %v4739 = vadd.f32 %v4738, %v4638
      %v4740 = vadd.f32 %v4739, %v4643
      %v4741 = vadd.f32 %v4740, %v4646
      %v4742 = vadd.f32 %v4741, %v4651
      %v4743 = vadd.f32 %v4742, %v4654
      %v4744 = vadd.f32 %v4743, %v4659
      %v4745 = vadd.f32 %v4744, %v4662
      %v4746 = vadd.f32 %v4745, %v4667
      %v4747 = vadd.f32 %v4746, %v4670
      %v4748 = vadd.f32 %v4747, %v4675
      %v4749 = vadd.f32 %v4748, %v4678
      %v4750 = vrot.slane %v4749, 4
      %v4751 = vadd.f32 %v4749, %v4750
      %v4752 = vrot.slane %v4751, 2
      %v4753 = vadd.f32 %v4751, %v4752
      %v4754 = vrot.slane %v4753, 1
      %v4755 = vadd.f32 %v4753, %v4754
      %v4756 = vmul.f32 %v4555, %v4555
      %v4757 = vmul.f32 %v4558, %v4558
      %v4758 = vmul.f32 %v4563, %v4563
      %v4759 = vmul.f32 %v4566, %v4566
      %v4760 = vmul.f32 %v4571, %v4571
      %v4761 = vmul.f32 %v4574, %v4574
      %v4762 = vmul.f32 %v4579, %v4579
      %v4763 = vmul.f32 %v4582, %v4582
      %v4764 = vmul.f32 %v4587, %v4587
      %v4765 = vmul.f32 %v4590, %v4590
      %v4766 = vmul.f32 %v4595, %v4595
      %v4767 = vmul.f32 %v4598, %v4598
      %v4768 = vmul.f32 %v4603, %v4603
      %v4769 = vmul.f32 %v4606, %v4606
      %v4770 = vmul.f32 %v4611, %v4611
      %v4771 = vmul.f32 %v4614, %v4614
      %v4772 = vmul.f32 %v4619, %v4619
      %v4773 = vmul.f32 %v4622, %v4622
      %v4774 = vmul.f32 %v4627, %v4627
      %v4775 = vmul.f32 %v4630, %v4630
      %v4776 = vmul.f32 %v4635, %v4635
      %v4777 = vmul.f32 %v4638, %v4638
      %v4778 = vmul.f32 %v4643, %v4643
      %v4779 = vmul.f32 %v4646, %v4646
      %v4780 = vmul.f32 %v4651, %v4651
      %v4781 = vmul.f32 %v4654, %v4654
      %v4782 = vmul.f32 %v4659, %v4659
      %v4783 = vmul.f32 %v4662, %v4662
      %v4784 = vmul.f32 %v4667, %v4667
      %v4785 = vmul.f32 %v4670, %v4670
      %v4786 = vmul.f32 %v4675, %v4675
      %v4787 = vmul.f32 %v4678, %v4678
      %v4788 = vadd.f32 %v4756, %v4757
      %v4789 = vadd.f32 %v4788, %v4758
      %v4790 = vadd.f32 %v4789, %v4759
      %v4791 = vadd.f32 %v4790, %v4760
      %v4792 = vadd.f32 %v4791, %v4761
      %v4793 = vadd.f32 %v4792, %v4762
      %v4794 = vadd.f32 %v4793, %v4763
      %v4795 = vadd.f32 %v4794, %v4764
      %v4796 = vadd.f32 %v4795, %v4765
      %v4797 = vadd.f32 %v4796, %v4766
      %v4798 = vadd.f32 %v4797, %v4767
      %v4799 = vadd.f32 %v4798, %v4768
      %v4800 = vadd.f32 %v4799, %v4769
      %v4801 = vadd.f32 %v4800, %v4770
      %v4802 = vadd.f32 %v4801, %v4771
      %v4803 = vadd.f32 %v4802, %v4772
      %v4804 = vadd.f32 %v4803, %v4773
      %v4805 = vadd.f32 %v4804, %v4774
      %v4806 = vadd.f32 %v4805, %v4775
      %v4807 = vadd.f32 %v4806, %v4776
      %v4808 = vadd.f32 %v4807, %v4777
      %v4809 = vadd.f32 %v4808, %v4778
      %v4810 = vadd.f32 %v4809, %v4779
      %v4811 = vadd.f32 %v4810, %v4780
      %v4812 = vadd.f32 %v4811, %v4781
      %v4813 = vadd.f32 %v4812, %v4782
      %v4814 = vadd.f32 %v4813, %v4783
      %v4815 = vadd.f32 %v4814, %v4784
      %v4816 = vadd.f32 %v4815, %v4785
      %v4817 = vadd.f32 %v4816, %v4786
      %v4818 = vadd.f32 %v4817, %v4787
      %v4819 = vrot.slane %v4818, 4
      %v4820 = vadd.f32 %v4818, %v4819
      %v4821 = vrot.slane %v4820, 2
      %v4822 = vadd.f32 %v4820, %v4821
      %v4823 = vrot.slane %v4822, 1
      %v4824 = vadd.f32 %v4822, %v4823
      %vm4825 = vcmask 1040384
      %v4826 = vsel %vm4825, %v4755, %v4824
      %v4827 = vadd.f32 %v4718, %v4826
      %4828 = vst [vmem:[%s4] sm:$0x3] %v4827
      %p4829 = scmp.lt.s32.totalorder %s16, 1
      %s4830 = scalar_select %p4829, %s16, 1
      %s4831 = smul.addr %s4830, 32
      %s4832 = smul.addr %s4831, 8
      %s4833 = scalar_lea.vmem %s3, %s4832
      // Predicated region
      $region37: #{resblock_pallas.3} parent=31 // pred_check
        %p4834 = pneg %p102
      $region38: #{resblock_pallas.3} parent=31 // pred_check_branch
        %4836 = sbr.rel (%p4834) target = $region40
      $region39: #{resblock_pallas.3} parent=31 // pred_region
        _
      $region40: #{resblock_pallas.3} parent=31 // pred_fallthru
        _
      // Predicated region
      $region41: #{resblock_pallas.3} parent=31 // pred_check
        %p4837 = pneg %p123
      $region42: #{resblock_pallas.3} parent=31 // pred_check_branch
        %4839 = sbr.rel (%p4837) target = $region44
      $region43: #{resblock_pallas.3} parent=31 // pred_region
        _
      $region44: #{resblock_pallas.3} parent=31 // pred_fallthru
        _
      // Predicated region
      $region45: #{resblock_pallas.3} parent=31 // pred_check
        %p4840 = pneg %p123
      $region46: #{resblock_pallas.3} parent=31 // pred_check_branch
        %4842 = sbr.rel (%p4840) target = $region48
      $region47: #{resblock_pallas.3} parent=31 // pred_region
        _
      $region48: #{resblock_pallas.3} parent=31 // pred_fallthru
        _
    $region32: #{resblock_pallas.3} parent=5 // pred_fallthru
      _
    %p4843 = scmp.le.s32.totalorder 2, %s11
    // Predicated region
    $region49: #{resblock_pallas.3} parent=5 // pred_check
      %p4844 = pneg %p4843
    $region50: #{resblock_pallas.3} parent=5 // pred_check_branch
      %4846 = sbr.rel (%p4844) target = $region52
    $region51: #{resblock_pallas.3} parent=5 // pred_region
      %s4847 = ssub.s32 %s11, 2
      // Predicated region
      $region53: #{resblock_pallas.3} parent=51 // pred_check
        %p4848 = pneg %p108
      $region54: #{resblock_pallas.3} parent=51 // pred_check_branch
        %4850 = sbr.rel (%p4848) target = $region56
      $region55: #{resblock_pallas.3} parent=51 // pred_region
        %p4851 = scmp.lt.s32.totalorder %s17, 1
        %s4852 = scalar_select %p4851, %s17, 1
        %s4853 = smul.addr %s4852, 32
        %s4854 = smul.addr %s4853, 8
        %s4855 = scalar_lea.vmem %s3, %s4854
      $region56: #{resblock_pallas.3} parent=51 // pred_fallthru
        _
    $region52: #{resblock_pallas.3} parent=5 // pred_fallthru
      _
  $region6: #{resblock_pallas.3} parent=0 // loop_footer
    %s15 = sadd.s32 1, %s11
  $region7: #{resblock_pallas.3} parent=0 // loop_footer_branch
    %10 = sbr.rel target = $region3
  $region8: #{resblock_pallas.3} parent=0 // loop_exit
    _

</llo_original>
